<compile_context>
chip_gen: v6e
topology: v6e:2x2x1
jax: 0.10.0
libtpu: 0.0.40
codegen_flags: <defaults>
</compile_context>

<pallas_src>
import numpy as np

import jax
import jax.numpy as jnp
from jax.experimental import pallas as pl
from jax.experimental.pallas import tpu as pltpu


# --------------------------------------------------------------------------
# fused forward kernel (one grid step = one batch block of `tb` images)
# --------------------------------------------------------------------------
def _net_kernel(x_ref, t1_ref, t2_ref, wf1_ref, wf2_ref,
                b1_ref, b2_ref, bf1_ref, bf2_ref, o_ref):
    # x_ref  : (28, tb, 28) bf16  input images, laid out (h, n, w)
    # t1_ref : (140, 240)   bf16  conv1 Toeplitz, rows kh*28+iw, cols ow*10+oc
    # t2_ref : (5, 240, 160) bf16 conv2 per-kh Toeplitz, cols ow2*20+oc2
    # wf1_ref: (4, 160, 50) bf16  fc1 per-ph2 weights (flatten + stride folded)
    # wf2_ref: (50, 10)     bf16  fc2 weights (transposed)
    # b*_ref : f32 biases, pre-tiled to match the lane layouts
    # o_ref  : (tb, 10)     f32   log-probabilities
    tb = x_ref.shape[1]
    xb = x_ref[...]                                            # (28, tb, 28) bf16

    # ---- conv1 (1->10, k=5): single fused MXU matmul, K = 5*28 = 140 -------
    lhs = jnp.concatenate([xb[kh:kh + 24] for kh in range(5)], axis=-1)
    r1 = jnp.dot(lhs.reshape(24 * tb, 140), t1_ref[...],
                 preferred_element_type=jnp.float32)           # (24*tb, 240)
    # rows = oh*tb + n, cols = ow*10 + oc

    # ---- 2x2 max-pool + bias + ReLU (bias commutes with max) ---------------
    r1 = r1.reshape(12, 2, tb, 240)
    y = jnp.maximum(r1[:, 0], r1[:, 1])                        # pool oh -> (12, tb, 240)
    # pool ow: shift lanes by one channel-group (10) and max; valid results
    # land at even ow-groups, the odd groups are garbage and get zero weights.
    y = jnp.maximum(y, jnp.concatenate([y[..., 10:], y[..., :10]], axis=-1))
    a1 = jnp.maximum(y + b1_ref[...], 0.0).astype(jnp.bfloat16)  # (12, tb, 240)

    # ---- conv2 (10->20, k=5): 5 per-kh Toeplitz matmuls, K = 240 -----------
    # TODO(synk): Dropout2d runs as identity (inference mode).
    acc2 = None
    for kh in range(5):
        part = jnp.dot(a1[kh:kh + 8].reshape(8 * tb, 240), t2_ref[kh],
                       preferred_element_type=jnp.float32)     # (8*tb, 160)
        acc2 = part if acc2 is None else acc2 + part
    # rows = oh2*tb + n, cols = ow2*20 + oc2

    # ---- 2x2 max-pool + bias + ReLU -----------------------------------------
    r2 = acc2.reshape(4, 2, tb, 160)
    z = jnp.maximum(r2[:, 0], r2[:, 1])                        # pool oh2 -> (4, tb, 160)
    z = jnp.maximum(z, jnp.concatenate([z[..., 20:], z[..., :20]], axis=-1))
    a2 = jnp.maximum(z + b2_ref[...], 0.0).astype(jnp.bfloat16)  # (4, tb, 160)
    # valid pooled values at cols 40*pw2 + oc2 (even ow2-groups)

    # ---- fc1 (320->50): 4 matmuls of K = 160 (NCHW flatten folded in) ------
    h = None
    for ph2 in range(4):
        part = jnp.dot(a2[ph2], wf1_ref[ph2],
                       preferred_element_type=jnp.float32)     # (tb, 50)
        h = part if h is None else h + part
    h = jnp.maximum(h + bf1_ref[...], 0.0).astype(jnp.bfloat16)

    # TODO(synk): F.dropout runs as identity (inference mode).

    # ---- fc2 (50->10) + log_softmax -----------------------------------------
    logits = jnp.dot(h, wf2_ref[...],
                     preferred_element_type=jnp.float32) + bf2_ref[...]
    s = logits - jnp.max(logits, axis=-1, keepdims=True)
    o_ref[...] = s - jnp.log(jnp.sum(jnp.exp(s), axis=-1, keepdims=True))


# --------------------------------------------------------------------------
# parameter preparation (host-side, one time)
# --------------------------------------------------------------------------
def init_params(key):
    ks = jax.random.split(key, 8)
    p = {}
    p["w_conv1"] = 0.1 * jax.random.normal(ks[0], (10, 1, 5, 5), jnp.float32)
    p["b_conv1"] = 0.1 * jax.random.normal(ks[1], (10,), jnp.float32)
    p["w_conv2"] = 0.1 * jax.random.normal(ks[2], (20, 10, 5, 5), jnp.float32)
    p["b_conv2"] = 0.1 * jax.random.normal(ks[3], (20,), jnp.float32)
    p["w_fc1"] = 0.05 * jax.random.normal(ks[4], (50, 320), jnp.float32)   # (out, in)
    p["b_fc1"] = 0.05 * jax.random.normal(ks[5], (50,), jnp.float32)
    p["w_fc2"] = 0.05 * jax.random.normal(ks[6], (10, 50), jnp.float32)    # (out, in)
    p["b_fc2"] = 0.05 * jax.random.normal(ks[7], (10,), jnp.float32)
    return p


def prepare_kernel_params(params):
    """Repack PyTorch-layout parameters into the kernel's weight layouts."""
    w1 = np.asarray(params["w_conv1"], np.float32)     # (10, 1, 5, 5)
    w2 = np.asarray(params["w_conv2"], np.float32)     # (20, 10, 5, 5)
    wf1 = np.asarray(params["w_fc1"], np.float32)      # (50, 320), in = c*16 + h*4 + w
    wf2 = np.asarray(params["w_fc2"], np.float32)      # (10, 50)

    # conv1 fused width-Toeplitz: T1[kh*28 + iw, ow*10 + oc] = w1[oc, 0, kh, iw - ow]
    T1 = np.zeros((5, 28, 24, 10), np.float32)
    for kh in range(5):
        for kw in range(5):
            for ow in range(24):
                T1[kh, ow + kw, ow, :] = w1[:, 0, kh, kw]
    T1 = T1.reshape(140, 240)

    # conv2 per-kh Toeplitz: T2[kh, 20*pw + c, 20*ow2 + oc2] = w2[oc2, c, kh, pw - ow2];
    # rows 20*pw + 10..19 (pool garbage columns) stay zero.
    T2 = np.zeros((5, 12, 20, 8, 20), np.float32)
    for kh in range(5):
        for kw in range(5):
            for ow2 in range(8):
                T2[kh, ow2 + kw, :10, ow2, :] = w2[:, :, kh, kw].T     # (c=10, oc2=20)
    T2 = T2.reshape(5, 240, 160)

    # fc1 with pool stride + NCHW flatten folded in:
    # Wf1[ph2, 40*pw2 + oc2, o] = wf1[o, oc2*16 + ph2*4 + pw2]; odd ow2-groups zero.
    Wf1 = np.zeros((4, 8, 20, 50), np.float32)
    wf1_r = wf1.reshape(50, 20, 4, 4)                   # (o, c, h, w)
    for ph2 in range(4):
        for pw2 in range(4):
            Wf1[ph2, 2 * pw2, :, :] = wf1_r[:, :, ph2, pw2].T          # (c=20, o=50)
    Wf1 = Wf1.reshape(4, 160, 50)

    b1 = np.asarray(params["b_conv1"], np.float32)
    b2 = np.asarray(params["b_conv2"], np.float32)

    return {
        "t1": jnp.asarray(T1, jnp.bfloat16),
        "t2": jnp.asarray(T2, jnp.bfloat16),
        "wf1": jnp.asarray(Wf1, jnp.bfloat16),
        "wf2": jnp.asarray(wf2.T, jnp.bfloat16),                        # (50, 10)
        "b1": jnp.asarray(np.tile(b1, 24).reshape(1, 240), jnp.float32),
        "b2": jnp.asarray(np.tile(b2, 8).reshape(1, 160), jnp.float32),
        "bf1": jnp.asarray(np.asarray(params["b_fc1"], np.float32).reshape(1, 50)),
        "bf2": jnp.asarray(np.asarray(params["b_fc2"], np.float32).reshape(1, 10)),
    }


# --------------------------------------------------------------------------
# wrapper
# --------------------------------------------------------------------------
def _round_up(a, b):
    return (a + b - 1) // b * b


def net_forward(kp, x, tb=256):
    """x: (N, 1, 28, 28) float32 -> (N, 10) log-probabilities."""
    n = x.shape[0]
    x3 = x.reshape(n, 28, 28).astype(jnp.bfloat16)      # cast once at the HBM boundary

    # Batch tile: multiple of 16 (bf16 sublane tiling); prefer >=2 grid steps
    # so v7x's two TensorCores both get work via the "parallel" batch axis.
    n16 = _round_up(n, 16)
    tb = max(16, min(_round_up(tb, 16), n16))
    if 32 <= n16 <= tb:
        tb = _round_up((n16 + 1) // 2, 16)
    n_pad = _round_up(n, tb)

    if n_pad != n:
        x3 = jnp.concatenate(
            [x3, jnp.zeros((n_pad - n, 28, 28), jnp.bfloat16)], axis=0)

    # (h, n, w): the cast above fuses with this transpose into one XLA pass,
    # so the extra input traffic is a single bf16 write (kernel DMA is bf16).
    xt = jnp.transpose(x3, (1, 0, 2))                   # (28, n_pad, 28)

    out = pl.pallas_call(
        _net_kernel,
        out_shape=jax.ShapeDtypeStruct((n_pad, 10), jnp.float32),
        grid=(n_pad // tb,),
        in_specs=[
            pl.BlockSpec((28, tb, 28), lambda i: (0, i, 0)),   # input block
            pl.BlockSpec((140, 240), lambda i: (0, 0)),        # conv1 Toeplitz
            pl.BlockSpec((5, 240, 160), lambda i: (0, 0, 0)),  # conv2 per-kh Toeplitz
            pl.BlockSpec((4, 160, 50), lambda i: (0, 0, 0)),   # fc1 (repacked)
            pl.BlockSpec((50, 10), lambda i: (0, 0)),          # fc2
            pl.BlockSpec((1, 240), lambda i: (0, 0)),          # b_conv1 (tiled)
            pl.BlockSpec((1, 160), lambda i: (0, 0)),          # b_conv2 (tiled)
            pl.BlockSpec((1, 50), lambda i: (0, 0)),           # b_fc1
            pl.BlockSpec((1, 10), lambda i: (0, 0)),           # b_fc2
        ],
        out_specs=pl.BlockSpec((tb, 10), lambda i: (i, 0)),
        compiler_params=pltpu.CompilerParams(
            dimension_semantics=("parallel",),
            vmem_limit_bytes=48 * 1024 * 1024),
    )(xt, kp["t1"], kp["t2"], kp["wf1"], kp["wf2"],
      kp["b1"], kp["b2"], kp["bf1"], kp["bf2"])

    return out[:n]


# --------------------------------------------------------------------------
# pure-JAX reference (f32) for validation
# --------------------------------------------------------------------------
def net_reference(params, x):
    def pool2(v):
        n, c, h, w = v.shape
        return jnp.max(v.reshape(n, c, h // 2, 2, w // 2, 2), axis=(3, 5))

    dn = ("NCHW", "OIHW", "NCHW")
    y = jax.lax.conv_general_dilated(x, params["w_conv1"], (1, 1), "VALID",
                                     dimension_numbers=dn)
    y = y + params["b_conv1"].reshape(1, 10, 1, 1)
    y = jnp.maximum(pool2(y), 0.0)
    y = jax.lax.conv_general_dilated(y, params["w_conv2"], (1, 1), "VALID",
                                     dimension_numbers=dn)
    y = y + params["b_conv2"].reshape(1, 20, 1, 1)
    y = jnp.maximum(pool2(y), 0.0)
    flat = y.reshape(y.shape[0], 320)
    h = jnp.maximum(flat @ params["w_fc1"].T + params["b_fc1"], 0.0)
    logits = h @ params["w_fc2"].T + params["b_fc2"]
    return jax.nn.log_softmax(logits, axis=1)


# --------------------------------------------------------------------------
if __name__ == "__main__":
    key = jax.random.PRNGKey(0)
    pkey, xkey = jax.random.split(key)
    params = init_params(pkey)
    kparams = prepare_kernel_params(params)

    # MNIST-shaped inputs (fc1's 320 hard-codes 28x28x1); batch 64 -> 2 grid
    # steps of 32 images, exercising the parallel batch grid.
    x = jax.random.normal(xkey, (64, 1, 28, 28), jnp.float32)

    fwd = jax.jit(lambda kp, xx: net_forward(kp, xx))
    y = jax.block_until_ready(fwd(kparams, x))

    assert y.shape == (64, 10)
    # log_softmax rows must (approximately) exp-sum to 1
    assert bool(jnp.allclose(jnp.sum(jnp.exp(y), axis=1), 1.0, atol=1e-3))

    # validate against a pure-JAX f32 reference (kernel uses bf16 MXU inputs)
    y_ref = net_reference(params, x)
    max_err = float(jnp.max(jnp.abs(y - y_ref)))
    assert max_err < 5e-2, f"mismatch vs reference: max |err| = {max_err}"

    print("KERNEL_OK")
</pallas_src>

<mosaic_0001>
module attributes {stable_mosaic.version = 11 : i64} {
  func.func @_net_kernel(%arg0: i32, %arg1: memref<28x32x28xbf16, #tpu.memory_space<vmem>>, %arg2: memref<140x240xbf16, #tpu.memory_space<vmem>>, %arg3: memref<5x240x160xbf16, #tpu.memory_space<vmem>>, %arg4: memref<4x160x50xbf16, #tpu.memory_space<vmem>>, %arg5: memref<50x10xbf16, #tpu.memory_space<vmem>>, %arg6: memref<1x240xf32, #tpu.memory_space<vmem>>, %arg7: memref<1x160xf32, #tpu.memory_space<vmem>>, %arg8: memref<1x50xf32, #tpu.memory_space<vmem>>, %arg9: memref<1x10xf32, #tpu.memory_space<vmem>>, %arg10: memref<32x10xf32, #tpu.memory_space<vmem>>) attributes {dimension_semantics = [#tpu.dimension_semantics<parallel>], iteration_bounds = array<i64: 2>, scalar_prefetch = 0 : i64, scratch_operands = 0 : i64, tpu.core_type = #tpu.core_type<tc>, window_params = [{transform_indices = @transform_0, window_bounds = array<i64: 28, 32, 28>}, {pipeline_mode = #tpu.pipeline_mode<synchronous>, transform_indices = @transform_1, window_bounds = array<i64: 140, 240>}, {pipeline_mode = #tpu.pipeline_mode<synchronous>, transform_indices = @transform_2, window_bounds = array<i64: 5, 240, 160>}, {pipeline_mode = #tpu.pipeline_mode<synchronous>, transform_indices = @transform_3, window_bounds = array<i64: 4, 160, 50>}, {pipeline_mode = #tpu.pipeline_mode<synchronous>, transform_indices = @transform_4, window_bounds = array<i64: 50, 10>}, {pipeline_mode = #tpu.pipeline_mode<synchronous>, transform_indices = @transform_5, window_bounds = array<i64: 1, 240>}, {pipeline_mode = #tpu.pipeline_mode<synchronous>, transform_indices = @transform_6, window_bounds = array<i64: 1, 160>}, {pipeline_mode = #tpu.pipeline_mode<synchronous>, transform_indices = @transform_7, window_bounds = array<i64: 1, 50>}, {pipeline_mode = #tpu.pipeline_mode<synchronous>, transform_indices = @transform_8, window_bounds = array<i64: 1, 10>}, {transform_indices = @transform_9, window_bounds = array<i64: 32, 10>}]} {
    %c0 = arith.constant 0 : index
    %c0_0 = arith.constant 0 : index
    %c0_1 = arith.constant 0 : index
    %0 = vector.load %arg1[%c0, %c0_0, %c0_1] : memref<28x32x28xbf16, #tpu.memory_space<vmem>>, vector<28x32x28xbf16>
    %1 = vector.extract_strided_slice %0 {offsets = [0, 0, 0], sizes = [24, 32, 28], strides = [1, 1, 1]} : vector<28x32x28xbf16> to vector<24x32x28xbf16>
    %2 = vector.extract_strided_slice %0 {offsets = [1, 0, 0], sizes = [24, 32, 28], strides = [1, 1, 1]} : vector<28x32x28xbf16> to vector<24x32x28xbf16>
    %3 = vector.extract_strided_slice %0 {offsets = [2, 0, 0], sizes = [24, 32, 28], strides = [1, 1, 1]} : vector<28x32x28xbf16> to vector<24x32x28xbf16>
    %4 = vector.extract_strided_slice %0 {offsets = [3, 0, 0], sizes = [24, 32, 28], strides = [1, 1, 1]} : vector<28x32x28xbf16> to vector<24x32x28xbf16>
    %5 = vector.extract_strided_slice %0 {offsets = [4, 0, 0], sizes = [24, 32, 28], strides = [1, 1, 1]} : vector<28x32x28xbf16> to vector<24x32x28xbf16>
    %6 = tpu.concatenate %1, %2, %3, %4, %5 in 2 : vector<24x32x28xbf16>, vector<24x32x28xbf16>, vector<24x32x28xbf16>, vector<24x32x28xbf16>, vector<24x32x28xbf16> -> vector<24x32x140xbf16>
    %7 = vector.shape_cast %6 : vector<24x32x140xbf16> to vector<768x140xbf16>
    %c0_2 = arith.constant 0 : index
    %c0_3 = arith.constant 0 : index
    %8 = vector.load %arg2[%c0_2, %c0_3] : memref<140x240xbf16, #tpu.memory_space<vmem>>, vector<140x240xbf16>
    %cst = arith.constant dense<0.000000e+00> : vector<768x240xf32>
    %9 = tpu.matmul %7, %8, %cst {dimension_numbers = #tpu.dot_dimension_numbers<[1], [0], [0], [1], [0, 0, 1, 1], [], []>} : vector<768x140xbf16>, vector<140x240xbf16>, vector<768x240xf32> -> vector<768x240xf32>
    %10 = vector.shape_cast %9 : vector<768x240xf32> to vector<12x2x32x240xf32>
    %11 = vector.extract_strided_slice %10 {offsets = [0, 0, 0, 0], sizes = [12, 1, 32, 240], strides = [1, 1, 1, 1]} : vector<12x2x32x240xf32> to vector<12x1x32x240xf32>
    %12 = vector.shape_cast %11 : vector<12x1x32x240xf32> to vector<12x32x240xf32>
    %13 = vector.extract_strided_slice %10 {offsets = [0, 1, 0, 0], sizes = [12, 1, 32, 240], strides = [1, 1, 1, 1]} : vector<12x2x32x240xf32> to vector<12x1x32x240xf32>
    %14 = vector.shape_cast %13 : vector<12x1x32x240xf32> to vector<12x32x240xf32>
    %15 = arith.maximumf %12, %14 : vector<12x32x240xf32>
    %16 = vector.extract_strided_slice %15 {offsets = [0, 0, 10], sizes = [12, 32, 230], strides = [1, 1, 1]} : vector<12x32x240xf32> to vector<12x32x230xf32>
    %17 = vector.extract_strided_slice %15 {offsets = [0, 0, 0], sizes = [12, 32, 10], strides = [1, 1, 1]} : vector<12x32x240xf32> to vector<12x32x10xf32>
    %18 = tpu.concatenate %16, %17 in 2 : vector<12x32x230xf32>, vector<12x32x10xf32> -> vector<12x32x240xf32>
    %19 = arith.maximumf %15, %18 : vector<12x32x240xf32>
    %c0_4 = arith.constant 0 : index
    %c0_5 = arith.constant 0 : index
    %20 = vector.load %arg6[%c0_4, %c0_5] : memref<1x240xf32, #tpu.memory_space<vmem>>, vector<1x240xf32>
    %21 = vector.shape_cast %20 : vector<1x240xf32> to vector<1x1x240xf32>
    %22 = vector.broadcast %21 : vector<1x1x240xf32> to vector<12x32x240xf32>
    %23 = arith.addf %19, %22 : vector<12x32x240xf32>
    %cst_6 = arith.constant 0.000000e+00 : f32
    %24 = vector.broadcast %cst_6 : f32 to vector<12x32x240xf32>
    %25 = arith.maximumf %23, %24 : vector<12x32x240xf32>
    %26 = arith.truncf %25 : vector<12x32x240xf32> to vector<12x32x240xbf16>
    %27 = vector.extract_strided_slice %26 {offsets = [0, 0, 0], sizes = [8, 32, 240], strides = [1, 1, 1]} : vector<12x32x240xbf16> to vector<8x32x240xbf16>
    %28 = vector.shape_cast %27 : vector<8x32x240xbf16> to vector<256x240xbf16>
    %c0_7 = arith.constant 0 : index
    %c0_8 = arith.constant 0 : index
    %c0_9 = arith.constant 0 : index
    %29 = vector.load %arg3[%c0_7, %c0_8, %c0_9] : memref<5x240x160xbf16, #tpu.memory_space<vmem>>, vector<1x240x160xbf16>
    %30 = vector.shape_cast %29 : vector<1x240x160xbf16> to vector<240x160xbf16>
    %cst_10 = arith.constant dense<0.000000e+00> : vector<256x160xf32>
    %31 = tpu.matmul %28, %30, %cst_10 {dimension_numbers = #tpu.dot_dimension_numbers<[1], [0], [0], [1], [0, 0, 1, 1], [], []>} : vector<256x240xbf16>, vector<240x160xbf16>, vector<256x160xf32> -> vector<256x160xf32>
    %32 = vector.extract_strided_slice %26 {offsets = [1, 0, 0], sizes = [8, 32, 240], strides = [1, 1, 1]} : vector<12x32x240xbf16> to vector<8x32x240xbf16>
    %33 = vector.shape_cast %32 : vector<8x32x240xbf16> to vector<256x240xbf16>
    %c1 = arith.constant 1 : index
    %c0_11 = arith.constant 0 : index
    %c0_12 = arith.constant 0 : index
    %34 = vector.load %arg3[%c1, %c0_11, %c0_12] : memref<5x240x160xbf16, #tpu.memory_space<vmem>>, vector<1x240x160xbf16>
    %35 = vector.shape_cast %34 : vector<1x240x160xbf16> to vector<240x160xbf16>
    %cst_13 = arith.constant dense<0.000000e+00> : vector<256x160xf32>
    %36 = tpu.matmul %33, %35, %cst_13 {dimension_numbers = #tpu.dot_dimension_numbers<[1], [0], [0], [1], [0, 0, 1, 1], [], []>} : vector<256x240xbf16>, vector<240x160xbf16>, vector<256x160xf32> -> vector<256x160xf32>
    %37 = arith.addf %31, %36 : vector<256x160xf32>
    %38 = vector.extract_strided_slice %26 {offsets = [2, 0, 0], sizes = [8, 32, 240], strides = [1, 1, 1]} : vector<12x32x240xbf16> to vector<8x32x240xbf16>
    %39 = vector.shape_cast %38 : vector<8x32x240xbf16> to vector<256x240xbf16>
    %c2 = arith.constant 2 : index
    %c0_14 = arith.constant 0 : index
    %c0_15 = arith.constant 0 : index
    %40 = vector.load %arg3[%c2, %c0_14, %c0_15] : memref<5x240x160xbf16, #tpu.memory_space<vmem>>, vector<1x240x160xbf16>
    %41 = vector.shape_cast %40 : vector<1x240x160xbf16> to vector<240x160xbf16>
    %cst_16 = arith.constant dense<0.000000e+00> : vector<256x160xf32>
    %42 = tpu.matmul %39, %41, %cst_16 {dimension_numbers = #tpu.dot_dimension_numbers<[1], [0], [0], [1], [0, 0, 1, 1], [], []>} : vector<256x240xbf16>, vector<240x160xbf16>, vector<256x160xf32> -> vector<256x160xf32>
    %43 = arith.addf %37, %42 : vector<256x160xf32>
    %44 = vector.extract_strided_slice %26 {offsets = [3, 0, 0], sizes = [8, 32, 240], strides = [1, 1, 1]} : vector<12x32x240xbf16> to vector<8x32x240xbf16>
    %45 = vector.shape_cast %44 : vector<8x32x240xbf16> to vector<256x240xbf16>
    %c3 = arith.constant 3 : index
    %c0_17 = arith.constant 0 : index
    %c0_18 = arith.constant 0 : index
    %46 = vector.load %arg3[%c3, %c0_17, %c0_18] : memref<5x240x160xbf16, #tpu.memory_space<vmem>>, vector<1x240x160xbf16>
    %47 = vector.shape_cast %46 : vector<1x240x160xbf16> to vector<240x160xbf16>
    %cst_19 = arith.constant dense<0.000000e+00> : vector<256x160xf32>
    %48 = tpu.matmul %45, %47, %cst_19 {dimension_numbers = #tpu.dot_dimension_numbers<[1], [0], [0], [1], [0, 0, 1, 1], [], []>} : vector<256x240xbf16>, vector<240x160xbf16>, vector<256x160xf32> -> vector<256x160xf32>
    %49 = arith.addf %43, %48 : vector<256x160xf32>
    %50 = vector.extract_strided_slice %26 {offsets = [4, 0, 0], sizes = [8, 32, 240], strides = [1, 1, 1]} : vector<12x32x240xbf16> to vector<8x32x240xbf16>
    %51 = vector.shape_cast %50 : vector<8x32x240xbf16> to vector<256x240xbf16>
    %c4 = arith.constant 4 : index
    %c0_20 = arith.constant 0 : index
    %c0_21 = arith.constant 0 : index
    %52 = vector.load %arg3[%c4, %c0_20, %c0_21] : memref<5x240x160xbf16, #tpu.memory_space<vmem>>, vector<1x240x160xbf16>
    %53 = vector.shape_cast %52 : vector<1x240x160xbf16> to vector<240x160xbf16>
    %cst_22 = arith.constant dense<0.000000e+00> : vector<256x160xf32>
    %54 = tpu.matmul %51, %53, %cst_22 {dimension_numbers = #tpu.dot_dimension_numbers<[1], [0], [0], [1], [0, 0, 1, 1], [], []>} : vector<256x240xbf16>, vector<240x160xbf16>, vector<256x160xf32> -> vector<256x160xf32>
    %55 = arith.addf %49, %54 : vector<256x160xf32>
    %56 = vector.shape_cast %55 : vector<256x160xf32> to vector<4x2x32x160xf32>
    %57 = vector.extract_strided_slice %56 {offsets = [0, 0, 0, 0], sizes = [4, 1, 32, 160], strides = [1, 1, 1, 1]} : vector<4x2x32x160xf32> to vector<4x1x32x160xf32>
    %58 = vector.shape_cast %57 : vector<4x1x32x160xf32> to vector<4x32x160xf32>
    %59 = vector.extract_strided_slice %56 {offsets = [0, 1, 0, 0], sizes = [4, 1, 32, 160], strides = [1, 1, 1, 1]} : vector<4x2x32x160xf32> to vector<4x1x32x160xf32>
    %60 = vector.shape_cast %59 : vector<4x1x32x160xf32> to vector<4x32x160xf32>
    %61 = arith.maximumf %58, %60 : vector<4x32x160xf32>
    %62 = vector.extract_strided_slice %61 {offsets = [0, 0, 20], sizes = [4, 32, 140], strides = [1, 1, 1]} : vector<4x32x160xf32> to vector<4x32x140xf32>
    %63 = vector.extract_strided_slice %61 {offsets = [0, 0, 0], sizes = [4, 32, 20], strides = [1, 1, 1]} : vector<4x32x160xf32> to vector<4x32x20xf32>
    %64 = tpu.concatenate %62, %63 in 2 : vector<4x32x140xf32>, vector<4x32x20xf32> -> vector<4x32x160xf32>
    %65 = arith.maximumf %61, %64 : vector<4x32x160xf32>
    %c0_23 = arith.constant 0 : index
    %c0_24 = arith.constant 0 : index
    %66 = vector.load %arg7[%c0_23, %c0_24] : memref<1x160xf32, #tpu.memory_space<vmem>>, vector<1x160xf32>
    %67 = vector.shape_cast %66 : vector<1x160xf32> to vector<1x1x160xf32>
    %68 = vector.broadcast %67 : vector<1x1x160xf32> to vector<4x32x160xf32>
    %69 = arith.addf %65, %68 : vector<4x32x160xf32>
    %cst_25 = arith.constant 0.000000e+00 : f32
    %70 = vector.broadcast %cst_25 : f32 to vector<4x32x160xf32>
    %71 = arith.maximumf %69, %70 : vector<4x32x160xf32>
    %72 = arith.truncf %71 : vector<4x32x160xf32> to vector<4x32x160xbf16>
    %73 = vector.extract_strided_slice %72 {offsets = [0, 0, 0], sizes = [1, 32, 160], strides = [1, 1, 1]} : vector<4x32x160xbf16> to vector<1x32x160xbf16>
    %74 = vector.shape_cast %73 : vector<1x32x160xbf16> to vector<32x160xbf16>
    %c0_26 = arith.constant 0 : index
    %c0_27 = arith.constant 0 : index
    %c0_28 = arith.constant 0 : index
    %75 = vector.load %arg4[%c0_26, %c0_27, %c0_28] : memref<4x160x50xbf16, #tpu.memory_space<vmem>>, vector<1x160x50xbf16>
    %76 = vector.shape_cast %75 : vector<1x160x50xbf16> to vector<160x50xbf16>
    %cst_29 = arith.constant dense<0.000000e+00> : vector<32x50xf32>
    %77 = tpu.matmul %74, %76, %cst_29 {dimension_numbers = #tpu.dot_dimension_numbers<[1], [0], [0], [1], [0, 0, 1, 1], [], []>} : vector<32x160xbf16>, vector<160x50xbf16>, vector<32x50xf32> -> vector<32x50xf32>
    %78 = vector.extract_strided_slice %72 {offsets = [1, 0, 0], sizes = [1, 32, 160], strides = [1, 1, 1]} : vector<4x32x160xbf16> to vector<1x32x160xbf16>
    %79 = vector.shape_cast %78 : vector<1x32x160xbf16> to vector<32x160xbf16>
    %c1_30 = arith.constant 1 : index
    %c0_31 = arith.constant 0 : index
    %c0_32 = arith.constant 0 : index
    %80 = vector.load %arg4[%c1_30, %c0_31, %c0_32] : memref<4x160x50xbf16, #tpu.memory_space<vmem>>, vector<1x160x50xbf16>
    %81 = vector.shape_cast %80 : vector<1x160x50xbf16> to vector<160x50xbf16>
    %cst_33 = arith.constant dense<0.000000e+00> : vector<32x50xf32>
    %82 = tpu.matmul %79, %81, %cst_33 {dimension_numbers = #tpu.dot_dimension_numbers<[1], [0], [0], [1], [0, 0, 1, 1], [], []>} : vector<32x160xbf16>, vector<160x50xbf16>, vector<32x50xf32> -> vector<32x50xf32>
    %83 = arith.addf %77, %82 : vector<32x50xf32>
    %84 = vector.extract_strided_slice %72 {offsets = [2, 0, 0], sizes = [1, 32, 160], strides = [1, 1, 1]} : vector<4x32x160xbf16> to vector<1x32x160xbf16>
    %85 = vector.shape_cast %84 : vector<1x32x160xbf16> to vector<32x160xbf16>
    %c2_34 = arith.constant 2 : index
    %c0_35 = arith.constant 0 : index
    %c0_36 = arith.constant 0 : index
    %86 = vector.load %arg4[%c2_34, %c0_35, %c0_36] : memref<4x160x50xbf16, #tpu.memory_space<vmem>>, vector<1x160x50xbf16>
    %87 = vector.shape_cast %86 : vector<1x160x50xbf16> to vector<160x50xbf16>
    %cst_37 = arith.constant dense<0.000000e+00> : vector<32x50xf32>
    %88 = tpu.matmul %85, %87, %cst_37 {dimension_numbers = #tpu.dot_dimension_numbers<[1], [0], [0], [1], [0, 0, 1, 1], [], []>} : vector<32x160xbf16>, vector<160x50xbf16>, vector<32x50xf32> -> vector<32x50xf32>
    %89 = arith.addf %83, %88 : vector<32x50xf32>
    %90 = vector.extract_strided_slice %72 {offsets = [3, 0, 0], sizes = [1, 32, 160], strides = [1, 1, 1]} : vector<4x32x160xbf16> to vector<1x32x160xbf16>
    %91 = vector.shape_cast %90 : vector<1x32x160xbf16> to vector<32x160xbf16>
    %c3_38 = arith.constant 3 : index
    %c0_39 = arith.constant 0 : index
    %c0_40 = arith.constant 0 : index
    %92 = vector.load %arg4[%c3_38, %c0_39, %c0_40] : memref<4x160x50xbf16, #tpu.memory_space<vmem>>, vector<1x160x50xbf16>
    %93 = vector.shape_cast %92 : vector<1x160x50xbf16> to vector<160x50xbf16>
    %cst_41 = arith.constant dense<0.000000e+00> : vector<32x50xf32>
    %94 = tpu.matmul %91, %93, %cst_41 {dimension_numbers = #tpu.dot_dimension_numbers<[1], [0], [0], [1], [0, 0, 1, 1], [], []>} : vector<32x160xbf16>, vector<160x50xbf16>, vector<32x50xf32> -> vector<32x50xf32>
    %95 = arith.addf %89, %94 : vector<32x50xf32>
    %c0_42 = arith.constant 0 : index
    %c0_43 = arith.constant 0 : index
    %96 = vector.load %arg8[%c0_42, %c0_43] : memref<1x50xf32, #tpu.memory_space<vmem>>, vector<1x50xf32>
    %97 = vector.broadcast %96 : vector<1x50xf32> to vector<32x50xf32>
    %98 = arith.addf %95, %97 : vector<32x50xf32>
    %cst_44 = arith.constant 0.000000e+00 : f32
    %99 = vector.broadcast %cst_44 : f32 to vector<32x50xf32>
    %100 = arith.maximumf %98, %99 : vector<32x50xf32>
    %101 = arith.truncf %100 : vector<32x50xf32> to vector<32x50xbf16>
    %c0_45 = arith.constant 0 : index
    %c0_46 = arith.constant 0 : index
    %102 = vector.load %arg5[%c0_45, %c0_46] : memref<50x10xbf16, #tpu.memory_space<vmem>>, vector<50x10xbf16>
    %cst_47 = arith.constant dense<0.000000e+00> : vector<32x10xf32>
    %103 = tpu.matmul %101, %102, %cst_47 {dimension_numbers = #tpu.dot_dimension_numbers<[1], [0], [0], [1], [0, 0, 1, 1], [], []>} : vector<32x50xbf16>, vector<50x10xbf16>, vector<32x10xf32> -> vector<32x10xf32>
    %c0_48 = arith.constant 0 : index
    %c0_49 = arith.constant 0 : index
    %104 = vector.load %arg9[%c0_48, %c0_49] : memref<1x10xf32, #tpu.memory_space<vmem>>, vector<1x10xf32>
    %105 = vector.broadcast %104 : vector<1x10xf32> to vector<32x10xf32>
    %106 = arith.addf %103, %105 : vector<32x10xf32>
    %cst_50 = arith.constant dense<0xFF800000> : vector<32xf32>
    %107 = vector.multi_reduction <maximumf>, %106, %cst_50 [1] : vector<32x10xf32> to vector<32xf32>
    %108 = vector.shape_cast %107 : vector<32xf32> to vector<32x1xf32>
    %109 = vector.broadcast %108 : vector<32x1xf32> to vector<32x10xf32>
    %110 = arith.subf %106, %109 : vector<32x10xf32>
    %111 = math.exp %110 : vector<32x10xf32>
    %cst_51 = arith.constant dense<0.000000e+00> : vector<32xf32>
    %112 = vector.multi_reduction <add>, %111, %cst_51 [1] : vector<32x10xf32> to vector<32xf32>
    %113 = vector.shape_cast %112 : vector<32xf32> to vector<32x1xf32>
    %114 = math.log %113 : vector<32x1xf32>
    %115 = vector.broadcast %114 : vector<32x1xf32> to vector<32x10xf32>
    %116 = arith.subf %110, %115 : vector<32x10xf32>
    %c0_52 = arith.constant 0 : index
    %c0_53 = arith.constant 0 : index
    %117 = vector.load %arg10[%c0_52, %c0_53] : memref<32x10xf32, #tpu.memory_space<vmem>>, vector<32x10xf32>
    tpu.vector_store %arg10[%c0_52, %c0_53], %116 {strides = array<i32>} : memref<32x10xf32, #tpu.memory_space<vmem>>, vector<32x10xf32>,
    return
  }
  func.func @transform_0(%arg0: i32) -> (i32, i32, i32) {
    %c0_i32 = arith.constant 0 : i32
    %c0_i32_0 = arith.constant 0 : i32
    %c0_i32_1 = arith.constant 0 : i32
    return %c0_i32, %arg0, %c0_i32_0 : i32, i32, i32
  }
  func.func @transform_1(%arg0: i32) -> (i32, i32) {
    %c0_i32 = arith.constant 0 : i32
    %c0_i32_0 = arith.constant 0 : i32
    %c0_i32_1 = arith.constant 0 : i32
    return %c0_i32, %c0_i32_0 : i32, i32
  }
  func.func @transform_2(%arg0: i32) -> (i32, i32, i32) {
    %c0_i32 = arith.constant 0 : i32
    %c0_i32_0 = arith.constant 0 : i32
    %c0_i32_1 = arith.constant 0 : i32
    %c0_i32_2 = arith.constant 0 : i32
    return %c0_i32, %c0_i32_0, %c0_i32_1 : i32, i32, i32
  }
  func.func @transform_3(%arg0: i32) -> (i32, i32, i32) {
    %c0_i32 = arith.constant 0 : i32
    %c0_i32_0 = arith.constant 0 : i32
    %c0_i32_1 = arith.constant 0 : i32
    %c0_i32_2 = arith.constant 0 : i32
    return %c0_i32, %c0_i32_0, %c0_i32_1 : i32, i32, i32
  }
  func.func @transform_4(%arg0: i32) -> (i32, i32) {
    %c0_i32 = arith.constant 0 : i32
    %c0_i32_0 = arith.constant 0 : i32
    %c0_i32_1 = arith.constant 0 : i32
    return %c0_i32, %c0_i32_0 : i32, i32
  }
  func.func @transform_5(%arg0: i32) -> (i32, i32) {
    %c0_i32 = arith.constant 0 : i32
    %c0_i32_0 = arith.constant 0 : i32
    %c0_i32_1 = arith.constant 0 : i32
    return %c0_i32, %c0_i32_0 : i32, i32
  }
  func.func @transform_6(%arg0: i32) -> (i32, i32) {
    %c0_i32 = arith.constant 0 : i32
    %c0_i32_0 = arith.constant 0 : i32
    %c0_i32_1 = arith.constant 0 : i32
    return %c0_i32, %c0_i32_0 : i32, i32
  }
  func.func @transform_7(%arg0: i32) -> (i32, i32) {
    %c0_i32 = arith.constant 0 : i32
    %c0_i32_0 = arith.constant 0 : i32
    %c0_i32_1 = arith.constant 0 : i32
    return %c0_i32, %c0_i32_0 : i32, i32
  }
  func.func @transform_8(%arg0: i32) -> (i32, i32) {
    %c0_i32 = arith.constant 0 : i32
    %c0_i32_0 = arith.constant 0 : i32
    %c0_i32_1 = arith.constant 0 : i32
    return %c0_i32, %c0_i32_0 : i32, i32
  }
  func.func @transform_9(%arg0: i32) -> (i32, i32) {
    %c0_i32 = arith.constant 0 : i32
    %c0_i32_0 = arith.constant 0 : i32
    return %arg0, %c0_i32 : i32, i32
  }
}

</mosaic_0001>

<llo_original>
// kernel: _lambda_.1
$region0: #{_lambda_.1}
  #allocation0 [shape = 'u32[]', space=smem, size = 0x4, offset = 0x4, fixed_abs, tag = 'smem constant byte address 0x4 - core index']
  #allocation1 [shape = 'u32[144,128]{1,0:T(1,128)}', space=vmem, size = 0x12000, scoped, tag = 'internal scratch']
  %s0 = inlined_call_operand.vmem [shape: bf16[28,64,28], index: 0, kind: input, shape index: {}]
  %s1 = inlined_call_operand.vmem [shape: bf16[140,240], index: 1, kind: input, shape index: {}]
  %s2 = inlined_call_operand.vmem [shape: bf16[5,240,160], index: 2, kind: input, shape index: {}]
  %s3 = inlined_call_operand.vmem [shape: bf16[4,160,50], index: 3, kind: input, shape index: {}]
  %s4 = inlined_call_operand.vmem [shape: bf16[50,10], index: 4, kind: input, shape index: {}]
  %s5 = inlined_call_operand.vmem [shape: f32[1,240], index: 5, kind: input, shape index: {}]
  %s6 = inlined_call_operand.vmem [shape: f32[1,160], index: 6, kind: input, shape index: {}]
  %s7 = inlined_call_operand.vmem [shape: f32[1,50], index: 7, kind: input, shape index: {}]
  %s8 = inlined_call_operand.vmem [shape: f32[1,10], index: 8, kind: input, shape index: {}]
  %s9 = inlined_call_operand.vmem [shape: f32[64,10], index: 9, kind: output, shape index: {}]
  %s10 = sld [smem:[#allocation0]]
  $region110: #{_lambda_.1} parent=0
    _
  %s12 = ssub.s32 1, %s10
  %s13 = scalar_select 0, %s12, %s10
  $region1: #{_lambda_.1} parent=0
    #allocation2 [shape = 'u8[458752]{0}', space=vmem, size = 0x70000, scoped, tag = 'input window, operand 0']
    loop: start=0, step=1, limit=4
    $region2: #{_lambda_.1} parent=1 // loop_pre_header
      _
    $region3: #{_lambda_.1} parent=1 // loop_header
      %s15 = sphi 0, %s19
      %p16 = scmp.ge.s32.totalorder %s15, 4
      %s25 = sphi 0, %s27
      %s28 = sphi 0, %s25
      %s29 = sphi 0, %s28
      %s45 = sphi 0, %s29
      %s49 = sphi 0, %s49
      %s51 = sphi 0, %s49
      %s52 = sphi 0, %s51
      %s66 = sphi 0, %s52
      %s70 = sphi 0, %s70
      %s72 = sphi 0, %s70
      %s73 = sphi 0, %s72
      %s87 = sphi 0, %s73
      %s91 = sphi 0, %s91
      %s93 = sphi 0, %s91
      %s94 = sphi 0, %s93
      %s108 = sphi 0, %s94
      %s112 = sphi 0, %s112
      %s114 = sphi 0, %s112
      %s115 = sphi 0, %s114
      %s129 = sphi 0, %s115
      %s133 = sphi 0, %s133
      %s135 = sphi 0, %s133
      %s136 = sphi 0, %s135
      %s150 = sphi 0, %s136
      %s154 = sphi 0, %s154
      %s156 = sphi 0, %s154
      %s157 = sphi 0, %s156
      %s171 = sphi 0, %s157
      %s175 = sphi 0, %s175
      %s177 = sphi 0, %s175
      %s178 = sphi 0, %s177
      %s192 = sphi 0, %s178
      %s196 = sphi 0, %s196
      %s198 = sphi 0, %s196
      %s199 = sphi 0, %s198
      %s213 = sphi 0, %s199
      %s219 = sphi 0, %s221
      %s222 = sphi 0, %s219
      %s223 = sphi 0, %s222
      %s239 = sphi 0, %s223
    $region4: #{_lambda_.1} parent=1 // loop_header_branch
      %18 = sbr.rel (%p16) target = $region8
    $region5: #{_lambda_.1} parent=1 // loop_body
      %s20 = ssub.s32 %s15, 1
      %s21 = ssub.s32 %s15, 2
      %s22 = sadd.s32 %s15, 1
      %s23 = ssub.s32 %s15, %s22
      %p24 = scmp.eq.s32.totalorder %s23, 0
      %s26 = sadd.s32 %s25, 1
      %s27 = scalar_select %p24, %s25, %s26
      %p30 = pneg %p24
      %p31 = scmp.eq.s32.totalorder %s15, 1
      %p32 = por %p30, %p31
      %p33 = scmp.ne.s32.totalorder %s25, %s28
      %p34 = scmp.eq.s32.totalorder %s15, 0
      %p35 = por %p33, %p34
      %p36 = scmp.ne.s32.totalorder %s25, %s28
      %p37 = scmp.eq.s32.totalorder %s20, 1
      %p38 = por %p36, %p37
      %p39 = scmp.ne.s32.totalorder %s28, %s29
      %p40 = scmp.eq.s32.totalorder %s20, 0
      %p41 = por %p39, %p40
      %p42 = scmp.ne.s32.totalorder %s28, %s29
      %p43 = scmp.eq.s32.totalorder %s21, 1
      %p44 = por %p42, %p43
      %p46 = scmp.ne.s32.totalorder %s29, %s45
      %p47 = scmp.eq.s32.totalorder %s21, 0
      %p48 = por %p46, %p47
      %s50 = sadd.s32 %s49, 1
      %p53 = scmp.eq.s32.totalorder %s15, 1
      %p54 = scmp.ne.s32.totalorder %s49, %s51
      %p55 = scmp.eq.s32.totalorder %s15, 0
      %p56 = por %p54, %p55
      %p57 = scmp.ne.s32.totalorder %s49, %s51
      %p58 = scmp.eq.s32.totalorder %s20, 1
      %p59 = por %p57, %p58
      %p60 = scmp.ne.s32.totalorder %s51, %s52
      %p61 = scmp.eq.s32.totalorder %s20, 0
      %p62 = por %p60, %p61
      %p63 = scmp.ne.s32.totalorder %s51, %s52
      %p64 = scmp.eq.s32.totalorder %s21, 1
      %p65 = por %p63, %p64
      %p67 = scmp.ne.s32.totalorder %s52, %s66
      %p68 = scmp.eq.s32.totalorder %s21, 0
      %p69 = por %p67, %p68
      %s71 = sadd.s32 %s70, 1
      %p74 = scmp.eq.s32.totalorder %s15, 1
      %p75 = scmp.ne.s32.totalorder %s70, %s72
      %p76 = scmp.eq.s32.totalorder %s15, 0
      %p77 = por %p75, %p76
      %p78 = scmp.ne.s32.totalorder %s70, %s72
      %p79 = scmp.eq.s32.totalorder %s20, 1
      %p80 = por %p78, %p79
      %p81 = scmp.ne.s32.totalorder %s72, %s73
      %p82 = scmp.eq.s32.totalorder %s20, 0
      %p83 = por %p81, %p82
      %p84 = scmp.ne.s32.totalorder %s72, %s73
      %p85 = scmp.eq.s32.totalorder %s21, 1
      %p86 = por %p84, %p85
      %p88 = scmp.ne.s32.totalorder %s73, %s87
      %p89 = scmp.eq.s32.totalorder %s21, 0
      %p90 = por %p88, %p89
      %s92 = sadd.s32 %s91, 1
      %p95 = scmp.eq.s32.totalorder %s15, 1
      %p96 = scmp.ne.s32.totalorder %s91, %s93
      %p97 = scmp.eq.s32.totalorder %s15, 0
      %p98 = por %p96, %p97
      %p99 = scmp.ne.s32.totalorder %s91, %s93
      %p100 = scmp.eq.s32.totalorder %s20, 1
      %p101 = por %p99, %p100
      %p102 = scmp.ne.s32.totalorder %s93, %s94
      %p103 = scmp.eq.s32.totalorder %s20, 0
      %p104 = por %p102, %p103
      %p105 = scmp.ne.s32.totalorder %s93, %s94
      %p106 = scmp.eq.s32.totalorder %s21, 1
      %p107 = por %p105, %p106
      %p109 = scmp.ne.s32.totalorder %s94, %s108
      %p110 = scmp.eq.s32.totalorder %s21, 0
      %p111 = por %p109, %p110
      %s113 = sadd.s32 %s112, 1
      %p116 = scmp.eq.s32.totalorder %s15, 1
      %p117 = scmp.ne.s32.totalorder %s112, %s114
      %p118 = scmp.eq.s32.totalorder %s15, 0
      %p119 = por %p117, %p118
      %p120 = scmp.ne.s32.totalorder %s112, %s114
      %p121 = scmp.eq.s32.totalorder %s20, 1
      %p122 = por %p120, %p121
      %p123 = scmp.ne.s32.totalorder %s114, %s115
      %p124 = scmp.eq.s32.totalorder %s20, 0
      %p125 = por %p123, %p124
      %p126 = scmp.ne.s32.totalorder %s114, %s115
      %p127 = scmp.eq.s32.totalorder %s21, 1
      %p128 = por %p126, %p127
      %p130 = scmp.ne.s32.totalorder %s115, %s129
      %p131 = scmp.eq.s32.totalorder %s21, 0
      %p132 = por %p130, %p131
      %s134 = sadd.s32 %s133, 1
      %p137 = scmp.eq.s32.totalorder %s15, 1
      %p138 = scmp.ne.s32.totalorder %s133, %s135
      %p139 = scmp.eq.s32.totalorder %s15, 0
      %p140 = por %p138, %p139
      %p141 = scmp.ne.s32.totalorder %s133, %s135
      %p142 = scmp.eq.s32.totalorder %s20, 1
      %p143 = por %p141, %p142
      %p144 = scmp.ne.s32.totalorder %s135, %s136
      %p145 = scmp.eq.s32.totalorder %s20, 0
      %p146 = por %p144, %p145
      %p147 = scmp.ne.s32.totalorder %s135, %s136
      %p148 = scmp.eq.s32.totalorder %s21, 1
      %p149 = por %p147, %p148
      %p151 = scmp.ne.s32.totalorder %s136, %s150
      %p152 = scmp.eq.s32.totalorder %s21, 0
      %p153 = por %p151, %p152
      %s155 = sadd.s32 %s154, 1
      %p158 = scmp.eq.s32.totalorder %s15, 1
      %p159 = scmp.ne.s32.totalorder %s154, %s156
      %p160 = scmp.eq.s32.totalorder %s15, 0
      %p161 = por %p159, %p160
      %p162 = scmp.ne.s32.totalorder %s154, %s156
      %p163 = scmp.eq.s32.totalorder %s20, 1
      %p164 = por %p162, %p163
      %p165 = scmp.ne.s32.totalorder %s156, %s157
      %p166 = scmp.eq.s32.totalorder %s20, 0
      %p167 = por %p165, %p166
      %p168 = scmp.ne.s32.totalorder %s156, %s157
      %p169 = scmp.eq.s32.totalorder %s21, 1
      %p170 = por %p168, %p169
      %p172 = scmp.ne.s32.totalorder %s157, %s171
      %p173 = scmp.eq.s32.totalorder %s21, 0
      %p174 = por %p172, %p173
      %s176 = sadd.s32 %s175, 1
      %p179 = scmp.eq.s32.totalorder %s15, 1
      %p180 = scmp.ne.s32.totalorder %s175, %s177
      %p181 = scmp.eq.s32.totalorder %s15, 0
      %p182 = por %p180, %p181
      %p183 = scmp.ne.s32.totalorder %s175, %s177
      %p184 = scmp.eq.s32.totalorder %s20, 1
      %p185 = por %p183, %p184
      %p186 = scmp.ne.s32.totalorder %s177, %s178
      %p187 = scmp.eq.s32.totalorder %s20, 0
      %p188 = por %p186, %p187
      %p189 = scmp.ne.s32.totalorder %s177, %s178
      %p190 = scmp.eq.s32.totalorder %s21, 1
      %p191 = por %p189, %p190
      %p193 = scmp.ne.s32.totalorder %s178, %s192
      %p194 = scmp.eq.s32.totalorder %s21, 0
      %p195 = por %p193, %p194
      %s197 = sadd.s32 %s196, 1
      %p200 = scmp.eq.s32.totalorder %s15, 1
      %p201 = scmp.ne.s32.totalorder %s196, %s198
      %p202 = scmp.eq.s32.totalorder %s15, 0
      %p203 = por %p201, %p202
      %p204 = scmp.ne.s32.totalorder %s196, %s198
      %p205 = scmp.eq.s32.totalorder %s20, 1
      %p206 = por %p204, %p205
      %p207 = scmp.ne.s32.totalorder %s198, %s199
      %p208 = scmp.eq.s32.totalorder %s20, 0
      %p209 = por %p207, %p208
      %p210 = scmp.ne.s32.totalorder %s198, %s199
      %p211 = scmp.eq.s32.totalorder %s21, 1
      %p212 = por %p210, %p211
      %p214 = scmp.ne.s32.totalorder %s199, %s213
      %p215 = scmp.eq.s32.totalorder %s21, 0
      %p216 = por %p214, %p215
      %s217 = ssub.s32 %s15, %s22
      %p218 = scmp.eq.s32.totalorder %s217, 0
      %s220 = sadd.s32 %s219, 1
      %s221 = scalar_select %p218, %s219, %s220
      %p224 = pneg %p218
      %p225 = scmp.eq.s32.totalorder %s15, 1
      %p226 = por %p224, %p225
      %p227 = scmp.ne.s32.totalorder %s219, %s222
      %p228 = scmp.eq.s32.totalorder %s15, 0
      %p229 = por %p227, %p228
      %p230 = scmp.ne.s32.totalorder %s219, %s222
      %p231 = scmp.eq.s32.totalorder %s20, 1
      %p232 = por %p230, %p231
      %p233 = scmp.ne.s32.totalorder %s222, %s223
      %p234 = scmp.eq.s32.totalorder %s20, 0
      %p235 = por %p233, %p234
      %p236 = scmp.ne.s32.totalorder %s222, %s223
      %p237 = scmp.eq.s32.totalorder %s21, 1
      %p238 = por %p236, %p237
      %p240 = scmp.ne.s32.totalorder %s223, %s239
      %p241 = scmp.eq.s32.totalorder %s21, 0
      %p242 = por %p240, %p241
      %p243 = scmp.le.s32.totalorder 1, %s15
      %p244 = scmp.lt.s32.totalorder %s15, 3
      %p245 = pnand %p243, %p244
      %p246 = pneg %p245
      // Predicated region
      $region9: #{_lambda_.1} parent=5 // pred_check
        _
      $region10: #{_lambda_.1} parent=5 // pred_check_branch
        %248 = sbr.rel (%p245) target = $region12
      $region11: #{_lambda_.1} parent=5 // pred_region
        %s249 = ssub.s32 %s15, 1
        // Predicated region
        $region13: #{_lambda_.1} parent=11 // pred_check
          %p250 = pneg %p62
        $region14: #{_lambda_.1} parent=11 // pred_check_branch
          %252 = sbr.rel (%p250) target = $region16
        $region15: #{_lambda_.1} parent=11 // pred_region
          _
        $region16: #{_lambda_.1} parent=11 // pred_fallthru
          _
        // Predicated region
        $region17: #{_lambda_.1} parent=11 // pred_check
          %p253 = pneg %p83
        $region18: #{_lambda_.1} parent=11 // pred_check_branch
          %255 = sbr.rel (%p253) target = $region20
        $region19: #{_lambda_.1} parent=11 // pred_region
          _
        $region20: #{_lambda_.1} parent=11 // pred_fallthru
          _
        // Predicated region
        $region21: #{_lambda_.1} parent=11 // pred_check
          %p256 = pneg %p104
        $region22: #{_lambda_.1} parent=11 // pred_check_branch
          %258 = sbr.rel (%p256) target = $region24
        $region23: #{_lambda_.1} parent=11 // pred_region
          _
        $region24: #{_lambda_.1} parent=11 // pred_fallthru
          _
        // Predicated region
        $region25: #{_lambda_.1} parent=11 // pred_check
          %p259 = pneg %p125
        $region26: #{_lambda_.1} parent=11 // pred_check_branch
          %261 = sbr.rel (%p259) target = $region28
        $region27: #{_lambda_.1} parent=11 // pred_region
          _
        $region28: #{_lambda_.1} parent=11 // pred_fallthru
          _
        // Predicated region
        $region29: #{_lambda_.1} parent=11 // pred_check
          %p262 = pneg %p146
        $region30: #{_lambda_.1} parent=11 // pred_check_branch
          %264 = sbr.rel (%p262) target = $region32
        $region31: #{_lambda_.1} parent=11 // pred_region
          _
        $region32: #{_lambda_.1} parent=11 // pred_fallthru
          _
        // Predicated region
        $region33: #{_lambda_.1} parent=11 // pred_check
          %p265 = pneg %p167
        $region34: #{_lambda_.1} parent=11 // pred_check_branch
          %267 = sbr.rel (%p265) target = $region36
        $region35: #{_lambda_.1} parent=11 // pred_region
          _
        $region36: #{_lambda_.1} parent=11 // pred_fallthru
          _
        // Predicated region
        $region37: #{_lambda_.1} parent=11 // pred_check
          %p268 = pneg %p188
        $region38: #{_lambda_.1} parent=11 // pred_check_branch
          %270 = sbr.rel (%p268) target = $region40
        $region39: #{_lambda_.1} parent=11 // pred_region
          _
        $region40: #{_lambda_.1} parent=11 // pred_fallthru
          _
        // Predicated region
        $region41: #{_lambda_.1} parent=11 // pred_check
          %p271 = pneg %p209
        $region42: #{_lambda_.1} parent=11 // pred_check_branch
          %273 = sbr.rel (%p271) target = $region44
        $region43: #{_lambda_.1} parent=11 // pred_region
          _
        $region44: #{_lambda_.1} parent=11 // pred_fallthru
          _
      $region12: #{_lambda_.1} parent=5 // pred_fallthru
        _
      %p274 = scmp.lt.s32.totalorder %s15, 2
      // Predicated region
      $region45: #{_lambda_.1} parent=5 // pred_check
        %p275 = pneg %p274
      $region46: #{_lambda_.1} parent=5 // pred_check_branch
        %277 = sbr.rel (%p275) target = $region48
      $region47: #{_lambda_.1} parent=5 // pred_region
        // Predicated region
        $region49: #{_lambda_.1} parent=47 // pred_check
          %p278 = pneg %p35
        $region50: #{_lambda_.1} parent=47 // pred_check_branch
          %280 = sbr.rel (%p278) target = $region52
        $region51: #{_lambda_.1} parent=47 // pred_region
          %s281 = sand.u32 %s25, 1
          %s282 = sand.u32 %s25, 1
          %s283 = smul.addr %s282, 448
          %s284 = scalar_lea.vmem [#allocation2], %s283
          %s285 = smul.u32 4, %s15
          %s286 = smul.addr %s285, 4
          %s287 = scalar_lea.vmem %s0, %s286
          // Predicated region
          $region53: #{_lambda_.1} parent=51 // pred_check
            _
          $region54: #{_lambda_.1} parent=51 // pred_check_branch
            %289 = sbr.rel (0) target = $region56
          $region55: #{_lambda_.1} parent=51 // pred_region
            // Predicated region
            $region57: #{_lambda_.1} parent=55 // pred_check
              _
            $region58: #{_lambda_.1} parent=55 // pred_check_branch
              %291 = sbr.rel target = $region60
            $region59: #{_lambda_.1} parent=55 // pred_region
              // Predicated region
              $region72: #{_lambda_.1} parent=59 // pred_check
                _
              $region73: #{_lambda_.1} parent=59 // pred_check_branch
                %529 = sbr.rel (0) target = $region75
              $region74: #{_lambda_.1} parent=59 // pred_region
                loop: start=0, step=1, limit=1
                $region76: #{_lambda_.1} parent=74 // loop_pre_header
                  _
                $region77: #{_lambda_.1} parent=74 // loop_header
                  %s531 = sphi 0, %s535
                  %p532 = scmp.ge.s32.totalorder %s531, 1
                  %s536 = sphi %s287, %s287
                  %s537 = sphi %s284, %s284
                $region78: #{_lambda_.1} parent=74 // loop_header_branch
                  %534 = sbr.rel (%p532) target = $region82
                $region79: #{_lambda_.1} parent=74 // loop_body
                  _
                $region80: #{_lambda_.1} parent=74 // loop_footer
                  %s535 = sadd.s32 1, %s531
                $region81: #{_lambda_.1} parent=74 // loop_footer_branch
                  %530 = sbr.rel target = $region77
                $region82: #{_lambda_.1} parent=74 // loop_exit
                  _
                %s539 = ssub.s32 16, 1
                loop: start=0, step=1, limit=1
                $region83: #{_lambda_.1} parent=74 // loop_pre_header
                  _
                $region84: #{_lambda_.1} parent=74 // loop_header
                  %s541 = sphi 0, %s545
                  %p542 = scmp.ge.s32.totalorder %s541, 1
                  %s546 = sphi %s287, %s287
                  %s547 = sphi %s284, %s284
                $region85: #{_lambda_.1} parent=74 // loop_header_branch
                  %544 = sbr.rel (%p542) target = $region89
                $region86: #{_lambda_.1} parent=74 // loop_body
                  %v548 = vld [vmem:[%s546] sm:%s539]
                  %549 = vst [vmem:[%s547] sm:%s539] %v548
                  %v550 = vld [vmem:[%s546 + $0x4] sm:%s539]
                  %551 = vst [vmem:[%s547 + $0x4] sm:%s539] %v550
                  %v552 = vld [vmem:[%s546 + $0x8] sm:%s539]
                  %553 = vst [vmem:[%s547 + $0x8] sm:%s539] %v552
                  %v554 = vld [vmem:[%s546 + $0xc] sm:%s539]
                  %555 = vst [vmem:[%s547 + $0xc] sm:%s539] %v554
                  %v556 = vld [vmem:[%s546 + $0x20] sm:%s539]
                  %557 = vst [vmem:[%s547 + $0x10] sm:%s539] %v556
                  %v558 = vld [vmem:[%s546 + $0x24] sm:%s539]
                  %559 = vst [vmem:[%s547 + $0x14] sm:%s539] %v558
                  %v560 = vld [vmem:[%s546 + $0x28] sm:%s539]
                  %561 = vst [vmem:[%s547 + $0x18] sm:%s539] %v560
                  %v562 = vld [vmem:[%s546 + $0x2c] sm:%s539]
                  %563 = vst [vmem:[%s547 + $0x1c] sm:%s539] %v562
                  %v564 = vld [vmem:[%s546 + $0x40] sm:%s539]
                  %565 = vst [vmem:[%s547 + $0x20] sm:%s539] %v564
                  %v566 = vld [vmem:[%s546 + $0x44] sm:%s539]
                  %567 = vst [vmem:[%s547 + $0x24] sm:%s539] %v566
                  %v568 = vld [vmem:[%s546 + $0x48] sm:%s539]
                  %569 = vst [vmem:[%s547 + $0x28] sm:%s539] %v568
                  %v570 = vld [vmem:[%s546 + $0x4c] sm:%s539]
                  %571 = vst [vmem:[%s547 + $0x2c] sm:%s539] %v570
                  %v572 = vld [vmem:[%s546 + $0x60] sm:%s539]
                  %573 = vst [vmem:[%s547 + $0x30] sm:%s539] %v572
                  %v574 = vld [vmem:[%s546 + $0x64] sm:%s539]
                  %575 = vst [vmem:[%s547 + $0x34] sm:%s539] %v574
                  %v576 = vld [vmem:[%s546 + $0x68] sm:%s539]
                  %577 = vst [vmem:[%s547 + $0x38] sm:%s539] %v576
                  %v578 = vld [vmem:[%s546 + $0x6c] sm:%s539]
                  %579 = vst [vmem:[%s547 + $0x3c] sm:%s539] %v578
                  %v580 = vld [vmem:[%s546 + $0x80] sm:%s539]
                  %581 = vst [vmem:[%s547 + $0x40] sm:%s539] %v580
                  %v582 = vld [vmem:[%s546 + $0x84] sm:%s539]
                  %583 = vst [vmem:[%s547 + $0x44] sm:%s539] %v582
                  %v584 = vld [vmem:[%s546 + $0x88] sm:%s539]
                  %585 = vst [vmem:[%s547 + $0x48] sm:%s539] %v584
                  %v586 = vld [vmem:[%s546 + $0x8c] sm:%s539]
                  %587 = vst [vmem:[%s547 + $0x4c] sm:%s539] %v586
                  %v588 = vld [vmem:[%s546 + $0xa0] sm:%s539]
                  %589 = vst [vmem:[%s547 + $0x50] sm:%s539] %v588
                  %v590 = vld [vmem:[%s546 + $0xa4] sm:%s539]
                  %591 = vst [vmem:[%s547 + $0x54] sm:%s539] %v590
                  %v592 = vld [vmem:[%s546 + $0xa8] sm:%s539]
                  %593 = vst [vmem:[%s547 + $0x58] sm:%s539] %v592
                  %v594 = vld [vmem:[%s546 + $0xac] sm:%s539]
                  %595 = vst [vmem:[%s547 + $0x5c] sm:%s539] %v594
                  %v596 = vld [vmem:[%s546 + $0xc0] sm:%s539]
                  %597 = vst [vmem:[%s547 + $0x60] sm:%s539] %v596
                  %v598 = vld [vmem:[%s546 + $0xc4] sm:%s539]
                  %599 = vst [vmem:[%s547 + $0x64] sm:%s539] %v598
                  %v600 = vld [vmem:[%s546 + $0xc8] sm:%s539]
                  %601 = vst [vmem:[%s547 + $0x68] sm:%s539] %v600
                  %v602 = vld [vmem:[%s546 + $0xcc] sm:%s539]
                  %603 = vst [vmem:[%s547 + $0x6c] sm:%s539] %v602
                  %v604 = vld [vmem:[%s546 + $0xe0] sm:%s539]
                  %605 = vst [vmem:[%s547 + $0x70] sm:%s539] %v604
                  %v606 = vld [vmem:[%s546 + $0xe4] sm:%s539]
                  %607 = vst [vmem:[%s547 + $0x74] sm:%s539] %v606
                  %v608 = vld [vmem:[%s546 + $0xe8] sm:%s539]
                  %609 = vst [vmem:[%s547 + $0x78] sm:%s539] %v608
                  %v610 = vld [vmem:[%s546 + $0xec] sm:%s539]
                  %611 = vst [vmem:[%s547 + $0x7c] sm:%s539] %v610
                  %v612 = vld [vmem:[%s546 + $0x100] sm:%s539]
                  %613 = vst [vmem:[%s547 + $0x80] sm:%s539] %v612
                  %v614 = vld [vmem:[%s546 + $0x104] sm:%s539]
                  %615 = vst [vmem:[%s547 + $0x84] sm:%s539] %v614
                  %v616 = vld [vmem:[%s546 + $0x108] sm:%s539]
                  %617 = vst [vmem:[%s547 + $0x88] sm:%s539] %v616
                  %v618 = vld [vmem:[%s546 + $0x10c] sm:%s539]
                  %619 = vst [vmem:[%s547 + $0x8c] sm:%s539] %v618
                  %v620 = vld [vmem:[%s546 + $0x120] sm:%s539]
                  %621 = vst [vmem:[%s547 + $0x90] sm:%s539] %v620
                  %v622 = vld [vmem:[%s546 + $0x124] sm:%s539]
                  %623 = vst [vmem:[%s547 + $0x94] sm:%s539] %v622
                  %v624 = vld [vmem:[%s546 + $0x128] sm:%s539]
                  %625 = vst [vmem:[%s547 + $0x98] sm:%s539] %v624
                  %v626 = vld [vmem:[%s546 + $0x12c] sm:%s539]
                  %627 = vst [vmem:[%s547 + $0x9c] sm:%s539] %v626
                  %v628 = vld [vmem:[%s546 + $0x140] sm:%s539]
                  %629 = vst [vmem:[%s547 + $0xa0] sm:%s539] %v628
                  %v630 = vld [vmem:[%s546 + $0x144] sm:%s539]
                  %631 = vst [vmem:[%s547 + $0xa4] sm:%s539] %v630
                  %v632 = vld [vmem:[%s546 + $0x148] sm:%s539]
                  %633 = vst [vmem:[%s547 + $0xa8] sm:%s539] %v632
                  %v634 = vld [vmem:[%s546 + $0x14c] sm:%s539]
                  %635 = vst [vmem:[%s547 + $0xac] sm:%s539] %v634
                  %v636 = vld [vmem:[%s546 + $0x160] sm:%s539]
                  %637 = vst [vmem:[%s547 + $0xb0] sm:%s539] %v636
                  %v638 = vld [vmem:[%s546 + $0x164] sm:%s539]
                  %639 = vst [vmem:[%s547 + $0xb4] sm:%s539] %v638
                  %v640 = vld [vmem:[%s546 + $0x168] sm:%s539]
                  %641 = vst [vmem:[%s547 + $0xb8] sm:%s539] %v640
                  %v642 = vld [vmem:[%s546 + $0x16c] sm:%s539]
                  %643 = vst [vmem:[%s547 + $0xbc] sm:%s539] %v642
                  %v644 = vld [vmem:[%s546 + $0x180] sm:%s539]
                  %645 = vst [vmem:[%s547 + $0xc0] sm:%s539] %v644
                  %v646 = vld [vmem:[%s546 + $0x184] sm:%s539]
                  %647 = vst [vmem:[%s547 + $0xc4] sm:%s539] %v646
                  %v648 = vld [vmem:[%s546 + $0x188] sm:%s539]
                  %649 = vst [vmem:[%s547 + $0xc8] sm:%s539] %v648
                  %v650 = vld [vmem:[%s546 + $0x18c] sm:%s539]
                  %651 = vst [vmem:[%s547 + $0xcc] sm:%s539] %v650
                  %v652 = vld [vmem:[%s546 + $0x1a0] sm:%s539]
                  %653 = vst [vmem:[%s547 + $0xd0] sm:%s539] %v652
                  %v654 = vld [vmem:[%s546 + $0x1a4] sm:%s539]
                  %655 = vst [vmem:[%s547 + $0xd4] sm:%s539] %v654
                  %v656 = vld [vmem:[%s546 + $0x1a8] sm:%s539]
                  %657 = vst [vmem:[%s547 + $0xd8] sm:%s539] %v656
                  %v658 = vld [vmem:[%s546 + $0x1ac] sm:%s539]
                  %659 = vst [vmem:[%s547 + $0xdc] sm:%s539] %v658
                  %v660 = vld [vmem:[%s546 + $0x1c0] sm:%s539]
                  %661 = vst [vmem:[%s547 + $0xe0] sm:%s539] %v660
                  %v662 = vld [vmem:[%s546 + $0x1c4] sm:%s539]
                  %663 = vst [vmem:[%s547 + $0xe4] sm:%s539] %v662
                  %v664 = vld [vmem:[%s546 + $0x1c8] sm:%s539]
                  %665 = vst [vmem:[%s547 + $0xe8] sm:%s539] %v664
                  %v666 = vld [vmem:[%s546 + $0x1cc] sm:%s539]
                  %667 = vst [vmem:[%s547 + $0xec] sm:%s539] %v666
                  %v668 = vld [vmem:[%s546 + $0x1e0] sm:%s539]
                  %669 = vst [vmem:[%s547 + $0xf0] sm:%s539] %v668
                  %v670 = vld [vmem:[%s546 + $0x1e4] sm:%s539]
                  %671 = vst [vmem:[%s547 + $0xf4] sm:%s539] %v670
                  %v672 = vld [vmem:[%s546 + $0x1e8] sm:%s539]
                  %673 = vst [vmem:[%s547 + $0xf8] sm:%s539] %v672
                  %v674 = vld [vmem:[%s546 + $0x1ec] sm:%s539]
                  %675 = vst [vmem:[%s547 + $0xfc] sm:%s539] %v674
                  %v676 = vld [vmem:[%s546 + $0x200] sm:%s539]
                  %677 = vst [vmem:[%s547 + $0x100] sm:%s539] %v676
                  %v678 = vld [vmem:[%s546 + $0x204] sm:%s539]
                  %679 = vst [vmem:[%s547 + $0x104] sm:%s539] %v678
                  %v680 = vld [vmem:[%s546 + $0x208] sm:%s539]
                  %681 = vst [vmem:[%s547 + $0x108] sm:%s539] %v680
                  %v682 = vld [vmem:[%s546 + $0x20c] sm:%s539]
                  %683 = vst [vmem:[%s547 + $0x10c] sm:%s539] %v682
                  %v684 = vld [vmem:[%s546 + $0x220] sm:%s539]
                  %685 = vst [vmem:[%s547 + $0x110] sm:%s539] %v684
                  %v686 = vld [vmem:[%s546 + $0x224] sm:%s539]
                  %687 = vst [vmem:[%s547 + $0x114] sm:%s539] %v686
                  %v688 = vld [vmem:[%s546 + $0x228] sm:%s539]
                  %689 = vst [vmem:[%s547 + $0x118] sm:%s539] %v688
                  %v690 = vld [vmem:[%s546 + $0x22c] sm:%s539]
                  %691 = vst [vmem:[%s547 + $0x11c] sm:%s539] %v690
                  %v692 = vld [vmem:[%s546 + $0x240] sm:%s539]
                  %693 = vst [vmem:[%s547 + $0x120] sm:%s539] %v692
                  %v694 = vld [vmem:[%s546 + $0x244] sm:%s539]
                  %695 = vst [vmem:[%s547 + $0x124] sm:%s539] %v694
                  %v696 = vld [vmem:[%s546 + $0x248] sm:%s539]
                  %697 = vst [vmem:[%s547 + $0x128] sm:%s539] %v696
                  %v698 = vld [vmem:[%s546 + $0x24c] sm:%s539]
                  %699 = vst [vmem:[%s547 + $0x12c] sm:%s539] %v698
                  %v700 = vld [vmem:[%s546 + $0x260] sm:%s539]
                  %701 = vst [vmem:[%s547 + $0x130] sm:%s539] %v700
                  %v702 = vld [vmem:[%s546 + $0x264] sm:%s539]
                  %703 = vst [vmem:[%s547 + $0x134] sm:%s539] %v702
                  %v704 = vld [vmem:[%s546 + $0x268] sm:%s539]
                  %705 = vst [vmem:[%s547 + $0x138] sm:%s539] %v704
                  %v706 = vld [vmem:[%s546 + $0x26c] sm:%s539]
                  %707 = vst [vmem:[%s547 + $0x13c] sm:%s539] %v706
                  %v708 = vld [vmem:[%s546 + $0x280] sm:%s539]
                  %709 = vst [vmem:[%s547 + $0x140] sm:%s539] %v708
                  %v710 = vld [vmem:[%s546 + $0x284] sm:%s539]
                  %711 = vst [vmem:[%s547 + $0x144] sm:%s539] %v710
                  %v712 = vld [vmem:[%s546 + $0x288] sm:%s539]
                  %713 = vst [vmem:[%s547 + $0x148] sm:%s539] %v712
                  %v714 = vld [vmem:[%s546 + $0x28c] sm:%s539]
                  %715 = vst [vmem:[%s547 + $0x14c] sm:%s539] %v714
                  %v716 = vld [vmem:[%s546 + $0x2a0] sm:%s539]
                  %717 = vst [vmem:[%s547 + $0x150] sm:%s539] %v716
                  %v718 = vld [vmem:[%s546 + $0x2a4] sm:%s539]
                  %719 = vst [vmem:[%s547 + $0x154] sm:%s539] %v718
                  %v720 = vld [vmem:[%s546 + $0x2a8] sm:%s539]
                  %721 = vst [vmem:[%s547 + $0x158] sm:%s539] %v720
                  %v722 = vld [vmem:[%s546 + $0x2ac] sm:%s539]
                  %723 = vst [vmem:[%s547 + $0x15c] sm:%s539] %v722
                  %v724 = vld [vmem:[%s546 + $0x2c0] sm:%s539]
                  %725 = vst [vmem:[%s547 + $0x160] sm:%s539] %v724
                  %v726 = vld [vmem:[%s546 + $0x2c4] sm:%s539]
                  %727 = vst [vmem:[%s547 + $0x164] sm:%s539] %v726
                  %v728 = vld [vmem:[%s546 + $0x2c8] sm:%s539]
                  %729 = vst [vmem:[%s547 + $0x168] sm:%s539] %v728
                  %v730 = vld [vmem:[%s546 + $0x2cc] sm:%s539]
                  %731 = vst [vmem:[%s547 + $0x16c] sm:%s539] %v730
                  %v732 = vld [vmem:[%s546 + $0x2e0] sm:%s539]
                  %733 = vst [vmem:[%s547 + $0x170] sm:%s539] %v732
                  %v734 = vld [vmem:[%s546 + $0x2e4] sm:%s539]
                  %735 = vst [vmem:[%s547 + $0x174] sm:%s539] %v734
                  %v736 = vld [vmem:[%s546 + $0x2e8] sm:%s539]
                  %737 = vst [vmem:[%s547 + $0x178] sm:%s539] %v736
                  %v738 = vld [vmem:[%s546 + $0x2ec] sm:%s539]
                  %739 = vst [vmem:[%s547 + $0x17c] sm:%s539] %v738
                  %v740 = vld [vmem:[%s546 + $0x300] sm:%s539]
                  %741 = vst [vmem:[%s547 + $0x180] sm:%s539] %v740
                  %v742 = vld [vmem:[%s546 + $0x304] sm:%s539]
                  %743 = vst [vmem:[%s547 + $0x184] sm:%s539] %v742
                  %v744 = vld [vmem:[%s546 + $0x308] sm:%s539]
                  %745 = vst [vmem:[%s547 + $0x188] sm:%s539] %v744
                  %v746 = vld [vmem:[%s546 + $0x30c] sm:%s539]
                  %747 = vst [vmem:[%s547 + $0x18c] sm:%s539] %v746
                  %v748 = vld [vmem:[%s546 + $0x320] sm:%s539]
                  %749 = vst [vmem:[%s547 + $0x190] sm:%s539] %v748
                  %v750 = vld [vmem:[%s546 + $0x324] sm:%s539]
                  %751 = vst [vmem:[%s547 + $0x194] sm:%s539] %v750
                  %v752 = vld [vmem:[%s546 + $0x328] sm:%s539]
                  %753 = vst [vmem:[%s547 + $0x198] sm:%s539] %v752
                  %v754 = vld [vmem:[%s546 + $0x32c] sm:%s539]
                  %755 = vst [vmem:[%s547 + $0x19c] sm:%s539] %v754
                  %v756 = vld [vmem:[%s546 + $0x340] sm:%s539]
                  %757 = vst [vmem:[%s547 + $0x1a0] sm:%s539] %v756
                  %v758 = vld [vmem:[%s546 + $0x344] sm:%s539]
                  %759 = vst [vmem:[%s547 + $0x1a4] sm:%s539] %v758
                  %v760 = vld [vmem:[%s546 + $0x348] sm:%s539]
                  %761 = vst [vmem:[%s547 + $0x1a8] sm:%s539] %v760
                  %v762 = vld [vmem:[%s546 + $0x34c] sm:%s539]
                  %763 = vst [vmem:[%s547 + $0x1ac] sm:%s539] %v762
                  %v764 = vld [vmem:[%s546 + $0x360] sm:%s539]
                  %765 = vst [vmem:[%s547 + $0x1b0] sm:%s539] %v764
                  %v766 = vld [vmem:[%s546 + $0x364] sm:%s539]
                  %767 = vst [vmem:[%s547 + $0x1b4] sm:%s539] %v766
                  %v768 = vld [vmem:[%s546 + $0x368] sm:%s539]
                  %769 = vst [vmem:[%s547 + $0x1b8] sm:%s539] %v768
                  %v770 = vld [vmem:[%s546 + $0x36c] sm:%s539]
                  %771 = vst [vmem:[%s547 + $0x1bc] sm:%s539] %v770
                $region87: #{_lambda_.1} parent=74 // loop_footer
                  %s545 = sadd.s32 1, %s541
                $region88: #{_lambda_.1} parent=74 // loop_footer_branch
                  %540 = sbr.rel target = $region84
                $region89: #{_lambda_.1} parent=74 // loop_exit
                  _
              $region75: #{_lambda_.1} parent=59 // pred_fallthru
                _
            $region60: #{_lambda_.1} parent=55 // pred_fallthru
              _
            // Predicated region
            $region61: #{_lambda_.1} parent=55 // pred_check
              _
            $region62: #{_lambda_.1} parent=55 // pred_check_branch
              %293 = sbr.rel (0) target = $region64
            $region63: #{_lambda_.1} parent=55 // pred_region
              %s295 = ssub.s32 16, 1
              loop: start=0, step=1, limit=1
              $region65: #{_lambda_.1} parent=63 // loop_pre_header
                _
              $region66: #{_lambda_.1} parent=63 // loop_header
                %s297 = sphi 0, %s301
                %p298 = scmp.ge.s32.totalorder %s297, 1
                %s302 = sphi %s287, %s287
                %s303 = sphi %s284, %s284
              $region67: #{_lambda_.1} parent=63 // loop_header_branch
                %300 = sbr.rel (%p298) target = $region71
              $region68: #{_lambda_.1} parent=63 // loop_body
                %v304 = vld [vmem:[%s302] sm:%s295]
                %305 = vst [vmem:[%s303] sm:%s295] %v304
                %v306 = vld [vmem:[%s302 + $0x4] sm:%s295]
                %307 = vst [vmem:[%s303 + $0x4] sm:%s295] %v306
                %v308 = vld [vmem:[%s302 + $0x8] sm:%s295]
                %309 = vst [vmem:[%s303 + $0x8] sm:%s295] %v308
                %v310 = vld [vmem:[%s302 + $0xc] sm:%s295]
                %311 = vst [vmem:[%s303 + $0xc] sm:%s295] %v310
                %v312 = vld [vmem:[%s302 + $0x20] sm:%s295]
                %313 = vst [vmem:[%s303 + $0x10] sm:%s295] %v312
                %v314 = vld [vmem:[%s302 + $0x24] sm:%s295]
                %315 = vst [vmem:[%s303 + $0x14] sm:%s295] %v314
                %v316 = vld [vmem:[%s302 + $0x28] sm:%s295]
                %317 = vst [vmem:[%s303 + $0x18] sm:%s295] %v316
                %v318 = vld [vmem:[%s302 + $0x2c] sm:%s295]
                %319 = vst [vmem:[%s303 + $0x1c] sm:%s295] %v318
                %v320 = vld [vmem:[%s302 + $0x40] sm:%s295]
                %321 = vst [vmem:[%s303 + $0x20] sm:%s295] %v320
                %v322 = vld [vmem:[%s302 + $0x44] sm:%s295]
                %323 = vst [vmem:[%s303 + $0x24] sm:%s295] %v322
                %v324 = vld [vmem:[%s302 + $0x48] sm:%s295]
                %325 = vst [vmem:[%s303 + $0x28] sm:%s295] %v324
                %v326 = vld [vmem:[%s302 + $0x4c] sm:%s295]
                %327 = vst [vmem:[%s303 + $0x2c] sm:%s295] %v326
                %v328 = vld [vmem:[%s302 + $0x60] sm:%s295]
                %329 = vst [vmem:[%s303 + $0x30] sm:%s295] %v328
                %v330 = vld [vmem:[%s302 + $0x64] sm:%s295]
                %331 = vst [vmem:[%s303 + $0x34] sm:%s295] %v330
                %v332 = vld [vmem:[%s302 + $0x68] sm:%s295]
                %333 = vst [vmem:[%s303 + $0x38] sm:%s295] %v332
                %v334 = vld [vmem:[%s302 + $0x6c] sm:%s295]
                %335 = vst [vmem:[%s303 + $0x3c] sm:%s295] %v334
                %v336 = vld [vmem:[%s302 + $0x80] sm:%s295]
                %337 = vst [vmem:[%s303 + $0x40] sm:%s295] %v336
                %v338 = vld [vmem:[%s302 + $0x84] sm:%s295]
                %339 = vst [vmem:[%s303 + $0x44] sm:%s295] %v338
                %v340 = vld [vmem:[%s302 + $0x88] sm:%s295]
                %341 = vst [vmem:[%s303 + $0x48] sm:%s295] %v340
                %v342 = vld [vmem:[%s302 + $0x8c] sm:%s295]
                %343 = vst [vmem:[%s303 + $0x4c] sm:%s295] %v342
                %v344 = vld [vmem:[%s302 + $0xa0] sm:%s295]
                %345 = vst [vmem:[%s303 + $0x50] sm:%s295] %v344
                %v346 = vld [vmem:[%s302 + $0xa4] sm:%s295]
                %347 = vst [vmem:[%s303 + $0x54] sm:%s295] %v346
                %v348 = vld [vmem:[%s302 + $0xa8] sm:%s295]
                %349 = vst [vmem:[%s303 + $0x58] sm:%s295] %v348
                %v350 = vld [vmem:[%s302 + $0xac] sm:%s295]
                %351 = vst [vmem:[%s303 + $0x5c] sm:%s295] %v350
                %v352 = vld [vmem:[%s302 + $0xc0] sm:%s295]
                %353 = vst [vmem:[%s303 + $0x60] sm:%s295] %v352
                %v354 = vld [vmem:[%s302 + $0xc4] sm:%s295]
                %355 = vst [vmem:[%s303 + $0x64] sm:%s295] %v354
                %v356 = vld [vmem:[%s302 + $0xc8] sm:%s295]
                %357 = vst [vmem:[%s303 + $0x68] sm:%s295] %v356
                %v358 = vld [vmem:[%s302 + $0xcc] sm:%s295]
                %359 = vst [vmem:[%s303 + $0x6c] sm:%s295] %v358
                %v360 = vld [vmem:[%s302 + $0xe0] sm:%s295]
                %361 = vst [vmem:[%s303 + $0x70] sm:%s295] %v360
                %v362 = vld [vmem:[%s302 + $0xe4] sm:%s295]
                %363 = vst [vmem:[%s303 + $0x74] sm:%s295] %v362
                %v364 = vld [vmem:[%s302 + $0xe8] sm:%s295]
                %365 = vst [vmem:[%s303 + $0x78] sm:%s295] %v364
                %v366 = vld [vmem:[%s302 + $0xec] sm:%s295]
                %367 = vst [vmem:[%s303 + $0x7c] sm:%s295] %v366
                %v368 = vld [vmem:[%s302 + $0x100] sm:%s295]
                %369 = vst [vmem:[%s303 + $0x80] sm:%s295] %v368
                %v370 = vld [vmem:[%s302 + $0x104] sm:%s295]
                %371 = vst [vmem:[%s303 + $0x84] sm:%s295] %v370
                %v372 = vld [vmem:[%s302 + $0x108] sm:%s295]
                %373 = vst [vmem:[%s303 + $0x88] sm:%s295] %v372
                %v374 = vld [vmem:[%s302 + $0x10c] sm:%s295]
                %375 = vst [vmem:[%s303 + $0x8c] sm:%s295] %v374
                %v376 = vld [vmem:[%s302 + $0x120] sm:%s295]
                %377 = vst [vmem:[%s303 + $0x90] sm:%s295] %v376
                %v378 = vld [vmem:[%s302 + $0x124] sm:%s295]
                %379 = vst [vmem:[%s303 + $0x94] sm:%s295] %v378
                %v380 = vld [vmem:[%s302 + $0x128] sm:%s295]
                %381 = vst [vmem:[%s303 + $0x98] sm:%s295] %v380
                %v382 = vld [vmem:[%s302 + $0x12c] sm:%s295]
                %383 = vst [vmem:[%s303 + $0x9c] sm:%s295] %v382
                %v384 = vld [vmem:[%s302 + $0x140] sm:%s295]
                %385 = vst [vmem:[%s303 + $0xa0] sm:%s295] %v384
                %v386 = vld [vmem:[%s302 + $0x144] sm:%s295]
                %387 = vst [vmem:[%s303 + $0xa4] sm:%s295] %v386
                %v388 = vld [vmem:[%s302 + $0x148] sm:%s295]
                %389 = vst [vmem:[%s303 + $0xa8] sm:%s295] %v388
                %v390 = vld [vmem:[%s302 + $0x14c] sm:%s295]
                %391 = vst [vmem:[%s303 + $0xac] sm:%s295] %v390
                %v392 = vld [vmem:[%s302 + $0x160] sm:%s295]
                %393 = vst [vmem:[%s303 + $0xb0] sm:%s295] %v392
                %v394 = vld [vmem:[%s302 + $0x164] sm:%s295]
                %395 = vst [vmem:[%s303 + $0xb4] sm:%s295] %v394
                %v396 = vld [vmem:[%s302 + $0x168] sm:%s295]
                %397 = vst [vmem:[%s303 + $0xb8] sm:%s295] %v396
                %v398 = vld [vmem:[%s302 + $0x16c] sm:%s295]
                %399 = vst [vmem:[%s303 + $0xbc] sm:%s295] %v398
                %v400 = vld [vmem:[%s302 + $0x180] sm:%s295]
                %401 = vst [vmem:[%s303 + $0xc0] sm:%s295] %v400
                %v402 = vld [vmem:[%s302 + $0x184] sm:%s295]
                %403 = vst [vmem:[%s303 + $0xc4] sm:%s295] %v402
                %v404 = vld [vmem:[%s302 + $0x188] sm:%s295]
                %405 = vst [vmem:[%s303 + $0xc8] sm:%s295] %v404
                %v406 = vld [vmem:[%s302 + $0x18c] sm:%s295]
                %407 = vst [vmem:[%s303 + $0xcc] sm:%s295] %v406
                %v408 = vld [vmem:[%s302 + $0x1a0] sm:%s295]
                %409 = vst [vmem:[%s303 + $0xd0] sm:%s295] %v408
                %v410 = vld [vmem:[%s302 + $0x1a4] sm:%s295]
                %411 = vst [vmem:[%s303 + $0xd4] sm:%s295] %v410
                %v412 = vld [vmem:[%s302 + $0x1a8] sm:%s295]
                %413 = vst [vmem:[%s303 + $0xd8] sm:%s295] %v412
                %v414 = vld [vmem:[%s302 + $0x1ac] sm:%s295]
                %415 = vst [vmem:[%s303 + $0xdc] sm:%s295] %v414
                %v416 = vld [vmem:[%s302 + $0x1c0] sm:%s295]
                %417 = vst [vmem:[%s303 + $0xe0] sm:%s295] %v416
                %v418 = vld [vmem:[%s302 + $0x1c4] sm:%s295]
                %419 = vst [vmem:[%s303 + $0xe4] sm:%s295] %v418
                %v420 = vld [vmem:[%s302 + $0x1c8] sm:%s295]
                %421 = vst [vmem:[%s303 + $0xe8] sm:%s295] %v420
                %v422 = vld [vmem:[%s302 + $0x1cc] sm:%s295]
                %423 = vst [vmem:[%s303 + $0xec] sm:%s295] %v422
                %v424 = vld [vmem:[%s302 + $0x1e0] sm:%s295]
                %425 = vst [vmem:[%s303 + $0xf0] sm:%s295] %v424
                %v426 = vld [vmem:[%s302 + $0x1e4] sm:%s295]
                %427 = vst [vmem:[%s303 + $0xf4] sm:%s295] %v426
                %v428 = vld [vmem:[%s302 + $0x1e8] sm:%s295]
                %429 = vst [vmem:[%s303 + $0xf8] sm:%s295] %v428
                %v430 = vld [vmem:[%s302 + $0x1ec] sm:%s295]
                %431 = vst [vmem:[%s303 + $0xfc] sm:%s295] %v430
                %v432 = vld [vmem:[%s302 + $0x200] sm:%s295]
                %433 = vst [vmem:[%s303 + $0x100] sm:%s295] %v432
                %v434 = vld [vmem:[%s302 + $0x204] sm:%s295]
                %435 = vst [vmem:[%s303 + $0x104] sm:%s295] %v434
                %v436 = vld [vmem:[%s302 + $0x208] sm:%s295]
                %437 = vst [vmem:[%s303 + $0x108] sm:%s295] %v436
                %v438 = vld [vmem:[%s302 + $0x20c] sm:%s295]
                %439 = vst [vmem:[%s303 + $0x10c] sm:%s295] %v438
                %v440 = vld [vmem:[%s302 + $0x220] sm:%s295]
                %441 = vst [vmem:[%s303 + $0x110] sm:%s295] %v440
                %v442 = vld [vmem:[%s302 + $0x224] sm:%s295]
                %443 = vst [vmem:[%s303 + $0x114] sm:%s295] %v442
                %v444 = vld [vmem:[%s302 + $0x228] sm:%s295]
                %445 = vst [vmem:[%s303 + $0x118] sm:%s295] %v444
                %v446 = vld [vmem:[%s302 + $0x22c] sm:%s295]
                %447 = vst [vmem:[%s303 + $0x11c] sm:%s295] %v446
                %v448 = vld [vmem:[%s302 + $0x240] sm:%s295]
                %449 = vst [vmem:[%s303 + $0x120] sm:%s295] %v448
                %v450 = vld [vmem:[%s302 + $0x244] sm:%s295]
                %451 = vst [vmem:[%s303 + $0x124] sm:%s295] %v450
                %v452 = vld [vmem:[%s302 + $0x248] sm:%s295]
                %453 = vst [vmem:[%s303 + $0x128] sm:%s295] %v452
                %v454 = vld [vmem:[%s302 + $0x24c] sm:%s295]
                %455 = vst [vmem:[%s303 + $0x12c] sm:%s295] %v454
                %v456 = vld [vmem:[%s302 + $0x260] sm:%s295]
                %457 = vst [vmem:[%s303 + $0x130] sm:%s295] %v456
                %v458 = vld [vmem:[%s302 + $0x264] sm:%s295]
                %459 = vst [vmem:[%s303 + $0x134] sm:%s295] %v458
                %v460 = vld [vmem:[%s302 + $0x268] sm:%s295]
                %461 = vst [vmem:[%s303 + $0x138] sm:%s295] %v460
                %v462 = vld [vmem:[%s302 + $0x26c] sm:%s295]
                %463 = vst [vmem:[%s303 + $0x13c] sm:%s295] %v462
                %v464 = vld [vmem:[%s302 + $0x280] sm:%s295]
                %465 = vst [vmem:[%s303 + $0x140] sm:%s295] %v464
                %v466 = vld [vmem:[%s302 + $0x284] sm:%s295]
                %467 = vst [vmem:[%s303 + $0x144] sm:%s295] %v466
                %v468 = vld [vmem:[%s302 + $0x288] sm:%s295]
                %469 = vst [vmem:[%s303 + $0x148] sm:%s295] %v468
                %v470 = vld [vmem:[%s302 + $0x28c] sm:%s295]
                %471 = vst [vmem:[%s303 + $0x14c] sm:%s295] %v470
                %v472 = vld [vmem:[%s302 + $0x2a0] sm:%s295]
                %473 = vst [vmem:[%s303 + $0x150] sm:%s295] %v472
                %v474 = vld [vmem:[%s302 + $0x2a4] sm:%s295]
                %475 = vst [vmem:[%s303 + $0x154] sm:%s295] %v474
                %v476 = vld [vmem:[%s302 + $0x2a8] sm:%s295]
                %477 = vst [vmem:[%s303 + $0x158] sm:%s295] %v476
                %v478 = vld [vmem:[%s302 + $0x2ac] sm:%s295]
                %479 = vst [vmem:[%s303 + $0x15c] sm:%s295] %v478
                %v480 = vld [vmem:[%s302 + $0x2c0] sm:%s295]
                %481 = vst [vmem:[%s303 + $0x160] sm:%s295] %v480
                %v482 = vld [vmem:[%s302 + $0x2c4] sm:%s295]
                %483 = vst [vmem:[%s303 + $0x164] sm:%s295] %v482
                %v484 = vld [vmem:[%s302 + $0x2c8] sm:%s295]
                %485 = vst [vmem:[%s303 + $0x168] sm:%s295] %v484
                %v486 = vld [vmem:[%s302 + $0x2cc] sm:%s295]
                %487 = vst [vmem:[%s303 + $0x16c] sm:%s295] %v486
                %v488 = vld [vmem:[%s302 + $0x2e0] sm:%s295]
                %489 = vst [vmem:[%s303 + $0x170] sm:%s295] %v488
                %v490 = vld [vmem:[%s302 + $0x2e4] sm:%s295]
                %491 = vst [vmem:[%s303 + $0x174] sm:%s295] %v490
                %v492 = vld [vmem:[%s302 + $0x2e8] sm:%s295]
                %493 = vst [vmem:[%s303 + $0x178] sm:%s295] %v492
                %v494 = vld [vmem:[%s302 + $0x2ec] sm:%s295]
                %495 = vst [vmem:[%s303 + $0x17c] sm:%s295] %v494
                %v496 = vld [vmem:[%s302 + $0x300] sm:%s295]
                %497 = vst [vmem:[%s303 + $0x180] sm:%s295] %v496
                %v498 = vld [vmem:[%s302 + $0x304] sm:%s295]
                %499 = vst [vmem:[%s303 + $0x184] sm:%s295] %v498
                %v500 = vld [vmem:[%s302 + $0x308] sm:%s295]
                %501 = vst [vmem:[%s303 + $0x188] sm:%s295] %v500
                %v502 = vld [vmem:[%s302 + $0x30c] sm:%s295]
                %503 = vst [vmem:[%s303 + $0x18c] sm:%s295] %v502
                %v504 = vld [vmem:[%s302 + $0x320] sm:%s295]
                %505 = vst [vmem:[%s303 + $0x190] sm:%s295] %v504
                %v506 = vld [vmem:[%s302 + $0x324] sm:%s295]
                %507 = vst [vmem:[%s303 + $0x194] sm:%s295] %v506
                %v508 = vld [vmem:[%s302 + $0x328] sm:%s295]
                %509 = vst [vmem:[%s303 + $0x198] sm:%s295] %v508
                %v510 = vld [vmem:[%s302 + $0x32c] sm:%s295]
                %511 = vst [vmem:[%s303 + $0x19c] sm:%s295] %v510
                %v512 = vld [vmem:[%s302 + $0x340] sm:%s295]
                %513 = vst [vmem:[%s303 + $0x1a0] sm:%s295] %v512
                %v514 = vld [vmem:[%s302 + $0x344] sm:%s295]
                %515 = vst [vmem:[%s303 + $0x1a4] sm:%s295] %v514
                %v516 = vld [vmem:[%s302 + $0x348] sm:%s295]
                %517 = vst [vmem:[%s303 + $0x1a8] sm:%s295] %v516
                %v518 = vld [vmem:[%s302 + $0x34c] sm:%s295]
                %519 = vst [vmem:[%s303 + $0x1ac] sm:%s295] %v518
                %v520 = vld [vmem:[%s302 + $0x360] sm:%s295]
                %521 = vst [vmem:[%s303 + $0x1b0] sm:%s295] %v520
                %v522 = vld [vmem:[%s302 + $0x364] sm:%s295]
                %523 = vst [vmem:[%s303 + $0x1b4] sm:%s295] %v522
                %v524 = vld [vmem:[%s302 + $0x368] sm:%s295]
                %525 = vst [vmem:[%s303 + $0x1b8] sm:%s295] %v524
                %v526 = vld [vmem:[%s302 + $0x36c] sm:%s295]
                %527 = vst [vmem:[%s303 + $0x1bc] sm:%s295] %v526
              $region69: #{_lambda_.1} parent=63 // loop_footer
                %s301 = sadd.s32 1, %s297
              $region70: #{_lambda_.1} parent=63 // loop_footer_branch
                %296 = sbr.rel target = $region66
              $region71: #{_lambda_.1} parent=63 // loop_exit
                _
            $region64: #{_lambda_.1} parent=55 // pred_fallthru
              _
          $region56: #{_lambda_.1} parent=51 // pred_fallthru
            _
          %772 = vnop
        $region52: #{_lambda_.1} parent=47 // pred_fallthru
          _
      $region48: #{_lambda_.1} parent=5 // pred_fallthru
        _
      %p773 = scmp.le.s32.totalorder 1, %s15
      %p774 = scmp.lt.s32.totalorder %s15, 3
      %p775 = pnand %p773, %p774
      %p776 = pneg %p775
      // Predicated region
      $region90: #{_lambda_.1} parent=5 // pred_check
        _
      $region91: #{_lambda_.1} parent=5 // pred_check_branch
        %778 = sbr.rel (%p775) target = $region93
      $region92: #{_lambda_.1} parent=5 // pred_region
        %s779 = ssub.s32 %s15, 1
        %s780 = sand.u32 %s28, 1
        %s781 = sand.u32 %s28, 1
        %s782 = smul.addr %s781, 448
        %s783 = scalar_lea.vmem [#allocation2], %s782
        // Predicated region
        $region94: #{_lambda_.1} parent=92 // pred_check
          %p784 = pneg %p41
        $region95: #{_lambda_.1} parent=92 // pred_check_branch
          %786 = sbr.rel (%p784) target = $region97
        $region96: #{_lambda_.1} parent=92 // pred_region
          _
        $region97: #{_lambda_.1} parent=92 // pred_fallthru
          _
        %s787 = sand.u32 %s28, 1
        %s788 = sand.u32 %s28, 1
        %s789 = smul.addr %s788, 448
        %s790 = scalar_lea.vmem [#allocation2], %s789
        %p791 = pneg %p41
        %p792 = pneg %p38
        %p793 = pneg %p62
        %p794 = pneg %p59
        %p795 = pneg %p83
        %p796 = pneg %p80
        %p797 = pneg %p104
        %p798 = pneg %p101
        %p799 = pneg %p125
        %p800 = pneg %p122
        %p801 = pneg %p146
        %p802 = pneg %p143
        %p803 = pneg %p167
        %p804 = pneg %p164
        %p805 = pneg %p188
        %p806 = pneg %p185
        %p807 = pneg %p209
        %p808 = pneg %p206
        %p809 = pneg %p235
        %p810 = pneg %p232
        %s811 = smul.u32 4, %s20
        %p812 = scmp.lt.s32.totalorder %s811, 7
        %s813 = scalar_select %p812, %s811, 7
        %s814 = smul.addr %s813, 8
        %s815 = scalar_lea.vmem %s9, %s814
        %s816 = smul.u32 4, %s20
        %s817 = smul.u32 4, %s20
        %p818 = scmp.lt.s32.totalorder %s817, 7
        %s819 = scalar_select %p818, %s817, 7
        %s820 = smul.addr %s819, 8
        %s821 = scalar_lea.vmem %s9, %s820
        %s822 = smul.u32 4, %s20
        %v824 = vld [vmem:[%s783] sm:$0xf]
        %v825 = vld [vmem:[%s783 + $0x4] sm:$0xf]
        %v826 = vld [vmem:[%s783 + $0x8] sm:$0xf]
        %v827 = vld [vmem:[%s783 + $0xc] sm:$0xf]
        %v828 = vld [vmem:[%s783 + $0x10] sm:$0xf]
        %v829 = vld [vmem:[%s783 + $0x14] sm:$0xf]
        %v830 = vld [vmem:[%s783 + $0x18] sm:$0xf]
        %v831 = vld [vmem:[%s783 + $0x1c] sm:$0xf]
        %v832 = vld [vmem:[%s783 + $0x20] sm:$0xf]
        %v833 = vld [vmem:[%s783 + $0x24] sm:$0xf]
        %v834 = vld [vmem:[%s783 + $0x28] sm:$0xf]
        %v835 = vld [vmem:[%s783 + $0x2c] sm:$0xf]
        %v836 = vld [vmem:[%s783 + $0x30] sm:$0xf]
        %v837 = vld [vmem:[%s783 + $0x34] sm:$0xf]
        %v838 = vld [vmem:[%s783 + $0x38] sm:$0xf]
        %v839 = vld [vmem:[%s783 + $0x3c] sm:$0xf]
        %v840 = vld [vmem:[%s783 + $0x40] sm:$0xf]
        %v841 = vld [vmem:[%s783 + $0x44] sm:$0xf]
        %v842 = vld [vmem:[%s783 + $0x48] sm:$0xf]
        %v843 = vld [vmem:[%s783 + $0x4c] sm:$0xf]
        %v844 = vld [vmem:[%s783 + $0x50] sm:$0xf]
        %v845 = vld [vmem:[%s783 + $0x54] sm:$0xf]
        %v846 = vld [vmem:[%s783 + $0x58] sm:$0xf]
        %v847 = vld [vmem:[%s783 + $0x5c] sm:$0xf]
        %v848 = vld [vmem:[%s783 + $0x60] sm:$0xf]
        %v849 = vld [vmem:[%s783 + $0x64] sm:$0xf]
        %v850 = vld [vmem:[%s783 + $0x68] sm:$0xf]
        %v851 = vld [vmem:[%s783 + $0x6c] sm:$0xf]
        %v852 = vld [vmem:[%s783 + $0x70] sm:$0xf]
        %v853 = vld [vmem:[%s783 + $0x74] sm:$0xf]
        %v854 = vld [vmem:[%s783 + $0x78] sm:$0xf]
        %v855 = vld [vmem:[%s783 + $0x7c] sm:$0xf]
        %v856 = vld [vmem:[%s783 + $0x80] sm:$0xf]
        %v857 = vld [vmem:[%s783 + $0x84] sm:$0xf]
        %v858 = vld [vmem:[%s783 + $0x88] sm:$0xf]
        %v859 = vld [vmem:[%s783 + $0x8c] sm:$0xf]
        %v860 = vld [vmem:[%s783 + $0x90] sm:$0xf]
        %v861 = vld [vmem:[%s783 + $0x94] sm:$0xf]
        %v862 = vld [vmem:[%s783 + $0x98] sm:$0xf]
        %v863 = vld [vmem:[%s783 + $0x9c] sm:$0xf]
        %v864 = vld [vmem:[%s783 + $0xa0] sm:$0xf]
        %v865 = vld [vmem:[%s783 + $0xa4] sm:$0xf]
        %v866 = vld [vmem:[%s783 + $0xa8] sm:$0xf]
        %v867 = vld [vmem:[%s783 + $0xac] sm:$0xf]
        %v868 = vld [vmem:[%s783 + $0xb0] sm:$0xf]
        %v869 = vld [vmem:[%s783 + $0xb4] sm:$0xf]
        %v870 = vld [vmem:[%s783 + $0xb8] sm:$0xf]
        %v871 = vld [vmem:[%s783 + $0xbc] sm:$0xf]
        %v872 = vld [vmem:[%s783 + $0xc0] sm:$0xf]
        %v873 = vld [vmem:[%s783 + $0xc4] sm:$0xf]
        %v874 = vld [vmem:[%s783 + $0xc8] sm:$0xf]
        %v875 = vld [vmem:[%s783 + $0xcc] sm:$0xf]
        %v876 = vld [vmem:[%s783 + $0xd0] sm:$0xf]
        %v877 = vld [vmem:[%s783 + $0xd4] sm:$0xf]
        %v878 = vld [vmem:[%s783 + $0xd8] sm:$0xf]
        %v879 = vld [vmem:[%s783 + $0xdc] sm:$0xf]
        %v880 = vld [vmem:[%s783 + $0xe0] sm:$0xf]
        %v881 = vld [vmem:[%s783 + $0xe4] sm:$0xf]
        %v882 = vld [vmem:[%s783 + $0xe8] sm:$0xf]
        %v883 = vld [vmem:[%s783 + $0xec] sm:$0xf]
        %v884 = vld [vmem:[%s783 + $0xf0] sm:$0xf]
        %v885 = vld [vmem:[%s783 + $0xf4] sm:$0xf]
        %v886 = vld [vmem:[%s783 + $0xf8] sm:$0xf]
        %v887 = vld [vmem:[%s783 + $0xfc] sm:$0xf]
        %v888 = vld [vmem:[%s783 + $0x100] sm:$0xf]
        %v889 = vld [vmem:[%s783 + $0x104] sm:$0xf]
        %v890 = vld [vmem:[%s783 + $0x108] sm:$0xf]
        %v891 = vld [vmem:[%s783 + $0x10c] sm:$0xf]
        %v892 = vld [vmem:[%s783 + $0x110] sm:$0xf]
        %v893 = vld [vmem:[%s783 + $0x114] sm:$0xf]
        %v894 = vld [vmem:[%s783 + $0x118] sm:$0xf]
        %v895 = vld [vmem:[%s783 + $0x11c] sm:$0xf]
        %v896 = vld [vmem:[%s783 + $0x120] sm:$0xf]
        %v897 = vld [vmem:[%s783 + $0x124] sm:$0xf]
        %v898 = vld [vmem:[%s783 + $0x128] sm:$0xf]
        %v899 = vld [vmem:[%s783 + $0x12c] sm:$0xf]
        %v900 = vld [vmem:[%s783 + $0x130] sm:$0xf]
        %v901 = vld [vmem:[%s783 + $0x134] sm:$0xf]
        %v902 = vld [vmem:[%s783 + $0x138] sm:$0xf]
        %v903 = vld [vmem:[%s783 + $0x13c] sm:$0xf]
        %v904 = vld [vmem:[%s783 + $0x140] sm:$0xf]
        %v905 = vld [vmem:[%s783 + $0x144] sm:$0xf]
        %v906 = vld [vmem:[%s783 + $0x148] sm:$0xf]
        %v907 = vld [vmem:[%s783 + $0x14c] sm:$0xf]
        %v908 = vld [vmem:[%s783 + $0x150] sm:$0xf]
        %v909 = vld [vmem:[%s783 + $0x154] sm:$0xf]
        %v910 = vld [vmem:[%s783 + $0x158] sm:$0xf]
        %v911 = vld [vmem:[%s783 + $0x15c] sm:$0xf]
        %v912 = vld [vmem:[%s783 + $0x160] sm:$0xf]
        %v913 = vld [vmem:[%s783 + $0x164] sm:$0xf]
        %v914 = vld [vmem:[%s783 + $0x168] sm:$0xf]
        %v915 = vld [vmem:[%s783 + $0x16c] sm:$0xf]
        %v916 = vld [vmem:[%s783 + $0x170] sm:$0xf]
        %v917 = vld [vmem:[%s783 + $0x174] sm:$0xf]
        %v918 = vld [vmem:[%s783 + $0x178] sm:$0xf]
        %v919 = vld [vmem:[%s783 + $0x17c] sm:$0xf]
        %v920 = vld [vmem:[%s783 + $0x180] sm:$0xf]
        %v921 = vld [vmem:[%s783 + $0x184] sm:$0xf]
        %v922 = vld [vmem:[%s783 + $0x188] sm:$0xf]
        %v923 = vld [vmem:[%s783 + $0x18c] sm:$0xf]
        %v924 = vld [vmem:[%s783 + $0x190] sm:$0xf]
        %v925 = vld [vmem:[%s783 + $0x194] sm:$0xf]
        %v926 = vld [vmem:[%s783 + $0x198] sm:$0xf]
        %v927 = vld [vmem:[%s783 + $0x19c] sm:$0xf]
        %v928 = vld [vmem:[%s783 + $0x1a0] sm:$0xf]
        %v929 = vld [vmem:[%s783 + $0x1a4] sm:$0xf]
        %v930 = vld [vmem:[%s783 + $0x1a8] sm:$0xf]
        %v931 = vld [vmem:[%s783 + $0x1ac] sm:$0xf]
        %v932 = vld [vmem:[%s783 + $0x1b0] sm:$0xf]
        %v933 = vld [vmem:[%s783 + $0x1b4] sm:$0xf]
        %v934 = vld [vmem:[%s783 + $0x1b8] sm:$0xf]
        %v935 = vld [vmem:[%s783 + $0x1bc] sm:$0xf]
        %v1032 = vunpack.c.l.b16 %v824
        %v1033 = vunpack.c.l.b16 %v825
        %v1034 = vunpack.c.l.b16 %v826
        %v1035 = vunpack.c.l.b16 %v827
        %v1036 = vunpack.c.l.b16 %v828
        %v1037 = vunpack.c.l.b16 %v829
        %v1038 = vunpack.c.l.b16 %v830
        %v1039 = vunpack.c.l.b16 %v831
        %v1040 = vunpack.c.l.b16 %v832
        %v1041 = vunpack.c.l.b16 %v833
        %v1042 = vunpack.c.l.b16 %v834
        %v1043 = vunpack.c.l.b16 %v835
        %v1044 = vunpack.c.l.b16 %v836
        %v1045 = vunpack.c.l.b16 %v837
        %v1046 = vunpack.c.l.b16 %v838
        %v1047 = vunpack.c.l.b16 %v839
        %v1048 = vunpack.c.l.b16 %v840
        %v1049 = vunpack.c.l.b16 %v841
        %v1050 = vunpack.c.l.b16 %v842
        %v1051 = vunpack.c.l.b16 %v843
        %v1052 = vunpack.c.l.b16 %v844
        %v1053 = vunpack.c.l.b16 %v845
        %v1054 = vunpack.c.l.b16 %v846
        %v1055 = vunpack.c.l.b16 %v847
        %v1056 = vunpack.c.l.b16 %v848
        %v1057 = vunpack.c.l.b16 %v849
        %v1058 = vunpack.c.l.b16 %v850
        %v1059 = vunpack.c.l.b16 %v851
        %v1060 = vunpack.c.l.b16 %v852
        %v1061 = vunpack.c.l.b16 %v853
        %v1062 = vunpack.c.l.b16 %v854
        %v1063 = vunpack.c.l.b16 %v855
        %v1064 = vunpack.c.l.b16 %v856
        %v1065 = vunpack.c.l.b16 %v857
        %v1066 = vunpack.c.l.b16 %v858
        %v1067 = vunpack.c.l.b16 %v859
        %v1068 = vunpack.c.l.b16 %v860
        %v1069 = vunpack.c.l.b16 %v861
        %v1070 = vunpack.c.l.b16 %v862
        %v1071 = vunpack.c.l.b16 %v863
        %v1072 = vunpack.c.l.b16 %v864
        %v1073 = vunpack.c.l.b16 %v865
        %v1074 = vunpack.c.l.b16 %v866
        %v1075 = vunpack.c.l.b16 %v867
        %v1076 = vunpack.c.l.b16 %v868
        %v1077 = vunpack.c.l.b16 %v869
        %v1078 = vunpack.c.l.b16 %v870
        %v1079 = vunpack.c.l.b16 %v871
        %v1080 = vunpack.c.l.b16 %v872
        %v1081 = vunpack.c.l.b16 %v873
        %v1082 = vunpack.c.l.b16 %v874
        %v1083 = vunpack.c.l.b16 %v875
        %v1084 = vunpack.c.l.b16 %v876
        %v1085 = vunpack.c.l.b16 %v877
        %v1086 = vunpack.c.l.b16 %v878
        %v1087 = vunpack.c.l.b16 %v879
        %v1088 = vunpack.c.l.b16 %v880
        %v1089 = vunpack.c.l.b16 %v881
        %v1090 = vunpack.c.l.b16 %v882
        %v1091 = vunpack.c.l.b16 %v883
        %v1092 = vunpack.c.l.b16 %v884
        %v1093 = vunpack.c.l.b16 %v885
        %v1094 = vunpack.c.l.b16 %v886
        %v1095 = vunpack.c.l.b16 %v887
        %v1096 = vunpack.c.l.b16 %v888
        %v1097 = vunpack.c.l.b16 %v889
        %v1098 = vunpack.c.l.b16 %v890
        %v1099 = vunpack.c.l.b16 %v891
        %v1100 = vunpack.c.l.b16 %v892
        %v1101 = vunpack.c.l.b16 %v893
        %v1102 = vunpack.c.l.b16 %v894
        %v1103 = vunpack.c.l.b16 %v895
        %v1104 = vunpack.c.l.b16 %v896
        %v1105 = vunpack.c.l.b16 %v897
        %v1106 = vunpack.c.l.b16 %v898
        %v1107 = vunpack.c.l.b16 %v899
        %v1108 = vunpack.c.l.b16 %v900
        %v1109 = vunpack.c.l.b16 %v901
        %v1110 = vunpack.c.l.b16 %v902
        %v1111 = vunpack.c.l.b16 %v903
        %v1112 = vunpack.c.l.b16 %v904
        %v1113 = vunpack.c.l.b16 %v905
        %v1114 = vunpack.c.l.b16 %v906
        %v1115 = vunpack.c.l.b16 %v907
        %v1116 = vunpack.c.l.b16 %v908
        %v1117 = vunpack.c.l.b16 %v909
        %v1118 = vunpack.c.l.b16 %v910
        %v1119 = vunpack.c.l.b16 %v911
        %v1120 = vunpack.c.l.b16 %v912
        %v1121 = vunpack.c.l.b16 %v913
        %v1122 = vunpack.c.l.b16 %v914
        %v1123 = vunpack.c.l.b16 %v915
        %v1124 = vunpack.c.l.b16 %v916
        %v1125 = vunpack.c.l.b16 %v917
        %v1126 = vunpack.c.l.b16 %v918
        %v1127 = vunpack.c.l.b16 %v919
        %v1128 = vpack.c.b16 %v1033, %v1032
        %v1129 = vpack.c.b16 %v1035, %v1034
        %v1130 = vpack.c.b16 %v1037, %v1036
        %v1131 = vpack.c.b16 %v1039, %v1038
        %v1132 = vpack.c.b16 %v1041, %v1040
        %v1133 = vpack.c.b16 %v1043, %v1042
        %v1134 = vpack.c.b16 %v1045, %v1044
        %v1135 = vpack.c.b16 %v1047, %v1046
        %v1136 = vpack.c.b16 %v1049, %v1048
        %v1137 = vpack.c.b16 %v1051, %v1050
        %v1138 = vpack.c.b16 %v1053, %v1052
        %v1139 = vpack.c.b16 %v1055, %v1054
        %v1140 = vpack.c.b16 %v1057, %v1056
        %v1141 = vpack.c.b16 %v1059, %v1058
        %v1142 = vpack.c.b16 %v1061, %v1060
        %v1143 = vpack.c.b16 %v1063, %v1062
        %v1144 = vpack.c.b16 %v1065, %v1064
        %v1145 = vpack.c.b16 %v1067, %v1066
        %v1146 = vpack.c.b16 %v1069, %v1068
        %v1147 = vpack.c.b16 %v1071, %v1070
        %v1148 = vpack.c.b16 %v1073, %v1072
        %v1149 = vpack.c.b16 %v1075, %v1074
        %v1150 = vpack.c.b16 %v1077, %v1076
        %v1151 = vpack.c.b16 %v1079, %v1078
        %v1152 = vpack.c.b16 %v1081, %v1080
        %v1153 = vpack.c.b16 %v1083, %v1082
        %v1154 = vpack.c.b16 %v1085, %v1084
        %v1155 = vpack.c.b16 %v1087, %v1086
        %v1156 = vpack.c.b16 %v1089, %v1088
        %v1157 = vpack.c.b16 %v1091, %v1090
        %v1158 = vpack.c.b16 %v1093, %v1092
        %v1159 = vpack.c.b16 %v1095, %v1094
        %v1160 = vpack.c.b16 %v1097, %v1096
        %v1161 = vpack.c.b16 %v1099, %v1098
        %v1162 = vpack.c.b16 %v1101, %v1100
        %v1163 = vpack.c.b16 %v1103, %v1102
        %v1164 = vpack.c.b16 %v1105, %v1104
        %v1165 = vpack.c.b16 %v1107, %v1106
        %v1166 = vpack.c.b16 %v1109, %v1108
        %v1167 = vpack.c.b16 %v1111, %v1110
        %v1168 = vpack.c.b16 %v1113, %v1112
        %v1169 = vpack.c.b16 %v1115, %v1114
        %v1170 = vpack.c.b16 %v1117, %v1116
        %v1171 = vpack.c.b16 %v1119, %v1118
        %v1172 = vpack.c.b16 %v1121, %v1120
        %v1173 = vpack.c.b16 %v1123, %v1122
        %v1174 = vpack.c.b16 %v1125, %v1124
        %v1175 = vpack.c.b16 %v1127, %v1126
        %v1180 = vunpack.c.l.b16 %v920
        %v1181 = vunpack.c.l.b16 %v921
        %v1182 = vunpack.c.l.b16 %v922
        %v1183 = vunpack.c.l.b16 %v923
        %v1184 = vpack.c.b16 %v1181, %v1180
        %v1185 = vpack.c.b16 %v1183, %v1182
        %1186 = vrot.lane.b32.xlu0 %v1130, 28
        %v1187 = vpop.permute.xlu0 %1186
        %1188 = vrot.lane.b32.xlu0 %v1131, 28
        %v1189 = vpop.permute.xlu0 %1188
        %1190 = vrot.lane.b32.xlu0 %v1132, 28
        %v1191 = vpop.permute.xlu0 %1190
        %1192 = vrot.lane.b32.xlu0 %v1133, 28
        %v1193 = vpop.permute.xlu0 %1192
        %1194 = vrot.lane.b32.xlu0 %v1134, 28
        %v1195 = vpop.permute.xlu0 %1194
        %1196 = vrot.lane.b32.xlu0 %v1135, 28
        %v1197 = vpop.permute.xlu0 %1196
        %1198 = vrot.lane.b32.xlu0 %v1136, 28
        %v1199 = vpop.permute.xlu0 %1198
        %1200 = vrot.lane.b32.xlu0 %v1137, 28
        %v1201 = vpop.permute.xlu0 %1200
        %1202 = vrot.lane.b32.xlu0 %v1138, 28
        %v1203 = vpop.permute.xlu0 %1202
        %1204 = vrot.lane.b32.xlu0 %v1139, 28
        %v1205 = vpop.permute.xlu0 %1204
        %1206 = vrot.lane.b32.xlu0 %v1140, 28
        %v1207 = vpop.permute.xlu0 %1206
        %1208 = vrot.lane.b32.xlu0 %v1141, 28
        %v1209 = vpop.permute.xlu0 %1208
        %1210 = vrot.lane.b32.xlu0 %v1142, 28
        %v1211 = vpop.permute.xlu0 %1210
        %1212 = vrot.lane.b32.xlu0 %v1143, 28
        %v1213 = vpop.permute.xlu0 %1212
        %1214 = vrot.lane.b32.xlu0 %v1144, 28
        %v1215 = vpop.permute.xlu0 %1214
        %1216 = vrot.lane.b32.xlu0 %v1145, 28
        %v1217 = vpop.permute.xlu0 %1216
        %1218 = vrot.lane.b32.xlu0 %v1146, 28
        %v1219 = vpop.permute.xlu0 %1218
        %1220 = vrot.lane.b32.xlu0 %v1147, 28
        %v1221 = vpop.permute.xlu0 %1220
        %1222 = vrot.lane.b32.xlu0 %v1148, 28
        %v1223 = vpop.permute.xlu0 %1222
        %1224 = vrot.lane.b32.xlu0 %v1149, 28
        %v1225 = vpop.permute.xlu0 %1224
        %1226 = vrot.lane.b32.xlu0 %v1150, 28
        %v1227 = vpop.permute.xlu0 %1226
        %1228 = vrot.lane.b32.xlu0 %v1151, 28
        %v1229 = vpop.permute.xlu0 %1228
        %1230 = vrot.lane.b32.xlu0 %v1152, 28
        %v1231 = vpop.permute.xlu0 %1230
        %1232 = vrot.lane.b32.xlu0 %v1153, 28
        %v1233 = vpop.permute.xlu0 %1232
        %1234 = vrot.lane.b32.xlu0 %v1154, 28
        %v1235 = vpop.permute.xlu0 %1234
        %1236 = vrot.lane.b32.xlu0 %v1155, 28
        %v1237 = vpop.permute.xlu0 %1236
        %1238 = vrot.lane.b32.xlu0 %v1156, 28
        %v1239 = vpop.permute.xlu0 %1238
        %1240 = vrot.lane.b32.xlu0 %v1157, 28
        %v1241 = vpop.permute.xlu0 %1240
        %1242 = vrot.lane.b32.xlu0 %v1158, 28
        %v1243 = vpop.permute.xlu0 %1242
        %1244 = vrot.lane.b32.xlu0 %v1159, 28
        %v1245 = vpop.permute.xlu0 %1244
        %1246 = vrot.lane.b32.xlu0 %v1160, 28
        %v1247 = vpop.permute.xlu0 %1246
        %1248 = vrot.lane.b32.xlu0 %v1161, 28
        %v1249 = vpop.permute.xlu0 %1248
        %1250 = vrot.lane.b32.xlu0 %v1162, 28
        %v1251 = vpop.permute.xlu0 %1250
        %1252 = vrot.lane.b32.xlu0 %v1163, 28
        %v1253 = vpop.permute.xlu0 %1252
        %1254 = vrot.lane.b32.xlu0 %v1164, 28
        %v1255 = vpop.permute.xlu0 %1254
        %1256 = vrot.lane.b32.xlu0 %v1165, 28
        %v1257 = vpop.permute.xlu0 %1256
        %1258 = vrot.lane.b32.xlu0 %v1166, 28
        %v1259 = vpop.permute.xlu0 %1258
        %1260 = vrot.lane.b32.xlu0 %v1167, 28
        %v1261 = vpop.permute.xlu0 %1260
        %1262 = vrot.lane.b32.xlu0 %v1168, 28
        %v1263 = vpop.permute.xlu0 %1262
        %1264 = vrot.lane.b32.xlu0 %v1169, 28
        %v1265 = vpop.permute.xlu0 %1264
        %1266 = vrot.lane.b32.xlu0 %v1170, 28
        %v1267 = vpop.permute.xlu0 %1266
        %1268 = vrot.lane.b32.xlu0 %v1171, 28
        %v1269 = vpop.permute.xlu0 %1268
        %1270 = vrot.lane.b32.xlu0 %v1172, 28
        %v1271 = vpop.permute.xlu0 %1270
        %1272 = vrot.lane.b32.xlu0 %v1173, 28
        %v1273 = vpop.permute.xlu0 %1272
        %1274 = vrot.lane.b32.xlu0 %v1174, 28
        %v1275 = vpop.permute.xlu0 %1274
        %1276 = vrot.lane.b32.xlu0 %v1175, 28
        %v1277 = vpop.permute.xlu0 %1276
        %1278 = vrot.lane.b32.xlu0 %v1184, 28
        %v1279 = vpop.permute.xlu0 %1278
        %1280 = vrot.lane.b32.xlu0 %v1185, 28
        %v1281 = vpop.permute.xlu0 %1280
        %v1286 = vunpack.c.l.b16 %v924
        %v1287 = vunpack.c.l.b16 %v925
        %v1288 = vunpack.c.l.b16 %v926
        %v1289 = vunpack.c.l.b16 %v927
        %v1290 = vpack.c.b16 %v1287, %v1286
        %v1291 = vpack.c.b16 %v1289, %v1288
        %1292 = vrot.lane.b32.xlu0 %v1132, 56
        %v1293 = vpop.permute.xlu0 %1292
        %1294 = vrot.lane.b32.xlu0 %v1133, 56
        %v1295 = vpop.permute.xlu0 %1294
        %1296 = vrot.lane.b32.xlu0 %v1134, 56
        %v1297 = vpop.permute.xlu0 %1296
        %1298 = vrot.lane.b32.xlu0 %v1135, 56
        %v1299 = vpop.permute.xlu0 %1298
        %1300 = vrot.lane.b32.xlu0 %v1136, 56
        %v1301 = vpop.permute.xlu0 %1300
        %1302 = vrot.lane.b32.xlu0 %v1137, 56
        %v1303 = vpop.permute.xlu0 %1302
        %1304 = vrot.lane.b32.xlu0 %v1138, 56
        %v1305 = vpop.permute.xlu0 %1304
        %1306 = vrot.lane.b32.xlu0 %v1139, 56
        %v1307 = vpop.permute.xlu0 %1306
        %1308 = vrot.lane.b32.xlu0 %v1140, 56
        %v1309 = vpop.permute.xlu0 %1308
        %1310 = vrot.lane.b32.xlu0 %v1141, 56
        %v1311 = vpop.permute.xlu0 %1310
        %1312 = vrot.lane.b32.xlu0 %v1142, 56
        %v1313 = vpop.permute.xlu0 %1312
        %1314 = vrot.lane.b32.xlu0 %v1143, 56
        %v1315 = vpop.permute.xlu0 %1314
        %1316 = vrot.lane.b32.xlu0 %v1144, 56
        %v1317 = vpop.permute.xlu0 %1316
        %1318 = vrot.lane.b32.xlu0 %v1145, 56
        %v1319 = vpop.permute.xlu0 %1318
        %1320 = vrot.lane.b32.xlu0 %v1146, 56
        %v1321 = vpop.permute.xlu0 %1320
        %1322 = vrot.lane.b32.xlu0 %v1147, 56
        %v1323 = vpop.permute.xlu0 %1322
        %1324 = vrot.lane.b32.xlu0 %v1148, 56
        %v1325 = vpop.permute.xlu0 %1324
        %1326 = vrot.lane.b32.xlu0 %v1149, 56
        %v1327 = vpop.permute.xlu0 %1326
        %1328 = vrot.lane.b32.xlu0 %v1150, 56
        %v1329 = vpop.permute.xlu0 %1328
        %1330 = vrot.lane.b32.xlu0 %v1151, 56
        %v1331 = vpop.permute.xlu0 %1330
        %1332 = vrot.lane.b32.xlu0 %v1152, 56
        %v1333 = vpop.permute.xlu0 %1332
        %1334 = vrot.lane.b32.xlu0 %v1153, 56
        %v1335 = vpop.permute.xlu0 %1334
        %1336 = vrot.lane.b32.xlu0 %v1154, 56
        %v1337 = vpop.permute.xlu0 %1336
        %1338 = vrot.lane.b32.xlu0 %v1155, 56
        %v1339 = vpop.permute.xlu0 %1338
        %1340 = vrot.lane.b32.xlu0 %v1156, 56
        %v1341 = vpop.permute.xlu0 %1340
        %1342 = vrot.lane.b32.xlu0 %v1157, 56
        %v1343 = vpop.permute.xlu0 %1342
        %1344 = vrot.lane.b32.xlu0 %v1158, 56
        %v1345 = vpop.permute.xlu0 %1344
        %1346 = vrot.lane.b32.xlu0 %v1159, 56
        %v1347 = vpop.permute.xlu0 %1346
        %1348 = vrot.lane.b32.xlu0 %v1160, 56
        %v1349 = vpop.permute.xlu0 %1348
        %1350 = vrot.lane.b32.xlu0 %v1161, 56
        %v1351 = vpop.permute.xlu0 %1350
        %1352 = vrot.lane.b32.xlu0 %v1162, 56
        %v1353 = vpop.permute.xlu0 %1352
        %1354 = vrot.lane.b32.xlu0 %v1163, 56
        %v1355 = vpop.permute.xlu0 %1354
        %1356 = vrot.lane.b32.xlu0 %v1164, 56
        %v1357 = vpop.permute.xlu0 %1356
        %1358 = vrot.lane.b32.xlu0 %v1165, 56
        %v1359 = vpop.permute.xlu0 %1358
        %1360 = vrot.lane.b32.xlu0 %v1166, 56
        %v1361 = vpop.permute.xlu0 %1360
        %1362 = vrot.lane.b32.xlu0 %v1167, 56
        %v1363 = vpop.permute.xlu0 %1362
        %1364 = vrot.lane.b32.xlu0 %v1168, 56
        %v1365 = vpop.permute.xlu0 %1364
        %1366 = vrot.lane.b32.xlu0 %v1169, 56
        %v1367 = vpop.permute.xlu0 %1366
        %1368 = vrot.lane.b32.xlu0 %v1170, 56
        %v1369 = vpop.permute.xlu0 %1368
        %1370 = vrot.lane.b32.xlu0 %v1171, 56
        %v1371 = vpop.permute.xlu0 %1370
        %1372 = vrot.lane.b32.xlu0 %v1172, 56
        %v1373 = vpop.permute.xlu0 %1372
        %1374 = vrot.lane.b32.xlu0 %v1173, 56
        %v1375 = vpop.permute.xlu0 %1374
        %1376 = vrot.lane.b32.xlu0 %v1174, 56
        %v1377 = vpop.permute.xlu0 %1376
        %1378 = vrot.lane.b32.xlu0 %v1175, 56
        %v1379 = vpop.permute.xlu0 %1378
        %1380 = vrot.lane.b32.xlu0 %v1184, 56
        %v1381 = vpop.permute.xlu0 %1380
        %1382 = vrot.lane.b32.xlu0 %v1185, 56
        %v1383 = vpop.permute.xlu0 %1382
        %1384 = vrot.lane.b32.xlu0 %v1290, 56
        %v1385 = vpop.permute.xlu0 %1384
        %1386 = vrot.lane.b32.xlu0 %v1291, 56
        %v1387 = vpop.permute.xlu0 %1386
        %v1392 = vunpack.c.l.b16 %v928
        %v1393 = vunpack.c.l.b16 %v929
        %v1394 = vunpack.c.l.b16 %v930
        %v1395 = vunpack.c.l.b16 %v931
        %v1396 = vpack.c.b16 %v1393, %v1392
        %v1397 = vpack.c.b16 %v1395, %v1394
        %1398 = vrot.lane.b32.xlu0 %v1134, 84
        %v1399 = vpop.permute.xlu0 %1398
        %1400 = vrot.lane.b32.xlu0 %v1135, 84
        %v1401 = vpop.permute.xlu0 %1400
        %1402 = vrot.lane.b32.xlu0 %v1136, 84
        %v1403 = vpop.permute.xlu0 %1402
        %1404 = vrot.lane.b32.xlu0 %v1137, 84
        %v1405 = vpop.permute.xlu0 %1404
        %1406 = vrot.lane.b32.xlu0 %v1138, 84
        %v1407 = vpop.permute.xlu0 %1406
        %1408 = vrot.lane.b32.xlu0 %v1139, 84
        %v1409 = vpop.permute.xlu0 %1408
        %1410 = vrot.lane.b32.xlu0 %v1140, 84
        %v1411 = vpop.permute.xlu0 %1410
        %1412 = vrot.lane.b32.xlu0 %v1141, 84
        %v1413 = vpop.permute.xlu0 %1412
        %1414 = vrot.lane.b32.xlu0 %v1142, 84
        %v1415 = vpop.permute.xlu0 %1414
        %1416 = vrot.lane.b32.xlu0 %v1143, 84
        %v1417 = vpop.permute.xlu0 %1416
        %1418 = vrot.lane.b32.xlu0 %v1144, 84
        %v1419 = vpop.permute.xlu0 %1418
        %1420 = vrot.lane.b32.xlu0 %v1145, 84
        %v1421 = vpop.permute.xlu0 %1420
        %1422 = vrot.lane.b32.xlu0 %v1146, 84
        %v1423 = vpop.permute.xlu0 %1422
        %1424 = vrot.lane.b32.xlu0 %v1147, 84
        %v1425 = vpop.permute.xlu0 %1424
        %1426 = vrot.lane.b32.xlu0 %v1148, 84
        %v1427 = vpop.permute.xlu0 %1426
        %1428 = vrot.lane.b32.xlu0 %v1149, 84
        %v1429 = vpop.permute.xlu0 %1428
        %1430 = vrot.lane.b32.xlu0 %v1150, 84
        %v1431 = vpop.permute.xlu0 %1430
        %1432 = vrot.lane.b32.xlu0 %v1151, 84
        %v1433 = vpop.permute.xlu0 %1432
        %1434 = vrot.lane.b32.xlu0 %v1152, 84
        %v1435 = vpop.permute.xlu0 %1434
        %1436 = vrot.lane.b32.xlu0 %v1153, 84
        %v1437 = vpop.permute.xlu0 %1436
        %1438 = vrot.lane.b32.xlu0 %v1154, 84
        %v1439 = vpop.permute.xlu0 %1438
        %1440 = vrot.lane.b32.xlu0 %v1155, 84
        %v1441 = vpop.permute.xlu0 %1440
        %1442 = vrot.lane.b32.xlu0 %v1156, 84
        %v1443 = vpop.permute.xlu0 %1442
        %1444 = vrot.lane.b32.xlu0 %v1157, 84
        %v1445 = vpop.permute.xlu0 %1444
        %1446 = vrot.lane.b32.xlu0 %v1158, 84
        %v1447 = vpop.permute.xlu0 %1446
        %1448 = vrot.lane.b32.xlu0 %v1159, 84
        %v1449 = vpop.permute.xlu0 %1448
        %1450 = vrot.lane.b32.xlu0 %v1160, 84
        %v1451 = vpop.permute.xlu0 %1450
        %1452 = vrot.lane.b32.xlu0 %v1161, 84
        %v1453 = vpop.permute.xlu0 %1452
        %1454 = vrot.lane.b32.xlu0 %v1162, 84
        %v1455 = vpop.permute.xlu0 %1454
        %1456 = vrot.lane.b32.xlu0 %v1163, 84
        %v1457 = vpop.permute.xlu0 %1456
        %1458 = vrot.lane.b32.xlu0 %v1164, 84
        %v1459 = vpop.permute.xlu0 %1458
        %1460 = vrot.lane.b32.xlu0 %v1165, 84
        %v1461 = vpop.permute.xlu0 %1460
        %1462 = vrot.lane.b32.xlu0 %v1166, 84
        %v1463 = vpop.permute.xlu0 %1462
        %1464 = vrot.lane.b32.xlu0 %v1167, 84
        %v1465 = vpop.permute.xlu0 %1464
        %1466 = vrot.lane.b32.xlu0 %v1168, 84
        %v1467 = vpop.permute.xlu0 %1466
        %1468 = vrot.lane.b32.xlu0 %v1169, 84
        %v1469 = vpop.permute.xlu0 %1468
        %1470 = vrot.lane.b32.xlu0 %v1170, 84
        %v1471 = vpop.permute.xlu0 %1470
        %1472 = vrot.lane.b32.xlu0 %v1171, 84
        %v1473 = vpop.permute.xlu0 %1472
        %1474 = vrot.lane.b32.xlu0 %v1172, 84
        %v1475 = vpop.permute.xlu0 %1474
        %1476 = vrot.lane.b32.xlu0 %v1173, 84
        %v1477 = vpop.permute.xlu0 %1476
        %1478 = vrot.lane.b32.xlu0 %v1174, 84
        %v1479 = vpop.permute.xlu0 %1478
        %1480 = vrot.lane.b32.xlu0 %v1175, 84
        %v1481 = vpop.permute.xlu0 %1480
        %1482 = vrot.lane.b32.xlu0 %v1184, 84
        %v1483 = vpop.permute.xlu0 %1482
        %1484 = vrot.lane.b32.xlu0 %v1185, 84
        %v1485 = vpop.permute.xlu0 %1484
        %1486 = vrot.lane.b32.xlu0 %v1290, 84
        %v1487 = vpop.permute.xlu0 %1486
        %1488 = vrot.lane.b32.xlu0 %v1291, 84
        %v1489 = vpop.permute.xlu0 %1488
        %1490 = vrot.lane.b32.xlu0 %v1396, 84
        %v1491 = vpop.permute.xlu0 %1490
        %1492 = vrot.lane.b32.xlu0 %v1397, 84
        %v1493 = vpop.permute.xlu0 %1492
        %v1498 = vunpack.c.l.b16 %v932
        %v1499 = vunpack.c.l.b16 %v933
        %v1500 = vunpack.c.l.b16 %v934
        %v1501 = vunpack.c.l.b16 %v935
        %v1502 = vpack.c.b16 %v1499, %v1498
        %v1503 = vpack.c.b16 %v1501, %v1500
        %1504 = vrot.lane.b32.xlu0 %v1136, 112
        %v1505 = vpop.permute.xlu0 %1504
        %1506 = vrot.lane.b32.xlu0 %v1137, 112
        %v1507 = vpop.permute.xlu0 %1506
        %1508 = vrot.lane.b32.xlu0 %v1138, 112
        %v1509 = vpop.permute.xlu0 %1508
        %1510 = vrot.lane.b32.xlu0 %v1139, 112
        %v1511 = vpop.permute.xlu0 %1510
        %1512 = vrot.lane.b32.xlu0 %v1140, 112
        %v1513 = vpop.permute.xlu0 %1512
        %1514 = vrot.lane.b32.xlu0 %v1141, 112
        %v1515 = vpop.permute.xlu0 %1514
        %1516 = vrot.lane.b32.xlu0 %v1142, 112
        %v1517 = vpop.permute.xlu0 %1516
        %1518 = vrot.lane.b32.xlu0 %v1143, 112
        %v1519 = vpop.permute.xlu0 %1518
        %1520 = vrot.lane.b32.xlu0 %v1144, 112
        %v1521 = vpop.permute.xlu0 %1520
        %1522 = vrot.lane.b32.xlu0 %v1145, 112
        %v1523 = vpop.permute.xlu0 %1522
        %1524 = vrot.lane.b32.xlu0 %v1146, 112
        %v1525 = vpop.permute.xlu0 %1524
        %1526 = vrot.lane.b32.xlu0 %v1147, 112
        %v1527 = vpop.permute.xlu0 %1526
        %1528 = vrot.lane.b32.xlu0 %v1148, 112
        %v1529 = vpop.permute.xlu0 %1528
        %1530 = vrot.lane.b32.xlu0 %v1149, 112
        %v1531 = vpop.permute.xlu0 %1530
        %1532 = vrot.lane.b32.xlu0 %v1150, 112
        %v1533 = vpop.permute.xlu0 %1532
        %1534 = vrot.lane.b32.xlu0 %v1151, 112
        %v1535 = vpop.permute.xlu0 %1534
        %1536 = vrot.lane.b32.xlu0 %v1152, 112
        %v1537 = vpop.permute.xlu0 %1536
        %1538 = vrot.lane.b32.xlu0 %v1153, 112
        %v1539 = vpop.permute.xlu0 %1538
        %1540 = vrot.lane.b32.xlu0 %v1154, 112
        %v1541 = vpop.permute.xlu0 %1540
        %1542 = vrot.lane.b32.xlu0 %v1155, 112
        %v1543 = vpop.permute.xlu0 %1542
        %1544 = vrot.lane.b32.xlu0 %v1156, 112
        %v1545 = vpop.permute.xlu0 %1544
        %1546 = vrot.lane.b32.xlu0 %v1157, 112
        %v1547 = vpop.permute.xlu0 %1546
        %1548 = vrot.lane.b32.xlu0 %v1158, 112
        %v1549 = vpop.permute.xlu0 %1548
        %1550 = vrot.lane.b32.xlu0 %v1159, 112
        %v1551 = vpop.permute.xlu0 %1550
        %1552 = vrot.lane.b32.xlu0 %v1160, 112
        %v1553 = vpop.permute.xlu0 %1552
        %1554 = vrot.lane.b32.xlu0 %v1161, 112
        %v1555 = vpop.permute.xlu0 %1554
        %1556 = vrot.lane.b32.xlu0 %v1162, 112
        %v1557 = vpop.permute.xlu0 %1556
        %1558 = vrot.lane.b32.xlu0 %v1163, 112
        %v1559 = vpop.permute.xlu0 %1558
        %1560 = vrot.lane.b32.xlu0 %v1164, 112
        %v1561 = vpop.permute.xlu0 %1560
        %1562 = vrot.lane.b32.xlu0 %v1165, 112
        %v1563 = vpop.permute.xlu0 %1562
        %1564 = vrot.lane.b32.xlu0 %v1166, 112
        %v1565 = vpop.permute.xlu0 %1564
        %1566 = vrot.lane.b32.xlu0 %v1167, 112
        %v1567 = vpop.permute.xlu0 %1566
        %1568 = vrot.lane.b32.xlu0 %v1168, 112
        %v1569 = vpop.permute.xlu0 %1568
        %1570 = vrot.lane.b32.xlu0 %v1169, 112
        %v1571 = vpop.permute.xlu0 %1570
        %1572 = vrot.lane.b32.xlu0 %v1170, 112
        %v1573 = vpop.permute.xlu0 %1572
        %1574 = vrot.lane.b32.xlu0 %v1171, 112
        %v1575 = vpop.permute.xlu0 %1574
        %1576 = vrot.lane.b32.xlu0 %v1172, 112
        %v1577 = vpop.permute.xlu0 %1576
        %1578 = vrot.lane.b32.xlu0 %v1173, 112
        %v1579 = vpop.permute.xlu0 %1578
        %1580 = vrot.lane.b32.xlu0 %v1174, 112
        %v1581 = vpop.permute.xlu0 %1580
        %1582 = vrot.lane.b32.xlu0 %v1175, 112
        %v1583 = vpop.permute.xlu0 %1582
        %1584 = vrot.lane.b32.xlu0 %v1184, 112
        %v1585 = vpop.permute.xlu0 %1584
        %1586 = vrot.lane.b32.xlu0 %v1185, 112
        %v1587 = vpop.permute.xlu0 %1586
        %1588 = vrot.lane.b32.xlu0 %v1290, 112
        %v1589 = vpop.permute.xlu0 %1588
        %1590 = vrot.lane.b32.xlu0 %v1291, 112
        %v1591 = vpop.permute.xlu0 %1590
        %1592 = vrot.lane.b32.xlu0 %v1396, 112
        %v1593 = vpop.permute.xlu0 %1592
        %1594 = vrot.lane.b32.xlu0 %v1397, 112
        %v1595 = vpop.permute.xlu0 %1594
        %1596 = vrot.lane.b32.xlu0 %v1502, 112
        %v1597 = vpop.permute.xlu0 %1596
        %1598 = vrot.lane.b32.xlu0 %v1503, 112
        %v1599 = vpop.permute.xlu0 %1598
        %vm1600 = vcmask 228352
        %v1603 = vsel %vm1600, %v1128, %v1187
        %v1606 = vsel %vm1600, %v1129, %v1189
        %v1609 = vsel %vm1600, %v1130, %v1191
        %v1612 = vsel %vm1600, %v1131, %v1193
        %v1615 = vsel %vm1600, %v1132, %v1195
        %v1618 = vsel %vm1600, %v1133, %v1197
        %v1621 = vsel %vm1600, %v1134, %v1199
        %v1624 = vsel %vm1600, %v1135, %v1201
        %v1627 = vsel %vm1600, %v1136, %v1203
        %v1630 = vsel %vm1600, %v1137, %v1205
        %v1633 = vsel %vm1600, %v1138, %v1207
        %v1636 = vsel %vm1600, %v1139, %v1209
        %v1639 = vsel %vm1600, %v1140, %v1211
        %v1642 = vsel %vm1600, %v1141, %v1213
        %v1645 = vsel %vm1600, %v1142, %v1215
        %v1648 = vsel %vm1600, %v1143, %v1217
        %v1651 = vsel %vm1600, %v1144, %v1219
        %v1654 = vsel %vm1600, %v1145, %v1221
        %v1657 = vsel %vm1600, %v1146, %v1223
        %v1660 = vsel %vm1600, %v1147, %v1225
        %v1663 = vsel %vm1600, %v1148, %v1227
        %v1666 = vsel %vm1600, %v1149, %v1229
        %v1669 = vsel %vm1600, %v1150, %v1231
        %v1672 = vsel %vm1600, %v1151, %v1233
        %v1675 = vsel %vm1600, %v1152, %v1235
        %v1678 = vsel %vm1600, %v1153, %v1237
        %v1681 = vsel %vm1600, %v1154, %v1239
        %v1684 = vsel %vm1600, %v1155, %v1241
        %v1687 = vsel %vm1600, %v1156, %v1243
        %v1690 = vsel %vm1600, %v1157, %v1245
        %v1693 = vsel %vm1600, %v1158, %v1247
        %v1696 = vsel %vm1600, %v1159, %v1249
        %v1699 = vsel %vm1600, %v1160, %v1251
        %v1702 = vsel %vm1600, %v1161, %v1253
        %v1705 = vsel %vm1600, %v1162, %v1255
        %v1708 = vsel %vm1600, %v1163, %v1257
        %v1711 = vsel %vm1600, %v1164, %v1259
        %v1714 = vsel %vm1600, %v1165, %v1261
        %v1717 = vsel %vm1600, %v1166, %v1263
        %v1720 = vsel %vm1600, %v1167, %v1265
        %v1723 = vsel %vm1600, %v1168, %v1267
        %v1726 = vsel %vm1600, %v1169, %v1269
        %v1729 = vsel %vm1600, %v1170, %v1271
        %v1732 = vsel %vm1600, %v1171, %v1273
        %v1735 = vsel %vm1600, %v1172, %v1275
        %v1738 = vsel %vm1600, %v1173, %v1277
        %v1741 = vsel %vm1600, %v1174, %v1279
        %v1744 = vsel %vm1600, %v1175, %v1281
        %vm1745 = vcmask 457728
        %v1747 = vsel %vm1745, %v1603, %v1293
        %v1749 = vsel %vm1745, %v1606, %v1295
        %v1751 = vsel %vm1745, %v1609, %v1297
        %v1753 = vsel %vm1745, %v1612, %v1299
        %v1755 = vsel %vm1745, %v1615, %v1301
        %v1757 = vsel %vm1745, %v1618, %v1303
        %v1759 = vsel %vm1745, %v1621, %v1305
        %v1761 = vsel %vm1745, %v1624, %v1307
        %v1763 = vsel %vm1745, %v1627, %v1309
        %v1765 = vsel %vm1745, %v1630, %v1311
        %v1767 = vsel %vm1745, %v1633, %v1313
        %v1769 = vsel %vm1745, %v1636, %v1315
        %v1771 = vsel %vm1745, %v1639, %v1317
        %v1773 = vsel %vm1745, %v1642, %v1319
        %v1775 = vsel %vm1745, %v1645, %v1321
        %v1777 = vsel %vm1745, %v1648, %v1323
        %v1779 = vsel %vm1745, %v1651, %v1325
        %v1781 = vsel %vm1745, %v1654, %v1327
        %v1783 = vsel %vm1745, %v1657, %v1329
        %v1785 = vsel %vm1745, %v1660, %v1331
        %v1787 = vsel %vm1745, %v1663, %v1333
        %v1789 = vsel %vm1745, %v1666, %v1335
        %v1791 = vsel %vm1745, %v1669, %v1337
        %v1793 = vsel %vm1745, %v1672, %v1339
        %v1795 = vsel %vm1745, %v1675, %v1341
        %v1797 = vsel %vm1745, %v1678, %v1343
        %v1799 = vsel %vm1745, %v1681, %v1345
        %v1801 = vsel %vm1745, %v1684, %v1347
        %v1803 = vsel %vm1745, %v1687, %v1349
        %v1805 = vsel %vm1745, %v1690, %v1351
        %v1807 = vsel %vm1745, %v1693, %v1353
        %v1809 = vsel %vm1745, %v1696, %v1355
        %v1811 = vsel %vm1745, %v1699, %v1357
        %v1813 = vsel %vm1745, %v1702, %v1359
        %v1815 = vsel %vm1745, %v1705, %v1361
        %v1817 = vsel %vm1745, %v1708, %v1363
        %v1819 = vsel %vm1745, %v1711, %v1365
        %v1821 = vsel %vm1745, %v1714, %v1367
        %v1823 = vsel %vm1745, %v1717, %v1369
        %v1825 = vsel %vm1745, %v1720, %v1371
        %v1827 = vsel %vm1745, %v1723, %v1373
        %v1829 = vsel %vm1745, %v1726, %v1375
        %v1831 = vsel %vm1745, %v1729, %v1377
        %v1833 = vsel %vm1745, %v1732, %v1379
        %v1835 = vsel %vm1745, %v1735, %v1381
        %v1837 = vsel %vm1745, %v1738, %v1383
        %v1839 = vsel %vm1745, %v1741, %v1385
        %v1841 = vsel %vm1745, %v1744, %v1387
        %vm1842 = vcmask 687104
        %v1844 = vsel %vm1842, %v1747, %v1399
        %v1846 = vsel %vm1842, %v1749, %v1401
        %v1848 = vsel %vm1842, %v1751, %v1403
        %v1850 = vsel %vm1842, %v1753, %v1405
        %v1852 = vsel %vm1842, %v1755, %v1407
        %v1854 = vsel %vm1842, %v1757, %v1409
        %v1856 = vsel %vm1842, %v1759, %v1411
        %v1858 = vsel %vm1842, %v1761, %v1413
        %v1860 = vsel %vm1842, %v1763, %v1415
        %v1862 = vsel %vm1842, %v1765, %v1417
        %v1864 = vsel %vm1842, %v1767, %v1419
        %v1866 = vsel %vm1842, %v1769, %v1421
        %v1868 = vsel %vm1842, %v1771, %v1423
        %v1870 = vsel %vm1842, %v1773, %v1425
        %v1872 = vsel %vm1842, %v1775, %v1427
        %v1874 = vsel %vm1842, %v1777, %v1429
        %v1876 = vsel %vm1842, %v1779, %v1431
        %v1878 = vsel %vm1842, %v1781, %v1433
        %v1880 = vsel %vm1842, %v1783, %v1435
        %v1882 = vsel %vm1842, %v1785, %v1437
        %v1884 = vsel %vm1842, %v1787, %v1439
        %v1886 = vsel %vm1842, %v1789, %v1441
        %v1888 = vsel %vm1842, %v1791, %v1443
        %v1890 = vsel %vm1842, %v1793, %v1445
        %v1892 = vsel %vm1842, %v1795, %v1447
        %v1894 = vsel %vm1842, %v1797, %v1449
        %v1896 = vsel %vm1842, %v1799, %v1451
        %v1898 = vsel %vm1842, %v1801, %v1453
        %v1900 = vsel %vm1842, %v1803, %v1455
        %v1902 = vsel %vm1842, %v1805, %v1457
        %v1904 = vsel %vm1842, %v1807, %v1459
        %v1906 = vsel %vm1842, %v1809, %v1461
        %v1908 = vsel %vm1842, %v1811, %v1463
        %v1910 = vsel %vm1842, %v1813, %v1465
        %v1912 = vsel %vm1842, %v1815, %v1467
        %v1914 = vsel %vm1842, %v1817, %v1469
        %v1916 = vsel %vm1842, %v1819, %v1471
        %v1918 = vsel %vm1842, %v1821, %v1473
        %v1920 = vsel %vm1842, %v1823, %v1475
        %v1922 = vsel %vm1842, %v1825, %v1477
        %v1924 = vsel %vm1842, %v1827, %v1479
        %v1926 = vsel %vm1842, %v1829, %v1481
        %v1928 = vsel %vm1842, %v1831, %v1483
        %v1930 = vsel %vm1842, %v1833, %v1485
        %v1932 = vsel %vm1842, %v1835, %v1487
        %v1934 = vsel %vm1842, %v1837, %v1489
        %v1936 = vsel %vm1842, %v1839, %v1491
        %v1938 = vsel %vm1842, %v1841, %v1493
        %vm1939 = vcmask 916480
        %v1941 = vsel %vm1939, %v1844, %v1505
        %v1944 = vsel %vm1939, %v1846, %v1507
        %v1947 = vsel %vm1939, %v1848, %v1509
        %v1950 = vsel %vm1939, %v1850, %v1511
        %v1953 = vsel %vm1939, %v1852, %v1513
        %v1956 = vsel %vm1939, %v1854, %v1515
        %v1959 = vsel %vm1939, %v1856, %v1517
        %v1962 = vsel %vm1939, %v1858, %v1519
        %v1965 = vsel %vm1939, %v1860, %v1521
        %v1968 = vsel %vm1939, %v1862, %v1523
        %v1971 = vsel %vm1939, %v1864, %v1525
        %v1974 = vsel %vm1939, %v1866, %v1527
        %v1977 = vsel %vm1939, %v1868, %v1529
        %v1980 = vsel %vm1939, %v1870, %v1531
        %v1983 = vsel %vm1939, %v1872, %v1533
        %v1986 = vsel %vm1939, %v1874, %v1535
        %v1989 = vsel %vm1939, %v1876, %v1537
        %v1992 = vsel %vm1939, %v1878, %v1539
        %v1995 = vsel %vm1939, %v1880, %v1541
        %v1998 = vsel %vm1939, %v1882, %v1543
        %v2001 = vsel %vm1939, %v1884, %v1545
        %v2004 = vsel %vm1939, %v1886, %v1547
        %v2007 = vsel %vm1939, %v1888, %v1549
        %v2010 = vsel %vm1939, %v1890, %v1551
        %v2013 = vsel %vm1939, %v1892, %v1553
        %v2016 = vsel %vm1939, %v1894, %v1555
        %v2019 = vsel %vm1939, %v1896, %v1557
        %v2022 = vsel %vm1939, %v1898, %v1559
        %v2025 = vsel %vm1939, %v1900, %v1561
        %v2028 = vsel %vm1939, %v1902, %v1563
        %v2031 = vsel %vm1939, %v1904, %v1565
        %v2034 = vsel %vm1939, %v1906, %v1567
        %v2037 = vsel %vm1939, %v1908, %v1569
        %v2040 = vsel %vm1939, %v1910, %v1571
        %v2043 = vsel %vm1939, %v1912, %v1573
        %v2046 = vsel %vm1939, %v1914, %v1575
        %v2049 = vsel %vm1939, %v1916, %v1577
        %v2052 = vsel %vm1939, %v1918, %v1579
        %v2055 = vsel %vm1939, %v1920, %v1581
        %v2058 = vsel %vm1939, %v1922, %v1583
        %v2061 = vsel %vm1939, %v1924, %v1585
        %v2064 = vsel %vm1939, %v1926, %v1587
        %v2067 = vsel %vm1939, %v1928, %v1589
        %v2070 = vsel %vm1939, %v1930, %v1591
        %v2073 = vsel %vm1939, %v1932, %v1593
        %v2076 = vsel %vm1939, %v1934, %v1595
        %v2079 = vsel %vm1939, %v1936, %v1597
        %v2082 = vsel %vm1939, %v1938, %v1599
        %v2084 = vld [vmem:[%s1] sm:$0xff]
        %v2085 = vld [vmem:[%s1 + $0x8] sm:$0xff]
        %v2086 = vld [vmem:[%s1 + $0x10] sm:$0xff]
        %v2087 = vld [vmem:[%s1 + $0x18] sm:$0xff]
        %v2088 = vld [vmem:[%s1 + $0x20] sm:$0xff]
        %v2089 = vld [vmem:[%s1 + $0x28] sm:$0xff]
        %v2090 = vld [vmem:[%s1 + $0x30] sm:$0xff]
        %v2091 = vld [vmem:[%s1 + $0x38] sm:$0xff]
        %v2092 = vld [vmem:[%s1 + $0x40] sm:$0xff]
        %v2093 = vld [vmem:[%s1 + $0x48] sm:$0xff]
        %v2094 = vld [vmem:[%s1 + $0x50] sm:$0xff]
        %v2095 = vld [vmem:[%s1 + $0x58] sm:$0xff]
        %v2096 = vld [vmem:[%s1 + $0x60] sm:$0xff]
        %v2097 = vld [vmem:[%s1 + $0x68] sm:$0xff]
        %v2098 = vld [vmem:[%s1 + $0x70] sm:$0xff]
        %v2099 = vld [vmem:[%s1 + $0x78] sm:$0xff]
        %v2100 = vld [vmem:[%s1 + $0x80] sm:$0xff]
        %v2101 = vld [vmem:[%s1 + $0x88] sm:$0x33]
        %v2120 = vunpack.c.l.b16 %v2084
        %v2121 = vunpack.c.h.b16 %v2084
        %v2122 = vunpack.c.l.b16 %v2085
        %v2123 = vunpack.c.h.b16 %v2085
        %v2124 = vunpack.c.l.b16 %v2086
        %v2125 = vunpack.c.h.b16 %v2086
        %v2126 = vunpack.c.l.b16 %v2087
        %v2127 = vunpack.c.h.b16 %v2087
        %v2128 = vunpack.c.l.b16 %v2088
        %v2129 = vunpack.c.h.b16 %v2088
        %v2130 = vunpack.c.l.b16 %v2089
        %v2131 = vunpack.c.h.b16 %v2089
        %v2132 = vunpack.c.l.b16 %v2090
        %v2133 = vunpack.c.h.b16 %v2090
        %v2134 = vunpack.c.l.b16 %v2091
        %v2135 = vunpack.c.h.b16 %v2091
        %v2136 = vunpack.c.l.b16 %v2092
        %v2137 = vunpack.c.h.b16 %v2092
        %v2138 = vunpack.c.l.b16 %v2093
        %v2139 = vunpack.c.h.b16 %v2093
        %v2140 = vunpack.c.l.b16 %v2094
        %v2141 = vunpack.c.h.b16 %v2094
        %v2142 = vunpack.c.l.b16 %v2095
        %v2143 = vunpack.c.h.b16 %v2095
        %v2144 = vunpack.c.l.b16 %v2096
        %v2145 = vunpack.c.h.b16 %v2096
        %v2146 = vunpack.c.l.b16 %v2097
        %v2147 = vunpack.c.h.b16 %v2097
        %v2148 = vunpack.c.l.b16 %v2098
        %v2149 = vunpack.c.h.b16 %v2098
        %v2150 = vunpack.c.l.b16 %v2099
        %v2151 = vunpack.c.h.b16 %v2099
        %v2152 = vunpack.c.l.b16 %v2100
        %v2153 = vunpack.c.h.b16 %v2100
        %v2154 = vunpack.c.l.b16 %v2101
        %v2155 = vunpack.c.h.b16 %v2101
        %v2156 = vpack.c.b16 %v2122, %v2120
        %v2157 = vpack.c.b16 %v2123, %v2121
        %v2158 = vpack.c.b16 %v2126, %v2124
        %v2159 = vpack.c.b16 %v2127, %v2125
        %v2160 = vpack.c.b16 %v2130, %v2128
        %v2161 = vpack.c.b16 %v2131, %v2129
        %v2162 = vpack.c.b16 %v2134, %v2132
        %v2163 = vpack.c.b16 %v2135, %v2133
        %v2164 = vpack.c.b16 %v2138, %v2136
        %v2165 = vpack.c.b16 %v2139, %v2137
        %v2166 = vpack.c.b16 %v2142, %v2140
        %v2167 = vpack.c.b16 %v2143, %v2141
        %v2168 = vpack.c.b16 %v2146, %v2144
        %v2169 = vpack.c.b16 %v2147, %v2145
        %v2170 = vpack.c.b16 %v2150, %v2148
        %v2171 = vpack.c.b16 %v2151, %v2149
        %v2172 = vpack.c.b16 %v2154, %v2152
        %v2173 = vpack.c.b16 %v2155, %v2153
        %vm2190 = vcmask 97280
        %v2191 = vsel %vm2190, %v1505, 0
        %v2193 = vsel %vm2190, %v1507, 0
        %v2195 = vsel %vm2190, %v1509, 0
        %v2197 = vsel %vm2190, %v1511, 0
        %v2199 = vsel %vm2190, %v1513, 0
        %v2201 = vsel %vm2190, %v1515, 0
        %v2203 = vsel %vm2190, %v1517, 0
        %v2205 = vsel %vm2190, %v1519, 0
        %v2207 = vsel %vm2190, %v1521, 0
        %v2209 = vsel %vm2190, %v1523, 0
        %v2211 = vsel %vm2190, %v1525, 0
        %v2213 = vsel %vm2190, %v1527, 0
        %v2215 = vsel %vm2190, %v1529, 0
        %v2217 = vsel %vm2190, %v1531, 0
        %v2219 = vsel %vm2190, %v1533, 0
        %v2221 = vsel %vm2190, %v1535, 0
        %v2223 = vsel %vm2190, %v1537, 0
        %v2225 = vsel %vm2190, %v1539, 0
        %v2227 = vsel %vm2190, %v1541, 0
        %v2229 = vsel %vm2190, %v1543, 0
        %v2231 = vsel %vm2190, %v1545, 0
        %v2233 = vsel %vm2190, %v1547, 0
        %v2235 = vsel %vm2190, %v1549, 0
        %v2237 = vsel %vm2190, %v1551, 0
        %v2239 = vsel %vm2190, %v1553, 0
        %v2241 = vsel %vm2190, %v1555, 0
        %v2243 = vsel %vm2190, %v1557, 0
        %v2245 = vsel %vm2190, %v1559, 0
        %v2247 = vsel %vm2190, %v1561, 0
        %v2249 = vsel %vm2190, %v1563, 0
        %v2251 = vsel %vm2190, %v1565, 0
        %v2253 = vsel %vm2190, %v1567, 0
        %v2255 = vsel %vm2190, %v1569, 0
        %v2257 = vsel %vm2190, %v1571, 0
        %v2259 = vsel %vm2190, %v1573, 0
        %v2261 = vsel %vm2190, %v1575, 0
        %v2263 = vsel %vm2190, %v1577, 0
        %v2265 = vsel %vm2190, %v1579, 0
        %v2267 = vsel %vm2190, %v1581, 0
        %v2269 = vsel %vm2190, %v1583, 0
        %v2271 = vsel %vm2190, %v1585, 0
        %v2273 = vsel %vm2190, %v1587, 0
        %v2275 = vsel %vm2190, %v1589, 0
        %v2277 = vsel %vm2190, %v1591, 0
        %v2279 = vsel %vm2190, %v1593, 0
        %v2281 = vsel %vm2190, %v1595, 0
        %v2283 = vsel %vm2190, %v1597, 0
        %v2285 = vsel %vm2190, %v1599, 0
        %vm2287 = vcmask 1045504
        %v2289 = vsel %vm2287, %v2172, 0
        %v2292 = vsel %vm2287, %v2173, 0
        %2294 = vmatprep.subr.bf16.mxu0 %v2171
        %2295 = vmatpush1.bf16.msra.mxu0 %v2170
        %2296 = vmatprep.subr.bf16.mxu0 %v2169
        %2297 = vmatpush1.bf16.msra.mxu0 %v2168
        %2298 = vmatprep.subr.bf16.mxu0 %v2167
        %2299 = vmatpush1.bf16.msra.mxu0 %v2166
        %2300 = vmatprep.subr.bf16.mxu0 %v2165
        %2301 = vmatpush1.bf16.msra.mxu0 %v2164
        %2302 = vmatprep.subr.bf16.mxu0 %v2163
        %2303 = vmatpush1.bf16.msra.mxu0 %v2162
        %2304 = vmatprep.subr.bf16.mxu0 %v2161
        %2305 = vmatpush1.bf16.msra.mxu0 %v2160
        %2306 = vmatprep.subr.bf16.mxu0 %v2159
        %2307 = vmatpush1.bf16.msra.mxu0 %v2158
        %2308 = vmatprep.subr.bf16.mxu0 %v2157
        %2309 = vmatpush1.bf16.msra.mxu0 %v2156
        %2310 = vmatprep.subr.bf16.mxu0 0
        %2311 = vmatpush2.bf16.msra.mxu0 0
        %2312 = vmatprep.subr.bf16.mxu0 0
        %2313 = vmatpush2.bf16.msra.mxu0 0
        %2314 = vmatprep.subr.bf16.mxu0 0
        %2315 = vmatpush2.bf16.msra.mxu0 0
        %2316 = vmatprep.subr.bf16.mxu0 0
        %2317 = vmatpush2.bf16.msra.mxu0 0
        %2318 = vmatprep.subr.bf16.mxu0 0
        %2319 = vmatpush2.bf16.msra.mxu0 0
        %2320 = vmatprep.subr.bf16.mxu0 0
        %2321 = vmatpush2.bf16.msra.mxu0 0
        %2322 = vmatprep.subr.bf16.mxu0 0
        %2323 = vmatpush2.bf16.msra.mxu0 0
        %2324 = vmatprep.subr.bf16.mxu0 %v2292
        %2325 = vmatpush2.bf16.msra.mxu0 %v2289
        %2326 = vmatprep.mubr.bf16.mxu0 %v2191
        %2327 = vmatmul.mubr.bf16.gmra.mxu0 %v1941
        %v2328 = vpop.f32.mrf.mxu0
        %v2329 = vadd.f32 0.0, %v2328
        %v2330 = vpop.f32.mrf.mxu0
        %v2331 = vadd.f32 0.0, %v2330
        %v2332 = vpop.f32.mrf.mxu0
        %v2333 = vadd.f32 0.0, %v2332
        %v2334 = vpop.f32.mrf.mxu0
        %v2335 = vadd.f32 0.0, %v2334
        %2336 = vmatprep.mubr.bf16.mxu0 %v2193
        %2337 = vmatmul.mubr.bf16.gmra.mxu0 %v1944
        %v2338 = vpop.f32.mrf.mxu0
        %v2339 = vadd.f32 0.0, %v2338
        %v2340 = vpop.f32.mrf.mxu0
        %v2341 = vadd.f32 0.0, %v2340
        %v2342 = vpop.f32.mrf.mxu0
        %v2343 = vadd.f32 0.0, %v2342
        %v2344 = vpop.f32.mrf.mxu0
        %v2345 = vadd.f32 0.0, %v2344
        %2346 = vmatprep.mubr.bf16.mxu0 %v2195
        %2347 = vmatmul.mubr.bf16.gmra.mxu0 %v1947
        %v2348 = vpop.f32.mrf.mxu0
        %v2349 = vadd.f32 0.0, %v2348
        %v2350 = vpop.f32.mrf.mxu0
        %v2351 = vadd.f32 0.0, %v2350
        %v2352 = vpop.f32.mrf.mxu0
        %v2353 = vadd.f32 0.0, %v2352
        %v2354 = vpop.f32.mrf.mxu0
        %v2355 = vadd.f32 0.0, %v2354
        %2356 = vmatprep.mubr.bf16.mxu0 %v2197
        %2357 = vmatmul.mubr.bf16.gmra.mxu0 %v1950
        %v2358 = vpop.f32.mrf.mxu0
        %v2359 = vadd.f32 0.0, %v2358
        %v2360 = vpop.f32.mrf.mxu0
        %v2361 = vadd.f32 0.0, %v2360
        %v2362 = vpop.f32.mrf.mxu0
        %v2363 = vadd.f32 0.0, %v2362
        %v2364 = vpop.f32.mrf.mxu0
        %v2365 = vadd.f32 0.0, %v2364
        %2366 = vmatprep.mubr.bf16.mxu0 %v2199
        %2367 = vmatmul.mubr.bf16.gmra.mxu0 %v1953
        %v2368 = vpop.f32.mrf.mxu0
        %v2369 = vadd.f32 0.0, %v2368
        %v2370 = vpop.f32.mrf.mxu0
        %v2371 = vadd.f32 0.0, %v2370
        %v2372 = vpop.f32.mrf.mxu0
        %v2373 = vadd.f32 0.0, %v2372
        %v2374 = vpop.f32.mrf.mxu0
        %v2375 = vadd.f32 0.0, %v2374
        %2376 = vmatprep.mubr.bf16.mxu0 %v2201
        %2377 = vmatmul.mubr.bf16.gmra.mxu0 %v1956
        %v2378 = vpop.f32.mrf.mxu0
        %v2379 = vadd.f32 0.0, %v2378
        %v2380 = vpop.f32.mrf.mxu0
        %v2381 = vadd.f32 0.0, %v2380
        %v2382 = vpop.f32.mrf.mxu0
        %v2383 = vadd.f32 0.0, %v2382
        %v2384 = vpop.f32.mrf.mxu0
        %v2385 = vadd.f32 0.0, %v2384
        %2386 = vmatprep.mubr.bf16.mxu0 %v2203
        %2387 = vmatmul.mubr.bf16.gmra.mxu0 %v1959
        %v2388 = vpop.f32.mrf.mxu0
        %v2389 = vadd.f32 0.0, %v2388
        %v2390 = vpop.f32.mrf.mxu0
        %v2391 = vadd.f32 0.0, %v2390
        %v2392 = vpop.f32.mrf.mxu0
        %v2393 = vadd.f32 0.0, %v2392
        %v2394 = vpop.f32.mrf.mxu0
        %v2395 = vadd.f32 0.0, %v2394
        %2396 = vmatprep.mubr.bf16.mxu0 %v2205
        %2397 = vmatmul.mubr.bf16.gmra.mxu0 %v1962
        %v2398 = vpop.f32.mrf.mxu0
        %v2399 = vadd.f32 0.0, %v2398
        %v2400 = vpop.f32.mrf.mxu0
        %v2401 = vadd.f32 0.0, %v2400
        %v2402 = vpop.f32.mrf.mxu0
        %v2403 = vadd.f32 0.0, %v2402
        %v2404 = vpop.f32.mrf.mxu0
        %v2405 = vadd.f32 0.0, %v2404
        %2406 = vmatprep.mubr.bf16.mxu0 %v2207
        %2407 = vmatmul.mubr.bf16.gmra.mxu0 %v1965
        %v2408 = vpop.f32.mrf.mxu0
        %v2409 = vadd.f32 0.0, %v2408
        %v2410 = vpop.f32.mrf.mxu0
        %v2411 = vadd.f32 0.0, %v2410
        %v2412 = vpop.f32.mrf.mxu0
        %v2413 = vadd.f32 0.0, %v2412
        %v2414 = vpop.f32.mrf.mxu0
        %v2415 = vadd.f32 0.0, %v2414
        %2416 = vmatprep.mubr.bf16.mxu0 %v2209
        %2417 = vmatmul.mubr.bf16.gmra.mxu0 %v1968
        %v2418 = vpop.f32.mrf.mxu0
        %v2419 = vadd.f32 0.0, %v2418
        %v2420 = vpop.f32.mrf.mxu0
        %v2421 = vadd.f32 0.0, %v2420
        %v2422 = vpop.f32.mrf.mxu0
        %v2423 = vadd.f32 0.0, %v2422
        %v2424 = vpop.f32.mrf.mxu0
        %v2425 = vadd.f32 0.0, %v2424
        %2426 = vmatprep.mubr.bf16.mxu0 %v2211
        %2427 = vmatmul.mubr.bf16.gmra.mxu0 %v1971
        %v2428 = vpop.f32.mrf.mxu0
        %v2429 = vadd.f32 0.0, %v2428
        %v2430 = vpop.f32.mrf.mxu0
        %v2431 = vadd.f32 0.0, %v2430
        %v2432 = vpop.f32.mrf.mxu0
        %v2433 = vadd.f32 0.0, %v2432
        %v2434 = vpop.f32.mrf.mxu0
        %v2435 = vadd.f32 0.0, %v2434
        %2436 = vmatprep.mubr.bf16.mxu0 %v2213
        %2437 = vmatmul.mubr.bf16.gmra.mxu0 %v1974
        %v2438 = vpop.f32.mrf.mxu0
        %v2439 = vadd.f32 0.0, %v2438
        %v2440 = vpop.f32.mrf.mxu0
        %v2441 = vadd.f32 0.0, %v2440
        %v2442 = vpop.f32.mrf.mxu0
        %v2443 = vadd.f32 0.0, %v2442
        %v2444 = vpop.f32.mrf.mxu0
        %v2445 = vadd.f32 0.0, %v2444
        %2446 = vmatprep.mubr.bf16.mxu0 %v2215
        %2447 = vmatmul.mubr.bf16.gmra.mxu0 %v1977
        %v2448 = vpop.f32.mrf.mxu0
        %v2449 = vadd.f32 0.0, %v2448
        %v2450 = vpop.f32.mrf.mxu0
        %v2451 = vadd.f32 0.0, %v2450
        %v2452 = vpop.f32.mrf.mxu0
        %v2453 = vadd.f32 0.0, %v2452
        %v2454 = vpop.f32.mrf.mxu0
        %v2455 = vadd.f32 0.0, %v2454
        %2456 = vmatprep.mubr.bf16.mxu0 %v2217
        %2457 = vmatmul.mubr.bf16.gmra.mxu0 %v1980
        %v2458 = vpop.f32.mrf.mxu0
        %v2459 = vadd.f32 0.0, %v2458
        %v2460 = vpop.f32.mrf.mxu0
        %v2461 = vadd.f32 0.0, %v2460
        %v2462 = vpop.f32.mrf.mxu0
        %v2463 = vadd.f32 0.0, %v2462
        %v2464 = vpop.f32.mrf.mxu0
        %v2465 = vadd.f32 0.0, %v2464
        %2466 = vmatprep.mubr.bf16.mxu0 %v2219
        %2467 = vmatmul.mubr.bf16.gmra.mxu0 %v1983
        %v2468 = vpop.f32.mrf.mxu0
        %v2469 = vadd.f32 0.0, %v2468
        %v2470 = vpop.f32.mrf.mxu0
        %v2471 = vadd.f32 0.0, %v2470
        %v2472 = vpop.f32.mrf.mxu0
        %v2473 = vadd.f32 0.0, %v2472
        %v2474 = vpop.f32.mrf.mxu0
        %v2475 = vadd.f32 0.0, %v2474
        %2476 = vmatprep.mubr.bf16.mxu0 %v2221
        %2477 = vmatmul.mubr.bf16.gmra.mxu0 %v1986
        %v2478 = vpop.f32.mrf.mxu0
        %v2479 = vadd.f32 0.0, %v2478
        %v2480 = vpop.f32.mrf.mxu0
        %v2481 = vadd.f32 0.0, %v2480
        %v2482 = vpop.f32.mrf.mxu0
        %v2483 = vadd.f32 0.0, %v2482
        %v2484 = vpop.f32.mrf.mxu0
        %v2485 = vadd.f32 0.0, %v2484
        %2486 = vmatprep.mubr.bf16.mxu0 %v2223
        %2487 = vmatmul.mubr.bf16.gmra.mxu0 %v1989
        %v2488 = vpop.f32.mrf.mxu0
        %v2489 = vadd.f32 0.0, %v2488
        %v2490 = vpop.f32.mrf.mxu0
        %v2491 = vadd.f32 0.0, %v2490
        %v2492 = vpop.f32.mrf.mxu0
        %v2493 = vadd.f32 0.0, %v2492
        %v2494 = vpop.f32.mrf.mxu0
        %v2495 = vadd.f32 0.0, %v2494
        %2496 = vmatprep.mubr.bf16.mxu0 %v2225
        %2497 = vmatmul.mubr.bf16.gmra.mxu0 %v1992
        %v2498 = vpop.f32.mrf.mxu0
        %v2499 = vadd.f32 0.0, %v2498
        %v2500 = vpop.f32.mrf.mxu0
        %v2501 = vadd.f32 0.0, %v2500
        %v2502 = vpop.f32.mrf.mxu0
        %v2503 = vadd.f32 0.0, %v2502
        %v2504 = vpop.f32.mrf.mxu0
        %v2505 = vadd.f32 0.0, %v2504
        %2506 = vmatprep.mubr.bf16.mxu0 %v2227
        %2507 = vmatmul.mubr.bf16.gmra.mxu0 %v1995
        %v2508 = vpop.f32.mrf.mxu0
        %v2509 = vadd.f32 0.0, %v2508
        %v2510 = vpop.f32.mrf.mxu0
        %v2511 = vadd.f32 0.0, %v2510
        %v2512 = vpop.f32.mrf.mxu0
        %v2513 = vadd.f32 0.0, %v2512
        %v2514 = vpop.f32.mrf.mxu0
        %v2515 = vadd.f32 0.0, %v2514
        %2516 = vmatprep.mubr.bf16.mxu0 %v2229
        %2517 = vmatmul.mubr.bf16.gmra.mxu0 %v1998
        %v2518 = vpop.f32.mrf.mxu0
        %v2519 = vadd.f32 0.0, %v2518
        %v2520 = vpop.f32.mrf.mxu0
        %v2521 = vadd.f32 0.0, %v2520
        %v2522 = vpop.f32.mrf.mxu0
        %v2523 = vadd.f32 0.0, %v2522
        %v2524 = vpop.f32.mrf.mxu0
        %v2525 = vadd.f32 0.0, %v2524
        %2526 = vmatprep.mubr.bf16.mxu0 %v2231
        %2527 = vmatmul.mubr.bf16.gmra.mxu0 %v2001
        %v2528 = vpop.f32.mrf.mxu0
        %v2529 = vadd.f32 0.0, %v2528
        %v2530 = vpop.f32.mrf.mxu0
        %v2531 = vadd.f32 0.0, %v2530
        %v2532 = vpop.f32.mrf.mxu0
        %v2533 = vadd.f32 0.0, %v2532
        %v2534 = vpop.f32.mrf.mxu0
        %v2535 = vadd.f32 0.0, %v2534
        %2536 = vmatprep.mubr.bf16.mxu0 %v2233
        %2537 = vmatmul.mubr.bf16.gmra.mxu0 %v2004
        %v2538 = vpop.f32.mrf.mxu0
        %v2539 = vadd.f32 0.0, %v2538
        %v2540 = vpop.f32.mrf.mxu0
        %v2541 = vadd.f32 0.0, %v2540
        %v2542 = vpop.f32.mrf.mxu0
        %v2543 = vadd.f32 0.0, %v2542
        %v2544 = vpop.f32.mrf.mxu0
        %v2545 = vadd.f32 0.0, %v2544
        %2546 = vmatprep.mubr.bf16.mxu0 %v2235
        %2547 = vmatmul.mubr.bf16.gmra.mxu0 %v2007
        %v2548 = vpop.f32.mrf.mxu0
        %v2549 = vadd.f32 0.0, %v2548
        %v2550 = vpop.f32.mrf.mxu0
        %v2551 = vadd.f32 0.0, %v2550
        %v2552 = vpop.f32.mrf.mxu0
        %v2553 = vadd.f32 0.0, %v2552
        %v2554 = vpop.f32.mrf.mxu0
        %v2555 = vadd.f32 0.0, %v2554
        %2556 = vmatprep.mubr.bf16.mxu0 %v2237
        %2557 = vmatmul.mubr.bf16.gmra.mxu0 %v2010
        %v2558 = vpop.f32.mrf.mxu0
        %v2559 = vadd.f32 0.0, %v2558
        %v2560 = vpop.f32.mrf.mxu0
        %v2561 = vadd.f32 0.0, %v2560
        %v2562 = vpop.f32.mrf.mxu0
        %v2563 = vadd.f32 0.0, %v2562
        %v2564 = vpop.f32.mrf.mxu0
        %v2565 = vadd.f32 0.0, %v2564
        %2566 = vmatprep.mubr.bf16.mxu0 %v2239
        %2567 = vmatmul.mubr.bf16.gmra.mxu0 %v2013
        %v2568 = vpop.f32.mrf.mxu0
        %v2569 = vadd.f32 0.0, %v2568
        %v2570 = vpop.f32.mrf.mxu0
        %v2571 = vadd.f32 0.0, %v2570
        %v2572 = vpop.f32.mrf.mxu0
        %v2573 = vadd.f32 0.0, %v2572
        %v2574 = vpop.f32.mrf.mxu0
        %v2575 = vadd.f32 0.0, %v2574
        %2576 = vmatprep.mubr.bf16.mxu0 %v2241
        %2577 = vmatmul.mubr.bf16.gmra.mxu0 %v2016
        %v2578 = vpop.f32.mrf.mxu0
        %v2579 = vadd.f32 0.0, %v2578
        %v2580 = vpop.f32.mrf.mxu0
        %v2581 = vadd.f32 0.0, %v2580
        %v2582 = vpop.f32.mrf.mxu0
        %v2583 = vadd.f32 0.0, %v2582
        %v2584 = vpop.f32.mrf.mxu0
        %v2585 = vadd.f32 0.0, %v2584
        %2586 = vmatprep.mubr.bf16.mxu0 %v2243
        %2587 = vmatmul.mubr.bf16.gmra.mxu0 %v2019
        %v2588 = vpop.f32.mrf.mxu0
        %v2589 = vadd.f32 0.0, %v2588
        %v2590 = vpop.f32.mrf.mxu0
        %v2591 = vadd.f32 0.0, %v2590
        %v2592 = vpop.f32.mrf.mxu0
        %v2593 = vadd.f32 0.0, %v2592
        %v2594 = vpop.f32.mrf.mxu0
        %v2595 = vadd.f32 0.0, %v2594
        %2596 = vmatprep.mubr.bf16.mxu0 %v2245
        %2597 = vmatmul.mubr.bf16.gmra.mxu0 %v2022
        %v2598 = vpop.f32.mrf.mxu0
        %v2599 = vadd.f32 0.0, %v2598
        %v2600 = vpop.f32.mrf.mxu0
        %v2601 = vadd.f32 0.0, %v2600
        %v2602 = vpop.f32.mrf.mxu0
        %v2603 = vadd.f32 0.0, %v2602
        %v2604 = vpop.f32.mrf.mxu0
        %v2605 = vadd.f32 0.0, %v2604
        %2606 = vmatprep.mubr.bf16.mxu0 %v2247
        %2607 = vmatmul.mubr.bf16.gmra.mxu0 %v2025
        %v2608 = vpop.f32.mrf.mxu0
        %v2609 = vadd.f32 0.0, %v2608
        %v2610 = vpop.f32.mrf.mxu0
        %v2611 = vadd.f32 0.0, %v2610
        %v2612 = vpop.f32.mrf.mxu0
        %v2613 = vadd.f32 0.0, %v2612
        %v2614 = vpop.f32.mrf.mxu0
        %v2615 = vadd.f32 0.0, %v2614
        %2616 = vmatprep.mubr.bf16.mxu0 %v2249
        %2617 = vmatmul.mubr.bf16.gmra.mxu0 %v2028
        %v2618 = vpop.f32.mrf.mxu0
        %v2619 = vadd.f32 0.0, %v2618
        %v2620 = vpop.f32.mrf.mxu0
        %v2621 = vadd.f32 0.0, %v2620
        %v2622 = vpop.f32.mrf.mxu0
        %v2623 = vadd.f32 0.0, %v2622
        %v2624 = vpop.f32.mrf.mxu0
        %v2625 = vadd.f32 0.0, %v2624
        %2626 = vmatprep.mubr.bf16.mxu0 %v2251
        %2627 = vmatmul.mubr.bf16.gmra.mxu0 %v2031
        %v2628 = vpop.f32.mrf.mxu0
        %v2629 = vadd.f32 0.0, %v2628
        %v2630 = vpop.f32.mrf.mxu0
        %v2631 = vadd.f32 0.0, %v2630
        %v2632 = vpop.f32.mrf.mxu0
        %v2633 = vadd.f32 0.0, %v2632
        %v2634 = vpop.f32.mrf.mxu0
        %v2635 = vadd.f32 0.0, %v2634
        %2636 = vmatprep.mubr.bf16.mxu0 %v2253
        %2637 = vmatmul.mubr.bf16.gmra.mxu0 %v2034
        %v2638 = vpop.f32.mrf.mxu0
        %v2639 = vadd.f32 0.0, %v2638
        %v2640 = vpop.f32.mrf.mxu0
        %v2641 = vadd.f32 0.0, %v2640
        %v2642 = vpop.f32.mrf.mxu0
        %v2643 = vadd.f32 0.0, %v2642
        %v2644 = vpop.f32.mrf.mxu0
        %v2645 = vadd.f32 0.0, %v2644
        %2646 = vmatprep.mubr.bf16.mxu0 %v2255
        %2647 = vmatmul.mubr.bf16.gmra.mxu0 %v2037
        %v2648 = vpop.f32.mrf.mxu0
        %v2649 = vadd.f32 0.0, %v2648
        %v2650 = vpop.f32.mrf.mxu0
        %v2651 = vadd.f32 0.0, %v2650
        %v2652 = vpop.f32.mrf.mxu0
        %v2653 = vadd.f32 0.0, %v2652
        %v2654 = vpop.f32.mrf.mxu0
        %v2655 = vadd.f32 0.0, %v2654
        %2656 = vmatprep.mubr.bf16.mxu0 %v2257
        %2657 = vmatmul.mubr.bf16.gmra.mxu0 %v2040
        %v2658 = vpop.f32.mrf.mxu0
        %v2659 = vadd.f32 0.0, %v2658
        %v2660 = vpop.f32.mrf.mxu0
        %v2661 = vadd.f32 0.0, %v2660
        %v2662 = vpop.f32.mrf.mxu0
        %v2663 = vadd.f32 0.0, %v2662
        %v2664 = vpop.f32.mrf.mxu0
        %v2665 = vadd.f32 0.0, %v2664
        %2666 = vmatprep.mubr.bf16.mxu0 %v2259
        %2667 = vmatmul.mubr.bf16.gmra.mxu0 %v2043
        %v2668 = vpop.f32.mrf.mxu0
        %v2669 = vadd.f32 0.0, %v2668
        %v2670 = vpop.f32.mrf.mxu0
        %v2671 = vadd.f32 0.0, %v2670
        %v2672 = vpop.f32.mrf.mxu0
        %v2673 = vadd.f32 0.0, %v2672
        %v2674 = vpop.f32.mrf.mxu0
        %v2675 = vadd.f32 0.0, %v2674
        %2676 = vmatprep.mubr.bf16.mxu0 %v2261
        %2677 = vmatmul.mubr.bf16.gmra.mxu0 %v2046
        %v2678 = vpop.f32.mrf.mxu0
        %v2679 = vadd.f32 0.0, %v2678
        %v2680 = vpop.f32.mrf.mxu0
        %v2681 = vadd.f32 0.0, %v2680
        %v2682 = vpop.f32.mrf.mxu0
        %v2683 = vadd.f32 0.0, %v2682
        %v2684 = vpop.f32.mrf.mxu0
        %v2685 = vadd.f32 0.0, %v2684
        %2686 = vmatprep.mubr.bf16.mxu0 %v2263
        %2687 = vmatmul.mubr.bf16.gmra.mxu0 %v2049
        %v2688 = vpop.f32.mrf.mxu0
        %v2689 = vadd.f32 0.0, %v2688
        %v2690 = vpop.f32.mrf.mxu0
        %v2691 = vadd.f32 0.0, %v2690
        %v2692 = vpop.f32.mrf.mxu0
        %v2693 = vadd.f32 0.0, %v2692
        %v2694 = vpop.f32.mrf.mxu0
        %v2695 = vadd.f32 0.0, %v2694
        %2696 = vmatprep.mubr.bf16.mxu0 %v2265
        %2697 = vmatmul.mubr.bf16.gmra.mxu0 %v2052
        %v2698 = vpop.f32.mrf.mxu0
        %v2699 = vadd.f32 0.0, %v2698
        %v2700 = vpop.f32.mrf.mxu0
        %v2701 = vadd.f32 0.0, %v2700
        %v2702 = vpop.f32.mrf.mxu0
        %v2703 = vadd.f32 0.0, %v2702
        %v2704 = vpop.f32.mrf.mxu0
        %v2705 = vadd.f32 0.0, %v2704
        %2706 = vmatprep.mubr.bf16.mxu0 %v2267
        %2707 = vmatmul.mubr.bf16.gmra.mxu0 %v2055
        %v2708 = vpop.f32.mrf.mxu0
        %v2709 = vadd.f32 0.0, %v2708
        %v2710 = vpop.f32.mrf.mxu0
        %v2711 = vadd.f32 0.0, %v2710
        %v2712 = vpop.f32.mrf.mxu0
        %v2713 = vadd.f32 0.0, %v2712
        %v2714 = vpop.f32.mrf.mxu0
        %v2715 = vadd.f32 0.0, %v2714
        %2716 = vmatprep.mubr.bf16.mxu0 %v2269
        %2717 = vmatmul.mubr.bf16.gmra.mxu0 %v2058
        %v2718 = vpop.f32.mrf.mxu0
        %v2719 = vadd.f32 0.0, %v2718
        %v2720 = vpop.f32.mrf.mxu0
        %v2721 = vadd.f32 0.0, %v2720
        %v2722 = vpop.f32.mrf.mxu0
        %v2723 = vadd.f32 0.0, %v2722
        %v2724 = vpop.f32.mrf.mxu0
        %v2725 = vadd.f32 0.0, %v2724
        %2726 = vmatprep.mubr.bf16.mxu0 %v2271
        %2727 = vmatmul.mubr.bf16.gmra.mxu0 %v2061
        %v2728 = vpop.f32.mrf.mxu0
        %v2729 = vadd.f32 0.0, %v2728
        %v2730 = vpop.f32.mrf.mxu0
        %v2731 = vadd.f32 0.0, %v2730
        %v2732 = vpop.f32.mrf.mxu0
        %v2733 = vadd.f32 0.0, %v2732
        %v2734 = vpop.f32.mrf.mxu0
        %v2735 = vadd.f32 0.0, %v2734
        %2736 = vmatprep.mubr.bf16.mxu0 %v2273
        %2737 = vmatmul.mubr.bf16.gmra.mxu0 %v2064
        %v2738 = vpop.f32.mrf.mxu0
        %v2739 = vadd.f32 0.0, %v2738
        %v2740 = vpop.f32.mrf.mxu0
        %v2741 = vadd.f32 0.0, %v2740
        %v2742 = vpop.f32.mrf.mxu0
        %v2743 = vadd.f32 0.0, %v2742
        %v2744 = vpop.f32.mrf.mxu0
        %v2745 = vadd.f32 0.0, %v2744
        %2746 = vmatprep.mubr.bf16.mxu0 %v2275
        %2747 = vmatmul.mubr.bf16.gmra.mxu0 %v2067
        %v2748 = vpop.f32.mrf.mxu0
        %v2749 = vadd.f32 0.0, %v2748
        %v2750 = vpop.f32.mrf.mxu0
        %v2751 = vadd.f32 0.0, %v2750
        %v2752 = vpop.f32.mrf.mxu0
        %v2753 = vadd.f32 0.0, %v2752
        %v2754 = vpop.f32.mrf.mxu0
        %v2755 = vadd.f32 0.0, %v2754
        %2756 = vmatprep.mubr.bf16.mxu0 %v2277
        %2757 = vmatmul.mubr.bf16.gmra.mxu0 %v2070
        %v2758 = vpop.f32.mrf.mxu0
        %v2759 = vadd.f32 0.0, %v2758
        %v2760 = vpop.f32.mrf.mxu0
        %v2761 = vadd.f32 0.0, %v2760
        %v2762 = vpop.f32.mrf.mxu0
        %v2763 = vadd.f32 0.0, %v2762
        %v2764 = vpop.f32.mrf.mxu0
        %v2765 = vadd.f32 0.0, %v2764
        %2766 = vmatprep.mubr.bf16.mxu0 %v2279
        %2767 = vmatmul.mubr.bf16.gmra.mxu0 %v2073
        %v2768 = vpop.f32.mrf.mxu0
        %v2769 = vadd.f32 0.0, %v2768
        %v2770 = vpop.f32.mrf.mxu0
        %v2771 = vadd.f32 0.0, %v2770
        %v2772 = vpop.f32.mrf.mxu0
        %v2773 = vadd.f32 0.0, %v2772
        %v2774 = vpop.f32.mrf.mxu0
        %v2775 = vadd.f32 0.0, %v2774
        %2776 = vmatprep.mubr.bf16.mxu0 %v2281
        %2777 = vmatmul.mubr.bf16.gmra.mxu0 %v2076
        %v2778 = vpop.f32.mrf.mxu0
        %v2779 = vadd.f32 0.0, %v2778
        %v2780 = vpop.f32.mrf.mxu0
        %v2781 = vadd.f32 0.0, %v2780
        %v2782 = vpop.f32.mrf.mxu0
        %v2783 = vadd.f32 0.0, %v2782
        %v2784 = vpop.f32.mrf.mxu0
        %v2785 = vadd.f32 0.0, %v2784
        %2786 = vmatprep.mubr.bf16.mxu0 %v2283
        %2787 = vmatmul.mubr.bf16.gmra.mxu0 %v2079
        %v2788 = vpop.f32.mrf.mxu0
        %v2789 = vadd.f32 0.0, %v2788
        %v2790 = vpop.f32.mrf.mxu0
        %v2791 = vadd.f32 0.0, %v2790
        %v2792 = vpop.f32.mrf.mxu0
        %v2793 = vadd.f32 0.0, %v2792
        %v2794 = vpop.f32.mrf.mxu0
        %v2795 = vadd.f32 0.0, %v2794
        %2796 = vmatprep.mubr.bf16.mxu0 %v2285
        %2797 = vmatmul.mubr.bf16.gmra.mxu0 %v2082
        %v2798 = vpop.f32.mrf.mxu0
        %v2799 = vadd.f32 0.0, %v2798
        %v2800 = vpop.f32.mrf.mxu0
        %v2801 = vadd.f32 0.0, %v2800
        %v2802 = vpop.f32.mrf.mxu0
        %v2803 = vadd.f32 0.0, %v2802
        %v2804 = vpop.f32.mrf.mxu0
        %v2805 = vadd.f32 0.0, %v2804
        %2806 = vdwg.mxu0
        %v2807 = vmax.f32 %v2329, %v2349
        %v2808 = vmax.f32 %v2331, %v2351
        %v2809 = vmax.f32 %v2333, %v2353
        %v2810 = vmax.f32 %v2335, %v2355
        %v2811 = vmax.f32 %v2339, %v2359
        %v2812 = vmax.f32 %v2341, %v2361
        %v2813 = vmax.f32 %v2343, %v2363
        %v2814 = vmax.f32 %v2345, %v2365
        %v2815 = vmax.f32 %v2369, %v2389
        %v2816 = vmax.f32 %v2371, %v2391
        %v2817 = vmax.f32 %v2373, %v2393
        %v2818 = vmax.f32 %v2375, %v2395
        %v2819 = vmax.f32 %v2379, %v2399
        %v2820 = vmax.f32 %v2381, %v2401
        %v2821 = vmax.f32 %v2383, %v2403
        %v2822 = vmax.f32 %v2385, %v2405
        %v2823 = vmax.f32 %v2409, %v2429
        %v2824 = vmax.f32 %v2411, %v2431
        %v2825 = vmax.f32 %v2413, %v2433
        %v2826 = vmax.f32 %v2415, %v2435
        %v2827 = vmax.f32 %v2419, %v2439
        %v2828 = vmax.f32 %v2421, %v2441
        %v2829 = vmax.f32 %v2423, %v2443
        %v2830 = vmax.f32 %v2425, %v2445
        %v2831 = vmax.f32 %v2449, %v2469
        %v2832 = vmax.f32 %v2451, %v2471
        %v2833 = vmax.f32 %v2453, %v2473
        %v2834 = vmax.f32 %v2455, %v2475
        %v2835 = vmax.f32 %v2459, %v2479
        %v2836 = vmax.f32 %v2461, %v2481
        %v2837 = vmax.f32 %v2463, %v2483
        %v2838 = vmax.f32 %v2465, %v2485
        %v2839 = vmax.f32 %v2489, %v2509
        %v2840 = vmax.f32 %v2491, %v2511
        %v2841 = vmax.f32 %v2493, %v2513
        %v2842 = vmax.f32 %v2495, %v2515
        %v2843 = vmax.f32 %v2499, %v2519
        %v2844 = vmax.f32 %v2501, %v2521
        %v2845 = vmax.f32 %v2503, %v2523
        %v2846 = vmax.f32 %v2505, %v2525
        %v2847 = vmax.f32 %v2529, %v2549
        %v2848 = vmax.f32 %v2531, %v2551
        %v2849 = vmax.f32 %v2533, %v2553
        %v2850 = vmax.f32 %v2535, %v2555
        %v2851 = vmax.f32 %v2539, %v2559
        %v2852 = vmax.f32 %v2541, %v2561
        %v2853 = vmax.f32 %v2543, %v2563
        %v2854 = vmax.f32 %v2545, %v2565
        %v2855 = vmax.f32 %v2569, %v2589
        %v2856 = vmax.f32 %v2571, %v2591
        %v2857 = vmax.f32 %v2573, %v2593
        %v2858 = vmax.f32 %v2575, %v2595
        %v2859 = vmax.f32 %v2579, %v2599
        %v2860 = vmax.f32 %v2581, %v2601
        %v2861 = vmax.f32 %v2583, %v2603
        %v2862 = vmax.f32 %v2585, %v2605
        %v2863 = vmax.f32 %v2609, %v2629
        %v2864 = vmax.f32 %v2611, %v2631
        %v2865 = vmax.f32 %v2613, %v2633
        %v2866 = vmax.f32 %v2615, %v2635
        %v2867 = vmax.f32 %v2619, %v2639
        %v2868 = vmax.f32 %v2621, %v2641
        %v2869 = vmax.f32 %v2623, %v2643
        %v2870 = vmax.f32 %v2625, %v2645
        %v2871 = vmax.f32 %v2649, %v2669
        %v2872 = vmax.f32 %v2651, %v2671
        %v2873 = vmax.f32 %v2653, %v2673
        %v2874 = vmax.f32 %v2655, %v2675
        %v2875 = vmax.f32 %v2659, %v2679
        %v2876 = vmax.f32 %v2661, %v2681
        %v2877 = vmax.f32 %v2663, %v2683
        %v2878 = vmax.f32 %v2665, %v2685
        %v2879 = vmax.f32 %v2689, %v2709
        %v2880 = vmax.f32 %v2691, %v2711
        %v2881 = vmax.f32 %v2693, %v2713
        %v2882 = vmax.f32 %v2695, %v2715
        %v2883 = vmax.f32 %v2699, %v2719
        %v2884 = vmax.f32 %v2701, %v2721
        %v2885 = vmax.f32 %v2703, %v2723
        %v2886 = vmax.f32 %v2705, %v2725
        %v2887 = vmax.f32 %v2729, %v2749
        %v2888 = vmax.f32 %v2731, %v2751
        %v2889 = vmax.f32 %v2733, %v2753
        %v2890 = vmax.f32 %v2735, %v2755
        %v2891 = vmax.f32 %v2739, %v2759
        %v2892 = vmax.f32 %v2741, %v2761
        %v2893 = vmax.f32 %v2743, %v2763
        %v2894 = vmax.f32 %v2745, %v2765
        %v2895 = vmax.f32 %v2769, %v2789
        %v2896 = vmax.f32 %v2771, %v2791
        %v2897 = vmax.f32 %v2773, %v2793
        %v2898 = vmax.f32 %v2775, %v2795
        %v2899 = vmax.f32 %v2779, %v2799
        %v2900 = vmax.f32 %v2781, %v2801
        %v2901 = vmax.f32 %v2783, %v2803
        %v2902 = vmax.f32 %v2785, %v2805
        %2999 = vrot.lane.b32.xlu0 %v2807, 118
        %v3000 = vpop.permute.xlu0 %2999
        %3001 = vrot.lane.b32.xlu0 %v2808, 118
        %v3002 = vpop.permute.xlu0 %3001
        %3003 = vrot.lane.b32.xlu0 %v2809, 118
        %v3004 = vpop.permute.xlu0 %3003
        %3005 = vrot.lane.b32.xlu0 %v2810, 118
        %v3006 = vpop.permute.xlu0 %3005
        %3007 = vrot.lane.b32.xlu0 %v2811, 118
        %v3008 = vpop.permute.xlu0 %3007
        %3009 = vrot.lane.b32.xlu0 %v2812, 118
        %v3010 = vpop.permute.xlu0 %3009
        %3011 = vrot.lane.b32.xlu0 %v2813, 118
        %v3012 = vpop.permute.xlu0 %3011
        %3013 = vrot.lane.b32.xlu0 %v2814, 118
        %v3014 = vpop.permute.xlu0 %3013
        %3015 = vrot.lane.b32.xlu0 %v2815, 118
        %v3016 = vpop.permute.xlu0 %3015
        %3017 = vrot.lane.b32.xlu0 %v2816, 118
        %v3018 = vpop.permute.xlu0 %3017
        %3019 = vrot.lane.b32.xlu0 %v2817, 118
        %v3020 = vpop.permute.xlu0 %3019
        %3021 = vrot.lane.b32.xlu0 %v2818, 118
        %v3022 = vpop.permute.xlu0 %3021
        %3023 = vrot.lane.b32.xlu0 %v2819, 118
        %v3024 = vpop.permute.xlu0 %3023
        %3025 = vrot.lane.b32.xlu0 %v2820, 118
        %v3026 = vpop.permute.xlu0 %3025
        %3027 = vrot.lane.b32.xlu0 %v2821, 118
        %v3028 = vpop.permute.xlu0 %3027
        %3029 = vrot.lane.b32.xlu0 %v2822, 118
        %v3030 = vpop.permute.xlu0 %3029
        %3031 = vrot.lane.b32.xlu0 %v2823, 118
        %v3032 = vpop.permute.xlu0 %3031
        %3033 = vrot.lane.b32.xlu0 %v2824, 118
        %v3034 = vpop.permute.xlu0 %3033
        %3035 = vrot.lane.b32.xlu0 %v2825, 118
        %v3036 = vpop.permute.xlu0 %3035
        %3037 = vrot.lane.b32.xlu0 %v2826, 118
        %v3038 = vpop.permute.xlu0 %3037
        %3039 = vrot.lane.b32.xlu0 %v2827, 118
        %v3040 = vpop.permute.xlu0 %3039
        %3041 = vrot.lane.b32.xlu0 %v2828, 118
        %v3042 = vpop.permute.xlu0 %3041
        %3043 = vrot.lane.b32.xlu0 %v2829, 118
        %v3044 = vpop.permute.xlu0 %3043
        %3045 = vrot.lane.b32.xlu0 %v2830, 118
        %v3046 = vpop.permute.xlu0 %3045
        %3047 = vrot.lane.b32.xlu0 %v2831, 118
        %v3048 = vpop.permute.xlu0 %3047
        %3049 = vrot.lane.b32.xlu0 %v2832, 118
        %v3050 = vpop.permute.xlu0 %3049
        %3051 = vrot.lane.b32.xlu0 %v2833, 118
        %v3052 = vpop.permute.xlu0 %3051
        %3053 = vrot.lane.b32.xlu0 %v2834, 118
        %v3054 = vpop.permute.xlu0 %3053
        %3055 = vrot.lane.b32.xlu0 %v2835, 118
        %v3056 = vpop.permute.xlu0 %3055
        %3057 = vrot.lane.b32.xlu0 %v2836, 118
        %v3058 = vpop.permute.xlu0 %3057
        %3059 = vrot.lane.b32.xlu0 %v2837, 118
        %v3060 = vpop.permute.xlu0 %3059
        %3061 = vrot.lane.b32.xlu0 %v2838, 118
        %v3062 = vpop.permute.xlu0 %3061
        %3063 = vrot.lane.b32.xlu0 %v2839, 118
        %v3064 = vpop.permute.xlu0 %3063
        %3065 = vrot.lane.b32.xlu0 %v2840, 118
        %v3066 = vpop.permute.xlu0 %3065
        %3067 = vrot.lane.b32.xlu0 %v2841, 118
        %v3068 = vpop.permute.xlu0 %3067
        %3069 = vrot.lane.b32.xlu0 %v2842, 118
        %v3070 = vpop.permute.xlu0 %3069
        %3071 = vrot.lane.b32.xlu0 %v2843, 118
        %v3072 = vpop.permute.xlu0 %3071
        %3073 = vrot.lane.b32.xlu0 %v2844, 118
        %v3074 = vpop.permute.xlu0 %3073
        %3075 = vrot.lane.b32.xlu0 %v2845, 118
        %v3076 = vpop.permute.xlu0 %3075
        %3077 = vrot.lane.b32.xlu0 %v2846, 118
        %v3078 = vpop.permute.xlu0 %3077
        %3079 = vrot.lane.b32.xlu0 %v2847, 118
        %v3080 = vpop.permute.xlu0 %3079
        %3081 = vrot.lane.b32.xlu0 %v2848, 118
        %v3082 = vpop.permute.xlu0 %3081
        %3083 = vrot.lane.b32.xlu0 %v2849, 118
        %v3084 = vpop.permute.xlu0 %3083
        %3085 = vrot.lane.b32.xlu0 %v2850, 118
        %v3086 = vpop.permute.xlu0 %3085
        %3087 = vrot.lane.b32.xlu0 %v2851, 118
        %v3088 = vpop.permute.xlu0 %3087
        %3089 = vrot.lane.b32.xlu0 %v2852, 118
        %v3090 = vpop.permute.xlu0 %3089
        %3091 = vrot.lane.b32.xlu0 %v2853, 118
        %v3092 = vpop.permute.xlu0 %3091
        %3093 = vrot.lane.b32.xlu0 %v2854, 118
        %v3094 = vpop.permute.xlu0 %3093
        %3095 = vrot.lane.b32.xlu0 %v2855, 118
        %v3096 = vpop.permute.xlu0 %3095
        %3097 = vrot.lane.b32.xlu0 %v2856, 118
        %v3098 = vpop.permute.xlu0 %3097
        %3099 = vrot.lane.b32.xlu0 %v2857, 118
        %v3100 = vpop.permute.xlu0 %3099
        %3101 = vrot.lane.b32.xlu0 %v2858, 118
        %v3102 = vpop.permute.xlu0 %3101
        %3103 = vrot.lane.b32.xlu0 %v2859, 118
        %v3104 = vpop.permute.xlu0 %3103
        %3105 = vrot.lane.b32.xlu0 %v2860, 118
        %v3106 = vpop.permute.xlu0 %3105
        %3107 = vrot.lane.b32.xlu0 %v2861, 118
        %v3108 = vpop.permute.xlu0 %3107
        %3109 = vrot.lane.b32.xlu0 %v2862, 118
        %v3110 = vpop.permute.xlu0 %3109
        %3111 = vrot.lane.b32.xlu0 %v2863, 118
        %v3112 = vpop.permute.xlu0 %3111
        %3113 = vrot.lane.b32.xlu0 %v2864, 118
        %v3114 = vpop.permute.xlu0 %3113
        %3115 = vrot.lane.b32.xlu0 %v2865, 118
        %v3116 = vpop.permute.xlu0 %3115
        %3117 = vrot.lane.b32.xlu0 %v2866, 118
        %v3118 = vpop.permute.xlu0 %3117
        %3119 = vrot.lane.b32.xlu0 %v2867, 118
        %v3120 = vpop.permute.xlu0 %3119
        %3121 = vrot.lane.b32.xlu0 %v2868, 118
        %v3122 = vpop.permute.xlu0 %3121
        %3123 = vrot.lane.b32.xlu0 %v2869, 118
        %v3124 = vpop.permute.xlu0 %3123
        %3125 = vrot.lane.b32.xlu0 %v2870, 118
        %v3126 = vpop.permute.xlu0 %3125
        %3127 = vrot.lane.b32.xlu0 %v2871, 118
        %v3128 = vpop.permute.xlu0 %3127
        %3129 = vrot.lane.b32.xlu0 %v2872, 118
        %v3130 = vpop.permute.xlu0 %3129
        %3131 = vrot.lane.b32.xlu0 %v2873, 118
        %v3132 = vpop.permute.xlu0 %3131
        %3133 = vrot.lane.b32.xlu0 %v2874, 118
        %v3134 = vpop.permute.xlu0 %3133
        %3135 = vrot.lane.b32.xlu0 %v2875, 118
        %v3136 = vpop.permute.xlu0 %3135
        %3137 = vrot.lane.b32.xlu0 %v2876, 118
        %v3138 = vpop.permute.xlu0 %3137
        %3139 = vrot.lane.b32.xlu0 %v2877, 118
        %v3140 = vpop.permute.xlu0 %3139
        %3141 = vrot.lane.b32.xlu0 %v2878, 118
        %v3142 = vpop.permute.xlu0 %3141
        %3143 = vrot.lane.b32.xlu0 %v2879, 118
        %v3144 = vpop.permute.xlu0 %3143
        %3145 = vrot.lane.b32.xlu0 %v2880, 118
        %v3146 = vpop.permute.xlu0 %3145
        %3147 = vrot.lane.b32.xlu0 %v2881, 118
        %v3148 = vpop.permute.xlu0 %3147
        %3149 = vrot.lane.b32.xlu0 %v2882, 118
        %v3150 = vpop.permute.xlu0 %3149
        %3151 = vrot.lane.b32.xlu0 %v2883, 118
        %v3152 = vpop.permute.xlu0 %3151
        %3153 = vrot.lane.b32.xlu0 %v2884, 118
        %v3154 = vpop.permute.xlu0 %3153
        %3155 = vrot.lane.b32.xlu0 %v2885, 118
        %v3156 = vpop.permute.xlu0 %3155
        %3157 = vrot.lane.b32.xlu0 %v2886, 118
        %v3158 = vpop.permute.xlu0 %3157
        %3159 = vrot.lane.b32.xlu0 %v2887, 118
        %v3160 = vpop.permute.xlu0 %3159
        %3161 = vrot.lane.b32.xlu0 %v2888, 118
        %v3162 = vpop.permute.xlu0 %3161
        %3163 = vrot.lane.b32.xlu0 %v2889, 118
        %v3164 = vpop.permute.xlu0 %3163
        %3165 = vrot.lane.b32.xlu0 %v2890, 118
        %v3166 = vpop.permute.xlu0 %3165
        %3167 = vrot.lane.b32.xlu0 %v2891, 118
        %v3168 = vpop.permute.xlu0 %3167
        %3169 = vrot.lane.b32.xlu0 %v2892, 118
        %v3170 = vpop.permute.xlu0 %3169
        %3171 = vrot.lane.b32.xlu0 %v2893, 118
        %v3172 = vpop.permute.xlu0 %3171
        %3173 = vrot.lane.b32.xlu0 %v2894, 118
        %v3174 = vpop.permute.xlu0 %3173
        %3175 = vrot.lane.b32.xlu0 %v2895, 118
        %v3176 = vpop.permute.xlu0 %3175
        %3177 = vrot.lane.b32.xlu0 %v2896, 118
        %v3178 = vpop.permute.xlu0 %3177
        %3179 = vrot.lane.b32.xlu0 %v2897, 118
        %v3180 = vpop.permute.xlu0 %3179
        %3181 = vrot.lane.b32.xlu0 %v2898, 118
        %v3182 = vpop.permute.xlu0 %3181
        %3183 = vrot.lane.b32.xlu0 %v2899, 118
        %v3184 = vpop.permute.xlu0 %3183
        %3185 = vrot.lane.b32.xlu0 %v2900, 118
        %v3186 = vpop.permute.xlu0 %3185
        %3187 = vrot.lane.b32.xlu0 %v2901, 118
        %v3188 = vpop.permute.xlu0 %3187
        %3189 = vrot.lane.b32.xlu0 %v2902, 118
        %v3190 = vpop.permute.xlu0 %3189
        %vm3191 = vcmask 965632
        %v3192 = vsel %vm3191, %v3000, %v3002
        %v3193 = vsel %vm3191, %v3004, %v3006
        %v3194 = vsel %vm3191, %v3008, %v3010
        %v3195 = vsel %vm3191, %v3012, %v3014
        %v3196 = vsel %vm3191, %v3016, %v3018
        %v3197 = vsel %vm3191, %v3020, %v3022
        %v3198 = vsel %vm3191, %v3024, %v3026
        %v3199 = vsel %vm3191, %v3028, %v3030
        %v3200 = vsel %vm3191, %v3032, %v3034
        %v3201 = vsel %vm3191, %v3036, %v3038
        %v3202 = vsel %vm3191, %v3040, %v3042
        %v3203 = vsel %vm3191, %v3044, %v3046
        %v3204 = vsel %vm3191, %v3048, %v3050
        %v3205 = vsel %vm3191, %v3052, %v3054
        %v3206 = vsel %vm3191, %v3056, %v3058
        %v3207 = vsel %vm3191, %v3060, %v3062
        %v3208 = vsel %vm3191, %v3064, %v3066
        %v3209 = vsel %vm3191, %v3068, %v3070
        %v3210 = vsel %vm3191, %v3072, %v3074
        %v3211 = vsel %vm3191, %v3076, %v3078
        %v3212 = vsel %vm3191, %v3080, %v3082
        %v3213 = vsel %vm3191, %v3084, %v3086
        %v3214 = vsel %vm3191, %v3088, %v3090
        %v3215 = vsel %vm3191, %v3092, %v3094
        %v3216 = vsel %vm3191, %v3096, %v3098
        %v3217 = vsel %vm3191, %v3100, %v3102
        %v3218 = vsel %vm3191, %v3104, %v3106
        %v3219 = vsel %vm3191, %v3108, %v3110
        %v3220 = vsel %vm3191, %v3112, %v3114
        %v3221 = vsel %vm3191, %v3116, %v3118
        %v3222 = vsel %vm3191, %v3120, %v3122
        %v3223 = vsel %vm3191, %v3124, %v3126
        %v3224 = vsel %vm3191, %v3128, %v3130
        %v3225 = vsel %vm3191, %v3132, %v3134
        %v3226 = vsel %vm3191, %v3136, %v3138
        %v3227 = vsel %vm3191, %v3140, %v3142
        %v3228 = vsel %vm3191, %v3144, %v3146
        %v3229 = vsel %vm3191, %v3148, %v3150
        %v3230 = vsel %vm3191, %v3152, %v3154
        %v3231 = vsel %vm3191, %v3156, %v3158
        %v3232 = vsel %vm3191, %v3160, %v3162
        %v3233 = vsel %vm3191, %v3164, %v3166
        %v3234 = vsel %vm3191, %v3168, %v3170
        %v3235 = vsel %vm3191, %v3172, %v3174
        %v3236 = vsel %vm3191, %v3176, %v3178
        %v3237 = vsel %vm3191, %v3180, %v3182
        %v3238 = vsel %vm3191, %v3184, %v3186
        %v3239 = vsel %vm3191, %v3188, %v3190
        %3336 = vrot.lane.b32.xlu0 %v2807, 102
        %v3337 = vpop.permute.xlu0 %3336
        %3338 = vrot.lane.b32.xlu0 %v2809, 102
        %v3339 = vpop.permute.xlu0 %3338
        %3340 = vrot.lane.b32.xlu0 %v2811, 102
        %v3341 = vpop.permute.xlu0 %3340
        %3342 = vrot.lane.b32.xlu0 %v2813, 102
        %v3343 = vpop.permute.xlu0 %3342
        %3344 = vrot.lane.b32.xlu0 %v2815, 102
        %v3345 = vpop.permute.xlu0 %3344
        %3346 = vrot.lane.b32.xlu0 %v2817, 102
        %v3347 = vpop.permute.xlu0 %3346
        %3348 = vrot.lane.b32.xlu0 %v2819, 102
        %v3349 = vpop.permute.xlu0 %3348
        %3350 = vrot.lane.b32.xlu0 %v2821, 102
        %v3351 = vpop.permute.xlu0 %3350
        %3352 = vrot.lane.b32.xlu0 %v2823, 102
        %v3353 = vpop.permute.xlu0 %3352
        %3354 = vrot.lane.b32.xlu0 %v2825, 102
        %v3355 = vpop.permute.xlu0 %3354
        %3356 = vrot.lane.b32.xlu0 %v2827, 102
        %v3357 = vpop.permute.xlu0 %3356
        %3358 = vrot.lane.b32.xlu0 %v2829, 102
        %v3359 = vpop.permute.xlu0 %3358
        %3360 = vrot.lane.b32.xlu0 %v2831, 102
        %v3361 = vpop.permute.xlu0 %3360
        %3362 = vrot.lane.b32.xlu0 %v2833, 102
        %v3363 = vpop.permute.xlu0 %3362
        %3364 = vrot.lane.b32.xlu0 %v2835, 102
        %v3365 = vpop.permute.xlu0 %3364
        %3366 = vrot.lane.b32.xlu0 %v2837, 102
        %v3367 = vpop.permute.xlu0 %3366
        %3368 = vrot.lane.b32.xlu0 %v2839, 102
        %v3369 = vpop.permute.xlu0 %3368
        %3370 = vrot.lane.b32.xlu0 %v2841, 102
        %v3371 = vpop.permute.xlu0 %3370
        %3372 = vrot.lane.b32.xlu0 %v2843, 102
        %v3373 = vpop.permute.xlu0 %3372
        %3374 = vrot.lane.b32.xlu0 %v2845, 102
        %v3375 = vpop.permute.xlu0 %3374
        %3376 = vrot.lane.b32.xlu0 %v2847, 102
        %v3377 = vpop.permute.xlu0 %3376
        %3378 = vrot.lane.b32.xlu0 %v2849, 102
        %v3379 = vpop.permute.xlu0 %3378
        %3380 = vrot.lane.b32.xlu0 %v2851, 102
        %v3381 = vpop.permute.xlu0 %3380
        %3382 = vrot.lane.b32.xlu0 %v2853, 102
        %v3383 = vpop.permute.xlu0 %3382
        %3384 = vrot.lane.b32.xlu0 %v2855, 102
        %v3385 = vpop.permute.xlu0 %3384
        %3386 = vrot.lane.b32.xlu0 %v2857, 102
        %v3387 = vpop.permute.xlu0 %3386
        %3388 = vrot.lane.b32.xlu0 %v2859, 102
        %v3389 = vpop.permute.xlu0 %3388
        %3390 = vrot.lane.b32.xlu0 %v2861, 102
        %v3391 = vpop.permute.xlu0 %3390
        %3392 = vrot.lane.b32.xlu0 %v2863, 102
        %v3393 = vpop.permute.xlu0 %3392
        %3394 = vrot.lane.b32.xlu0 %v2865, 102
        %v3395 = vpop.permute.xlu0 %3394
        %3396 = vrot.lane.b32.xlu0 %v2867, 102
        %v3397 = vpop.permute.xlu0 %3396
        %3398 = vrot.lane.b32.xlu0 %v2869, 102
        %v3399 = vpop.permute.xlu0 %3398
        %3400 = vrot.lane.b32.xlu0 %v2871, 102
        %v3401 = vpop.permute.xlu0 %3400
        %3402 = vrot.lane.b32.xlu0 %v2873, 102
        %v3403 = vpop.permute.xlu0 %3402
        %3404 = vrot.lane.b32.xlu0 %v2875, 102
        %v3405 = vpop.permute.xlu0 %3404
        %3406 = vrot.lane.b32.xlu0 %v2877, 102
        %v3407 = vpop.permute.xlu0 %3406
        %3408 = vrot.lane.b32.xlu0 %v2879, 102
        %v3409 = vpop.permute.xlu0 %3408
        %3410 = vrot.lane.b32.xlu0 %v2881, 102
        %v3411 = vpop.permute.xlu0 %3410
        %3412 = vrot.lane.b32.xlu0 %v2883, 102
        %v3413 = vpop.permute.xlu0 %3412
        %3414 = vrot.lane.b32.xlu0 %v2885, 102
        %v3415 = vpop.permute.xlu0 %3414
        %3416 = vrot.lane.b32.xlu0 %v2887, 102
        %v3417 = vpop.permute.xlu0 %3416
        %3418 = vrot.lane.b32.xlu0 %v2889, 102
        %v3419 = vpop.permute.xlu0 %3418
        %3420 = vrot.lane.b32.xlu0 %v2891, 102
        %v3421 = vpop.permute.xlu0 %3420
        %3422 = vrot.lane.b32.xlu0 %v2893, 102
        %v3423 = vpop.permute.xlu0 %3422
        %3424 = vrot.lane.b32.xlu0 %v2895, 102
        %v3425 = vpop.permute.xlu0 %3424
        %3426 = vrot.lane.b32.xlu0 %v2897, 102
        %v3427 = vpop.permute.xlu0 %3426
        %3428 = vrot.lane.b32.xlu0 %v2899, 102
        %v3429 = vpop.permute.xlu0 %3428
        %3430 = vrot.lane.b32.xlu0 %v2901, 102
        %v3431 = vpop.permute.xlu0 %3430
        %vm3480 = vcmask 834560
        %v3481 = vsel %vm3480, %v3002, %v3337
        %v3482 = vsel %vm3480, %v3006, %v3339
        %v3483 = vsel %vm3480, %v3010, %v3341
        %v3484 = vsel %vm3480, %v3014, %v3343
        %v3485 = vsel %vm3480, %v3018, %v3345
        %v3486 = vsel %vm3480, %v3022, %v3347
        %v3487 = vsel %vm3480, %v3026, %v3349
        %v3488 = vsel %vm3480, %v3030, %v3351
        %v3489 = vsel %vm3480, %v3034, %v3353
        %v3490 = vsel %vm3480, %v3038, %v3355
        %v3491 = vsel %vm3480, %v3042, %v3357
        %v3492 = vsel %vm3480, %v3046, %v3359
        %v3493 = vsel %vm3480, %v3050, %v3361
        %v3494 = vsel %vm3480, %v3054, %v3363
        %v3495 = vsel %vm3480, %v3058, %v3365
        %v3496 = vsel %vm3480, %v3062, %v3367
        %v3497 = vsel %vm3480, %v3066, %v3369
        %v3498 = vsel %vm3480, %v3070, %v3371
        %v3499 = vsel %vm3480, %v3074, %v3373
        %v3500 = vsel %vm3480, %v3078, %v3375
        %v3501 = vsel %vm3480, %v3082, %v3377
        %v3502 = vsel %vm3480, %v3086, %v3379
        %v3503 = vsel %vm3480, %v3090, %v3381
        %v3504 = vsel %vm3480, %v3094, %v3383
        %v3505 = vsel %vm3480, %v3098, %v3385
        %v3506 = vsel %vm3480, %v3102, %v3387
        %v3507 = vsel %vm3480, %v3106, %v3389
        %v3508 = vsel %vm3480, %v3110, %v3391
        %v3509 = vsel %vm3480, %v3114, %v3393
        %v3510 = vsel %vm3480, %v3118, %v3395
        %v3511 = vsel %vm3480, %v3122, %v3397
        %v3512 = vsel %vm3480, %v3126, %v3399
        %v3513 = vsel %vm3480, %v3130, %v3401
        %v3514 = vsel %vm3480, %v3134, %v3403
        %v3515 = vsel %vm3480, %v3138, %v3405
        %v3516 = vsel %vm3480, %v3142, %v3407
        %v3517 = vsel %vm3480, %v3146, %v3409
        %v3518 = vsel %vm3480, %v3150, %v3411
        %v3519 = vsel %vm3480, %v3154, %v3413
        %v3520 = vsel %vm3480, %v3158, %v3415
        %v3521 = vsel %vm3480, %v3162, %v3417
        %v3522 = vsel %vm3480, %v3166, %v3419
        %v3523 = vsel %vm3480, %v3170, %v3421
        %v3524 = vsel %vm3480, %v3174, %v3423
        %v3525 = vsel %vm3480, %v3178, %v3425
        %v3526 = vsel %vm3480, %v3182, %v3427
        %v3527 = vsel %vm3480, %v3186, %v3429
        %v3528 = vsel %vm3480, %v3190, %v3431
        %v3529 = vmax.f32 %v2807, %v3192
        %v3530 = vmax.f32 %v2808, %v3481
        %v3531 = vmax.f32 %v2809, %v3193
        %v3532 = vmax.f32 %v2810, %v3482
        %v3533 = vmax.f32 %v2811, %v3194
        %v3534 = vmax.f32 %v2812, %v3483
        %v3535 = vmax.f32 %v2813, %v3195
        %v3536 = vmax.f32 %v2814, %v3484
        %v3537 = vmax.f32 %v2815, %v3196
        %v3538 = vmax.f32 %v2816, %v3485
        %v3539 = vmax.f32 %v2817, %v3197
        %v3540 = vmax.f32 %v2818, %v3486
        %v3541 = vmax.f32 %v2819, %v3198
        %v3542 = vmax.f32 %v2820, %v3487
        %v3543 = vmax.f32 %v2821, %v3199
        %v3544 = vmax.f32 %v2822, %v3488
        %v3545 = vmax.f32 %v2823, %v3200
        %v3546 = vmax.f32 %v2824, %v3489
        %v3547 = vmax.f32 %v2825, %v3201
        %v3548 = vmax.f32 %v2826, %v3490
        %v3549 = vmax.f32 %v2827, %v3202
        %v3550 = vmax.f32 %v2828, %v3491
        %v3551 = vmax.f32 %v2829, %v3203
        %v3552 = vmax.f32 %v2830, %v3492
        %v3553 = vmax.f32 %v2831, %v3204
        %v3554 = vmax.f32 %v2832, %v3493
        %v3555 = vmax.f32 %v2833, %v3205
        %v3556 = vmax.f32 %v2834, %v3494
        %v3557 = vmax.f32 %v2835, %v3206
        %v3558 = vmax.f32 %v2836, %v3495
        %v3559 = vmax.f32 %v2837, %v3207
        %v3560 = vmax.f32 %v2838, %v3496
        %v3561 = vmax.f32 %v2839, %v3208
        %v3562 = vmax.f32 %v2840, %v3497
        %v3563 = vmax.f32 %v2841, %v3209
        %v3564 = vmax.f32 %v2842, %v3498
        %v3565 = vmax.f32 %v2843, %v3210
        %v3566 = vmax.f32 %v2844, %v3499
        %v3567 = vmax.f32 %v2845, %v3211
        %v3568 = vmax.f32 %v2846, %v3500
        %v3569 = vmax.f32 %v2847, %v3212
        %v3570 = vmax.f32 %v2848, %v3501
        %v3571 = vmax.f32 %v2849, %v3213
        %v3572 = vmax.f32 %v2850, %v3502
        %v3573 = vmax.f32 %v2851, %v3214
        %v3574 = vmax.f32 %v2852, %v3503
        %v3575 = vmax.f32 %v2853, %v3215
        %v3576 = vmax.f32 %v2854, %v3504
        %v3577 = vmax.f32 %v2855, %v3216
        %v3578 = vmax.f32 %v2856, %v3505
        %v3579 = vmax.f32 %v2857, %v3217
        %v3580 = vmax.f32 %v2858, %v3506
        %v3581 = vmax.f32 %v2859, %v3218
        %v3582 = vmax.f32 %v2860, %v3507
        %v3583 = vmax.f32 %v2861, %v3219
        %v3584 = vmax.f32 %v2862, %v3508
        %v3585 = vmax.f32 %v2863, %v3220
        %v3586 = vmax.f32 %v2864, %v3509
        %v3587 = vmax.f32 %v2865, %v3221
        %v3588 = vmax.f32 %v2866, %v3510
        %v3589 = vmax.f32 %v2867, %v3222
        %v3590 = vmax.f32 %v2868, %v3511
        %v3591 = vmax.f32 %v2869, %v3223
        %v3592 = vmax.f32 %v2870, %v3512
        %v3593 = vmax.f32 %v2871, %v3224
        %v3594 = vmax.f32 %v2872, %v3513
        %v3595 = vmax.f32 %v2873, %v3225
        %v3596 = vmax.f32 %v2874, %v3514
        %v3597 = vmax.f32 %v2875, %v3226
        %v3598 = vmax.f32 %v2876, %v3515
        %v3599 = vmax.f32 %v2877, %v3227
        %v3600 = vmax.f32 %v2878, %v3516
        %v3601 = vmax.f32 %v2879, %v3228
        %v3602 = vmax.f32 %v2880, %v3517
        %v3603 = vmax.f32 %v2881, %v3229
        %v3604 = vmax.f32 %v2882, %v3518
        %v3605 = vmax.f32 %v2883, %v3230
        %v3606 = vmax.f32 %v2884, %v3519
        %v3607 = vmax.f32 %v2885, %v3231
        %v3608 = vmax.f32 %v2886, %v3520
        %v3609 = vmax.f32 %v2887, %v3232
        %v3610 = vmax.f32 %v2888, %v3521
        %v3611 = vmax.f32 %v2889, %v3233
        %v3612 = vmax.f32 %v2890, %v3522
        %v3613 = vmax.f32 %v2891, %v3234
        %v3614 = vmax.f32 %v2892, %v3523
        %v3615 = vmax.f32 %v2893, %v3235
        %v3616 = vmax.f32 %v2894, %v3524
        %v3617 = vmax.f32 %v2895, %v3236
        %v3618 = vmax.f32 %v2896, %v3525
        %v3619 = vmax.f32 %v2897, %v3237
        %v3620 = vmax.f32 %v2898, %v3526
        %v3621 = vmax.f32 %v2899, %v3238
        %v3622 = vmax.f32 %v2900, %v3527
        %v3623 = vmax.f32 %v2901, %v3239
        %v3624 = vmax.f32 %v2902, %v3528
        %v3625 = vld [vmem:[%s5] sm:$0x3]
        %v3627 = vlaneseq
        %v3628 = vshrl.u32 %v3627, 7
        %v3629 = vsub.s32 0, %v3628
        %v3630 = vrot.slane %v3625, %v3629
        %v3631 = vlaneseq
        %v3632 = vshrl.u32 %v3631, 7
        %v3633 = vsub.s32 1, %v3632
        %v3634 = vrot.slane %v3625, %v3633
        %v3637 = vadd.f32 %v3529, %v3630
        %v3638 = vadd.f32 %v3530, %v3634
        %v3639 = vadd.f32 %v3531, %v3630
        %v3640 = vadd.f32 %v3532, %v3634
        %v3641 = vadd.f32 %v3533, %v3630
        %v3642 = vadd.f32 %v3534, %v3634
        %v3643 = vadd.f32 %v3535, %v3630
        %v3644 = vadd.f32 %v3536, %v3634
        %v3645 = vadd.f32 %v3537, %v3630
        %v3646 = vadd.f32 %v3538, %v3634
        %v3647 = vadd.f32 %v3539, %v3630
        %v3648 = vadd.f32 %v3540, %v3634
        %v3649 = vadd.f32 %v3541, %v3630
        %v3650 = vadd.f32 %v3542, %v3634
        %v3651 = vadd.f32 %v3543, %v3630
        %v3652 = vadd.f32 %v3544, %v3634
        %v3653 = vadd.f32 %v3545, %v3630
        %v3654 = vadd.f32 %v3546, %v3634
        %v3655 = vadd.f32 %v3547, %v3630
        %v3656 = vadd.f32 %v3548, %v3634
        %v3657 = vadd.f32 %v3549, %v3630
        %v3658 = vadd.f32 %v3550, %v3634
        %v3659 = vadd.f32 %v3551, %v3630
        %v3660 = vadd.f32 %v3552, %v3634
        %v3661 = vadd.f32 %v3553, %v3630
        %v3662 = vadd.f32 %v3554, %v3634
        %v3663 = vadd.f32 %v3555, %v3630
        %v3664 = vadd.f32 %v3556, %v3634
        %v3665 = vadd.f32 %v3557, %v3630
        %v3666 = vadd.f32 %v3558, %v3634
        %v3667 = vadd.f32 %v3559, %v3630
        %v3668 = vadd.f32 %v3560, %v3634
        %v3669 = vadd.f32 %v3561, %v3630
        %v3670 = vadd.f32 %v3562, %v3634
        %v3671 = vadd.f32 %v3563, %v3630
        %v3672 = vadd.f32 %v3564, %v3634
        %v3673 = vadd.f32 %v3565, %v3630
        %v3674 = vadd.f32 %v3566, %v3634
        %v3675 = vadd.f32 %v3567, %v3630
        %v3676 = vadd.f32 %v3568, %v3634
        %v3677 = vadd.f32 %v3569, %v3630
        %v3678 = vadd.f32 %v3570, %v3634
        %v3679 = vadd.f32 %v3571, %v3630
        %v3680 = vadd.f32 %v3572, %v3634
        %v3681 = vadd.f32 %v3573, %v3630
        %v3682 = vadd.f32 %v3574, %v3634
        %v3683 = vadd.f32 %v3575, %v3630
        %v3684 = vadd.f32 %v3576, %v3634
        %v3685 = vadd.f32 %v3577, %v3630
        %v3686 = vadd.f32 %v3578, %v3634
        %v3687 = vadd.f32 %v3579, %v3630
        %v3688 = vadd.f32 %v3580, %v3634
        %v3689 = vadd.f32 %v3581, %v3630
        %v3690 = vadd.f32 %v3582, %v3634
        %v3691 = vadd.f32 %v3583, %v3630
        %v3692 = vadd.f32 %v3584, %v3634
        %v3693 = vadd.f32 %v3585, %v3630
        %v3694 = vadd.f32 %v3586, %v3634
        %v3695 = vadd.f32 %v3587, %v3630
        %v3696 = vadd.f32 %v3588, %v3634
        %v3697 = vadd.f32 %v3589, %v3630
        %v3698 = vadd.f32 %v3590, %v3634
        %v3699 = vadd.f32 %v3591, %v3630
        %v3700 = vadd.f32 %v3592, %v3634
        %v3701 = vadd.f32 %v3593, %v3630
        %v3702 = vadd.f32 %v3594, %v3634
        %v3703 = vadd.f32 %v3595, %v3630
        %v3704 = vadd.f32 %v3596, %v3634
        %v3705 = vadd.f32 %v3597, %v3630
        %v3706 = vadd.f32 %v3598, %v3634
        %v3707 = vadd.f32 %v3599, %v3630
        %v3708 = vadd.f32 %v3600, %v3634
        %v3709 = vadd.f32 %v3601, %v3630
        %v3710 = vadd.f32 %v3602, %v3634
        %v3711 = vadd.f32 %v3603, %v3630
        %v3712 = vadd.f32 %v3604, %v3634
        %v3713 = vadd.f32 %v3605, %v3630
        %v3714 = vadd.f32 %v3606, %v3634
        %v3715 = vadd.f32 %v3607, %v3630
        %v3716 = vadd.f32 %v3608, %v3634
        %v3717 = vadd.f32 %v3609, %v3630
        %v3718 = vadd.f32 %v3610, %v3634
        %v3719 = vadd.f32 %v3611, %v3630
        %v3720 = vadd.f32 %v3612, %v3634
        %v3721 = vadd.f32 %v3613, %v3630
        %v3722 = vadd.f32 %v3614, %v3634
        %v3723 = vadd.f32 %v3615, %v3630
        %v3724 = vadd.f32 %v3616, %v3634
        %v3725 = vadd.f32 %v3617, %v3630
        %v3726 = vadd.f32 %v3618, %v3634
        %v3727 = vadd.f32 %v3619, %v3630
        %v3728 = vadd.f32 %v3620, %v3634
        %v3729 = vadd.f32 %v3621, %v3630
        %v3730 = vadd.f32 %v3622, %v3634
        %v3731 = vadd.f32 %v3623, %v3630
        %v3732 = vadd.f32 %v3624, %v3634
        %v3733 = vmax.f32 %v3637, 0.0
        %v3734 = vmax.f32 %v3638, 0.0
        %v3735 = vmax.f32 %v3639, 0.0
        %v3736 = vmax.f32 %v3640, 0.0
        %v3737 = vmax.f32 %v3641, 0.0
        %v3738 = vmax.f32 %v3642, 0.0
        %v3739 = vmax.f32 %v3643, 0.0
        %v3740 = vmax.f32 %v3644, 0.0
        %v3741 = vmax.f32 %v3645, 0.0
        %v3742 = vmax.f32 %v3646, 0.0
        %v3743 = vmax.f32 %v3647, 0.0
        %v3744 = vmax.f32 %v3648, 0.0
        %v3745 = vmax.f32 %v3649, 0.0
        %v3746 = vmax.f32 %v3650, 0.0
        %v3747 = vmax.f32 %v3651, 0.0
        %v3748 = vmax.f32 %v3652, 0.0
        %v3749 = vmax.f32 %v3653, 0.0
        %v3750 = vmax.f32 %v3654, 0.0
        %v3751 = vmax.f32 %v3655, 0.0
        %v3752 = vmax.f32 %v3656, 0.0
        %v3753 = vmax.f32 %v3657, 0.0
        %v3754 = vmax.f32 %v3658, 0.0
        %v3755 = vmax.f32 %v3659, 0.0
        %v3756 = vmax.f32 %v3660, 0.0
        %v3757 = vmax.f32 %v3661, 0.0
        %v3758 = vmax.f32 %v3662, 0.0
        %v3759 = vmax.f32 %v3663, 0.0
        %v3760 = vmax.f32 %v3664, 0.0
        %v3761 = vmax.f32 %v3665, 0.0
        %v3762 = vmax.f32 %v3666, 0.0
        %v3763 = vmax.f32 %v3667, 0.0
        %v3764 = vmax.f32 %v3668, 0.0
        %v3765 = vmax.f32 %v3669, 0.0
        %v3766 = vmax.f32 %v3670, 0.0
        %v3767 = vmax.f32 %v3671, 0.0
        %v3768 = vmax.f32 %v3672, 0.0
        %v3769 = vmax.f32 %v3673, 0.0
        %v3770 = vmax.f32 %v3674, 0.0
        %v3771 = vmax.f32 %v3675, 0.0
        %v3772 = vmax.f32 %v3676, 0.0
        %v3773 = vmax.f32 %v3677, 0.0
        %v3774 = vmax.f32 %v3678, 0.0
        %v3775 = vmax.f32 %v3679, 0.0
        %v3776 = vmax.f32 %v3680, 0.0
        %v3777 = vmax.f32 %v3681, 0.0
        %v3778 = vmax.f32 %v3682, 0.0
        %v3779 = vmax.f32 %v3683, 0.0
        %v3780 = vmax.f32 %v3684, 0.0
        %v3781 = vmax.f32 %v3685, 0.0
        %v3782 = vmax.f32 %v3686, 0.0
        %v3783 = vmax.f32 %v3687, 0.0
        %v3784 = vmax.f32 %v3688, 0.0
        %v3785 = vmax.f32 %v3689, 0.0
        %v3786 = vmax.f32 %v3690, 0.0
        %v3787 = vmax.f32 %v3691, 0.0
        %v3788 = vmax.f32 %v3692, 0.0
        %v3789 = vmax.f32 %v3693, 0.0
        %v3790 = vmax.f32 %v3694, 0.0
        %v3791 = vmax.f32 %v3695, 0.0
        %v3792 = vmax.f32 %v3696, 0.0
        %v3793 = vmax.f32 %v3697, 0.0
        %v3794 = vmax.f32 %v3698, 0.0
        %v3795 = vmax.f32 %v3699, 0.0
        %v3796 = vmax.f32 %v3700, 0.0
        %v3797 = vmax.f32 %v3701, 0.0
        %v3798 = vmax.f32 %v3702, 0.0
        %v3799 = vmax.f32 %v3703, 0.0
        %v3800 = vmax.f32 %v3704, 0.0
        %v3801 = vmax.f32 %v3705, 0.0
        %v3802 = vmax.f32 %v3706, 0.0
        %v3803 = vmax.f32 %v3707, 0.0
        %v3804 = vmax.f32 %v3708, 0.0
        %v3805 = vmax.f32 %v3709, 0.0
        %v3806 = vmax.f32 %v3710, 0.0
        %v3807 = vmax.f32 %v3711, 0.0
        %v3808 = vmax.f32 %v3712, 0.0
        %v3809 = vmax.f32 %v3713, 0.0
        %v3810 = vmax.f32 %v3714, 0.0
        %v3811 = vmax.f32 %v3715, 0.0
        %v3812 = vmax.f32 %v3716, 0.0
        %v3813 = vmax.f32 %v3717, 0.0
        %v3814 = vmax.f32 %v3718, 0.0
        %v3815 = vmax.f32 %v3719, 0.0
        %v3816 = vmax.f32 %v3720, 0.0
        %v3817 = vmax.f32 %v3721, 0.0
        %v3818 = vmax.f32 %v3722, 0.0
        %v3819 = vmax.f32 %v3723, 0.0
        %v3820 = vmax.f32 %v3724, 0.0
        %v3821 = vmax.f32 %v3725, 0.0
        %v3822 = vmax.f32 %v3726, 0.0
        %v3823 = vmax.f32 %v3727, 0.0
        %v3824 = vmax.f32 %v3728, 0.0
        %v3825 = vmax.f32 %v3729, 0.0
        %v3826 = vmax.f32 %v3730, 0.0
        %v3827 = vmax.f32 %v3731, 0.0
        %v3828 = vmax.f32 %v3732, 0.0
        %v3829 = vpack.c.bf16 %v3735, %v3733
        %v3830 = vpack.c.bf16 %v3736, %v3734
        %v3831 = vpack.c.bf16 %v3739, %v3737
        %v3832 = vpack.c.bf16 %v3740, %v3738
        %v3833 = vpack.c.bf16 %v3743, %v3741
        %v3834 = vpack.c.bf16 %v3744, %v3742
        %v3835 = vpack.c.bf16 %v3747, %v3745
        %v3836 = vpack.c.bf16 %v3748, %v3746
        %v3837 = vpack.c.bf16 %v3751, %v3749
        %v3838 = vpack.c.bf16 %v3752, %v3750
        %v3839 = vpack.c.bf16 %v3755, %v3753
        %v3840 = vpack.c.bf16 %v3756, %v3754
        %v3841 = vpack.c.bf16 %v3759, %v3757
        %v3842 = vpack.c.bf16 %v3760, %v3758
        %v3843 = vpack.c.bf16 %v3763, %v3761
        %v3844 = vpack.c.bf16 %v3764, %v3762
        %v3845 = vpack.c.bf16 %v3767, %v3765
        %v3846 = vpack.c.bf16 %v3768, %v3766
        %v3847 = vpack.c.bf16 %v3771, %v3769
        %v3848 = vpack.c.bf16 %v3772, %v3770
        %v3849 = vpack.c.bf16 %v3775, %v3773
        %v3850 = vpack.c.bf16 %v3776, %v3774
        %v3851 = vpack.c.bf16 %v3779, %v3777
        %v3852 = vpack.c.bf16 %v3780, %v3778
        %v3853 = vpack.c.bf16 %v3783, %v3781
        %v3854 = vpack.c.bf16 %v3784, %v3782
        %v3855 = vpack.c.bf16 %v3787, %v3785
        %v3856 = vpack.c.bf16 %v3788, %v3786
        %v3857 = vpack.c.bf16 %v3791, %v3789
        %v3858 = vpack.c.bf16 %v3792, %v3790
        %v3859 = vpack.c.bf16 %v3795, %v3793
        %v3860 = vpack.c.bf16 %v3796, %v3794
        %v3861 = vpack.c.bf16 %v3799, %v3797
        %v3862 = vpack.c.bf16 %v3800, %v3798
        %v3863 = vpack.c.bf16 %v3803, %v3801
        %v3864 = vpack.c.bf16 %v3804, %v3802
        %v3865 = vpack.c.bf16 %v3807, %v3805
        %v3866 = vpack.c.bf16 %v3808, %v3806
        %v3867 = vpack.c.bf16 %v3811, %v3809
        %v3868 = vpack.c.bf16 %v3812, %v3810
        %v3869 = vpack.c.bf16 %v3815, %v3813
        %v3870 = vpack.c.bf16 %v3816, %v3814
        %v3871 = vpack.c.bf16 %v3819, %v3817
        %v3872 = vpack.c.bf16 %v3820, %v3818
        %v3873 = vpack.c.bf16 %v3823, %v3821
        %v3874 = vpack.c.bf16 %v3824, %v3822
        %v3875 = vpack.c.bf16 %v3827, %v3825
        %v3876 = vpack.c.bf16 %v3828, %v3826
        %v3877 = vld [vmem:[%s2] sm:$0xff]
        %v3878 = vld [vmem:[%s2 + $0x8] sm:$0xff]
        %v3879 = vld [vmem:[%s2 + $0x10] sm:$0xff]
        %v3880 = vld [vmem:[%s2 + $0x18] sm:$0xff]
        %v3881 = vld [vmem:[%s2 + $0x20] sm:$0xff]
        %v3882 = vld [vmem:[%s2 + $0x28] sm:$0xff]
        %v3883 = vld [vmem:[%s2 + $0x30] sm:$0xff]
        %v3884 = vld [vmem:[%s2 + $0x38] sm:$0xff]
        %v3885 = vld [vmem:[%s2 + $0x40] sm:$0xff]
        %v3886 = vld [vmem:[%s2 + $0x48] sm:$0xff]
        %v3887 = vld [vmem:[%s2 + $0x50] sm:$0xff]
        %v3888 = vld [vmem:[%s2 + $0x58] sm:$0xff]
        %v3889 = vld [vmem:[%s2 + $0x60] sm:$0xff]
        %v3890 = vld [vmem:[%s2 + $0x68] sm:$0xff]
        %v3891 = vld [vmem:[%s2 + $0x70] sm:$0xff]
        %v3892 = vld [vmem:[%s2 + $0x78] sm:$0xff]
        %v3893 = vld [vmem:[%s2 + $0x80] sm:$0xff]
        %v3894 = vld [vmem:[%s2 + $0x88] sm:$0xff]
        %v3895 = vld [vmem:[%s2 + $0x90] sm:$0xff]
        %v3896 = vld [vmem:[%s2 + $0x98] sm:$0xff]
        %v3897 = vld [vmem:[%s2 + $0xa0] sm:$0xff]
        %v3898 = vld [vmem:[%s2 + $0xa8] sm:$0xff]
        %v3899 = vld [vmem:[%s2 + $0xb0] sm:$0xff]
        %v3900 = vld [vmem:[%s2 + $0xb8] sm:$0xff]
        %v3901 = vld [vmem:[%s2 + $0xc0] sm:$0xff]
        %v3902 = vld [vmem:[%s2 + $0xc8] sm:$0xff]
        %v3903 = vld [vmem:[%s2 + $0xd0] sm:$0xff]
        %v3904 = vld [vmem:[%s2 + $0xd8] sm:$0xff]
        %v3905 = vld [vmem:[%s2 + $0xe0] sm:$0xff]
        %v3906 = vld [vmem:[%s2 + $0xe8] sm:$0xff]
        %s3907 = scalar_lea.vmem %s2, 240
        %v3908 = vld [vmem:[%s3907] sm:$0xff]
        %v3909 = vld [vmem:[%s3907 + $0x8] sm:$0xff]
        %v3910 = vld [vmem:[%s3907 + $0x10] sm:$0xff]
        %v3911 = vld [vmem:[%s3907 + $0x18] sm:$0xff]
        %v3912 = vld [vmem:[%s3907 + $0x20] sm:$0xff]
        %v3913 = vld [vmem:[%s3907 + $0x28] sm:$0xff]
        %v3914 = vld [vmem:[%s3907 + $0x30] sm:$0xff]
        %v3915 = vld [vmem:[%s3907 + $0x38] sm:$0xff]
        %v3916 = vld [vmem:[%s3907 + $0x40] sm:$0xff]
        %v3917 = vld [vmem:[%s3907 + $0x48] sm:$0xff]
        %v3918 = vld [vmem:[%s3907 + $0x50] sm:$0xff]
        %v3919 = vld [vmem:[%s3907 + $0x58] sm:$0xff]
        %v3920 = vld [vmem:[%s3907 + $0x60] sm:$0xff]
        %v3921 = vld [vmem:[%s3907 + $0x68] sm:$0xff]
        %v3922 = vld [vmem:[%s3907 + $0x70] sm:$0xff]
        %v3923 = vld [vmem:[%s3907 + $0x78] sm:$0xff]
        %v3924 = vld [vmem:[%s3907 + $0x80] sm:$0xff]
        %v3925 = vld [vmem:[%s3907 + $0x88] sm:$0xff]
        %v3926 = vld [vmem:[%s3907 + $0x90] sm:$0xff]
        %v3927 = vld [vmem:[%s3907 + $0x98] sm:$0xff]
        %v3928 = vld [vmem:[%s3907 + $0xa0] sm:$0xff]
        %v3929 = vld [vmem:[%s3907 + $0xa8] sm:$0xff]
        %v3930 = vld [vmem:[%s3907 + $0xb0] sm:$0xff]
        %v3931 = vld [vmem:[%s3907 + $0xb8] sm:$0xff]
        %v3932 = vld [vmem:[%s3907 + $0xc0] sm:$0xff]
        %v3933 = vld [vmem:[%s3907 + $0xc8] sm:$0xff]
        %v3934 = vld [vmem:[%s3907 + $0xd0] sm:$0xff]
        %v3935 = vld [vmem:[%s3907 + $0xd8] sm:$0xff]
        %v3936 = vld [vmem:[%s3907 + $0xe0] sm:$0xff]
        %v3937 = vld [vmem:[%s3907 + $0xe8] sm:$0xff]
        %v3968 = vunpack.c.l.b16 %v3908
        %v3969 = vunpack.c.h.b16 %v3908
        %v3970 = vunpack.c.l.b16 %v3909
        %v3971 = vunpack.c.h.b16 %v3909
        %v3972 = vunpack.c.l.b16 %v3910
        %v3973 = vunpack.c.h.b16 %v3910
        %v3974 = vunpack.c.l.b16 %v3911
        %v3975 = vunpack.c.h.b16 %v3911
        %v3976 = vunpack.c.l.b16 %v3912
        %v3977 = vunpack.c.h.b16 %v3912
        %v3978 = vunpack.c.l.b16 %v3913
        %v3979 = vunpack.c.h.b16 %v3913
        %v3980 = vunpack.c.l.b16 %v3914
        %v3981 = vunpack.c.h.b16 %v3914
        %v3982 = vunpack.c.l.b16 %v3915
        %v3983 = vunpack.c.h.b16 %v3915
        %v3984 = vunpack.c.l.b16 %v3916
        %v3985 = vunpack.c.h.b16 %v3916
        %v3986 = vunpack.c.l.b16 %v3917
        %v3987 = vunpack.c.h.b16 %v3917
        %v3988 = vunpack.c.l.b16 %v3918
        %v3989 = vunpack.c.h.b16 %v3918
        %v3990 = vunpack.c.l.b16 %v3919
        %v3991 = vunpack.c.h.b16 %v3919
        %v3992 = vunpack.c.l.b16 %v3920
        %v3993 = vunpack.c.h.b16 %v3920
        %v3994 = vunpack.c.l.b16 %v3921
        %v3995 = vunpack.c.h.b16 %v3921
        %v3996 = vunpack.c.l.b16 %v3922
        %v3997 = vunpack.c.h.b16 %v3922
        %v3998 = vunpack.c.l.b16 %v3923
        %v3999 = vunpack.c.h.b16 %v3923
        %v4000 = vunpack.c.l.b16 %v3924
        %v4001 = vunpack.c.h.b16 %v3924
        %v4002 = vunpack.c.l.b16 %v3925
        %v4003 = vunpack.c.h.b16 %v3925
        %v4004 = vunpack.c.l.b16 %v3926
        %v4005 = vunpack.c.h.b16 %v3926
        %v4006 = vunpack.c.l.b16 %v3927
        %v4007 = vunpack.c.h.b16 %v3927
        %v4008 = vunpack.c.l.b16 %v3928
        %v4009 = vunpack.c.h.b16 %v3928
        %v4010 = vunpack.c.l.b16 %v3929
        %v4011 = vunpack.c.h.b16 %v3929
        %v4012 = vunpack.c.l.b16 %v3930
        %v4013 = vunpack.c.h.b16 %v3930
        %v4014 = vunpack.c.l.b16 %v3931
        %v4015 = vunpack.c.h.b16 %v3931
        %v4016 = vunpack.c.l.b16 %v3932
        %v4017 = vunpack.c.h.b16 %v3932
        %v4018 = vunpack.c.l.b16 %v3933
        %v4019 = vunpack.c.h.b16 %v3933
        %v4020 = vunpack.c.l.b16 %v3934
        %v4021 = vunpack.c.h.b16 %v3934
        %v4022 = vunpack.c.l.b16 %v3935
        %v4023 = vunpack.c.h.b16 %v3935
        %v4024 = vunpack.c.l.b16 %v3936
        %v4025 = vunpack.c.h.b16 %v3936
        %v4026 = vunpack.c.l.b16 %v3937
        %v4027 = vunpack.c.h.b16 %v3937
        %v4028 = vpack.c.b16 %v3970, %v3968
        %v4029 = vpack.c.b16 %v3971, %v3969
        %v4030 = vpack.c.b16 %v3974, %v3972
        %v4031 = vpack.c.b16 %v3975, %v3973
        %v4032 = vpack.c.b16 %v3978, %v3976
        %v4033 = vpack.c.b16 %v3979, %v3977
        %v4034 = vpack.c.b16 %v3982, %v3980
        %v4035 = vpack.c.b16 %v3983, %v3981
        %v4036 = vpack.c.b16 %v3986, %v3984
        %v4037 = vpack.c.b16 %v3987, %v3985
        %v4038 = vpack.c.b16 %v3990, %v3988
        %v4039 = vpack.c.b16 %v3991, %v3989
        %v4040 = vpack.c.b16 %v3994, %v3992
        %v4041 = vpack.c.b16 %v3995, %v3993
        %v4042 = vpack.c.b16 %v3998, %v3996
        %v4043 = vpack.c.b16 %v3999, %v3997
        %v4044 = vpack.c.b16 %v4002, %v4000
        %v4045 = vpack.c.b16 %v4003, %v4001
        %v4046 = vpack.c.b16 %v4006, %v4004
        %v4047 = vpack.c.b16 %v4007, %v4005
        %v4048 = vpack.c.b16 %v4010, %v4008
        %v4049 = vpack.c.b16 %v4011, %v4009
        %v4050 = vpack.c.b16 %v4014, %v4012
        %v4051 = vpack.c.b16 %v4015, %v4013
        %v4052 = vpack.c.b16 %v4018, %v4016
        %v4053 = vpack.c.b16 %v4019, %v4017
        %v4054 = vpack.c.b16 %v4022, %v4020
        %v4055 = vpack.c.b16 %v4023, %v4021
        %v4056 = vpack.c.b16 %v4026, %v4024
        %v4057 = vpack.c.b16 %v4027, %v4025
        %v4089 = vsel %vm1939, %v3834, 0
        %v4092 = vsel %vm1939, %v3836, 0
        %v4095 = vsel %vm1939, %v3838, 0
        %v4098 = vsel %vm1939, %v3840, 0
        %v4101 = vsel %vm1939, %v3842, 0
        %v4104 = vsel %vm1939, %v3844, 0
        %v4107 = vsel %vm1939, %v3846, 0
        %v4110 = vsel %vm1939, %v3848, 0
        %v4113 = vsel %vm1939, %v3850, 0
        %v4116 = vsel %vm1939, %v3852, 0
        %v4119 = vsel %vm1939, %v3854, 0
        %v4122 = vsel %vm1939, %v3856, 0
        %v4125 = vsel %vm1939, %v3858, 0
        %v4128 = vsel %vm1939, %v3860, 0
        %v4131 = vsel %vm1939, %v3862, 0
        %v4134 = vsel %vm1939, %v3864, 0
        %4136 = vmatprep.subr.bf16.mxu0 %v4043
        %4137 = vmatpush1.bf16.msra.mxu0 %v4042
        %4138 = vmatprep.subr.bf16.mxu0 %v4041
        %4139 = vmatpush1.bf16.msra.mxu0 %v4040
        %4140 = vmatprep.subr.bf16.mxu0 %v4039
        %4141 = vmatpush1.bf16.msra.mxu0 %v4038
        %4142 = vmatprep.subr.bf16.mxu0 %v4037
        %4143 = vmatpush1.bf16.msra.mxu0 %v4036
        %4144 = vmatprep.subr.bf16.mxu0 %v4035
        %4145 = vmatpush1.bf16.msra.mxu0 %v4034
        %4146 = vmatprep.subr.bf16.mxu0 %v4033
        %4147 = vmatpush1.bf16.msra.mxu0 %v4032
        %4148 = vmatprep.subr.bf16.mxu0 %v4031
        %4149 = vmatpush1.bf16.msra.mxu0 %v4030
        %4150 = vmatprep.subr.bf16.mxu0 %v4029
        %4151 = vmatpush1.bf16.msra.mxu0 %v4028
        %4152 = vmatprep.subr.bf16.mxu0 0
        %4153 = vmatpush2.bf16.msra.mxu0 0
        %4154 = vmatprep.subr.bf16.mxu0 %v4057
        %4155 = vmatpush2.bf16.msra.mxu0 %v4056
        %4156 = vmatprep.subr.bf16.mxu0 %v4055
        %4157 = vmatpush2.bf16.msra.mxu0 %v4054
        %4158 = vmatprep.subr.bf16.mxu0 %v4053
        %4159 = vmatpush2.bf16.msra.mxu0 %v4052
        %4160 = vmatprep.subr.bf16.mxu0 %v4051
        %4161 = vmatpush2.bf16.msra.mxu0 %v4050
        %4162 = vmatprep.subr.bf16.mxu0 %v4049
        %4163 = vmatpush2.bf16.msra.mxu0 %v4048
        %4164 = vmatprep.subr.bf16.mxu0 %v4047
        %4165 = vmatpush2.bf16.msra.mxu0 %v4046
        %4166 = vmatprep.subr.bf16.mxu0 %v4045
        %4167 = vmatpush2.bf16.msra.mxu0 %v4044
        %4168 = vmatprep.mubr.bf16.mxu0 %v4089
        %4169 = vmatmul.mubr.bf16.gmra.mxu0 %v3833
        %v4170 = vpop.f32.mrf.mxu0
        %v4171 = vadd.f32 0.0, %v4170
        %v4172 = vpop.f32.mrf.mxu0
        %v4173 = vadd.f32 0.0, %v4172
        %v4174 = vpop.f32.mrf.mxu0
        %v4175 = vadd.f32 0.0, %v4174
        %v4176 = vpop.f32.mrf.mxu0
        %v4177 = vadd.f32 0.0, %v4176
        %4178 = vmatprep.mubr.bf16.mxu0 %v4092
        %4179 = vmatmul.mubr.bf16.gmra.mxu0 %v3835
        %v4180 = vpop.f32.mrf.mxu0
        %v4181 = vadd.f32 0.0, %v4180
        %v4182 = vpop.f32.mrf.mxu0
        %v4183 = vadd.f32 0.0, %v4182
        %v4184 = vpop.f32.mrf.mxu0
        %v4185 = vadd.f32 0.0, %v4184
        %v4186 = vpop.f32.mrf.mxu0
        %v4187 = vadd.f32 0.0, %v4186
        %4188 = vmatprep.mubr.bf16.mxu0 %v4095
        %4189 = vmatmul.mubr.bf16.gmra.mxu0 %v3837
        %v4190 = vpop.f32.mrf.mxu0
        %v4191 = vadd.f32 0.0, %v4190
        %v4192 = vpop.f32.mrf.mxu0
        %v4193 = vadd.f32 0.0, %v4192
        %v4194 = vpop.f32.mrf.mxu0
        %v4195 = vadd.f32 0.0, %v4194
        %v4196 = vpop.f32.mrf.mxu0
        %v4197 = vadd.f32 0.0, %v4196
        %4198 = vmatprep.mubr.bf16.mxu0 %v4098
        %4199 = vmatmul.mubr.bf16.gmra.mxu0 %v3839
        %v4200 = vpop.f32.mrf.mxu0
        %v4201 = vadd.f32 0.0, %v4200
        %v4202 = vpop.f32.mrf.mxu0
        %v4203 = vadd.f32 0.0, %v4202
        %v4204 = vpop.f32.mrf.mxu0
        %v4205 = vadd.f32 0.0, %v4204
        %v4206 = vpop.f32.mrf.mxu0
        %v4207 = vadd.f32 0.0, %v4206
        %4208 = vmatprep.mubr.bf16.mxu0 %v4101
        %4209 = vmatmul.mubr.bf16.gmra.mxu0 %v3841
        %v4210 = vpop.f32.mrf.mxu0
        %v4211 = vadd.f32 0.0, %v4210
        %v4212 = vpop.f32.mrf.mxu0
        %v4213 = vadd.f32 0.0, %v4212
        %v4214 = vpop.f32.mrf.mxu0
        %v4215 = vadd.f32 0.0, %v4214
        %v4216 = vpop.f32.mrf.mxu0
        %v4217 = vadd.f32 0.0, %v4216
        %4218 = vmatprep.mubr.bf16.mxu0 %v4104
        %4219 = vmatmul.mubr.bf16.gmra.mxu0 %v3843
        %v4220 = vpop.f32.mrf.mxu0
        %v4221 = vadd.f32 0.0, %v4220
        %v4222 = vpop.f32.mrf.mxu0
        %v4223 = vadd.f32 0.0, %v4222
        %v4224 = vpop.f32.mrf.mxu0
        %v4225 = vadd.f32 0.0, %v4224
        %v4226 = vpop.f32.mrf.mxu0
        %v4227 = vadd.f32 0.0, %v4226
        %4228 = vmatprep.mubr.bf16.mxu0 %v4107
        %4229 = vmatmul.mubr.bf16.gmra.mxu0 %v3845
        %v4230 = vpop.f32.mrf.mxu0
        %v4231 = vadd.f32 0.0, %v4230
        %v4232 = vpop.f32.mrf.mxu0
        %v4233 = vadd.f32 0.0, %v4232
        %v4234 = vpop.f32.mrf.mxu0
        %v4235 = vadd.f32 0.0, %v4234
        %v4236 = vpop.f32.mrf.mxu0
        %v4237 = vadd.f32 0.0, %v4236
        %4238 = vmatprep.mubr.bf16.mxu0 %v4110
        %4239 = vmatmul.mubr.bf16.gmra.mxu0 %v3847
        %v4240 = vpop.f32.mrf.mxu0
        %v4241 = vadd.f32 0.0, %v4240
        %v4242 = vpop.f32.mrf.mxu0
        %v4243 = vadd.f32 0.0, %v4242
        %v4244 = vpop.f32.mrf.mxu0
        %v4245 = vadd.f32 0.0, %v4244
        %v4246 = vpop.f32.mrf.mxu0
        %v4247 = vadd.f32 0.0, %v4246
        %4248 = vmatprep.mubr.bf16.mxu0 %v4113
        %4249 = vmatmul.mubr.bf16.gmra.mxu0 %v3849
        %v4250 = vpop.f32.mrf.mxu0
        %v4251 = vadd.f32 0.0, %v4250
        %v4252 = vpop.f32.mrf.mxu0
        %v4253 = vadd.f32 0.0, %v4252
        %v4254 = vpop.f32.mrf.mxu0
        %v4255 = vadd.f32 0.0, %v4254
        %v4256 = vpop.f32.mrf.mxu0
        %v4257 = vadd.f32 0.0, %v4256
        %4258 = vmatprep.mubr.bf16.mxu0 %v4116
        %4259 = vmatmul.mubr.bf16.gmra.mxu0 %v3851
        %v4260 = vpop.f32.mrf.mxu0
        %v4261 = vadd.f32 0.0, %v4260
        %v4262 = vpop.f32.mrf.mxu0
        %v4263 = vadd.f32 0.0, %v4262
        %v4264 = vpop.f32.mrf.mxu0
        %v4265 = vadd.f32 0.0, %v4264
        %v4266 = vpop.f32.mrf.mxu0
        %v4267 = vadd.f32 0.0, %v4266
        %4268 = vmatprep.mubr.bf16.mxu0 %v4119
        %4269 = vmatmul.mubr.bf16.gmra.mxu0 %v3853
        %v4270 = vpop.f32.mrf.mxu0
        %v4271 = vadd.f32 0.0, %v4270
        %v4272 = vpop.f32.mrf.mxu0
        %v4273 = vadd.f32 0.0, %v4272
        %v4274 = vpop.f32.mrf.mxu0
        %v4275 = vadd.f32 0.0, %v4274
        %v4276 = vpop.f32.mrf.mxu0
        %v4277 = vadd.f32 0.0, %v4276
        %4278 = vmatprep.mubr.bf16.mxu0 %v4122
        %4279 = vmatmul.mubr.bf16.gmra.mxu0 %v3855
        %v4280 = vpop.f32.mrf.mxu0
        %v4281 = vadd.f32 0.0, %v4280
        %v4282 = vpop.f32.mrf.mxu0
        %v4283 = vadd.f32 0.0, %v4282
        %v4284 = vpop.f32.mrf.mxu0
        %v4285 = vadd.f32 0.0, %v4284
        %v4286 = vpop.f32.mrf.mxu0
        %v4287 = vadd.f32 0.0, %v4286
        %4288 = vmatprep.mubr.bf16.mxu0 %v4125
        %4289 = vmatmul.mubr.bf16.gmra.mxu0 %v3857
        %v4290 = vpop.f32.mrf.mxu0
        %v4291 = vadd.f32 0.0, %v4290
        %v4292 = vpop.f32.mrf.mxu0
        %v4293 = vadd.f32 0.0, %v4292
        %v4294 = vpop.f32.mrf.mxu0
        %v4295 = vadd.f32 0.0, %v4294
        %v4296 = vpop.f32.mrf.mxu0
        %v4297 = vadd.f32 0.0, %v4296
        %4298 = vmatprep.mubr.bf16.mxu0 %v4128
        %4299 = vmatmul.mubr.bf16.gmra.mxu0 %v3859
        %v4300 = vpop.f32.mrf.mxu0
        %v4301 = vadd.f32 0.0, %v4300
        %v4302 = vpop.f32.mrf.mxu0
        %v4303 = vadd.f32 0.0, %v4302
        %v4304 = vpop.f32.mrf.mxu0
        %v4305 = vadd.f32 0.0, %v4304
        %v4306 = vpop.f32.mrf.mxu0
        %v4307 = vadd.f32 0.0, %v4306
        %4308 = vmatprep.mubr.bf16.mxu0 %v4131
        %4309 = vmatmul.mubr.bf16.gmra.mxu0 %v3861
        %v4310 = vpop.f32.mrf.mxu0
        %v4311 = vadd.f32 0.0, %v4310
        %v4312 = vpop.f32.mrf.mxu0
        %v4313 = vadd.f32 0.0, %v4312
        %v4314 = vpop.f32.mrf.mxu0
        %v4315 = vadd.f32 0.0, %v4314
        %v4316 = vpop.f32.mrf.mxu0
        %v4317 = vadd.f32 0.0, %v4316
        %4318 = vmatprep.mubr.bf16.mxu0 %v4134
        %4319 = vmatmul.mubr.bf16.gmra.mxu0 %v3863
        %v4320 = vpop.f32.mrf.mxu0
        %v4321 = vadd.f32 0.0, %v4320
        %v4322 = vpop.f32.mrf.mxu0
        %v4323 = vadd.f32 0.0, %v4322
        %v4324 = vpop.f32.mrf.mxu0
        %v4325 = vadd.f32 0.0, %v4324
        %v4326 = vpop.f32.mrf.mxu0
        %v4327 = vadd.f32 0.0, %v4326
        %4328 = vdwg.mxu0
        %v4359 = vunpack.c.l.b16 %v3877
        %v4360 = vunpack.c.h.b16 %v3877
        %v4361 = vunpack.c.l.b16 %v3878
        %v4362 = vunpack.c.h.b16 %v3878
        %v4363 = vunpack.c.l.b16 %v3879
        %v4364 = vunpack.c.h.b16 %v3879
        %v4365 = vunpack.c.l.b16 %v3880
        %v4366 = vunpack.c.h.b16 %v3880
        %v4367 = vunpack.c.l.b16 %v3881
        %v4368 = vunpack.c.h.b16 %v3881
        %v4369 = vunpack.c.l.b16 %v3882
        %v4370 = vunpack.c.h.b16 %v3882
        %v4371 = vunpack.c.l.b16 %v3883
        %v4372 = vunpack.c.h.b16 %v3883
        %v4373 = vunpack.c.l.b16 %v3884
        %v4374 = vunpack.c.h.b16 %v3884
        %v4375 = vunpack.c.l.b16 %v3885
        %v4376 = vunpack.c.h.b16 %v3885
        %v4377 = vunpack.c.l.b16 %v3886
        %v4378 = vunpack.c.h.b16 %v3886
        %v4379 = vunpack.c.l.b16 %v3887
        %v4380 = vunpack.c.h.b16 %v3887
        %v4381 = vunpack.c.l.b16 %v3888
        %v4382 = vunpack.c.h.b16 %v3888
        %v4383 = vunpack.c.l.b16 %v3889
        %v4384 = vunpack.c.h.b16 %v3889
        %v4385 = vunpack.c.l.b16 %v3890
        %v4386 = vunpack.c.h.b16 %v3890
        %v4387 = vunpack.c.l.b16 %v3891
        %v4388 = vunpack.c.h.b16 %v3891
        %v4389 = vunpack.c.l.b16 %v3892
        %v4390 = vunpack.c.h.b16 %v3892
        %v4391 = vunpack.c.l.b16 %v3893
        %v4392 = vunpack.c.h.b16 %v3893
        %v4393 = vunpack.c.l.b16 %v3894
        %v4394 = vunpack.c.h.b16 %v3894
        %v4395 = vunpack.c.l.b16 %v3895
        %v4396 = vunpack.c.h.b16 %v3895
        %v4397 = vunpack.c.l.b16 %v3896
        %v4398 = vunpack.c.h.b16 %v3896
        %v4399 = vunpack.c.l.b16 %v3897
        %v4400 = vunpack.c.h.b16 %v3897
        %v4401 = vunpack.c.l.b16 %v3898
        %v4402 = vunpack.c.h.b16 %v3898
        %v4403 = vunpack.c.l.b16 %v3899
        %v4404 = vunpack.c.h.b16 %v3899
        %v4405 = vunpack.c.l.b16 %v3900
        %v4406 = vunpack.c.h.b16 %v3900
        %v4407 = vunpack.c.l.b16 %v3901
        %v4408 = vunpack.c.h.b16 %v3901
        %v4409 = vunpack.c.l.b16 %v3902
        %v4410 = vunpack.c.h.b16 %v3902
        %v4411 = vunpack.c.l.b16 %v3903
        %v4412 = vunpack.c.h.b16 %v3903
        %v4413 = vunpack.c.l.b16 %v3904
        %v4414 = vunpack.c.h.b16 %v3904
        %v4415 = vunpack.c.l.b16 %v3905
        %v4416 = vunpack.c.h.b16 %v3905
        %v4417 = vunpack.c.l.b16 %v3906
        %v4418 = vunpack.c.h.b16 %v3906
        %v4419 = vpack.c.b16 %v4361, %v4359
        %v4420 = vpack.c.b16 %v4362, %v4360
        %v4421 = vpack.c.b16 %v4365, %v4363
        %v4422 = vpack.c.b16 %v4366, %v4364
        %v4423 = vpack.c.b16 %v4369, %v4367
        %v4424 = vpack.c.b16 %v4370, %v4368
        %v4425 = vpack.c.b16 %v4373, %v4371
        %v4426 = vpack.c.b16 %v4374, %v4372
        %v4427 = vpack.c.b16 %v4377, %v4375
        %v4428 = vpack.c.b16 %v4378, %v4376
        %v4429 = vpack.c.b16 %v4381, %v4379
        %v4430 = vpack.c.b16 %v4382, %v4380
        %v4431 = vpack.c.b16 %v4385, %v4383
        %v4432 = vpack.c.b16 %v4386, %v4384
        %v4433 = vpack.c.b16 %v4389, %v4387
        %v4434 = vpack.c.b16 %v4390, %v4388
        %v4435 = vpack.c.b16 %v4393, %v4391
        %v4436 = vpack.c.b16 %v4394, %v4392
        %v4437 = vpack.c.b16 %v4397, %v4395
        %v4438 = vpack.c.b16 %v4398, %v4396
        %v4439 = vpack.c.b16 %v4401, %v4399
        %v4440 = vpack.c.b16 %v4402, %v4400
        %v4441 = vpack.c.b16 %v4405, %v4403
        %v4442 = vpack.c.b16 %v4406, %v4404
        %v4443 = vpack.c.b16 %v4409, %v4407
        %v4444 = vpack.c.b16 %v4410, %v4408
        %v4445 = vpack.c.b16 %v4413, %v4411
        %v4446 = vpack.c.b16 %v4414, %v4412
        %v4447 = vpack.c.b16 %v4417, %v4415
        %v4448 = vpack.c.b16 %v4418, %v4416
        %v4480 = vsel %vm1939, %v3830, 0
        %v4483 = vsel %vm1939, %v3832, 0
        %4485 = vmatprep.subr.bf16.mxu0 %v4434
        %4486 = vmatpush1.bf16.msra.mxu0 %v4433
        %4487 = vmatprep.subr.bf16.mxu0 %v4432
        %4488 = vmatpush1.bf16.msra.mxu0 %v4431
        %4489 = vmatprep.subr.bf16.mxu0 %v4430
        %4490 = vmatpush1.bf16.msra.mxu0 %v4429
        %4491 = vmatprep.subr.bf16.mxu0 %v4428
        %4492 = vmatpush1.bf16.msra.mxu0 %v4427
        %4493 = vmatprep.subr.bf16.mxu0 %v4426
        %4494 = vmatpush1.bf16.msra.mxu0 %v4425
        %4495 = vmatprep.subr.bf16.mxu0 %v4424
        %4496 = vmatpush1.bf16.msra.mxu0 %v4423
        %4497 = vmatprep.subr.bf16.mxu0 %v4422
        %4498 = vmatpush1.bf16.msra.mxu0 %v4421
        %4499 = vmatprep.subr.bf16.mxu0 %v4420
        %4500 = vmatpush1.bf16.msra.mxu0 %v4419
        %4501 = vmatprep.subr.bf16.mxu0 0
        %4502 = vmatpush2.bf16.msra.mxu0 0
        %4503 = vmatprep.subr.bf16.mxu0 %v4448
        %4504 = vmatpush2.bf16.msra.mxu0 %v4447
        %4505 = vmatprep.subr.bf16.mxu0 %v4446
        %4506 = vmatpush2.bf16.msra.mxu0 %v4445
        %4507 = vmatprep.subr.bf16.mxu0 %v4444
        %4508 = vmatpush2.bf16.msra.mxu0 %v4443
        %4509 = vmatprep.subr.bf16.mxu0 %v4442
        %4510 = vmatpush2.bf16.msra.mxu0 %v4441
        %4511 = vmatprep.subr.bf16.mxu0 %v4440
        %4512 = vmatpush2.bf16.msra.mxu0 %v4439
        %4513 = vmatprep.subr.bf16.mxu0 %v4438
        %4514 = vmatpush2.bf16.msra.mxu0 %v4437
        %4515 = vmatprep.subr.bf16.mxu0 %v4436
        %4516 = vmatpush2.bf16.msra.mxu0 %v4435
        %4517 = vmatprep.mubr.bf16.mxu0 %v4480
        %4518 = vmatmul.mubr.bf16.gmra.mxu0 %v3829
        %v4519 = vpop.f32.mrf.mxu0
        %v4520 = vadd.f32 %v4171, %v4519
        %v4521 = vpop.f32.mrf.mxu0
        %v4522 = vadd.f32 %v4173, %v4521
        %v4523 = vpop.f32.mrf.mxu0
        %v4524 = vadd.f32 %v4175, %v4523
        %v4525 = vpop.f32.mrf.mxu0
        %v4526 = vadd.f32 %v4177, %v4525
        %4527 = vmatprep.mubr.bf16.mxu0 %v4483
        %4528 = vmatmul.mubr.bf16.gmra.mxu0 %v3831
        %v4529 = vpop.f32.mrf.mxu0
        %v4530 = vadd.f32 %v4181, %v4529
        %v4531 = vpop.f32.mrf.mxu0
        %v4532 = vadd.f32 %v4183, %v4531
        %v4533 = vpop.f32.mrf.mxu0
        %v4534 = vadd.f32 %v4185, %v4533
        %v4535 = vpop.f32.mrf.mxu0
        %v4536 = vadd.f32 %v4187, %v4535
        %4537 = vmatprep.mubr.bf16.mxu0 %v4089
        %4538 = vmatmul.mubr.bf16.gmra.mxu0 %v3833
        %v4539 = vpop.f32.mrf.mxu0
        %v4540 = vadd.f32 %v4191, %v4539
        %v4541 = vpop.f32.mrf.mxu0
        %v4542 = vadd.f32 %v4193, %v4541
        %v4543 = vpop.f32.mrf.mxu0
        %v4544 = vadd.f32 %v4195, %v4543
        %v4545 = vpop.f32.mrf.mxu0
        %v4546 = vadd.f32 %v4197, %v4545
        %4547 = vmatprep.mubr.bf16.mxu0 %v4092
        %4548 = vmatmul.mubr.bf16.gmra.mxu0 %v3835
        %v4549 = vpop.f32.mrf.mxu0
        %v4550 = vadd.f32 %v4201, %v4549
        %v4551 = vpop.f32.mrf.mxu0
        %v4552 = vadd.f32 %v4203, %v4551
        %v4553 = vpop.f32.mrf.mxu0
        %v4554 = vadd.f32 %v4205, %v4553
        %v4555 = vpop.f32.mrf.mxu0
        %v4556 = vadd.f32 %v4207, %v4555
        %4557 = vmatprep.mubr.bf16.mxu0 %v4095
        %4558 = vmatmul.mubr.bf16.gmra.mxu0 %v3837
        %v4559 = vpop.f32.mrf.mxu0
        %v4560 = vadd.f32 %v4211, %v4559
        %v4561 = vpop.f32.mrf.mxu0
        %v4562 = vadd.f32 %v4213, %v4561
        %v4563 = vpop.f32.mrf.mxu0
        %v4564 = vadd.f32 %v4215, %v4563
        %v4565 = vpop.f32.mrf.mxu0
        %v4566 = vadd.f32 %v4217, %v4565
        %4567 = vmatprep.mubr.bf16.mxu0 %v4098
        %4568 = vmatmul.mubr.bf16.gmra.mxu0 %v3839
        %v4569 = vpop.f32.mrf.mxu0
        %v4570 = vadd.f32 %v4221, %v4569
        %v4571 = vpop.f32.mrf.mxu0
        %v4572 = vadd.f32 %v4223, %v4571
        %v4573 = vpop.f32.mrf.mxu0
        %v4574 = vadd.f32 %v4225, %v4573
        %v4575 = vpop.f32.mrf.mxu0
        %v4576 = vadd.f32 %v4227, %v4575
        %4577 = vmatprep.mubr.bf16.mxu0 %v4101
        %4578 = vmatmul.mubr.bf16.gmra.mxu0 %v3841
        %v4579 = vpop.f32.mrf.mxu0
        %v4580 = vadd.f32 %v4231, %v4579
        %v4581 = vpop.f32.mrf.mxu0
        %v4582 = vadd.f32 %v4233, %v4581
        %v4583 = vpop.f32.mrf.mxu0
        %v4584 = vadd.f32 %v4235, %v4583
        %v4585 = vpop.f32.mrf.mxu0
        %v4586 = vadd.f32 %v4237, %v4585
        %4587 = vmatprep.mubr.bf16.mxu0 %v4104
        %4588 = vmatmul.mubr.bf16.gmra.mxu0 %v3843
        %v4589 = vpop.f32.mrf.mxu0
        %v4590 = vadd.f32 %v4241, %v4589
        %v4591 = vpop.f32.mrf.mxu0
        %v4592 = vadd.f32 %v4243, %v4591
        %v4593 = vpop.f32.mrf.mxu0
        %v4594 = vadd.f32 %v4245, %v4593
        %v4595 = vpop.f32.mrf.mxu0
        %v4596 = vadd.f32 %v4247, %v4595
        %4597 = vmatprep.mubr.bf16.mxu0 %v4107
        %4598 = vmatmul.mubr.bf16.gmra.mxu0 %v3845
        %v4599 = vpop.f32.mrf.mxu0
        %v4600 = vadd.f32 %v4251, %v4599
        %v4601 = vpop.f32.mrf.mxu0
        %v4602 = vadd.f32 %v4253, %v4601
        %v4603 = vpop.f32.mrf.mxu0
        %v4604 = vadd.f32 %v4255, %v4603
        %v4605 = vpop.f32.mrf.mxu0
        %v4606 = vadd.f32 %v4257, %v4605
        %4607 = vmatprep.mubr.bf16.mxu0 %v4110
        %4608 = vmatmul.mubr.bf16.gmra.mxu0 %v3847
        %v4609 = vpop.f32.mrf.mxu0
        %v4610 = vadd.f32 %v4261, %v4609
        %v4611 = vpop.f32.mrf.mxu0
        %v4612 = vadd.f32 %v4263, %v4611
        %v4613 = vpop.f32.mrf.mxu0
        %v4614 = vadd.f32 %v4265, %v4613
        %v4615 = vpop.f32.mrf.mxu0
        %v4616 = vadd.f32 %v4267, %v4615
        %4617 = vmatprep.mubr.bf16.mxu0 %v4113
        %4618 = vmatmul.mubr.bf16.gmra.mxu0 %v3849
        %v4619 = vpop.f32.mrf.mxu0
        %v4620 = vadd.f32 %v4271, %v4619
        %v4621 = vpop.f32.mrf.mxu0
        %v4622 = vadd.f32 %v4273, %v4621
        %v4623 = vpop.f32.mrf.mxu0
        %v4624 = vadd.f32 %v4275, %v4623
        %v4625 = vpop.f32.mrf.mxu0
        %v4626 = vadd.f32 %v4277, %v4625
        %4627 = vmatprep.mubr.bf16.mxu0 %v4116
        %4628 = vmatmul.mubr.bf16.gmra.mxu0 %v3851
        %v4629 = vpop.f32.mrf.mxu0
        %v4630 = vadd.f32 %v4281, %v4629
        %v4631 = vpop.f32.mrf.mxu0
        %v4632 = vadd.f32 %v4283, %v4631
        %v4633 = vpop.f32.mrf.mxu0
        %v4634 = vadd.f32 %v4285, %v4633
        %v4635 = vpop.f32.mrf.mxu0
        %v4636 = vadd.f32 %v4287, %v4635
        %4637 = vmatprep.mubr.bf16.mxu0 %v4119
        %4638 = vmatmul.mubr.bf16.gmra.mxu0 %v3853
        %v4639 = vpop.f32.mrf.mxu0
        %v4640 = vadd.f32 %v4291, %v4639
        %v4641 = vpop.f32.mrf.mxu0
        %v4642 = vadd.f32 %v4293, %v4641
        %v4643 = vpop.f32.mrf.mxu0
        %v4644 = vadd.f32 %v4295, %v4643
        %v4645 = vpop.f32.mrf.mxu0
        %v4646 = vadd.f32 %v4297, %v4645
        %4647 = vmatprep.mubr.bf16.mxu0 %v4122
        %4648 = vmatmul.mubr.bf16.gmra.mxu0 %v3855
        %v4649 = vpop.f32.mrf.mxu0
        %v4650 = vadd.f32 %v4301, %v4649
        %v4651 = vpop.f32.mrf.mxu0
        %v4652 = vadd.f32 %v4303, %v4651
        %v4653 = vpop.f32.mrf.mxu0
        %v4654 = vadd.f32 %v4305, %v4653
        %v4655 = vpop.f32.mrf.mxu0
        %v4656 = vadd.f32 %v4307, %v4655
        %4657 = vmatprep.mubr.bf16.mxu0 %v4125
        %4658 = vmatmul.mubr.bf16.gmra.mxu0 %v3857
        %v4659 = vpop.f32.mrf.mxu0
        %v4660 = vadd.f32 %v4311, %v4659
        %v4661 = vpop.f32.mrf.mxu0
        %v4662 = vadd.f32 %v4313, %v4661
        %v4663 = vpop.f32.mrf.mxu0
        %v4664 = vadd.f32 %v4315, %v4663
        %v4665 = vpop.f32.mrf.mxu0
        %v4666 = vadd.f32 %v4317, %v4665
        %4667 = vmatprep.mubr.bf16.mxu0 %v4128
        %4668 = vmatmul.mubr.bf16.gmra.mxu0 %v3859
        %v4669 = vpop.f32.mrf.mxu0
        %v4670 = vadd.f32 %v4321, %v4669
        %v4671 = vpop.f32.mrf.mxu0
        %v4672 = vadd.f32 %v4323, %v4671
        %v4673 = vpop.f32.mrf.mxu0
        %v4674 = vadd.f32 %v4325, %v4673
        %v4675 = vpop.f32.mrf.mxu0
        %v4676 = vadd.f32 %v4327, %v4675
        %4677 = vdwg.mxu0
        %s4678 = scalar_lea.vmem %s2, 480
        %v4679 = vld [vmem:[%s4678] sm:$0xff]
        %v4680 = vld [vmem:[%s4678 + $0x8] sm:$0xff]
        %v4681 = vld [vmem:[%s4678 + $0x10] sm:$0xff]
        %v4682 = vld [vmem:[%s4678 + $0x18] sm:$0xff]
        %v4683 = vld [vmem:[%s4678 + $0x20] sm:$0xff]
        %v4684 = vld [vmem:[%s4678 + $0x28] sm:$0xff]
        %v4685 = vld [vmem:[%s4678 + $0x30] sm:$0xff]
        %v4686 = vld [vmem:[%s4678 + $0x38] sm:$0xff]
        %v4687 = vld [vmem:[%s4678 + $0x40] sm:$0xff]
        %v4688 = vld [vmem:[%s4678 + $0x48] sm:$0xff]
        %v4689 = vld [vmem:[%s4678 + $0x50] sm:$0xff]
        %v4690 = vld [vmem:[%s4678 + $0x58] sm:$0xff]
        %v4691 = vld [vmem:[%s4678 + $0x60] sm:$0xff]
        %v4692 = vld [vmem:[%s4678 + $0x68] sm:$0xff]
        %v4693 = vld [vmem:[%s4678 + $0x70] sm:$0xff]
        %v4694 = vld [vmem:[%s4678 + $0x78] sm:$0xff]
        %v4695 = vld [vmem:[%s4678 + $0x80] sm:$0xff]
        %v4696 = vld [vmem:[%s4678 + $0x88] sm:$0xff]
        %v4697 = vld [vmem:[%s4678 + $0x90] sm:$0xff]
        %v4698 = vld [vmem:[%s4678 + $0x98] sm:$0xff]
        %v4699 = vld [vmem:[%s4678 + $0xa0] sm:$0xff]
        %v4700 = vld [vmem:[%s4678 + $0xa8] sm:$0xff]
        %v4701 = vld [vmem:[%s4678 + $0xb0] sm:$0xff]
        %v4702 = vld [vmem:[%s4678 + $0xb8] sm:$0xff]
        %v4703 = vld [vmem:[%s4678 + $0xc0] sm:$0xff]
        %v4704 = vld [vmem:[%s4678 + $0xc8] sm:$0xff]
        %v4705 = vld [vmem:[%s4678 + $0xd0] sm:$0xff]
        %v4706 = vld [vmem:[%s4678 + $0xd8] sm:$0xff]
        %v4707 = vld [vmem:[%s4678 + $0xe0] sm:$0xff]
        %v4708 = vld [vmem:[%s4678 + $0xe8] sm:$0xff]
        %v4739 = vunpack.c.l.b16 %v4679
        %v4740 = vunpack.c.h.b16 %v4679
        %v4741 = vunpack.c.l.b16 %v4680
        %v4742 = vunpack.c.h.b16 %v4680
        %v4743 = vunpack.c.l.b16 %v4681
        %v4744 = vunpack.c.h.b16 %v4681
        %v4745 = vunpack.c.l.b16 %v4682
        %v4746 = vunpack.c.h.b16 %v4682
        %v4747 = vunpack.c.l.b16 %v4683
        %v4748 = vunpack.c.h.b16 %v4683
        %v4749 = vunpack.c.l.b16 %v4684
        %v4750 = vunpack.c.h.b16 %v4684
        %v4751 = vunpack.c.l.b16 %v4685
        %v4752 = vunpack.c.h.b16 %v4685
        %v4753 = vunpack.c.l.b16 %v4686
        %v4754 = vunpack.c.h.b16 %v4686
        %v4755 = vunpack.c.l.b16 %v4687
        %v4756 = vunpack.c.h.b16 %v4687
        %v4757 = vunpack.c.l.b16 %v4688
        %v4758 = vunpack.c.h.b16 %v4688
        %v4759 = vunpack.c.l.b16 %v4689
        %v4760 = vunpack.c.h.b16 %v4689
        %v4761 = vunpack.c.l.b16 %v4690
        %v4762 = vunpack.c.h.b16 %v4690
        %v4763 = vunpack.c.l.b16 %v4691
        %v4764 = vunpack.c.h.b16 %v4691
        %v4765 = vunpack.c.l.b16 %v4692
        %v4766 = vunpack.c.h.b16 %v4692
        %v4767 = vunpack.c.l.b16 %v4693
        %v4768 = vunpack.c.h.b16 %v4693
        %v4769 = vunpack.c.l.b16 %v4694
        %v4770 = vunpack.c.h.b16 %v4694
        %v4771 = vunpack.c.l.b16 %v4695
        %v4772 = vunpack.c.h.b16 %v4695
        %v4773 = vunpack.c.l.b16 %v4696
        %v4774 = vunpack.c.h.b16 %v4696
        %v4775 = vunpack.c.l.b16 %v4697
        %v4776 = vunpack.c.h.b16 %v4697
        %v4777 = vunpack.c.l.b16 %v4698
        %v4778 = vunpack.c.h.b16 %v4698
        %v4779 = vunpack.c.l.b16 %v4699
        %v4780 = vunpack.c.h.b16 %v4699
        %v4781 = vunpack.c.l.b16 %v4700
        %v4782 = vunpack.c.h.b16 %v4700
        %v4783 = vunpack.c.l.b16 %v4701
        %v4784 = vunpack.c.h.b16 %v4701
        %v4785 = vunpack.c.l.b16 %v4702
        %v4786 = vunpack.c.h.b16 %v4702
        %v4787 = vunpack.c.l.b16 %v4703
        %v4788 = vunpack.c.h.b16 %v4703
        %v4789 = vunpack.c.l.b16 %v4704
        %v4790 = vunpack.c.h.b16 %v4704
        %v4791 = vunpack.c.l.b16 %v4705
        %v4792 = vunpack.c.h.b16 %v4705
        %v4793 = vunpack.c.l.b16 %v4706
        %v4794 = vunpack.c.h.b16 %v4706
        %v4795 = vunpack.c.l.b16 %v4707
        %v4796 = vunpack.c.h.b16 %v4707
        %v4797 = vunpack.c.l.b16 %v4708
        %v4798 = vunpack.c.h.b16 %v4708
        %v4799 = vpack.c.b16 %v4741, %v4739
        %v4800 = vpack.c.b16 %v4742, %v4740
        %v4801 = vpack.c.b16 %v4745, %v4743
        %v4802 = vpack.c.b16 %v4746, %v4744
        %v4803 = vpack.c.b16 %v4749, %v4747
        %v4804 = vpack.c.b16 %v4750, %v4748
        %v4805 = vpack.c.b16 %v4753, %v4751
        %v4806 = vpack.c.b16 %v4754, %v4752
        %v4807 = vpack.c.b16 %v4757, %v4755
        %v4808 = vpack.c.b16 %v4758, %v4756
        %v4809 = vpack.c.b16 %v4761, %v4759
        %v4810 = vpack.c.b16 %v4762, %v4760
        %v4811 = vpack.c.b16 %v4765, %v4763
        %v4812 = vpack.c.b16 %v4766, %v4764
        %v4813 = vpack.c.b16 %v4769, %v4767
        %v4814 = vpack.c.b16 %v4770, %v4768
        %v4815 = vpack.c.b16 %v4773, %v4771
        %v4816 = vpack.c.b16 %v4774, %v4772
        %v4817 = vpack.c.b16 %v4777, %v4775
        %v4818 = vpack.c.b16 %v4778, %v4776
        %v4819 = vpack.c.b16 %v4781, %v4779
        %v4820 = vpack.c.b16 %v4782, %v4780
        %v4821 = vpack.c.b16 %v4785, %v4783
        %v4822 = vpack.c.b16 %v4786, %v4784
        %v4823 = vpack.c.b16 %v4789, %v4787
        %v4824 = vpack.c.b16 %v4790, %v4788
        %v4825 = vpack.c.b16 %v4793, %v4791
        %v4826 = vpack.c.b16 %v4794, %v4792
        %v4827 = vpack.c.b16 %v4797, %v4795
        %v4828 = vpack.c.b16 %v4798, %v4796
        %v4860 = vsel %vm1939, %v3866, 0
        %v4863 = vsel %vm1939, %v3868, 0
        %4865 = vmatprep.subr.bf16.mxu0 %v4814
        %4866 = vmatpush1.bf16.msra.mxu0 %v4813
        %4867 = vmatprep.subr.bf16.mxu0 %v4812
        %4868 = vmatpush1.bf16.msra.mxu0 %v4811
        %4869 = vmatprep.subr.bf16.mxu0 %v4810
        %4870 = vmatpush1.bf16.msra.mxu0 %v4809
        %4871 = vmatprep.subr.bf16.mxu0 %v4808
        %4872 = vmatpush1.bf16.msra.mxu0 %v4807
        %4873 = vmatprep.subr.bf16.mxu0 %v4806
        %4874 = vmatpush1.bf16.msra.mxu0 %v4805
        %4875 = vmatprep.subr.bf16.mxu0 %v4804
        %4876 = vmatpush1.bf16.msra.mxu0 %v4803
        %4877 = vmatprep.subr.bf16.mxu0 %v4802
        %4878 = vmatpush1.bf16.msra.mxu0 %v4801
        %4879 = vmatprep.subr.bf16.mxu0 %v4800
        %4880 = vmatpush1.bf16.msra.mxu0 %v4799
        %4881 = vmatprep.subr.bf16.mxu0 0
        %4882 = vmatpush2.bf16.msra.mxu0 0
        %4883 = vmatprep.subr.bf16.mxu0 %v4828
        %4884 = vmatpush2.bf16.msra.mxu0 %v4827
        %4885 = vmatprep.subr.bf16.mxu0 %v4826
        %4886 = vmatpush2.bf16.msra.mxu0 %v4825
        %4887 = vmatprep.subr.bf16.mxu0 %v4824
        %4888 = vmatpush2.bf16.msra.mxu0 %v4823
        %4889 = vmatprep.subr.bf16.mxu0 %v4822
        %4890 = vmatpush2.bf16.msra.mxu0 %v4821
        %4891 = vmatprep.subr.bf16.mxu0 %v4820
        %4892 = vmatpush2.bf16.msra.mxu0 %v4819
        %4893 = vmatprep.subr.bf16.mxu0 %v4818
        %4894 = vmatpush2.bf16.msra.mxu0 %v4817
        %4895 = vmatprep.subr.bf16.mxu0 %v4816
        %4896 = vmatpush2.bf16.msra.mxu0 %v4815
        %4897 = vmatprep.mubr.bf16.mxu0 %v4095
        %4898 = vmatmul.mubr.bf16.gmra.mxu0 %v3837
        %v4899 = vpop.f32.mrf.mxu0
        %v4900 = vadd.f32 0.0, %v4899
        %v4901 = vpop.f32.mrf.mxu0
        %v4902 = vadd.f32 0.0, %v4901
        %v4903 = vpop.f32.mrf.mxu0
        %v4904 = vadd.f32 0.0, %v4903
        %v4905 = vpop.f32.mrf.mxu0
        %v4906 = vadd.f32 0.0, %v4905
        %4907 = vmatprep.mubr.bf16.mxu0 %v4098
        %4908 = vmatmul.mubr.bf16.gmra.mxu0 %v3839
        %v4909 = vpop.f32.mrf.mxu0
        %v4910 = vadd.f32 0.0, %v4909
        %v4911 = vpop.f32.mrf.mxu0
        %v4912 = vadd.f32 0.0, %v4911
        %v4913 = vpop.f32.mrf.mxu0
        %v4914 = vadd.f32 0.0, %v4913
        %v4915 = vpop.f32.mrf.mxu0
        %v4916 = vadd.f32 0.0, %v4915
        %4917 = vmatprep.mubr.bf16.mxu0 %v4101
        %4918 = vmatmul.mubr.bf16.gmra.mxu0 %v3841
        %v4919 = vpop.f32.mrf.mxu0
        %v4920 = vadd.f32 0.0, %v4919
        %v4921 = vpop.f32.mrf.mxu0
        %v4922 = vadd.f32 0.0, %v4921
        %v4923 = vpop.f32.mrf.mxu0
        %v4924 = vadd.f32 0.0, %v4923
        %v4925 = vpop.f32.mrf.mxu0
        %v4926 = vadd.f32 0.0, %v4925
        %4927 = vmatprep.mubr.bf16.mxu0 %v4104
        %4928 = vmatmul.mubr.bf16.gmra.mxu0 %v3843
        %v4929 = vpop.f32.mrf.mxu0
        %v4930 = vadd.f32 0.0, %v4929
        %v4931 = vpop.f32.mrf.mxu0
        %v4932 = vadd.f32 0.0, %v4931
        %v4933 = vpop.f32.mrf.mxu0
        %v4934 = vadd.f32 0.0, %v4933
        %v4935 = vpop.f32.mrf.mxu0
        %v4936 = vadd.f32 0.0, %v4935
        %4937 = vmatprep.mubr.bf16.mxu0 %v4107
        %4938 = vmatmul.mubr.bf16.gmra.mxu0 %v3845
        %v4939 = vpop.f32.mrf.mxu0
        %v4940 = vadd.f32 0.0, %v4939
        %v4941 = vpop.f32.mrf.mxu0
        %v4942 = vadd.f32 0.0, %v4941
        %v4943 = vpop.f32.mrf.mxu0
        %v4944 = vadd.f32 0.0, %v4943
        %v4945 = vpop.f32.mrf.mxu0
        %v4946 = vadd.f32 0.0, %v4945
        %4947 = vmatprep.mubr.bf16.mxu0 %v4110
        %4948 = vmatmul.mubr.bf16.gmra.mxu0 %v3847
        %v4949 = vpop.f32.mrf.mxu0
        %v4950 = vadd.f32 0.0, %v4949
        %v4951 = vpop.f32.mrf.mxu0
        %v4952 = vadd.f32 0.0, %v4951
        %v4953 = vpop.f32.mrf.mxu0
        %v4954 = vadd.f32 0.0, %v4953
        %v4955 = vpop.f32.mrf.mxu0
        %v4956 = vadd.f32 0.0, %v4955
        %4957 = vmatprep.mubr.bf16.mxu0 %v4113
        %4958 = vmatmul.mubr.bf16.gmra.mxu0 %v3849
        %v4959 = vpop.f32.mrf.mxu0
        %v4960 = vadd.f32 0.0, %v4959
        %v4961 = vpop.f32.mrf.mxu0
        %v4962 = vadd.f32 0.0, %v4961
        %v4963 = vpop.f32.mrf.mxu0
        %v4964 = vadd.f32 0.0, %v4963
        %v4965 = vpop.f32.mrf.mxu0
        %v4966 = vadd.f32 0.0, %v4965
        %4967 = vmatprep.mubr.bf16.mxu0 %v4116
        %4968 = vmatmul.mubr.bf16.gmra.mxu0 %v3851
        %v4969 = vpop.f32.mrf.mxu0
        %v4970 = vadd.f32 0.0, %v4969
        %v4971 = vpop.f32.mrf.mxu0
        %v4972 = vadd.f32 0.0, %v4971
        %v4973 = vpop.f32.mrf.mxu0
        %v4974 = vadd.f32 0.0, %v4973
        %v4975 = vpop.f32.mrf.mxu0
        %v4976 = vadd.f32 0.0, %v4975
        %4977 = vmatprep.mubr.bf16.mxu0 %v4119
        %4978 = vmatmul.mubr.bf16.gmra.mxu0 %v3853
        %v4979 = vpop.f32.mrf.mxu0
        %v4980 = vadd.f32 0.0, %v4979
        %v4981 = vpop.f32.mrf.mxu0
        %v4982 = vadd.f32 0.0, %v4981
        %v4983 = vpop.f32.mrf.mxu0
        %v4984 = vadd.f32 0.0, %v4983
        %v4985 = vpop.f32.mrf.mxu0
        %v4986 = vadd.f32 0.0, %v4985
        %4987 = vmatprep.mubr.bf16.mxu0 %v4122
        %4988 = vmatmul.mubr.bf16.gmra.mxu0 %v3855
        %v4989 = vpop.f32.mrf.mxu0
        %v4990 = vadd.f32 0.0, %v4989
        %v4991 = vpop.f32.mrf.mxu0
        %v4992 = vadd.f32 0.0, %v4991
        %v4993 = vpop.f32.mrf.mxu0
        %v4994 = vadd.f32 0.0, %v4993
        %v4995 = vpop.f32.mrf.mxu0
        %v4996 = vadd.f32 0.0, %v4995
        %4997 = vmatprep.mubr.bf16.mxu0 %v4125
        %4998 = vmatmul.mubr.bf16.gmra.mxu0 %v3857
        %v4999 = vpop.f32.mrf.mxu0
        %v5000 = vadd.f32 0.0, %v4999
        %v5001 = vpop.f32.mrf.mxu0
        %v5002 = vadd.f32 0.0, %v5001
        %v5003 = vpop.f32.mrf.mxu0
        %v5004 = vadd.f32 0.0, %v5003
        %v5005 = vpop.f32.mrf.mxu0
        %v5006 = vadd.f32 0.0, %v5005
        %5007 = vmatprep.mubr.bf16.mxu0 %v4128
        %5008 = vmatmul.mubr.bf16.gmra.mxu0 %v3859
        %v5009 = vpop.f32.mrf.mxu0
        %v5010 = vadd.f32 0.0, %v5009
        %v5011 = vpop.f32.mrf.mxu0
        %v5012 = vadd.f32 0.0, %v5011
        %v5013 = vpop.f32.mrf.mxu0
        %v5014 = vadd.f32 0.0, %v5013
        %v5015 = vpop.f32.mrf.mxu0
        %v5016 = vadd.f32 0.0, %v5015
        %5017 = vmatprep.mubr.bf16.mxu0 %v4131
        %5018 = vmatmul.mubr.bf16.gmra.mxu0 %v3861
        %v5019 = vpop.f32.mrf.mxu0
        %v5020 = vadd.f32 0.0, %v5019
        %v5021 = vpop.f32.mrf.mxu0
        %v5022 = vadd.f32 0.0, %v5021
        %v5023 = vpop.f32.mrf.mxu0
        %v5024 = vadd.f32 0.0, %v5023
        %v5025 = vpop.f32.mrf.mxu0
        %v5026 = vadd.f32 0.0, %v5025
        %5027 = vmatprep.mubr.bf16.mxu0 %v4134
        %5028 = vmatmul.mubr.bf16.gmra.mxu0 %v3863
        %v5029 = vpop.f32.mrf.mxu0
        %v5030 = vadd.f32 0.0, %v5029
        %v5031 = vpop.f32.mrf.mxu0
        %v5032 = vadd.f32 0.0, %v5031
        %v5033 = vpop.f32.mrf.mxu0
        %v5034 = vadd.f32 0.0, %v5033
        %v5035 = vpop.f32.mrf.mxu0
        %v5036 = vadd.f32 0.0, %v5035
        %5037 = vmatprep.mubr.bf16.mxu0 %v4860
        %5038 = vmatmul.mubr.bf16.gmra.mxu0 %v3865
        %v5039 = vpop.f32.mrf.mxu0
        %v5040 = vadd.f32 0.0, %v5039
        %v5041 = vpop.f32.mrf.mxu0
        %v5042 = vadd.f32 0.0, %v5041
        %v5043 = vpop.f32.mrf.mxu0
        %v5044 = vadd.f32 0.0, %v5043
        %v5045 = vpop.f32.mrf.mxu0
        %v5046 = vadd.f32 0.0, %v5045
        %5047 = vmatprep.mubr.bf16.mxu0 %v4863
        %5048 = vmatmul.mubr.bf16.gmra.mxu0 %v3867
        %v5049 = vpop.f32.mrf.mxu0
        %v5050 = vadd.f32 0.0, %v5049
        %v5051 = vpop.f32.mrf.mxu0
        %v5052 = vadd.f32 0.0, %v5051
        %v5053 = vpop.f32.mrf.mxu0
        %v5054 = vadd.f32 0.0, %v5053
        %v5055 = vpop.f32.mrf.mxu0
        %v5056 = vadd.f32 0.0, %v5055
        %5057 = vdwg.mxu0
        %v5058 = vadd.f32 %v4520, %v4900
        %v5059 = vadd.f32 %v4522, %v4902
        %v5060 = vadd.f32 %v4524, %v4904
        %v5061 = vadd.f32 %v4526, %v4906
        %v5062 = vadd.f32 %v4530, %v4910
        %v5063 = vadd.f32 %v4532, %v4912
        %v5064 = vadd.f32 %v4534, %v4914
        %v5065 = vadd.f32 %v4536, %v4916
        %v5066 = vadd.f32 %v4540, %v4920
        %v5067 = vadd.f32 %v4542, %v4922
        %v5068 = vadd.f32 %v4544, %v4924
        %v5069 = vadd.f32 %v4546, %v4926
        %v5070 = vadd.f32 %v4550, %v4930
        %v5071 = vadd.f32 %v4552, %v4932
        %v5072 = vadd.f32 %v4554, %v4934
        %v5073 = vadd.f32 %v4556, %v4936
        %v5074 = vadd.f32 %v4560, %v4940
        %v5075 = vadd.f32 %v4562, %v4942
        %v5076 = vadd.f32 %v4564, %v4944
        %v5077 = vadd.f32 %v4566, %v4946
        %v5078 = vadd.f32 %v4570, %v4950
        %v5079 = vadd.f32 %v4572, %v4952
        %v5080 = vadd.f32 %v4574, %v4954
        %v5081 = vadd.f32 %v4576, %v4956
        %v5082 = vadd.f32 %v4580, %v4960
        %v5083 = vadd.f32 %v4582, %v4962
        %v5084 = vadd.f32 %v4584, %v4964
        %v5085 = vadd.f32 %v4586, %v4966
        %v5086 = vadd.f32 %v4590, %v4970
        %v5087 = vadd.f32 %v4592, %v4972
        %v5088 = vadd.f32 %v4594, %v4974
        %v5089 = vadd.f32 %v4596, %v4976
        %v5090 = vadd.f32 %v4600, %v4980
        %v5091 = vadd.f32 %v4602, %v4982
        %v5092 = vadd.f32 %v4604, %v4984
        %v5093 = vadd.f32 %v4606, %v4986
        %v5094 = vadd.f32 %v4610, %v4990
        %v5095 = vadd.f32 %v4612, %v4992
        %v5096 = vadd.f32 %v4614, %v4994
        %v5097 = vadd.f32 %v4616, %v4996
        %v5098 = vadd.f32 %v4620, %v5000
        %v5099 = vadd.f32 %v4622, %v5002
        %v5100 = vadd.f32 %v4624, %v5004
        %v5101 = vadd.f32 %v4626, %v5006
        %v5102 = vadd.f32 %v4630, %v5010
        %v5103 = vadd.f32 %v4632, %v5012
        %v5104 = vadd.f32 %v4634, %v5014
        %v5105 = vadd.f32 %v4636, %v5016
        %v5106 = vadd.f32 %v4640, %v5020
        %v5107 = vadd.f32 %v4642, %v5022
        %v5108 = vadd.f32 %v4644, %v5024
        %v5109 = vadd.f32 %v4646, %v5026
        %v5110 = vadd.f32 %v4650, %v5030
        %v5111 = vadd.f32 %v4652, %v5032
        %v5112 = vadd.f32 %v4654, %v5034
        %v5113 = vadd.f32 %v4656, %v5036
        %v5114 = vadd.f32 %v4660, %v5040
        %v5115 = vadd.f32 %v4662, %v5042
        %v5116 = vadd.f32 %v4664, %v5044
        %v5117 = vadd.f32 %v4666, %v5046
        %v5118 = vadd.f32 %v4670, %v5050
        %v5119 = vadd.f32 %v4672, %v5052
        %v5120 = vadd.f32 %v4674, %v5054
        %v5121 = vadd.f32 %v4676, %v5056
        %s5122 = scalar_lea.vmem %s2, 720
        %v5123 = vld [vmem:[%s5122] sm:$0xff]
        %v5124 = vld [vmem:[%s5122 + $0x8] sm:$0xff]
        %v5125 = vld [vmem:[%s5122 + $0x10] sm:$0xff]
        %v5126 = vld [vmem:[%s5122 + $0x18] sm:$0xff]
        %v5127 = vld [vmem:[%s5122 + $0x20] sm:$0xff]
        %v5128 = vld [vmem:[%s5122 + $0x28] sm:$0xff]
        %v5129 = vld [vmem:[%s5122 + $0x30] sm:$0xff]
        %v5130 = vld [vmem:[%s5122 + $0x38] sm:$0xff]
        %v5131 = vld [vmem:[%s5122 + $0x40] sm:$0xff]
        %v5132 = vld [vmem:[%s5122 + $0x48] sm:$0xff]
        %v5133 = vld [vmem:[%s5122 + $0x50] sm:$0xff]
        %v5134 = vld [vmem:[%s5122 + $0x58] sm:$0xff]
        %v5135 = vld [vmem:[%s5122 + $0x60] sm:$0xff]
        %v5136 = vld [vmem:[%s5122 + $0x68] sm:$0xff]
        %v5137 = vld [vmem:[%s5122 + $0x70] sm:$0xff]
        %v5138 = vld [vmem:[%s5122 + $0x78] sm:$0xff]
        %v5139 = vld [vmem:[%s5122 + $0x80] sm:$0xff]
        %v5140 = vld [vmem:[%s5122 + $0x88] sm:$0xff]
        %v5141 = vld [vmem:[%s5122 + $0x90] sm:$0xff]
        %v5142 = vld [vmem:[%s5122 + $0x98] sm:$0xff]
        %v5143 = vld [vmem:[%s5122 + $0xa0] sm:$0xff]
        %v5144 = vld [vmem:[%s5122 + $0xa8] sm:$0xff]
        %v5145 = vld [vmem:[%s5122 + $0xb0] sm:$0xff]
        %v5146 = vld [vmem:[%s5122 + $0xb8] sm:$0xff]
        %v5147 = vld [vmem:[%s5122 + $0xc0] sm:$0xff]
        %v5148 = vld [vmem:[%s5122 + $0xc8] sm:$0xff]
        %v5149 = vld [vmem:[%s5122 + $0xd0] sm:$0xff]
        %v5150 = vld [vmem:[%s5122 + $0xd8] sm:$0xff]
        %v5151 = vld [vmem:[%s5122 + $0xe0] sm:$0xff]
        %v5152 = vld [vmem:[%s5122 + $0xe8] sm:$0xff]
        %v5183 = vunpack.c.l.b16 %v5123
        %v5184 = vunpack.c.h.b16 %v5123
        %v5185 = vunpack.c.l.b16 %v5124
        %v5186 = vunpack.c.h.b16 %v5124
        %v5187 = vunpack.c.l.b16 %v5125
        %v5188 = vunpack.c.h.b16 %v5125
        %v5189 = vunpack.c.l.b16 %v5126
        %v5190 = vunpack.c.h.b16 %v5126
        %v5191 = vunpack.c.l.b16 %v5127
        %v5192 = vunpack.c.h.b16 %v5127
        %v5193 = vunpack.c.l.b16 %v5128
        %v5194 = vunpack.c.h.b16 %v5128
        %v5195 = vunpack.c.l.b16 %v5129
        %v5196 = vunpack.c.h.b16 %v5129
        %v5197 = vunpack.c.l.b16 %v5130
        %v5198 = vunpack.c.h.b16 %v5130
        %v5199 = vunpack.c.l.b16 %v5131
        %v5200 = vunpack.c.h.b16 %v5131
        %v5201 = vunpack.c.l.b16 %v5132
        %v5202 = vunpack.c.h.b16 %v5132
        %v5203 = vunpack.c.l.b16 %v5133
        %v5204 = vunpack.c.h.b16 %v5133
        %v5205 = vunpack.c.l.b16 %v5134
        %v5206 = vunpack.c.h.b16 %v5134
        %v5207 = vunpack.c.l.b16 %v5135
        %v5208 = vunpack.c.h.b16 %v5135
        %v5209 = vunpack.c.l.b16 %v5136
        %v5210 = vunpack.c.h.b16 %v5136
        %v5211 = vunpack.c.l.b16 %v5137
        %v5212 = vunpack.c.h.b16 %v5137
        %v5213 = vunpack.c.l.b16 %v5138
        %v5214 = vunpack.c.h.b16 %v5138
        %v5215 = vunpack.c.l.b16 %v5139
        %v5216 = vunpack.c.h.b16 %v5139
        %v5217 = vunpack.c.l.b16 %v5140
        %v5218 = vunpack.c.h.b16 %v5140
        %v5219 = vunpack.c.l.b16 %v5141
        %v5220 = vunpack.c.h.b16 %v5141
        %v5221 = vunpack.c.l.b16 %v5142
        %v5222 = vunpack.c.h.b16 %v5142
        %v5223 = vunpack.c.l.b16 %v5143
        %v5224 = vunpack.c.h.b16 %v5143
        %v5225 = vunpack.c.l.b16 %v5144
        %v5226 = vunpack.c.h.b16 %v5144
        %v5227 = vunpack.c.l.b16 %v5145
        %v5228 = vunpack.c.h.b16 %v5145
        %v5229 = vunpack.c.l.b16 %v5146
        %v5230 = vunpack.c.h.b16 %v5146
        %v5231 = vunpack.c.l.b16 %v5147
        %v5232 = vunpack.c.h.b16 %v5147
        %v5233 = vunpack.c.l.b16 %v5148
        %v5234 = vunpack.c.h.b16 %v5148
        %v5235 = vunpack.c.l.b16 %v5149
        %v5236 = vunpack.c.h.b16 %v5149
        %v5237 = vunpack.c.l.b16 %v5150
        %v5238 = vunpack.c.h.b16 %v5150
        %v5239 = vunpack.c.l.b16 %v5151
        %v5240 = vunpack.c.h.b16 %v5151
        %v5241 = vunpack.c.l.b16 %v5152
        %v5242 = vunpack.c.h.b16 %v5152
        %v5243 = vpack.c.b16 %v5185, %v5183
        %v5244 = vpack.c.b16 %v5186, %v5184
        %v5245 = vpack.c.b16 %v5189, %v5187
        %v5246 = vpack.c.b16 %v5190, %v5188
        %v5247 = vpack.c.b16 %v5193, %v5191
        %v5248 = vpack.c.b16 %v5194, %v5192
        %v5249 = vpack.c.b16 %v5197, %v5195
        %v5250 = vpack.c.b16 %v5198, %v5196
        %v5251 = vpack.c.b16 %v5201, %v5199
        %v5252 = vpack.c.b16 %v5202, %v5200
        %v5253 = vpack.c.b16 %v5205, %v5203
        %v5254 = vpack.c.b16 %v5206, %v5204
        %v5255 = vpack.c.b16 %v5209, %v5207
        %v5256 = vpack.c.b16 %v5210, %v5208
        %v5257 = vpack.c.b16 %v5213, %v5211
        %v5258 = vpack.c.b16 %v5214, %v5212
        %v5259 = vpack.c.b16 %v5217, %v5215
        %v5260 = vpack.c.b16 %v5218, %v5216
        %v5261 = vpack.c.b16 %v5221, %v5219
        %v5262 = vpack.c.b16 %v5222, %v5220
        %v5263 = vpack.c.b16 %v5225, %v5223
        %v5264 = vpack.c.b16 %v5226, %v5224
        %v5265 = vpack.c.b16 %v5229, %v5227
        %v5266 = vpack.c.b16 %v5230, %v5228
        %v5267 = vpack.c.b16 %v5233, %v5231
        %v5268 = vpack.c.b16 %v5234, %v5232
        %v5269 = vpack.c.b16 %v5237, %v5235
        %v5270 = vpack.c.b16 %v5238, %v5236
        %v5271 = vpack.c.b16 %v5241, %v5239
        %v5272 = vpack.c.b16 %v5242, %v5240
        %v5304 = vsel %vm1939, %v3870, 0
        %v5307 = vsel %vm1939, %v3872, 0
        %5309 = vmatprep.subr.bf16.mxu0 %v5258
        %5310 = vmatpush1.bf16.msra.mxu0 %v5257
        %5311 = vmatprep.subr.bf16.mxu0 %v5256
        %5312 = vmatpush1.bf16.msra.mxu0 %v5255
        %5313 = vmatprep.subr.bf16.mxu0 %v5254
        %5314 = vmatpush1.bf16.msra.mxu0 %v5253
        %5315 = vmatprep.subr.bf16.mxu0 %v5252
        %5316 = vmatpush1.bf16.msra.mxu0 %v5251
        %5317 = vmatprep.subr.bf16.mxu0 %v5250
        %5318 = vmatpush1.bf16.msra.mxu0 %v5249
        %5319 = vmatprep.subr.bf16.mxu0 %v5248
        %5320 = vmatpush1.bf16.msra.mxu0 %v5247
        %5321 = vmatprep.subr.bf16.mxu0 %v5246
        %5322 = vmatpush1.bf16.msra.mxu0 %v5245
        %5323 = vmatprep.subr.bf16.mxu0 %v5244
        %5324 = vmatpush1.bf16.msra.mxu0 %v5243
        %5325 = vmatprep.subr.bf16.mxu0 0
        %5326 = vmatpush2.bf16.msra.mxu0 0
        %5327 = vmatprep.subr.bf16.mxu0 %v5272
        %5328 = vmatpush2.bf16.msra.mxu0 %v5271
        %5329 = vmatprep.subr.bf16.mxu0 %v5270
        %5330 = vmatpush2.bf16.msra.mxu0 %v5269
        %5331 = vmatprep.subr.bf16.mxu0 %v5268
        %5332 = vmatpush2.bf16.msra.mxu0 %v5267
        %5333 = vmatprep.subr.bf16.mxu0 %v5266
        %5334 = vmatpush2.bf16.msra.mxu0 %v5265
        %5335 = vmatprep.subr.bf16.mxu0 %v5264
        %5336 = vmatpush2.bf16.msra.mxu0 %v5263
        %5337 = vmatprep.subr.bf16.mxu0 %v5262
        %5338 = vmatpush2.bf16.msra.mxu0 %v5261
        %5339 = vmatprep.subr.bf16.mxu0 %v5260
        %5340 = vmatpush2.bf16.msra.mxu0 %v5259
        %5341 = vmatprep.mubr.bf16.mxu0 %v4101
        %5342 = vmatmul.mubr.bf16.gmra.mxu0 %v3841
        %v5343 = vpop.f32.mrf.mxu0
        %v5344 = vadd.f32 0.0, %v5343
        %v5345 = vpop.f32.mrf.mxu0
        %v5346 = vadd.f32 0.0, %v5345
        %v5347 = vpop.f32.mrf.mxu0
        %v5348 = vadd.f32 0.0, %v5347
        %v5349 = vpop.f32.mrf.mxu0
        %v5350 = vadd.f32 0.0, %v5349
        %5351 = vmatprep.mubr.bf16.mxu0 %v4104
        %5352 = vmatmul.mubr.bf16.gmra.mxu0 %v3843
        %v5353 = vpop.f32.mrf.mxu0
        %v5354 = vadd.f32 0.0, %v5353
        %v5355 = vpop.f32.mrf.mxu0
        %v5356 = vadd.f32 0.0, %v5355
        %v5357 = vpop.f32.mrf.mxu0
        %v5358 = vadd.f32 0.0, %v5357
        %v5359 = vpop.f32.mrf.mxu0
        %v5360 = vadd.f32 0.0, %v5359
        %5361 = vmatprep.mubr.bf16.mxu0 %v4107
        %5362 = vmatmul.mubr.bf16.gmra.mxu0 %v3845
        %v5363 = vpop.f32.mrf.mxu0
        %v5364 = vadd.f32 0.0, %v5363
        %v5365 = vpop.f32.mrf.mxu0
        %v5366 = vadd.f32 0.0, %v5365
        %v5367 = vpop.f32.mrf.mxu0
        %v5368 = vadd.f32 0.0, %v5367
        %v5369 = vpop.f32.mrf.mxu0
        %v5370 = vadd.f32 0.0, %v5369
        %5371 = vmatprep.mubr.bf16.mxu0 %v4110
        %5372 = vmatmul.mubr.bf16.gmra.mxu0 %v3847
        %v5373 = vpop.f32.mrf.mxu0
        %v5374 = vadd.f32 0.0, %v5373
        %v5375 = vpop.f32.mrf.mxu0
        %v5376 = vadd.f32 0.0, %v5375
        %v5377 = vpop.f32.mrf.mxu0
        %v5378 = vadd.f32 0.0, %v5377
        %v5379 = vpop.f32.mrf.mxu0
        %v5380 = vadd.f32 0.0, %v5379
        %5381 = vmatprep.mubr.bf16.mxu0 %v4113
        %5382 = vmatmul.mubr.bf16.gmra.mxu0 %v3849
        %v5383 = vpop.f32.mrf.mxu0
        %v5384 = vadd.f32 0.0, %v5383
        %v5385 = vpop.f32.mrf.mxu0
        %v5386 = vadd.f32 0.0, %v5385
        %v5387 = vpop.f32.mrf.mxu0
        %v5388 = vadd.f32 0.0, %v5387
        %v5389 = vpop.f32.mrf.mxu0
        %v5390 = vadd.f32 0.0, %v5389
        %5391 = vmatprep.mubr.bf16.mxu0 %v4116
        %5392 = vmatmul.mubr.bf16.gmra.mxu0 %v3851
        %v5393 = vpop.f32.mrf.mxu0
        %v5394 = vadd.f32 0.0, %v5393
        %v5395 = vpop.f32.mrf.mxu0
        %v5396 = vadd.f32 0.0, %v5395
        %v5397 = vpop.f32.mrf.mxu0
        %v5398 = vadd.f32 0.0, %v5397
        %v5399 = vpop.f32.mrf.mxu0
        %v5400 = vadd.f32 0.0, %v5399
        %5401 = vmatprep.mubr.bf16.mxu0 %v4119
        %5402 = vmatmul.mubr.bf16.gmra.mxu0 %v3853
        %v5403 = vpop.f32.mrf.mxu0
        %v5404 = vadd.f32 0.0, %v5403
        %v5405 = vpop.f32.mrf.mxu0
        %v5406 = vadd.f32 0.0, %v5405
        %v5407 = vpop.f32.mrf.mxu0
        %v5408 = vadd.f32 0.0, %v5407
        %v5409 = vpop.f32.mrf.mxu0
        %v5410 = vadd.f32 0.0, %v5409
        %5411 = vmatprep.mubr.bf16.mxu0 %v4122
        %5412 = vmatmul.mubr.bf16.gmra.mxu0 %v3855
        %v5413 = vpop.f32.mrf.mxu0
        %v5414 = vadd.f32 0.0, %v5413
        %v5415 = vpop.f32.mrf.mxu0
        %v5416 = vadd.f32 0.0, %v5415
        %v5417 = vpop.f32.mrf.mxu0
        %v5418 = vadd.f32 0.0, %v5417
        %v5419 = vpop.f32.mrf.mxu0
        %v5420 = vadd.f32 0.0, %v5419
        %5421 = vmatprep.mubr.bf16.mxu0 %v4125
        %5422 = vmatmul.mubr.bf16.gmra.mxu0 %v3857
        %v5423 = vpop.f32.mrf.mxu0
        %v5424 = vadd.f32 0.0, %v5423
        %v5425 = vpop.f32.mrf.mxu0
        %v5426 = vadd.f32 0.0, %v5425
        %v5427 = vpop.f32.mrf.mxu0
        %v5428 = vadd.f32 0.0, %v5427
        %v5429 = vpop.f32.mrf.mxu0
        %v5430 = vadd.f32 0.0, %v5429
        %5431 = vmatprep.mubr.bf16.mxu0 %v4128
        %5432 = vmatmul.mubr.bf16.gmra.mxu0 %v3859
        %v5433 = vpop.f32.mrf.mxu0
        %v5434 = vadd.f32 0.0, %v5433
        %v5435 = vpop.f32.mrf.mxu0
        %v5436 = vadd.f32 0.0, %v5435
        %v5437 = vpop.f32.mrf.mxu0
        %v5438 = vadd.f32 0.0, %v5437
        %v5439 = vpop.f32.mrf.mxu0
        %v5440 = vadd.f32 0.0, %v5439
        %5441 = vmatprep.mubr.bf16.mxu0 %v4131
        %5442 = vmatmul.mubr.bf16.gmra.mxu0 %v3861
        %v5443 = vpop.f32.mrf.mxu0
        %v5444 = vadd.f32 0.0, %v5443
        %v5445 = vpop.f32.mrf.mxu0
        %v5446 = vadd.f32 0.0, %v5445
        %v5447 = vpop.f32.mrf.mxu0
        %v5448 = vadd.f32 0.0, %v5447
        %v5449 = vpop.f32.mrf.mxu0
        %v5450 = vadd.f32 0.0, %v5449
        %5451 = vmatprep.mubr.bf16.mxu0 %v4134
        %5452 = vmatmul.mubr.bf16.gmra.mxu0 %v3863
        %v5453 = vpop.f32.mrf.mxu0
        %v5454 = vadd.f32 0.0, %v5453
        %v5455 = vpop.f32.mrf.mxu0
        %v5456 = vadd.f32 0.0, %v5455
        %v5457 = vpop.f32.mrf.mxu0
        %v5458 = vadd.f32 0.0, %v5457
        %v5459 = vpop.f32.mrf.mxu0
        %v5460 = vadd.f32 0.0, %v5459
        %5461 = vmatprep.mubr.bf16.mxu0 %v4860
        %5462 = vmatmul.mubr.bf16.gmra.mxu0 %v3865
        %v5463 = vpop.f32.mrf.mxu0
        %v5464 = vadd.f32 0.0, %v5463
        %v5465 = vpop.f32.mrf.mxu0
        %v5466 = vadd.f32 0.0, %v5465
        %v5467 = vpop.f32.mrf.mxu0
        %v5468 = vadd.f32 0.0, %v5467
        %v5469 = vpop.f32.mrf.mxu0
        %v5470 = vadd.f32 0.0, %v5469
        %5471 = vmatprep.mubr.bf16.mxu0 %v4863
        %5472 = vmatmul.mubr.bf16.gmra.mxu0 %v3867
        %v5473 = vpop.f32.mrf.mxu0
        %v5474 = vadd.f32 0.0, %v5473
        %v5475 = vpop.f32.mrf.mxu0
        %v5476 = vadd.f32 0.0, %v5475
        %v5477 = vpop.f32.mrf.mxu0
        %v5478 = vadd.f32 0.0, %v5477
        %v5479 = vpop.f32.mrf.mxu0
        %v5480 = vadd.f32 0.0, %v5479
        %5481 = vmatprep.mubr.bf16.mxu0 %v5304
        %5482 = vmatmul.mubr.bf16.gmra.mxu0 %v3869
        %v5483 = vpop.f32.mrf.mxu0
        %v5484 = vadd.f32 0.0, %v5483
        %v5485 = vpop.f32.mrf.mxu0
        %v5486 = vadd.f32 0.0, %v5485
        %v5487 = vpop.f32.mrf.mxu0
        %v5488 = vadd.f32 0.0, %v5487
        %v5489 = vpop.f32.mrf.mxu0
        %v5490 = vadd.f32 0.0, %v5489
        %5491 = vmatprep.mubr.bf16.mxu0 %v5307
        %5492 = vmatmul.mubr.bf16.gmra.mxu0 %v3871
        %v5493 = vpop.f32.mrf.mxu0
        %v5494 = vadd.f32 0.0, %v5493
        %v5495 = vpop.f32.mrf.mxu0
        %v5496 = vadd.f32 0.0, %v5495
        %v5497 = vpop.f32.mrf.mxu0
        %v5498 = vadd.f32 0.0, %v5497
        %v5499 = vpop.f32.mrf.mxu0
        %v5500 = vadd.f32 0.0, %v5499
        %5501 = vdwg.mxu0
        %v5502 = vadd.f32 %v5058, %v5344
        %v5503 = vadd.f32 %v5059, %v5346
        %v5504 = vadd.f32 %v5060, %v5348
        %v5505 = vadd.f32 %v5061, %v5350
        %v5506 = vadd.f32 %v5062, %v5354
        %v5507 = vadd.f32 %v5063, %v5356
        %v5508 = vadd.f32 %v5064, %v5358
        %v5509 = vadd.f32 %v5065, %v5360
        %v5510 = vadd.f32 %v5066, %v5364
        %v5511 = vadd.f32 %v5067, %v5366
        %v5512 = vadd.f32 %v5068, %v5368
        %v5513 = vadd.f32 %v5069, %v5370
        %v5514 = vadd.f32 %v5070, %v5374
        %v5515 = vadd.f32 %v5071, %v5376
        %v5516 = vadd.f32 %v5072, %v5378
        %v5517 = vadd.f32 %v5073, %v5380
        %v5518 = vadd.f32 %v5074, %v5384
        %v5519 = vadd.f32 %v5075, %v5386
        %v5520 = vadd.f32 %v5076, %v5388
        %v5521 = vadd.f32 %v5077, %v5390
        %v5522 = vadd.f32 %v5078, %v5394
        %v5523 = vadd.f32 %v5079, %v5396
        %v5524 = vadd.f32 %v5080, %v5398
        %v5525 = vadd.f32 %v5081, %v5400
        %v5526 = vadd.f32 %v5082, %v5404
        %v5527 = vadd.f32 %v5083, %v5406
        %v5528 = vadd.f32 %v5084, %v5408
        %v5529 = vadd.f32 %v5085, %v5410
        %v5530 = vadd.f32 %v5086, %v5414
        %v5531 = vadd.f32 %v5087, %v5416
        %v5532 = vadd.f32 %v5088, %v5418
        %v5533 = vadd.f32 %v5089, %v5420
        %v5534 = vadd.f32 %v5090, %v5424
        %v5535 = vadd.f32 %v5091, %v5426
        %v5536 = vadd.f32 %v5092, %v5428
        %v5537 = vadd.f32 %v5093, %v5430
        %v5538 = vadd.f32 %v5094, %v5434
        %v5539 = vadd.f32 %v5095, %v5436
        %v5540 = vadd.f32 %v5096, %v5438
        %v5541 = vadd.f32 %v5097, %v5440
        %v5542 = vadd.f32 %v5098, %v5444
        %v5543 = vadd.f32 %v5099, %v5446
        %v5544 = vadd.f32 %v5100, %v5448
        %v5545 = vadd.f32 %v5101, %v5450
        %v5546 = vadd.f32 %v5102, %v5454
        %v5547 = vadd.f32 %v5103, %v5456
        %v5548 = vadd.f32 %v5104, %v5458
        %v5549 = vadd.f32 %v5105, %v5460
        %v5550 = vadd.f32 %v5106, %v5464
        %v5551 = vadd.f32 %v5107, %v5466
        %v5552 = vadd.f32 %v5108, %v5468
        %v5553 = vadd.f32 %v5109, %v5470
        %v5554 = vadd.f32 %v5110, %v5474
        %v5555 = vadd.f32 %v5111, %v5476
        %v5556 = vadd.f32 %v5112, %v5478
        %v5557 = vadd.f32 %v5113, %v5480
        %v5558 = vadd.f32 %v5114, %v5484
        %v5559 = vadd.f32 %v5115, %v5486
        %v5560 = vadd.f32 %v5116, %v5488
        %v5561 = vadd.f32 %v5117, %v5490
        %v5562 = vadd.f32 %v5118, %v5494
        %v5563 = vadd.f32 %v5119, %v5496
        %v5564 = vadd.f32 %v5120, %v5498
        %v5565 = vadd.f32 %v5121, %v5500
        %s5566 = scalar_lea.vmem %s2, 960
        %v5567 = vld [vmem:[%s5566] sm:$0xff]
        %v5568 = vld [vmem:[%s5566 + $0x8] sm:$0xff]
        %v5569 = vld [vmem:[%s5566 + $0x10] sm:$0xff]
        %v5570 = vld [vmem:[%s5566 + $0x18] sm:$0xff]
        %v5571 = vld [vmem:[%s5566 + $0x20] sm:$0xff]
        %v5572 = vld [vmem:[%s5566 + $0x28] sm:$0xff]
        %v5573 = vld [vmem:[%s5566 + $0x30] sm:$0xff]
        %v5574 = vld [vmem:[%s5566 + $0x38] sm:$0xff]
        %v5575 = vld [vmem:[%s5566 + $0x40] sm:$0xff]
        %v5576 = vld [vmem:[%s5566 + $0x48] sm:$0xff]
        %v5577 = vld [vmem:[%s5566 + $0x50] sm:$0xff]
        %v5578 = vld [vmem:[%s5566 + $0x58] sm:$0xff]
        %v5579 = vld [vmem:[%s5566 + $0x60] sm:$0xff]
        %v5580 = vld [vmem:[%s5566 + $0x68] sm:$0xff]
        %v5581 = vld [vmem:[%s5566 + $0x70] sm:$0xff]
        %v5582 = vld [vmem:[%s5566 + $0x78] sm:$0xff]
        %v5583 = vld [vmem:[%s5566 + $0x80] sm:$0xff]
        %v5584 = vld [vmem:[%s5566 + $0x88] sm:$0xff]
        %v5585 = vld [vmem:[%s5566 + $0x90] sm:$0xff]
        %v5586 = vld [vmem:[%s5566 + $0x98] sm:$0xff]
        %v5587 = vld [vmem:[%s5566 + $0xa0] sm:$0xff]
        %v5588 = vld [vmem:[%s5566 + $0xa8] sm:$0xff]
        %v5589 = vld [vmem:[%s5566 + $0xb0] sm:$0xff]
        %v5590 = vld [vmem:[%s5566 + $0xb8] sm:$0xff]
        %v5591 = vld [vmem:[%s5566 + $0xc0] sm:$0xff]
        %v5592 = vld [vmem:[%s5566 + $0xc8] sm:$0xff]
        %v5593 = vld [vmem:[%s5566 + $0xd0] sm:$0xff]
        %v5594 = vld [vmem:[%s5566 + $0xd8] sm:$0xff]
        %v5595 = vld [vmem:[%s5566 + $0xe0] sm:$0xff]
        %v5596 = vld [vmem:[%s5566 + $0xe8] sm:$0xff]
        %v5627 = vunpack.c.l.b16 %v5567
        %v5628 = vunpack.c.h.b16 %v5567
        %v5629 = vunpack.c.l.b16 %v5568
        %v5630 = vunpack.c.h.b16 %v5568
        %v5631 = vunpack.c.l.b16 %v5569
        %v5632 = vunpack.c.h.b16 %v5569
        %v5633 = vunpack.c.l.b16 %v5570
        %v5634 = vunpack.c.h.b16 %v5570
        %v5635 = vunpack.c.l.b16 %v5571
        %v5636 = vunpack.c.h.b16 %v5571
        %v5637 = vunpack.c.l.b16 %v5572
        %v5638 = vunpack.c.h.b16 %v5572
        %v5639 = vunpack.c.l.b16 %v5573
        %v5640 = vunpack.c.h.b16 %v5573
        %v5641 = vunpack.c.l.b16 %v5574
        %v5642 = vunpack.c.h.b16 %v5574
        %v5643 = vunpack.c.l.b16 %v5575
        %v5644 = vunpack.c.h.b16 %v5575
        %v5645 = vunpack.c.l.b16 %v5576
        %v5646 = vunpack.c.h.b16 %v5576
        %v5647 = vunpack.c.l.b16 %v5577
        %v5648 = vunpack.c.h.b16 %v5577
        %v5649 = vunpack.c.l.b16 %v5578
        %v5650 = vunpack.c.h.b16 %v5578
        %v5651 = vunpack.c.l.b16 %v5579
        %v5652 = vunpack.c.h.b16 %v5579
        %v5653 = vunpack.c.l.b16 %v5580
        %v5654 = vunpack.c.h.b16 %v5580
        %v5655 = vunpack.c.l.b16 %v5581
        %v5656 = vunpack.c.h.b16 %v5581
        %v5657 = vunpack.c.l.b16 %v5582
        %v5658 = vunpack.c.h.b16 %v5582
        %v5659 = vunpack.c.l.b16 %v5583
        %v5660 = vunpack.c.h.b16 %v5583
        %v5661 = vunpack.c.l.b16 %v5584
        %v5662 = vunpack.c.h.b16 %v5584
        %v5663 = vunpack.c.l.b16 %v5585
        %v5664 = vunpack.c.h.b16 %v5585
        %v5665 = vunpack.c.l.b16 %v5586
        %v5666 = vunpack.c.h.b16 %v5586
        %v5667 = vunpack.c.l.b16 %v5587
        %v5668 = vunpack.c.h.b16 %v5587
        %v5669 = vunpack.c.l.b16 %v5588
        %v5670 = vunpack.c.h.b16 %v5588
        %v5671 = vunpack.c.l.b16 %v5589
        %v5672 = vunpack.c.h.b16 %v5589
        %v5673 = vunpack.c.l.b16 %v5590
        %v5674 = vunpack.c.h.b16 %v5590
        %v5675 = vunpack.c.l.b16 %v5591
        %v5676 = vunpack.c.h.b16 %v5591
        %v5677 = vunpack.c.l.b16 %v5592
        %v5678 = vunpack.c.h.b16 %v5592
        %v5679 = vunpack.c.l.b16 %v5593
        %v5680 = vunpack.c.h.b16 %v5593
        %v5681 = vunpack.c.l.b16 %v5594
        %v5682 = vunpack.c.h.b16 %v5594
        %v5683 = vunpack.c.l.b16 %v5595
        %v5684 = vunpack.c.h.b16 %v5595
        %v5685 = vunpack.c.l.b16 %v5596
        %v5686 = vunpack.c.h.b16 %v5596
        %v5687 = vpack.c.b16 %v5629, %v5627
        %v5688 = vpack.c.b16 %v5630, %v5628
        %v5689 = vpack.c.b16 %v5633, %v5631
        %v5690 = vpack.c.b16 %v5634, %v5632
        %v5691 = vpack.c.b16 %v5637, %v5635
        %v5692 = vpack.c.b16 %v5638, %v5636
        %v5693 = vpack.c.b16 %v5641, %v5639
        %v5694 = vpack.c.b16 %v5642, %v5640
        %v5695 = vpack.c.b16 %v5645, %v5643
        %v5696 = vpack.c.b16 %v5646, %v5644
        %v5697 = vpack.c.b16 %v5649, %v5647
        %v5698 = vpack.c.b16 %v5650, %v5648
        %v5699 = vpack.c.b16 %v5653, %v5651
        %v5700 = vpack.c.b16 %v5654, %v5652
        %v5701 = vpack.c.b16 %v5657, %v5655
        %v5702 = vpack.c.b16 %v5658, %v5656
        %v5703 = vpack.c.b16 %v5661, %v5659
        %v5704 = vpack.c.b16 %v5662, %v5660
        %v5705 = vpack.c.b16 %v5665, %v5663
        %v5706 = vpack.c.b16 %v5666, %v5664
        %v5707 = vpack.c.b16 %v5669, %v5667
        %v5708 = vpack.c.b16 %v5670, %v5668
        %v5709 = vpack.c.b16 %v5673, %v5671
        %v5710 = vpack.c.b16 %v5674, %v5672
        %v5711 = vpack.c.b16 %v5677, %v5675
        %v5712 = vpack.c.b16 %v5678, %v5676
        %v5713 = vpack.c.b16 %v5681, %v5679
        %v5714 = vpack.c.b16 %v5682, %v5680
        %v5715 = vpack.c.b16 %v5685, %v5683
        %v5716 = vpack.c.b16 %v5686, %v5684
        %v5748 = vsel %vm1939, %v3874, 0
        %v5751 = vsel %vm1939, %v3876, 0
        %5753 = vmatprep.subr.bf16.mxu0 %v5702
        %5754 = vmatpush1.bf16.msra.mxu0 %v5701
        %5755 = vmatprep.subr.bf16.mxu0 %v5700
        %5756 = vmatpush1.bf16.msra.mxu0 %v5699
        %5757 = vmatprep.subr.bf16.mxu0 %v5698
        %5758 = vmatpush1.bf16.msra.mxu0 %v5697
        %5759 = vmatprep.subr.bf16.mxu0 %v5696
        %5760 = vmatpush1.bf16.msra.mxu0 %v5695
        %5761 = vmatprep.subr.bf16.mxu0 %v5694
        %5762 = vmatpush1.bf16.msra.mxu0 %v5693
        %5763 = vmatprep.subr.bf16.mxu0 %v5692
        %5764 = vmatpush1.bf16.msra.mxu0 %v5691
        %5765 = vmatprep.subr.bf16.mxu0 %v5690
        %5766 = vmatpush1.bf16.msra.mxu0 %v5689
        %5767 = vmatprep.subr.bf16.mxu0 %v5688
        %5768 = vmatpush1.bf16.msra.mxu0 %v5687
        %5769 = vmatprep.subr.bf16.mxu0 0
        %5770 = vmatpush2.bf16.msra.mxu0 0
        %5771 = vmatprep.subr.bf16.mxu0 %v5716
        %5772 = vmatpush2.bf16.msra.mxu0 %v5715
        %5773 = vmatprep.subr.bf16.mxu0 %v5714
        %5774 = vmatpush2.bf16.msra.mxu0 %v5713
        %5775 = vmatprep.subr.bf16.mxu0 %v5712
        %5776 = vmatpush2.bf16.msra.mxu0 %v5711
        %5777 = vmatprep.subr.bf16.mxu0 %v5710
        %5778 = vmatpush2.bf16.msra.mxu0 %v5709
        %5779 = vmatprep.subr.bf16.mxu0 %v5708
        %5780 = vmatpush2.bf16.msra.mxu0 %v5707
        %5781 = vmatprep.subr.bf16.mxu0 %v5706
        %5782 = vmatpush2.bf16.msra.mxu0 %v5705
        %5783 = vmatprep.subr.bf16.mxu0 %v5704
        %5784 = vmatpush2.bf16.msra.mxu0 %v5703
        %5785 = vmatprep.mubr.bf16.mxu0 %v4107
        %5786 = vmatmul.mubr.bf16.gmra.mxu0 %v3845
        %v5787 = vpop.f32.mrf.mxu0
        %v5788 = vadd.f32 0.0, %v5787
        %v5789 = vpop.f32.mrf.mxu0
        %v5790 = vadd.f32 0.0, %v5789
        %v5791 = vpop.f32.mrf.mxu0
        %v5792 = vadd.f32 0.0, %v5791
        %v5793 = vpop.f32.mrf.mxu0
        %v5794 = vadd.f32 0.0, %v5793
        %5795 = vmatprep.mubr.bf16.mxu0 %v4110
        %5796 = vmatmul.mubr.bf16.gmra.mxu0 %v3847
        %v5797 = vpop.f32.mrf.mxu0
        %v5798 = vadd.f32 0.0, %v5797
        %v5799 = vpop.f32.mrf.mxu0
        %v5800 = vadd.f32 0.0, %v5799
        %v5801 = vpop.f32.mrf.mxu0
        %v5802 = vadd.f32 0.0, %v5801
        %v5803 = vpop.f32.mrf.mxu0
        %v5804 = vadd.f32 0.0, %v5803
        %5805 = vmatprep.mubr.bf16.mxu0 %v4113
        %5806 = vmatmul.mubr.bf16.gmra.mxu0 %v3849
        %v5807 = vpop.f32.mrf.mxu0
        %v5808 = vadd.f32 0.0, %v5807
        %v5809 = vpop.f32.mrf.mxu0
        %v5810 = vadd.f32 0.0, %v5809
        %v5811 = vpop.f32.mrf.mxu0
        %v5812 = vadd.f32 0.0, %v5811
        %v5813 = vpop.f32.mrf.mxu0
        %v5814 = vadd.f32 0.0, %v5813
        %5815 = vmatprep.mubr.bf16.mxu0 %v4116
        %5816 = vmatmul.mubr.bf16.gmra.mxu0 %v3851
        %v5817 = vpop.f32.mrf.mxu0
        %v5818 = vadd.f32 0.0, %v5817
        %v5819 = vpop.f32.mrf.mxu0
        %v5820 = vadd.f32 0.0, %v5819
        %v5821 = vpop.f32.mrf.mxu0
        %v5822 = vadd.f32 0.0, %v5821
        %v5823 = vpop.f32.mrf.mxu0
        %v5824 = vadd.f32 0.0, %v5823
        %5825 = vmatprep.mubr.bf16.mxu0 %v4119
        %5826 = vmatmul.mubr.bf16.gmra.mxu0 %v3853
        %v5827 = vpop.f32.mrf.mxu0
        %v5828 = vadd.f32 0.0, %v5827
        %v5829 = vpop.f32.mrf.mxu0
        %v5830 = vadd.f32 0.0, %v5829
        %v5831 = vpop.f32.mrf.mxu0
        %v5832 = vadd.f32 0.0, %v5831
        %v5833 = vpop.f32.mrf.mxu0
        %v5834 = vadd.f32 0.0, %v5833
        %5835 = vmatprep.mubr.bf16.mxu0 %v4122
        %5836 = vmatmul.mubr.bf16.gmra.mxu0 %v3855
        %v5837 = vpop.f32.mrf.mxu0
        %v5838 = vadd.f32 0.0, %v5837
        %v5839 = vpop.f32.mrf.mxu0
        %v5840 = vadd.f32 0.0, %v5839
        %v5841 = vpop.f32.mrf.mxu0
        %v5842 = vadd.f32 0.0, %v5841
        %v5843 = vpop.f32.mrf.mxu0
        %v5844 = vadd.f32 0.0, %v5843
        %5845 = vmatprep.mubr.bf16.mxu0 %v4125
        %5846 = vmatmul.mubr.bf16.gmra.mxu0 %v3857
        %v5847 = vpop.f32.mrf.mxu0
        %v5848 = vadd.f32 0.0, %v5847
        %v5849 = vpop.f32.mrf.mxu0
        %v5850 = vadd.f32 0.0, %v5849
        %v5851 = vpop.f32.mrf.mxu0
        %v5852 = vadd.f32 0.0, %v5851
        %v5853 = vpop.f32.mrf.mxu0
        %v5854 = vadd.f32 0.0, %v5853
        %5855 = vmatprep.mubr.bf16.mxu0 %v4128
        %5856 = vmatmul.mubr.bf16.gmra.mxu0 %v3859
        %v5857 = vpop.f32.mrf.mxu0
        %v5858 = vadd.f32 0.0, %v5857
        %v5859 = vpop.f32.mrf.mxu0
        %v5860 = vadd.f32 0.0, %v5859
        %v5861 = vpop.f32.mrf.mxu0
        %v5862 = vadd.f32 0.0, %v5861
        %v5863 = vpop.f32.mrf.mxu0
        %v5864 = vadd.f32 0.0, %v5863
        %5865 = vmatprep.mubr.bf16.mxu0 %v4131
        %5866 = vmatmul.mubr.bf16.gmra.mxu0 %v3861
        %v5867 = vpop.f32.mrf.mxu0
        %v5868 = vadd.f32 0.0, %v5867
        %v5869 = vpop.f32.mrf.mxu0
        %v5870 = vadd.f32 0.0, %v5869
        %v5871 = vpop.f32.mrf.mxu0
        %v5872 = vadd.f32 0.0, %v5871
        %v5873 = vpop.f32.mrf.mxu0
        %v5874 = vadd.f32 0.0, %v5873
        %5875 = vmatprep.mubr.bf16.mxu0 %v4134
        %5876 = vmatmul.mubr.bf16.gmra.mxu0 %v3863
        %v5877 = vpop.f32.mrf.mxu0
        %v5878 = vadd.f32 0.0, %v5877
        %v5879 = vpop.f32.mrf.mxu0
        %v5880 = vadd.f32 0.0, %v5879
        %v5881 = vpop.f32.mrf.mxu0
        %v5882 = vadd.f32 0.0, %v5881
        %v5883 = vpop.f32.mrf.mxu0
        %v5884 = vadd.f32 0.0, %v5883
        %5885 = vmatprep.mubr.bf16.mxu0 %v4860
        %5886 = vmatmul.mubr.bf16.gmra.mxu0 %v3865
        %v5887 = vpop.f32.mrf.mxu0
        %v5888 = vadd.f32 0.0, %v5887
        %v5889 = vpop.f32.mrf.mxu0
        %v5890 = vadd.f32 0.0, %v5889
        %v5891 = vpop.f32.mrf.mxu0
        %v5892 = vadd.f32 0.0, %v5891
        %v5893 = vpop.f32.mrf.mxu0
        %v5894 = vadd.f32 0.0, %v5893
        %5895 = vmatprep.mubr.bf16.mxu0 %v4863
        %5896 = vmatmul.mubr.bf16.gmra.mxu0 %v3867
        %v5897 = vpop.f32.mrf.mxu0
        %v5898 = vadd.f32 0.0, %v5897
        %v5899 = vpop.f32.mrf.mxu0
        %v5900 = vadd.f32 0.0, %v5899
        %v5901 = vpop.f32.mrf.mxu0
        %v5902 = vadd.f32 0.0, %v5901
        %v5903 = vpop.f32.mrf.mxu0
        %v5904 = vadd.f32 0.0, %v5903
        %5905 = vmatprep.mubr.bf16.mxu0 %v5304
        %5906 = vmatmul.mubr.bf16.gmra.mxu0 %v3869
        %v5907 = vpop.f32.mrf.mxu0
        %v5908 = vadd.f32 0.0, %v5907
        %v5909 = vpop.f32.mrf.mxu0
        %v5910 = vadd.f32 0.0, %v5909
        %v5911 = vpop.f32.mrf.mxu0
        %v5912 = vadd.f32 0.0, %v5911
        %v5913 = vpop.f32.mrf.mxu0
        %v5914 = vadd.f32 0.0, %v5913
        %5915 = vmatprep.mubr.bf16.mxu0 %v5307
        %5916 = vmatmul.mubr.bf16.gmra.mxu0 %v3871
        %v5917 = vpop.f32.mrf.mxu0
        %v5918 = vadd.f32 0.0, %v5917
        %v5919 = vpop.f32.mrf.mxu0
        %v5920 = vadd.f32 0.0, %v5919
        %v5921 = vpop.f32.mrf.mxu0
        %v5922 = vadd.f32 0.0, %v5921
        %v5923 = vpop.f32.mrf.mxu0
        %v5924 = vadd.f32 0.0, %v5923
        %5925 = vmatprep.mubr.bf16.mxu0 %v5748
        %5926 = vmatmul.mubr.bf16.gmra.mxu0 %v3873
        %v5927 = vpop.f32.mrf.mxu0
        %v5928 = vadd.f32 0.0, %v5927
        %v5929 = vpop.f32.mrf.mxu0
        %v5930 = vadd.f32 0.0, %v5929
        %v5931 = vpop.f32.mrf.mxu0
        %v5932 = vadd.f32 0.0, %v5931
        %v5933 = vpop.f32.mrf.mxu0
        %v5934 = vadd.f32 0.0, %v5933
        %5935 = vmatprep.mubr.bf16.mxu0 %v5751
        %5936 = vmatmul.mubr.bf16.gmra.mxu0 %v3875
        %v5937 = vpop.f32.mrf.mxu0
        %v5938 = vadd.f32 0.0, %v5937
        %v5939 = vpop.f32.mrf.mxu0
        %v5940 = vadd.f32 0.0, %v5939
        %v5941 = vpop.f32.mrf.mxu0
        %v5942 = vadd.f32 0.0, %v5941
        %v5943 = vpop.f32.mrf.mxu0
        %v5944 = vadd.f32 0.0, %v5943
        %5945 = vdwg.mxu0
        %v5946 = vadd.f32 %v5502, %v5788
        %v5947 = vadd.f32 %v5503, %v5790
        %v5948 = vadd.f32 %v5504, %v5792
        %v5949 = vadd.f32 %v5505, %v5794
        %v5950 = vadd.f32 %v5506, %v5798
        %v5951 = vadd.f32 %v5507, %v5800
        %v5952 = vadd.f32 %v5508, %v5802
        %v5953 = vadd.f32 %v5509, %v5804
        %v5954 = vadd.f32 %v5510, %v5808
        %v5955 = vadd.f32 %v5511, %v5810
        %v5956 = vadd.f32 %v5512, %v5812
        %v5957 = vadd.f32 %v5513, %v5814
        %v5958 = vadd.f32 %v5514, %v5818
        %v5959 = vadd.f32 %v5515, %v5820
        %v5960 = vadd.f32 %v5516, %v5822
        %v5961 = vadd.f32 %v5517, %v5824
        %v5962 = vadd.f32 %v5518, %v5828
        %v5963 = vadd.f32 %v5519, %v5830
        %v5964 = vadd.f32 %v5520, %v5832
        %v5965 = vadd.f32 %v5521, %v5834
        %v5966 = vadd.f32 %v5522, %v5838
        %v5967 = vadd.f32 %v5523, %v5840
        %v5968 = vadd.f32 %v5524, %v5842
        %v5969 = vadd.f32 %v5525, %v5844
        %v5970 = vadd.f32 %v5526, %v5848
        %v5971 = vadd.f32 %v5527, %v5850
        %v5972 = vadd.f32 %v5528, %v5852
        %v5973 = vadd.f32 %v5529, %v5854
        %v5974 = vadd.f32 %v5530, %v5858
        %v5975 = vadd.f32 %v5531, %v5860
        %v5976 = vadd.f32 %v5532, %v5862
        %v5977 = vadd.f32 %v5533, %v5864
        %v5978 = vadd.f32 %v5534, %v5868
        %v5979 = vadd.f32 %v5535, %v5870
        %v5980 = vadd.f32 %v5536, %v5872
        %v5981 = vadd.f32 %v5537, %v5874
        %v5982 = vadd.f32 %v5538, %v5878
        %v5983 = vadd.f32 %v5539, %v5880
        %v5984 = vadd.f32 %v5540, %v5882
        %v5985 = vadd.f32 %v5541, %v5884
        %v5986 = vadd.f32 %v5542, %v5888
        %v5987 = vadd.f32 %v5543, %v5890
        %v5988 = vadd.f32 %v5544, %v5892
        %v5989 = vadd.f32 %v5545, %v5894
        %v5990 = vadd.f32 %v5546, %v5898
        %v5991 = vadd.f32 %v5547, %v5900
        %v5992 = vadd.f32 %v5548, %v5902
        %v5993 = vadd.f32 %v5549, %v5904
        %v5994 = vadd.f32 %v5550, %v5908
        %v5995 = vadd.f32 %v5551, %v5910
        %v5996 = vadd.f32 %v5552, %v5912
        %v5997 = vadd.f32 %v5553, %v5914
        %v5998 = vadd.f32 %v5554, %v5918
        %v5999 = vadd.f32 %v5555, %v5920
        %v6000 = vadd.f32 %v5556, %v5922
        %v6001 = vadd.f32 %v5557, %v5924
        %v6002 = vadd.f32 %v5558, %v5928
        %v6003 = vadd.f32 %v5559, %v5930
        %v6004 = vadd.f32 %v5560, %v5932
        %v6005 = vadd.f32 %v5561, %v5934
        %v6006 = vadd.f32 %v5562, %v5938
        %v6007 = vadd.f32 %v5563, %v5940
        %v6008 = vadd.f32 %v5564, %v5942
        %v6009 = vadd.f32 %v5565, %v5944
        %v6010 = vmax.f32 %v5946, %v5954
        %v6011 = vmax.f32 %v5947, %v5955
        %v6012 = vmax.f32 %v5948, %v5956
        %v6013 = vmax.f32 %v5949, %v5957
        %v6014 = vmax.f32 %v5950, %v5958
        %v6015 = vmax.f32 %v5951, %v5959
        %v6016 = vmax.f32 %v5952, %v5960
        %v6017 = vmax.f32 %v5953, %v5961
        %v6018 = vmax.f32 %v5962, %v5970
        %v6019 = vmax.f32 %v5963, %v5971
        %v6020 = vmax.f32 %v5964, %v5972
        %v6021 = vmax.f32 %v5965, %v5973
        %v6022 = vmax.f32 %v5966, %v5974
        %v6023 = vmax.f32 %v5967, %v5975
        %v6024 = vmax.f32 %v5968, %v5976
        %v6025 = vmax.f32 %v5969, %v5977
        %v6026 = vmax.f32 %v5978, %v5986
        %v6027 = vmax.f32 %v5979, %v5987
        %v6028 = vmax.f32 %v5980, %v5988
        %v6029 = vmax.f32 %v5981, %v5989
        %v6030 = vmax.f32 %v5982, %v5990
        %v6031 = vmax.f32 %v5983, %v5991
        %v6032 = vmax.f32 %v5984, %v5992
        %v6033 = vmax.f32 %v5985, %v5993
        %v6034 = vmax.f32 %v5994, %v6002
        %v6035 = vmax.f32 %v5995, %v6003
        %v6036 = vmax.f32 %v5996, %v6004
        %v6037 = vmax.f32 %v5997, %v6005
        %v6038 = vmax.f32 %v5998, %v6006
        %v6039 = vmax.f32 %v5999, %v6007
        %v6040 = vmax.f32 %v6000, %v6008
        %v6041 = vmax.f32 %v6001, %v6009
        %6074 = vrot.lane.b32.xlu0 %v6010, 108
        %v6075 = vpop.permute.xlu0 %6074
        %6076 = vrot.lane.b32.xlu0 %v6011, 108
        %v6077 = vpop.permute.xlu0 %6076
        %6078 = vrot.lane.b32.xlu0 %v6012, 108
        %v6079 = vpop.permute.xlu0 %6078
        %6080 = vrot.lane.b32.xlu0 %v6013, 108
        %v6081 = vpop.permute.xlu0 %6080
        %6082 = vrot.lane.b32.xlu0 %v6014, 108
        %v6083 = vpop.permute.xlu0 %6082
        %6084 = vrot.lane.b32.xlu0 %v6015, 108
        %v6085 = vpop.permute.xlu0 %6084
        %6086 = vrot.lane.b32.xlu0 %v6016, 108
        %v6087 = vpop.permute.xlu0 %6086
        %6088 = vrot.lane.b32.xlu0 %v6017, 108
        %v6089 = vpop.permute.xlu0 %6088
        %6090 = vrot.lane.b32.xlu0 %v6018, 108
        %v6091 = vpop.permute.xlu0 %6090
        %6092 = vrot.lane.b32.xlu0 %v6019, 108
        %v6093 = vpop.permute.xlu0 %6092
        %6094 = vrot.lane.b32.xlu0 %v6020, 108
        %v6095 = vpop.permute.xlu0 %6094
        %6096 = vrot.lane.b32.xlu0 %v6021, 108
        %v6097 = vpop.permute.xlu0 %6096
        %6098 = vrot.lane.b32.xlu0 %v6022, 108
        %v6099 = vpop.permute.xlu0 %6098
        %6100 = vrot.lane.b32.xlu0 %v6023, 108
        %v6101 = vpop.permute.xlu0 %6100
        %6102 = vrot.lane.b32.xlu0 %v6024, 108
        %v6103 = vpop.permute.xlu0 %6102
        %6104 = vrot.lane.b32.xlu0 %v6025, 108
        %v6105 = vpop.permute.xlu0 %6104
        %6106 = vrot.lane.b32.xlu0 %v6026, 108
        %v6107 = vpop.permute.xlu0 %6106
        %6108 = vrot.lane.b32.xlu0 %v6027, 108
        %v6109 = vpop.permute.xlu0 %6108
        %6110 = vrot.lane.b32.xlu0 %v6028, 108
        %v6111 = vpop.permute.xlu0 %6110
        %6112 = vrot.lane.b32.xlu0 %v6029, 108
        %v6113 = vpop.permute.xlu0 %6112
        %6114 = vrot.lane.b32.xlu0 %v6030, 108
        %v6115 = vpop.permute.xlu0 %6114
        %6116 = vrot.lane.b32.xlu0 %v6031, 108
        %v6117 = vpop.permute.xlu0 %6116
        %6118 = vrot.lane.b32.xlu0 %v6032, 108
        %v6119 = vpop.permute.xlu0 %6118
        %6120 = vrot.lane.b32.xlu0 %v6033, 108
        %v6121 = vpop.permute.xlu0 %6120
        %6122 = vrot.lane.b32.xlu0 %v6034, 108
        %v6123 = vpop.permute.xlu0 %6122
        %6124 = vrot.lane.b32.xlu0 %v6035, 108
        %v6125 = vpop.permute.xlu0 %6124
        %6126 = vrot.lane.b32.xlu0 %v6036, 108
        %v6127 = vpop.permute.xlu0 %6126
        %6128 = vrot.lane.b32.xlu0 %v6037, 108
        %v6129 = vpop.permute.xlu0 %6128
        %6130 = vrot.lane.b32.xlu0 %v6038, 108
        %v6131 = vpop.permute.xlu0 %6130
        %6132 = vrot.lane.b32.xlu0 %v6039, 108
        %v6133 = vpop.permute.xlu0 %6132
        %6134 = vrot.lane.b32.xlu0 %v6040, 108
        %v6135 = vpop.permute.xlu0 %6134
        %6136 = vrot.lane.b32.xlu0 %v6041, 108
        %v6137 = vpop.permute.xlu0 %6136
        %vm6138 = vcmask 883712
        %v6139 = vsel %vm6138, %v6075, %v6077
        %v6140 = vsel %vm6138, %v6079, %v6081
        %v6141 = vsel %vm6138, %v6083, %v6085
        %v6142 = vsel %vm6138, %v6087, %v6089
        %v6143 = vsel %vm6138, %v6091, %v6093
        %v6144 = vsel %vm6138, %v6095, %v6097
        %v6145 = vsel %vm6138, %v6099, %v6101
        %v6146 = vsel %vm6138, %v6103, %v6105
        %v6147 = vsel %vm6138, %v6107, %v6109
        %v6148 = vsel %vm6138, %v6111, %v6113
        %v6149 = vsel %vm6138, %v6115, %v6117
        %v6150 = vsel %vm6138, %v6119, %v6121
        %v6151 = vsel %vm6138, %v6123, %v6125
        %v6152 = vsel %vm6138, %v6127, %v6129
        %v6153 = vsel %vm6138, %v6131, %v6133
        %v6154 = vsel %vm6138, %v6135, %v6137
        %6187 = vrot.lane.b32.xlu0 %v6010, 12
        %v6188 = vpop.permute.xlu0 %6187
        %6189 = vrot.lane.b32.xlu0 %v6012, 12
        %v6190 = vpop.permute.xlu0 %6189
        %6191 = vrot.lane.b32.xlu0 %v6014, 12
        %v6192 = vpop.permute.xlu0 %6191
        %6193 = vrot.lane.b32.xlu0 %v6016, 12
        %v6194 = vpop.permute.xlu0 %6193
        %6195 = vrot.lane.b32.xlu0 %v6018, 12
        %v6196 = vpop.permute.xlu0 %6195
        %6197 = vrot.lane.b32.xlu0 %v6020, 12
        %v6198 = vpop.permute.xlu0 %6197
        %6199 = vrot.lane.b32.xlu0 %v6022, 12
        %v6200 = vpop.permute.xlu0 %6199
        %6201 = vrot.lane.b32.xlu0 %v6024, 12
        %v6202 = vpop.permute.xlu0 %6201
        %6203 = vrot.lane.b32.xlu0 %v6026, 12
        %v6204 = vpop.permute.xlu0 %6203
        %6205 = vrot.lane.b32.xlu0 %v6028, 12
        %v6206 = vpop.permute.xlu0 %6205
        %6207 = vrot.lane.b32.xlu0 %v6030, 12
        %v6208 = vpop.permute.xlu0 %6207
        %6209 = vrot.lane.b32.xlu0 %v6032, 12
        %v6210 = vpop.permute.xlu0 %6209
        %6211 = vrot.lane.b32.xlu0 %v6034, 12
        %v6212 = vpop.permute.xlu0 %6211
        %6213 = vrot.lane.b32.xlu0 %v6036, 12
        %v6214 = vpop.permute.xlu0 %6213
        %6215 = vrot.lane.b32.xlu0 %v6038, 12
        %v6216 = vpop.permute.xlu0 %6215
        %6217 = vrot.lane.b32.xlu0 %v6040, 12
        %v6218 = vpop.permute.xlu0 %6217
        %v6235 = vsel %vm2190, %v6077, %v6188
        %v6236 = vsel %vm2190, %v6081, %v6190
        %v6237 = vsel %vm2190, %v6085, %v6192
        %v6238 = vsel %vm2190, %v6089, %v6194
        %v6239 = vsel %vm2190, %v6093, %v6196
        %v6240 = vsel %vm2190, %v6097, %v6198
        %v6241 = vsel %vm2190, %v6101, %v6200
        %v6242 = vsel %vm2190, %v6105, %v6202
        %v6243 = vsel %vm2190, %v6109, %v6204
        %v6244 = vsel %vm2190, %v6113, %v6206
        %v6245 = vsel %vm2190, %v6117, %v6208
        %v6246 = vsel %vm2190, %v6121, %v6210
        %v6247 = vsel %vm2190, %v6125, %v6212
        %v6248 = vsel %vm2190, %v6129, %v6214
        %v6249 = vsel %vm2190, %v6133, %v6216
        %v6250 = vsel %vm2190, %v6137, %v6218
        %v6251 = vmax.f32 %v6010, %v6139
        %v6252 = vmax.f32 %v6011, %v6235
        %v6253 = vmax.f32 %v6012, %v6140
        %v6254 = vmax.f32 %v6013, %v6236
        %v6255 = vmax.f32 %v6014, %v6141
        %v6256 = vmax.f32 %v6015, %v6237
        %v6257 = vmax.f32 %v6016, %v6142
        %v6258 = vmax.f32 %v6017, %v6238
        %v6259 = vmax.f32 %v6018, %v6143
        %v6260 = vmax.f32 %v6019, %v6239
        %v6261 = vmax.f32 %v6020, %v6144
        %v6262 = vmax.f32 %v6021, %v6240
        %v6263 = vmax.f32 %v6022, %v6145
        %v6264 = vmax.f32 %v6023, %v6241
        %v6265 = vmax.f32 %v6024, %v6146
        %v6266 = vmax.f32 %v6025, %v6242
        %v6267 = vmax.f32 %v6026, %v6147
        %v6268 = vmax.f32 %v6027, %v6243
        %v6269 = vmax.f32 %v6028, %v6148
        %v6270 = vmax.f32 %v6029, %v6244
        %v6271 = vmax.f32 %v6030, %v6149
        %v6272 = vmax.f32 %v6031, %v6245
        %v6273 = vmax.f32 %v6032, %v6150
        %v6274 = vmax.f32 %v6033, %v6246
        %v6275 = vmax.f32 %v6034, %v6151
        %v6276 = vmax.f32 %v6035, %v6247
        %v6277 = vmax.f32 %v6036, %v6152
        %v6278 = vmax.f32 %v6037, %v6248
        %v6279 = vmax.f32 %v6038, %v6153
        %v6280 = vmax.f32 %v6039, %v6249
        %v6281 = vmax.f32 %v6040, %v6154
        %v6282 = vmax.f32 %v6041, %v6250
        %v6283 = vld [vmem:[%s6] sm:$0x3]
        %v6285 = vlaneseq
        %v6286 = vshrl.u32 %v6285, 7
        %v6287 = vsub.s32 0, %v6286
        %v6288 = vrot.slane %v6283, %v6287
        %v6289 = vlaneseq
        %v6290 = vshrl.u32 %v6289, 7
        %v6291 = vsub.s32 1, %v6290
        %v6292 = vrot.slane %v6283, %v6291
        %v6295 = vadd.f32 %v6251, %v6288
        %v6296 = vadd.f32 %v6252, %v6292
        %v6297 = vadd.f32 %v6253, %v6288
        %v6298 = vadd.f32 %v6254, %v6292
        %v6299 = vadd.f32 %v6255, %v6288
        %v6300 = vadd.f32 %v6256, %v6292
        %v6301 = vadd.f32 %v6257, %v6288
        %v6302 = vadd.f32 %v6258, %v6292
        %v6303 = vadd.f32 %v6259, %v6288
        %v6304 = vadd.f32 %v6260, %v6292
        %v6305 = vadd.f32 %v6261, %v6288
        %v6306 = vadd.f32 %v6262, %v6292
        %v6307 = vadd.f32 %v6263, %v6288
        %v6308 = vadd.f32 %v6264, %v6292
        %v6309 = vadd.f32 %v6265, %v6288
        %v6310 = vadd.f32 %v6266, %v6292
        %v6311 = vadd.f32 %v6267, %v6288
        %v6312 = vadd.f32 %v6268, %v6292
        %v6313 = vadd.f32 %v6269, %v6288
        %v6314 = vadd.f32 %v6270, %v6292
        %v6315 = vadd.f32 %v6271, %v6288
        %v6316 = vadd.f32 %v6272, %v6292
        %v6317 = vadd.f32 %v6273, %v6288
        %v6318 = vadd.f32 %v6274, %v6292
        %v6319 = vadd.f32 %v6275, %v6288
        %v6320 = vadd.f32 %v6276, %v6292
        %v6321 = vadd.f32 %v6277, %v6288
        %v6322 = vadd.f32 %v6278, %v6292
        %v6323 = vadd.f32 %v6279, %v6288
        %v6324 = vadd.f32 %v6280, %v6292
        %v6325 = vadd.f32 %v6281, %v6288
        %v6326 = vadd.f32 %v6282, %v6292
        %v6327 = vmax.f32 %v6295, 0.0
        %v6328 = vmax.f32 %v6296, 0.0
        %v6329 = vmax.f32 %v6297, 0.0
        %v6330 = vmax.f32 %v6298, 0.0
        %v6331 = vmax.f32 %v6299, 0.0
        %v6332 = vmax.f32 %v6300, 0.0
        %v6333 = vmax.f32 %v6301, 0.0
        %v6334 = vmax.f32 %v6302, 0.0
        %v6335 = vmax.f32 %v6303, 0.0
        %v6336 = vmax.f32 %v6304, 0.0
        %v6337 = vmax.f32 %v6305, 0.0
        %v6338 = vmax.f32 %v6306, 0.0
        %v6339 = vmax.f32 %v6307, 0.0
        %v6340 = vmax.f32 %v6308, 0.0
        %v6341 = vmax.f32 %v6309, 0.0
        %v6342 = vmax.f32 %v6310, 0.0
        %v6343 = vmax.f32 %v6311, 0.0
        %v6344 = vmax.f32 %v6312, 0.0
        %v6345 = vmax.f32 %v6313, 0.0
        %v6346 = vmax.f32 %v6314, 0.0
        %v6347 = vmax.f32 %v6315, 0.0
        %v6348 = vmax.f32 %v6316, 0.0
        %v6349 = vmax.f32 %v6317, 0.0
        %v6350 = vmax.f32 %v6318, 0.0
        %v6351 = vmax.f32 %v6319, 0.0
        %v6352 = vmax.f32 %v6320, 0.0
        %v6353 = vmax.f32 %v6321, 0.0
        %v6354 = vmax.f32 %v6322, 0.0
        %v6355 = vmax.f32 %v6323, 0.0
        %v6356 = vmax.f32 %v6324, 0.0
        %v6357 = vmax.f32 %v6325, 0.0
        %v6358 = vmax.f32 %v6326, 0.0
        %v6359 = vpack.c.bf16 %v6329, %v6327
        %v6360 = vpack.c.bf16 %v6330, %v6328
        %v6361 = vpack.c.bf16 %v6333, %v6331
        %v6362 = vpack.c.bf16 %v6334, %v6332
        %v6363 = vpack.c.bf16 %v6337, %v6335
        %v6364 = vpack.c.bf16 %v6338, %v6336
        %v6365 = vpack.c.bf16 %v6341, %v6339
        %v6366 = vpack.c.bf16 %v6342, %v6340
        %v6367 = vpack.c.bf16 %v6345, %v6343
        %v6368 = vpack.c.bf16 %v6346, %v6344
        %v6369 = vpack.c.bf16 %v6349, %v6347
        %v6370 = vpack.c.bf16 %v6350, %v6348
        %v6371 = vpack.c.bf16 %v6353, %v6351
        %v6372 = vpack.c.bf16 %v6354, %v6352
        %v6373 = vpack.c.bf16 %v6357, %v6355
        %v6374 = vpack.c.bf16 %v6358, %v6356
        %v6375 = vld [vmem:[%s3] sm:$0xf]
        %v6376 = vld [vmem:[%s3 + $0x4] sm:$0xf]
        %v6377 = vld [vmem:[%s3 + $0x8] sm:$0xf]
        %v6378 = vld [vmem:[%s3 + $0xc] sm:$0xf]
        %v6379 = vld [vmem:[%s3 + $0x10] sm:$0xf]
        %v6380 = vld [vmem:[%s3 + $0x14] sm:$0xf]
        %v6381 = vld [vmem:[%s3 + $0x18] sm:$0xf]
        %v6382 = vld [vmem:[%s3 + $0x1c] sm:$0xf]
        %v6383 = vld [vmem:[%s3 + $0x20] sm:$0xf]
        %v6384 = vld [vmem:[%s3 + $0x24] sm:$0xf]
        %v6385 = vld [vmem:[%s3 + $0x28] sm:$0xf]
        %v6386 = vld [vmem:[%s3 + $0x2c] sm:$0xf]
        %v6387 = vld [vmem:[%s3 + $0x30] sm:$0xf]
        %v6388 = vld [vmem:[%s3 + $0x34] sm:$0xf]
        %v6389 = vld [vmem:[%s3 + $0x38] sm:$0xf]
        %v6390 = vld [vmem:[%s3 + $0x3c] sm:$0xf]
        %v6391 = vld [vmem:[%s3 + $0x40] sm:$0xf]
        %v6392 = vld [vmem:[%s3 + $0x44] sm:$0xf]
        %v6393 = vld [vmem:[%s3 + $0x48] sm:$0xf]
        %v6394 = vld [vmem:[%s3 + $0x4c] sm:$0xf]
        %s6395 = scalar_lea.vmem %s3, 80
        %v6396 = vld [vmem:[%s6395] sm:$0xf]
        %v6397 = vld [vmem:[%s6395 + $0x4] sm:$0xf]
        %v6398 = vld [vmem:[%s6395 + $0x8] sm:$0xf]
        %v6399 = vld [vmem:[%s6395 + $0xc] sm:$0xf]
        %v6400 = vld [vmem:[%s6395 + $0x10] sm:$0xf]
        %v6401 = vld [vmem:[%s6395 + $0x14] sm:$0xf]
        %v6402 = vld [vmem:[%s6395 + $0x18] sm:$0xf]
        %v6403 = vld [vmem:[%s6395 + $0x1c] sm:$0xf]
        %v6404 = vld [vmem:[%s6395 + $0x20] sm:$0xf]
        %v6405 = vld [vmem:[%s6395 + $0x24] sm:$0xf]
        %v6406 = vld [vmem:[%s6395 + $0x28] sm:$0xf]
        %v6407 = vld [vmem:[%s6395 + $0x2c] sm:$0xf]
        %v6408 = vld [vmem:[%s6395 + $0x30] sm:$0xf]
        %v6409 = vld [vmem:[%s6395 + $0x34] sm:$0xf]
        %v6410 = vld [vmem:[%s6395 + $0x38] sm:$0xf]
        %v6411 = vld [vmem:[%s6395 + $0x3c] sm:$0xf]
        %v6412 = vld [vmem:[%s6395 + $0x40] sm:$0xf]
        %v6413 = vld [vmem:[%s6395 + $0x44] sm:$0xf]
        %v6414 = vld [vmem:[%s6395 + $0x48] sm:$0xf]
        %v6415 = vld [vmem:[%s6395 + $0x4c] sm:$0xf]
        %v6436 = vunpack.c.l.b16 %v6396
        %v6437 = vunpack.c.l.b16 %v6397
        %v6438 = vunpack.c.l.b16 %v6398
        %v6439 = vunpack.c.l.b16 %v6399
        %v6440 = vunpack.c.l.b16 %v6400
        %v6441 = vunpack.c.l.b16 %v6401
        %v6442 = vunpack.c.l.b16 %v6402
        %v6443 = vunpack.c.l.b16 %v6403
        %v6444 = vunpack.c.l.b16 %v6404
        %v6445 = vunpack.c.l.b16 %v6405
        %v6446 = vunpack.c.l.b16 %v6406
        %v6447 = vunpack.c.l.b16 %v6407
        %v6448 = vunpack.c.l.b16 %v6408
        %v6449 = vunpack.c.l.b16 %v6409
        %v6450 = vunpack.c.l.b16 %v6410
        %v6451 = vunpack.c.l.b16 %v6411
        %v6452 = vunpack.c.l.b16 %v6412
        %v6453 = vunpack.c.l.b16 %v6413
        %v6454 = vunpack.c.l.b16 %v6414
        %v6455 = vunpack.c.l.b16 %v6415
        %v6456 = vpack.c.b16 %v6437, %v6436
        %v6457 = vpack.c.b16 %v6439, %v6438
        %v6458 = vpack.c.b16 %v6441, %v6440
        %v6459 = vpack.c.b16 %v6443, %v6442
        %v6460 = vpack.c.b16 %v6445, %v6444
        %v6461 = vpack.c.b16 %v6447, %v6446
        %v6462 = vpack.c.b16 %v6449, %v6448
        %v6463 = vpack.c.b16 %v6451, %v6450
        %v6464 = vpack.c.b16 %v6453, %v6452
        %v6465 = vpack.c.b16 %v6455, %v6454
        %vm6476 = vcmask 261120
        %v6478 = vsel %vm6476, %v6364, 0
        %v6481 = vsel %vm6476, %v6366, 0
        %6483 = vmatprep.subr.bf16.mxu0 0
        %6484 = vmatpush1.bf16.msra.mxu0 %v6463
        %6485 = vmatprep.subr.bf16.mxu0 0
        %6486 = vmatpush1.bf16.msra.mxu0 %v6462
        %6487 = vmatprep.subr.bf16.mxu0 0
        %6488 = vmatpush1.bf16.msra.mxu0 %v6461
        %6489 = vmatprep.subr.bf16.mxu0 0
        %6490 = vmatpush1.bf16.msra.mxu0 %v6460
        %6491 = vmatprep.subr.bf16.mxu0 0
        %6492 = vmatpush1.bf16.msra.mxu0 %v6459
        %6493 = vmatprep.subr.bf16.mxu0 0
        %6494 = vmatpush1.bf16.msra.mxu0 %v6458
        %6495 = vmatprep.subr.bf16.mxu0 0
        %6496 = vmatpush1.bf16.msra.mxu0 %v6457
        %6497 = vmatprep.subr.bf16.mxu0 0
        %6498 = vmatpush1.bf16.msra.mxu0 %v6456
        %6499 = vmatprep.subr.bf16.mxu0 0
        %6500 = vmatpush2.bf16.msra.mxu0 0
        %6501 = vmatprep.subr.bf16.mxu0 0
        %6502 = vmatpush2.bf16.msra.mxu0 0
        %6503 = vmatprep.subr.bf16.mxu0 0
        %6504 = vmatpush2.bf16.msra.mxu0 0
        %6505 = vmatprep.subr.bf16.mxu0 0
        %6506 = vmatpush2.bf16.msra.mxu0 0
        %6507 = vmatprep.subr.bf16.mxu0 0
        %6508 = vmatpush2.bf16.msra.mxu0 0
        %6509 = vmatprep.subr.bf16.mxu0 0
        %6510 = vmatpush2.bf16.msra.mxu0 0
        %6511 = vmatprep.subr.bf16.mxu0 0
        %6512 = vmatpush2.bf16.msra.mxu0 %v6465
        %6513 = vmatprep.subr.bf16.mxu0 0
        %6514 = vmatpush2.bf16.msra.mxu0 %v6464
        %6515 = vmatprep.mubr.bf16.mxu0 %v6478
        %6516 = vmatmul.mubr.bf16.gmra.mxu0 %v6363
        %v6517 = vpop.f32.mrf.mxu0
        %v6518 = vadd.f32 0.0, %v6517
        %v6519 = vpop.f32.mrf.mxu0
        %v6520 = vpop.f32.mrf.mxu0
        %v6521 = vadd.f32 0.0, %v6520
        %v6522 = vpop.f32.mrf.mxu0
        %6523 = vmatprep.mubr.bf16.mxu0 %v6481
        %6524 = vmatmul.mubr.bf16.gmra.mxu0 %v6365
        %v6525 = vpop.f32.mrf.mxu0
        %v6526 = vadd.f32 0.0, %v6525
        %v6527 = vpop.f32.mrf.mxu0
        %v6528 = vpop.f32.mrf.mxu0
        %v6529 = vadd.f32 0.0, %v6528
        %v6530 = vpop.f32.mrf.mxu0
        %6531 = vdwg.mxu0
        %v6552 = vunpack.c.l.b16 %v6375
        %v6553 = vunpack.c.l.b16 %v6376
        %v6554 = vunpack.c.l.b16 %v6377
        %v6555 = vunpack.c.l.b16 %v6378
        %v6556 = vunpack.c.l.b16 %v6379
        %v6557 = vunpack.c.l.b16 %v6380
        %v6558 = vunpack.c.l.b16 %v6381
        %v6559 = vunpack.c.l.b16 %v6382
        %v6560 = vunpack.c.l.b16 %v6383
        %v6561 = vunpack.c.l.b16 %v6384
        %v6562 = vunpack.c.l.b16 %v6385
        %v6563 = vunpack.c.l.b16 %v6386
        %v6564 = vunpack.c.l.b16 %v6387
        %v6565 = vunpack.c.l.b16 %v6388
        %v6566 = vunpack.c.l.b16 %v6389
        %v6567 = vunpack.c.l.b16 %v6390
        %v6568 = vunpack.c.l.b16 %v6391
        %v6569 = vunpack.c.l.b16 %v6392
        %v6570 = vunpack.c.l.b16 %v6393
        %v6571 = vunpack.c.l.b16 %v6394
        %v6572 = vpack.c.b16 %v6553, %v6552
        %v6573 = vpack.c.b16 %v6555, %v6554
        %v6574 = vpack.c.b16 %v6557, %v6556
        %v6575 = vpack.c.b16 %v6559, %v6558
        %v6576 = vpack.c.b16 %v6561, %v6560
        %v6577 = vpack.c.b16 %v6563, %v6562
        %v6578 = vpack.c.b16 %v6565, %v6564
        %v6579 = vpack.c.b16 %v6567, %v6566
        %v6580 = vpack.c.b16 %v6569, %v6568
        %v6581 = vpack.c.b16 %v6571, %v6570
        %v6593 = vsel %vm6476, %v6360, 0
        %v6596 = vsel %vm6476, %v6362, 0
        %6598 = vmatprep.subr.bf16.mxu0 0
        %6599 = vmatpush1.bf16.msra.mxu0 %v6579
        %6600 = vmatprep.subr.bf16.mxu0 0
        %6601 = vmatpush1.bf16.msra.mxu0 %v6578
        %6602 = vmatprep.subr.bf16.mxu0 0
        %6603 = vmatpush1.bf16.msra.mxu0 %v6577
        %6604 = vmatprep.subr.bf16.mxu0 0
        %6605 = vmatpush1.bf16.msra.mxu0 %v6576
        %6606 = vmatprep.subr.bf16.mxu0 0
        %6607 = vmatpush1.bf16.msra.mxu0 %v6575
        %6608 = vmatprep.subr.bf16.mxu0 0
        %6609 = vmatpush1.bf16.msra.mxu0 %v6574
        %6610 = vmatprep.subr.bf16.mxu0 0
        %6611 = vmatpush1.bf16.msra.mxu0 %v6573
        %6612 = vmatprep.subr.bf16.mxu0 0
        %6613 = vmatpush1.bf16.msra.mxu0 %v6572
        %6614 = vmatprep.subr.bf16.mxu0 0
        %6615 = vmatpush2.bf16.msra.mxu0 0
        %6616 = vmatprep.subr.bf16.mxu0 0
        %6617 = vmatpush2.bf16.msra.mxu0 0
        %6618 = vmatprep.subr.bf16.mxu0 0
        %6619 = vmatpush2.bf16.msra.mxu0 0
        %6620 = vmatprep.subr.bf16.mxu0 0
        %6621 = vmatpush2.bf16.msra.mxu0 0
        %6622 = vmatprep.subr.bf16.mxu0 0
        %6623 = vmatpush2.bf16.msra.mxu0 0
        %6624 = vmatprep.subr.bf16.mxu0 0
        %6625 = vmatpush2.bf16.msra.mxu0 0
        %6626 = vmatprep.subr.bf16.mxu0 0
        %6627 = vmatpush2.bf16.msra.mxu0 %v6581
        %6628 = vmatprep.subr.bf16.mxu0 0
        %6629 = vmatpush2.bf16.msra.mxu0 %v6580
        %6630 = vmatprep.mubr.bf16.mxu0 %v6593
        %6631 = vmatmul.mubr.bf16.gmra.mxu0 %v6359
        %v6632 = vpop.f32.mrf.mxu0
        %v6633 = vadd.f32 %v6518, %v6632
        %v6634 = vpop.f32.mrf.mxu0
        %v6635 = vpop.f32.mrf.mxu0
        %v6636 = vadd.f32 %v6521, %v6635
        %v6637 = vpop.f32.mrf.mxu0
        %6638 = vmatprep.mubr.bf16.mxu0 %v6596
        %6639 = vmatmul.mubr.bf16.gmra.mxu0 %v6361
        %v6640 = vpop.f32.mrf.mxu0
        %v6641 = vadd.f32 %v6526, %v6640
        %v6642 = vpop.f32.mrf.mxu0
        %v6643 = vpop.f32.mrf.mxu0
        %v6644 = vadd.f32 %v6529, %v6643
        %v6645 = vpop.f32.mrf.mxu0
        %6646 = vdwg.mxu0
        %s6647 = scalar_lea.vmem %s3, 160
        %v6648 = vld [vmem:[%s6647] sm:$0xf]
        %v6649 = vld [vmem:[%s6647 + $0x4] sm:$0xf]
        %v6650 = vld [vmem:[%s6647 + $0x8] sm:$0xf]
        %v6651 = vld [vmem:[%s6647 + $0xc] sm:$0xf]
        %v6652 = vld [vmem:[%s6647 + $0x10] sm:$0xf]
        %v6653 = vld [vmem:[%s6647 + $0x14] sm:$0xf]
        %v6654 = vld [vmem:[%s6647 + $0x18] sm:$0xf]
        %v6655 = vld [vmem:[%s6647 + $0x1c] sm:$0xf]
        %v6656 = vld [vmem:[%s6647 + $0x20] sm:$0xf]
        %v6657 = vld [vmem:[%s6647 + $0x24] sm:$0xf]
        %v6658 = vld [vmem:[%s6647 + $0x28] sm:$0xf]
        %v6659 = vld [vmem:[%s6647 + $0x2c] sm:$0xf]
        %v6660 = vld [vmem:[%s6647 + $0x30] sm:$0xf]
        %v6661 = vld [vmem:[%s6647 + $0x34] sm:$0xf]
        %v6662 = vld [vmem:[%s6647 + $0x38] sm:$0xf]
        %v6663 = vld [vmem:[%s6647 + $0x3c] sm:$0xf]
        %v6664 = vld [vmem:[%s6647 + $0x40] sm:$0xf]
        %v6665 = vld [vmem:[%s6647 + $0x44] sm:$0xf]
        %v6666 = vld [vmem:[%s6647 + $0x48] sm:$0xf]
        %v6667 = vld [vmem:[%s6647 + $0x4c] sm:$0xf]
        %v6688 = vunpack.c.l.b16 %v6648
        %v6689 = vunpack.c.l.b16 %v6649
        %v6690 = vunpack.c.l.b16 %v6650
        %v6691 = vunpack.c.l.b16 %v6651
        %v6692 = vunpack.c.l.b16 %v6652
        %v6693 = vunpack.c.l.b16 %v6653
        %v6694 = vunpack.c.l.b16 %v6654
        %v6695 = vunpack.c.l.b16 %v6655
        %v6696 = vunpack.c.l.b16 %v6656
        %v6697 = vunpack.c.l.b16 %v6657
        %v6698 = vunpack.c.l.b16 %v6658
        %v6699 = vunpack.c.l.b16 %v6659
        %v6700 = vunpack.c.l.b16 %v6660
        %v6701 = vunpack.c.l.b16 %v6661
        %v6702 = vunpack.c.l.b16 %v6662
        %v6703 = vunpack.c.l.b16 %v6663
        %v6704 = vunpack.c.l.b16 %v6664
        %v6705 = vunpack.c.l.b16 %v6665
        %v6706 = vunpack.c.l.b16 %v6666
        %v6707 = vunpack.c.l.b16 %v6667
        %v6708 = vpack.c.b16 %v6689, %v6688
        %v6709 = vpack.c.b16 %v6691, %v6690
        %v6710 = vpack.c.b16 %v6693, %v6692
        %v6711 = vpack.c.b16 %v6695, %v6694
        %v6712 = vpack.c.b16 %v6697, %v6696
        %v6713 = vpack.c.b16 %v6699, %v6698
        %v6714 = vpack.c.b16 %v6701, %v6700
        %v6715 = vpack.c.b16 %v6703, %v6702
        %v6716 = vpack.c.b16 %v6705, %v6704
        %v6717 = vpack.c.b16 %v6707, %v6706
        %v6729 = vsel %vm6476, %v6368, 0
        %v6732 = vsel %vm6476, %v6370, 0
        %6734 = vmatprep.subr.bf16.mxu0 0
        %6735 = vmatpush1.bf16.msra.mxu0 %v6715
        %6736 = vmatprep.subr.bf16.mxu0 0
        %6737 = vmatpush1.bf16.msra.mxu0 %v6714
        %6738 = vmatprep.subr.bf16.mxu0 0
        %6739 = vmatpush1.bf16.msra.mxu0 %v6713
        %6740 = vmatprep.subr.bf16.mxu0 0
        %6741 = vmatpush1.bf16.msra.mxu0 %v6712
        %6742 = vmatprep.subr.bf16.mxu0 0
        %6743 = vmatpush1.bf16.msra.mxu0 %v6711
        %6744 = vmatprep.subr.bf16.mxu0 0
        %6745 = vmatpush1.bf16.msra.mxu0 %v6710
        %6746 = vmatprep.subr.bf16.mxu0 0
        %6747 = vmatpush1.bf16.msra.mxu0 %v6709
        %6748 = vmatprep.subr.bf16.mxu0 0
        %6749 = vmatpush1.bf16.msra.mxu0 %v6708
        %6750 = vmatprep.subr.bf16.mxu0 0
        %6751 = vmatpush2.bf16.msra.mxu0 0
        %6752 = vmatprep.subr.bf16.mxu0 0
        %6753 = vmatpush2.bf16.msra.mxu0 0
        %6754 = vmatprep.subr.bf16.mxu0 0
        %6755 = vmatpush2.bf16.msra.mxu0 0
        %6756 = vmatprep.subr.bf16.mxu0 0
        %6757 = vmatpush2.bf16.msra.mxu0 0
        %6758 = vmatprep.subr.bf16.mxu0 0
        %6759 = vmatpush2.bf16.msra.mxu0 0
        %6760 = vmatprep.subr.bf16.mxu0 0
        %6761 = vmatpush2.bf16.msra.mxu0 0
        %6762 = vmatprep.subr.bf16.mxu0 0
        %6763 = vmatpush2.bf16.msra.mxu0 %v6717
        %6764 = vmatprep.subr.bf16.mxu0 0
        %6765 = vmatpush2.bf16.msra.mxu0 %v6716
        %6766 = vmatprep.mubr.bf16.mxu0 %v6729
        %6767 = vmatmul.mubr.bf16.gmra.mxu0 %v6367
        %v6768 = vpop.f32.mrf.mxu0
        %v6769 = vadd.f32 0.0, %v6768
        %v6770 = vpop.f32.mrf.mxu0
        %v6771 = vpop.f32.mrf.mxu0
        %v6772 = vadd.f32 0.0, %v6771
        %v6773 = vpop.f32.mrf.mxu0
        %6774 = vmatprep.mubr.bf16.mxu0 %v6732
        %6775 = vmatmul.mubr.bf16.gmra.mxu0 %v6369
        %v6776 = vpop.f32.mrf.mxu0
        %v6777 = vadd.f32 0.0, %v6776
        %v6778 = vpop.f32.mrf.mxu0
        %v6779 = vpop.f32.mrf.mxu0
        %v6780 = vadd.f32 0.0, %v6779
        %v6781 = vpop.f32.mrf.mxu0
        %6782 = vdwg.mxu0
        %v6783 = vadd.f32 %v6633, %v6769
        %v6784 = vadd.f32 %v6636, %v6772
        %v6785 = vadd.f32 %v6641, %v6777
        %v6786 = vadd.f32 %v6644, %v6780
        %s6787 = scalar_lea.vmem %s3, 240
        %v6788 = vld [vmem:[%s6787] sm:$0xf]
        %v6789 = vld [vmem:[%s6787 + $0x4] sm:$0xf]
        %v6790 = vld [vmem:[%s6787 + $0x8] sm:$0xf]
        %v6791 = vld [vmem:[%s6787 + $0xc] sm:$0xf]
        %v6792 = vld [vmem:[%s6787 + $0x10] sm:$0xf]
        %v6793 = vld [vmem:[%s6787 + $0x14] sm:$0xf]
        %v6794 = vld [vmem:[%s6787 + $0x18] sm:$0xf]
        %v6795 = vld [vmem:[%s6787 + $0x1c] sm:$0xf]
        %v6796 = vld [vmem:[%s6787 + $0x20] sm:$0xf]
        %v6797 = vld [vmem:[%s6787 + $0x24] sm:$0xf]
        %v6798 = vld [vmem:[%s6787 + $0x28] sm:$0xf]
        %v6799 = vld [vmem:[%s6787 + $0x2c] sm:$0xf]
        %v6800 = vld [vmem:[%s6787 + $0x30] sm:$0xf]
        %v6801 = vld [vmem:[%s6787 + $0x34] sm:$0xf]
        %v6802 = vld [vmem:[%s6787 + $0x38] sm:$0xf]
        %v6803 = vld [vmem:[%s6787 + $0x3c] sm:$0xf]
        %v6804 = vld [vmem:[%s6787 + $0x40] sm:$0xf]
        %v6805 = vld [vmem:[%s6787 + $0x44] sm:$0xf]
        %v6806 = vld [vmem:[%s6787 + $0x48] sm:$0xf]
        %v6807 = vld [vmem:[%s6787 + $0x4c] sm:$0xf]
        %v6828 = vunpack.c.l.b16 %v6788
        %v6829 = vunpack.c.l.b16 %v6789
        %v6830 = vunpack.c.l.b16 %v6790
        %v6831 = vunpack.c.l.b16 %v6791
        %v6832 = vunpack.c.l.b16 %v6792
        %v6833 = vunpack.c.l.b16 %v6793
        %v6834 = vunpack.c.l.b16 %v6794
        %v6835 = vunpack.c.l.b16 %v6795
        %v6836 = vunpack.c.l.b16 %v6796
        %v6837 = vunpack.c.l.b16 %v6797
        %v6838 = vunpack.c.l.b16 %v6798
        %v6839 = vunpack.c.l.b16 %v6799
        %v6840 = vunpack.c.l.b16 %v6800
        %v6841 = vunpack.c.l.b16 %v6801
        %v6842 = vunpack.c.l.b16 %v6802
        %v6843 = vunpack.c.l.b16 %v6803
        %v6844 = vunpack.c.l.b16 %v6804
        %v6845 = vunpack.c.l.b16 %v6805
        %v6846 = vunpack.c.l.b16 %v6806
        %v6847 = vunpack.c.l.b16 %v6807
        %v6848 = vpack.c.b16 %v6829, %v6828
        %v6849 = vpack.c.b16 %v6831, %v6830
        %v6850 = vpack.c.b16 %v6833, %v6832
        %v6851 = vpack.c.b16 %v6835, %v6834
        %v6852 = vpack.c.b16 %v6837, %v6836
        %v6853 = vpack.c.b16 %v6839, %v6838
        %v6854 = vpack.c.b16 %v6841, %v6840
        %v6855 = vpack.c.b16 %v6843, %v6842
        %v6856 = vpack.c.b16 %v6845, %v6844
        %v6857 = vpack.c.b16 %v6847, %v6846
        %v6869 = vsel %vm6476, %v6372, 0
        %v6872 = vsel %vm6476, %v6374, 0
        %6874 = vmatprep.subr.bf16.mxu0 0
        %6875 = vmatpush1.bf16.msra.mxu0 %v6855
        %6876 = vmatprep.subr.bf16.mxu0 0
        %6877 = vmatpush1.bf16.msra.mxu0 %v6854
        %6878 = vmatprep.subr.bf16.mxu0 0
        %6879 = vmatpush1.bf16.msra.mxu0 %v6853
        %6880 = vmatprep.subr.bf16.mxu0 0
        %6881 = vmatpush1.bf16.msra.mxu0 %v6852
        %6882 = vmatprep.subr.bf16.mxu0 0
        %6883 = vmatpush1.bf16.msra.mxu0 %v6851
        %6884 = vmatprep.subr.bf16.mxu0 0
        %6885 = vmatpush1.bf16.msra.mxu0 %v6850
        %6886 = vmatprep.subr.bf16.mxu0 0
        %6887 = vmatpush1.bf16.msra.mxu0 %v6849
        %6888 = vmatprep.subr.bf16.mxu0 0
        %6889 = vmatpush1.bf16.msra.mxu0 %v6848
        %6890 = vmatprep.subr.bf16.mxu0 0
        %6891 = vmatpush2.bf16.msra.mxu0 0
        %6892 = vmatprep.subr.bf16.mxu0 0
        %6893 = vmatpush2.bf16.msra.mxu0 0
        %6894 = vmatprep.subr.bf16.mxu0 0
        %6895 = vmatpush2.bf16.msra.mxu0 0
        %6896 = vmatprep.subr.bf16.mxu0 0
        %6897 = vmatpush2.bf16.msra.mxu0 0
        %6898 = vmatprep.subr.bf16.mxu0 0
        %6899 = vmatpush2.bf16.msra.mxu0 0
        %6900 = vmatprep.subr.bf16.mxu0 0
        %6901 = vmatpush2.bf16.msra.mxu0 0
        %6902 = vmatprep.subr.bf16.mxu0 0
        %6903 = vmatpush2.bf16.msra.mxu0 %v6857
        %6904 = vmatprep.subr.bf16.mxu0 0
        %6905 = vmatpush2.bf16.msra.mxu0 %v6856
        %6906 = vmatprep.mubr.bf16.mxu0 %v6869
        %6907 = vmatmul.mubr.bf16.gmra.mxu0 %v6371
        %v6908 = vpop.f32.mrf.mxu0
        %v6909 = vadd.f32 0.0, %v6908
        %v6910 = vpop.f32.mrf.mxu0
        %v6911 = vpop.f32.mrf.mxu0
        %v6912 = vadd.f32 0.0, %v6911
        %v6913 = vpop.f32.mrf.mxu0
        %6914 = vmatprep.mubr.bf16.mxu0 %v6872
        %6915 = vmatmul.mubr.bf16.gmra.mxu0 %v6373
        %v6916 = vpop.f32.mrf.mxu0
        %v6917 = vadd.f32 0.0, %v6916
        %v6918 = vpop.f32.mrf.mxu0
        %v6919 = vpop.f32.mrf.mxu0
        %v6920 = vadd.f32 0.0, %v6919
        %v6921 = vpop.f32.mrf.mxu0
        %6922 = vdwg.mxu0
        %v6923 = vadd.f32 %v6783, %v6909
        %v6924 = vadd.f32 %v6784, %v6912
        %v6925 = vadd.f32 %v6785, %v6917
        %v6926 = vadd.f32 %v6786, %v6920
        %v6927 = vld [vmem:[%s7] sm:$0x1]
        %v6929 = vlaneseq
        %v6930 = vshrl.u32 %v6929, 7
        %v6931 = vsub.s32 0, %v6930
        %v6932 = vrot.slane %v6927, %v6931
        %v6934 = vadd.f32 %v6923, %v6932
        %v6935 = vadd.f32 %v6924, %v6932
        %v6936 = vadd.f32 %v6925, %v6932
        %v6937 = vadd.f32 %v6926, %v6932
        %v6938 = vmax.f32 %v6934, 0.0
        %v6939 = vmax.f32 %v6935, 0.0
        %v6940 = vmax.f32 %v6936, 0.0
        %v6941 = vmax.f32 %v6937, 0.0
        %v6942 = vpack.c.bf16 %v6939, %v6938
        %v6943 = vpack.c.bf16 %v6941, %v6940
        %v6944 = vld [vmem:[%s4] sm:$0xf]
        %v6945 = vld [vmem:[%s4 + $0x4] sm:$0xf]
        %v6946 = vld [vmem:[%s4 + $0x8] sm:$0xf]
        %v6947 = vld [vmem:[%s4 + $0xc] sm:$0xf]
        %v6948 = vld [vmem:[%s4 + $0x10] sm:$0xf]
        %v6949 = vld [vmem:[%s4 + $0x14] sm:$0xf]
        %v6950 = vld [vmem:[%s4 + $0x18] sm:$0x1]
        %v6951 = vld [vmem:[%s8] sm:$0x1]
        %v6953 = vlaneseq
        %v6954 = vshrl.u32 %v6953, 7
        %v6955 = vsub.s32 0, %v6954
        %v6956 = vrot.slane %v6951, %v6955
        %v6965 = vunpack.c.l.b16 %v6944
        %v6966 = vunpack.c.l.b16 %v6945
        %v6967 = vunpack.c.l.b16 %v6946
        %v6968 = vunpack.c.l.b16 %v6947
        %v6969 = vunpack.c.l.b16 %v6948
        %v6970 = vunpack.c.l.b16 %v6949
        %v6971 = vunpack.c.l.b16 %v6950
        %v6972 = vpack.c.b16 %v6966, %v6965
        %v6973 = vpack.c.b16 %v6968, %v6967
        %v6974 = vpack.c.b16 %v6970, %v6969
        %v6975 = vpack.c.b16 %v6971, %v6971
        %vm6979 = vcmask 408576
        %v6981 = vsel %vm6979, %v6942, 0
        %v6984 = vsel %vm6979, %v6943, 0
        %vm6986 = vcmask 1040384
        %v6988 = vsel %vm6986, %v6975, 0
        %6990 = vmatprep.subr.bf16.mxu0 0
        %6991 = vmatpush1.bf16.msra.mxu0 0
        %6992 = vmatprep.subr.bf16.mxu0 0
        %6993 = vmatpush1.bf16.msra.mxu0 0
        %6994 = vmatprep.subr.bf16.mxu0 0
        %6995 = vmatpush1.bf16.msra.mxu0 0
        %6996 = vmatprep.subr.bf16.mxu0 0
        %6997 = vmatpush1.bf16.msra.mxu0 0
        %6998 = vmatprep.subr.bf16.mxu0 0
        %6999 = vmatpush1.bf16.msra.mxu0 %v6988
        %7000 = vmatprep.subr.bf16.mxu0 0
        %7001 = vmatpush1.bf16.msra.mxu0 %v6974
        %7002 = vmatprep.subr.bf16.mxu0 0
        %7003 = vmatpush1.bf16.msra.mxu0 %v6973
        %7004 = vmatprep.subr.bf16.mxu0 0
        %7005 = vmatpush1.bf16.msra.mxu0 %v6972
        %7006 = vmatprep.subr.bf16.mxu0 0
        %7007 = vmatpush2.bf16.msra.mxu0 0
        %7008 = vmatprep.subr.bf16.mxu0 0
        %7009 = vmatpush2.bf16.msra.mxu0 0
        %7010 = vmatprep.subr.bf16.mxu0 0
        %7011 = vmatpush2.bf16.msra.mxu0 0
        %7012 = vmatprep.subr.bf16.mxu0 0
        %7013 = vmatpush2.bf16.msra.mxu0 0
        %7014 = vmatprep.subr.bf16.mxu0 0
        %7015 = vmatpush2.bf16.msra.mxu0 0
        %7016 = vmatprep.subr.bf16.mxu0 0
        %7017 = vmatpush2.bf16.msra.mxu0 0
        %7018 = vmatprep.subr.bf16.mxu0 0
        %7019 = vmatpush2.bf16.msra.mxu0 0
        %7020 = vmatprep.subr.bf16.mxu0 0
        %7021 = vmatpush2.bf16.msra.mxu0 0
        %7022 = vmatprep.mubr.bf16.mxu0 0
        %7023 = vmatmul.mubr.bf16.gmra.mxu0 %v6981
        %v7024 = vpop.f32.mrf.mxu0
        %v7025 = vadd.f32 %v6956, %v7024
        %v7026 = vpop.f32.mrf.mxu0
        %v7027 = vpop.f32.mrf.mxu0
        %v7028 = vadd.f32 %v6956, %v7027
        %v7029 = vpop.f32.mrf.mxu0
        %7030 = vmatprep.mubr.bf16.mxu0 0
        %7031 = vmatmul.mubr.bf16.gmra.mxu0 %v6984
        %v7032 = vpop.f32.mrf.mxu0
        %v7033 = vadd.f32 %v6956, %v7032
        %v7034 = vpop.f32.mrf.mxu0
        %v7035 = vpop.f32.mrf.mxu0
        %v7036 = vadd.f32 %v6956, %v7035
        %v7037 = vpop.f32.mrf.mxu0
        %7038 = vdwg.mxu0
        %vm7039 = vcmask 80896
        %v7040 = vsel %vm7039, %v7025, -inf
        %7041 = vmax.xlane.f32.xlu0 %v7040
        %v7042 = vpop.xlane.xlu0 %7041
        %v7043 = vsel %vm7039, %v7028, -inf
        %7044 = vmax.xlane.f32.xlu0 %v7043
        %v7045 = vpop.xlane.xlu0 %7044
        %v7046 = vsel %vm7039, %v7033, -inf
        %7047 = vmax.xlane.f32.xlu0 %v7046
        %v7048 = vpop.xlane.xlu0 %7047
        %v7049 = vsel %vm7039, %v7036, -inf
        %7050 = vmax.xlane.f32.xlu0 %v7049
        %v7051 = vpop.xlane.xlu0 %7050
        %v7052 = vsub.f32 %v7025, %v7042
        %v7053 = vsub.f32 %v7028, %v7045
        %v7054 = vsub.f32 %v7033, %v7048
        %v7055 = vsub.f32 %v7036, %v7051
        %v7056 = vmul.f32 %v7052, 1.442695
        %v7057 = vpow.pop %v7056
        %v7058 = vmul.f32 %v7053, 1.442695
        %v7059 = vpow.pop %v7058
        %v7060 = vmul.f32 %v7054, 1.442695
        %v7061 = vpow.pop %v7060
        %v7062 = vmul.f32 %v7055, 1.442695
        %v7063 = vpow.pop %v7062
        %v7064 = vsel %vm7039, %v7057, 0.0
        %7065 = vadd.xlane.f32.xlu0 %v7064
        %v7066 = vpop.xlane.xlu0 %7065
        %v7067 = vsel %vm7039, %v7059, 0.0
        %7068 = vadd.xlane.f32.xlu0 %v7067
        %v7069 = vpop.xlane.xlu0 %7068
        %v7070 = vsel %vm7039, %v7061, 0.0
        %7071 = vadd.xlane.f32.xlu0 %v7070
        %v7072 = vpop.xlane.xlu0 %7071
        %v7073 = vsel %vm7039, %v7063, 0.0
        %7074 = vadd.xlane.f32.xlu0 %v7073
        %v7075 = vpop.xlane.xlu0 %7074
        %v7076 = vlog2.pop %v7066
        %v7077 = vmul.f32 %v7076, 0.6931472
        %v7078 = vlog2.pop %v7069
        %v7079 = vmul.f32 %v7078, 0.6931472
        %v7080 = vlog2.pop %v7072
        %v7081 = vmul.f32 %v7080, 0.6931472
        %v7082 = vlog2.pop %v7075
        %v7083 = vmul.f32 %v7082, 0.6931472
        %v7084 = vsub.f32 %v7052, %v7077
        %v7085 = vsub.f32 %v7053, %v7079
        %v7086 = vsub.f32 %v7054, %v7081
        %v7087 = vsub.f32 %v7055, %v7083
        %7088 = vst.msk [vmem:[%s821] sm:$0xff] %vm7039, %v7084
        %7089 = vst.msk [vmem:[%s821 + $0x8] sm:$0xff] %vm7039, %v7085
        %7090 = vst.msk [vmem:[%s821 + $0x10] sm:$0xff] %vm7039, %v7086
        %7091 = vst.msk [vmem:[%s821 + $0x18] sm:$0xff] %vm7039, %v7087
        %s7092 = smul.u32 4, %s20
        %p7093 = scmp.lt.s32.totalorder %s7092, 7
        %s7094 = scalar_select %p7093, %s7092, 7
        %s7095 = smul.addr %s7094, 8
        %s7096 = scalar_lea.vmem %s9, %s7095
        // Predicated region
        $region98: #{_lambda_.1} parent=92 // pred_check
          %p7097 = pneg %p232
        $region99: #{_lambda_.1} parent=92 // pred_check_branch
          %7099 = sbr.rel (%p7097) target = $region101
        $region100: #{_lambda_.1} parent=92 // pred_region
          %s7100 = smul.u32 4, %s20
        $region101: #{_lambda_.1} parent=92 // pred_fallthru
          _
      $region93: #{_lambda_.1} parent=5 // pred_fallthru
        _
      %p7101 = scmp.le.s32.totalorder 2, %s15
      // Predicated region
      $region102: #{_lambda_.1} parent=5 // pred_check
        %p7102 = pneg %p7101
      $region103: #{_lambda_.1} parent=5 // pred_check_branch
        %7104 = sbr.rel (%p7102) target = $region105
      $region104: #{_lambda_.1} parent=5 // pred_region
        %s7105 = ssub.s32 %s15, 2
        // Predicated region
        $region106: #{_lambda_.1} parent=104 // pred_check
          %p7106 = pneg %p238
        $region107: #{_lambda_.1} parent=104 // pred_check_branch
          %7108 = sbr.rel (%p7106) target = $region109
        $region108: #{_lambda_.1} parent=104 // pred_region
          %s7109 = smul.u32 4, %s21
          %p7110 = scmp.lt.s32.totalorder %s7109, 7
          %s7111 = scalar_select %p7110, %s7109, 7
          %s7112 = smul.addr %s7111, 8
          %s7113 = scalar_lea.vmem %s9, %s7112
        $region109: #{_lambda_.1} parent=104 // pred_fallthru
          _
      $region105: #{_lambda_.1} parent=5 // pred_fallthru
        _
    $region6: #{_lambda_.1} parent=1 // loop_footer
      %s19 = sadd.s32 1, %s15
    $region7: #{_lambda_.1} parent=1 // loop_footer_branch
      %14 = sbr.rel target = $region3
    $region8: #{_lambda_.1} parent=1 // loop_exit
      _

</llo_original>
